<compile_context>
chip_gen: v7x
topology: tpu7x:2x2x1
jax: 0.10.0
libtpu: 0.0.40
codegen_flags: <defaults>
</compile_context>

<pallas_src>
import jax
import jax.numpy as jnp
from jax.experimental import pallas as pl
from jax.experimental.pallas import tpu as pltpu

# ----------------------------- small config (consistent with the module) -----------
NUM_IMAGES       = 2
NUM_OBJS_PER_IMG = 8          # #boxes per image
NUM_RELS_PER_IMG = 8          # #object pairs per image
NUM_OBJ_CLS      = 9          # ROI_BOX_HEAD.NUM_CLASSES / len(obj_classes)
NUM_REL_CLS      = 11         # ROI_RELATION_HEAD.NUM_CLASSES / len(rel_classes)
NUM_DET_CAT      = 20         # #offline detection categories (== rows of obj_embed)
EMBED_DIM        = 32         # GloVe embed dim
HIDDEN           = 128        # uniter_hidden_size stand-in (768 in the real model)
FFN_DIM          = 256
POOLING_DIM      = 64         # CONTEXT_POOLING_DIM == roi / union feature dim
POS_DIM          = 8          # 7 normalized box features padded to 8

N_OBJ_TOTAL = NUM_IMAGES * NUM_OBJS_PER_IMG
N_REL_TOTAL = NUM_IMAGES * NUM_RELS_PER_IMG      # R (one sequence per relation pair)

# triplet sequence layout: [CLS, sub, MASK, obj, SEP, pad, pad, pad, 8 region tokens]
N_TXT_TOKENS = 5
TXT_SLOTS    = 8                                  # text part padded to 8 (sublane aligned)
SEQ_LEN      = TXT_SLOTS + NUM_OBJS_PER_IMG       # 16
RS           = N_REL_TOTAL * SEQ_LEN              # 256 flattened tokens
SUBJ_TOK_POS = 1
MASK_POS     = 2
OOBJ_TOK_POS = 3

CLS_ID  = NUM_DET_CAT
SEP_ID  = NUM_DET_CAT + 1
MASK_ID = NUM_DET_CAT + 2
VOCAB_SIZE = NUM_DET_CAT + 3

PAD_CLS   = 128   # obj/rel class dims padded to a full lane
FREQ_ROWS = 128   # freq-bias table rows (num_obj_cls**2 = 81, padded)
UNION_PAD = 128   # union features lane-padded (keeps in-kernel concat 128-aligned)
MIX_DIM   = 4 * HIDDEN + UNION_PAD

_WEIGHT_KEYS = (
    "w_img", "w_ipos", "b_iemb", "ln_txt", "ln_img",
    "w_qkv", "b_qkv", "w_ao", "b_ao", "ln1",
    "w_ff1", "b_ff1", "w_ff2", "b_ff2", "ln2",
    "w_relmix", "b_relmix", "w_objemb", "b_objemb",
    "w_o1", "b_o1", "w_o2", "b_o2",
    "w_r1", "b_r1", "w_r2", "b_r2",
    "freq_bias",
)


# =================================== Pallas kernel =================================

def _uniter_fused_kernel(
    # data (all f32, 2-D)
    txt_ref,      # (RS, H)          text token+pos+type embeddings (zeros elsewhere)
    imgf_ref,     # (RS, POOLING)    roi features at image slots (zeros elsewhere)
    imgp_ref,     # (RS, POS_DIM)    normalized box-position features
    imgt_ref,     # (RS, H)          image type embeddings (type 1/2/3)
    dso_ref,      # (2R, NUM_DET_CAT)  [det_subj_dists ; det_oobj_dists]
    gmat_ref,     # (5R, RS)         one-hot selection matrix for sequence gathers
    union_ref,    # (R, UNION_PAD)   union features (lane-padded)
    # weights
    w_img_ref, w_ipos_ref, b_iemb_ref, ln_txt_ref, ln_img_ref,
    w_qkv_ref, b_qkv_ref, w_ao_ref, b_ao_ref, ln1_ref,
    w_ff1_ref, b_ff1_ref, w_ff2_ref, b_ff2_ref, ln2_ref,
    w_relmix_ref, b_relmix_ref, w_objemb_ref, b_objemb_ref,
    w_o1_ref, b_o1_ref, w_o2_ref, b_o2_ref,
    w_r1_ref, b_r1_ref, w_r2_ref, b_r2_ref,
    freq_ref,
    # outputs (class dims padded to 128 lanes)
    so_out_ref,   # (2R, PAD_CLS)   [subj_dists ; oobj_dists]
    rel_out_ref,  # (R,  PAD_CLS)
):
    R = N_REL_TOTAL
    H = HIDDEN
    f32 = jnp.float32

    def mm(a, b):
        return jnp.dot(a, b, preferred_element_type=f32)

    def ln(x, ln_ref_):
        g = ln_ref_[0:1, :]
        b = ln_ref_[1:2, :]
        mu = jnp.mean(x, axis=-1, keepdims=True)
        xc = x - mu
        var = jnp.mean(xc * xc, axis=-1, keepdims=True)
        return xc * jax.lax.rsqrt(var + 1e-12) * g + b

    # ---------------- UNITER embedding layers (stand-in) ----------------
    # TODO(synk): pretrained UNITER weights / exact BERT embedder layout not reproduced.
    seq_mask = SEQ_LEN - 1
    rowpos = jax.lax.broadcasted_iota(jnp.int32, (RS, 1), 0) & seq_mask   # pos within seq
    is_img = rowpos >= TXT_SLOTS                                          # (RS, 1)

    txt_emb = ln(txt_ref[...], ln_txt_ref)
    img_lin = (mm(imgf_ref[...], w_img_ref[...])
               + mm(imgp_ref[...], w_ipos_ref[...])
               + b_iemb_ref[...] + imgt_ref[...])
    img_emb = ln(img_lin, ln_img_ref)
    x = jnp.where(is_img, img_emb, txt_emb)                               # (RS, H)

    # ---------------- transformer encoder (single layer, single head stand-in) -----
    # TODO(synk): real UNITER is a 12-layer / 12-head pretrained encoder.
    qkv = mm(x, w_qkv_ref[...]) + b_qkv_ref[...]                          # (RS, 3H)
    q = qkv[:, 0:H]
    k = qkv[:, H:2 * H]
    v = qkv[:, 2 * H:3 * H]

    scores = jnp.einsum('qd,kd->qk', q, k, preferred_element_type=f32) * (H ** -0.5)
    trip_hi = ~seq_mask                                                   # clear low bits
    q_hi = rowpos & trip_hi                                               # (RS, 1) is 0 here
    q_row = jax.lax.broadcasted_iota(jnp.int32, (RS, 1), 0)
    k_col = jax.lax.broadcasted_iota(jnp.int32, (1, RS), 1)
    same_trip = (q_row & trip_hi) == (k_col & trip_hi)                    # block-diag (RS,RS)
    kpos = k_col & seq_mask
    key_ok = jnp.logical_or(kpos < N_TXT_TOKENS, kpos >= TXT_SLOTS)       # (1, RS)
    scores = jnp.where(jnp.logical_and(same_trip, key_ok), scores, -1e9)
    del q_hi

    scores = scores - jnp.max(scores, axis=-1, keepdims=True)
    p = jnp.exp(scores)
    p = p * pl.reciprocal(jnp.sum(p, axis=-1, keepdims=True), approx=True)
    attn = mm(mm(p, v), w_ao_ref[...]) + b_ao_ref[...]
    x = ln(x + attn, ln1_ref)
    ffn = mm(jnp.maximum(mm(x, w_ff1_ref[...]) + b_ff1_ref[...], 0.0),
             w_ff2_ref[...]) + b_ff2_ref[...]
    seq = ln(x + ffn, ln2_ref)                                            # (RS, H)

    # ---------------- gather sequence outputs (one selection matmul) ----------------
    g = mm(gmat_ref[...], seq)                                            # (5R, H)
    subj_rep = g[0 * R:1 * R, :]
    oobj_rep = g[1 * R:2 * R, :]
    rel_rep  = g[2 * R:3 * R, :]
    subj_t   = g[3 * R:4 * R, :]
    oobj_t   = g[4 * R:5 * R, :]

    # rel_rep += subj_text_proj + oobj_text_proj + rel_subj_proj + rel_oobj_proj
    #            + union_proj(union_features)            (all 5 linears merged into one)
    mix = jnp.concatenate([subj_t, oobj_t, subj_rep, oobj_rep, union_ref[...]],
                          axis=-1)                                        # (R, MIX_DIM)
    rel_in = rel_rep + mm(mix, w_relmix_ref[...]) + b_relmix_ref[...]

    # subj/oobj reps += obj_embed_proj(det_dists @ obj_embed.weight)
    # (obj_embed @ obj_embed_proj composed at init -> single (DET, H) matmul)
    so_rep = (g[0:2 * R, :]
              + mm(dso_ref[...], w_objemb_ref[...])
              + b_objemb_ref[...])                                        # (2R, H)

    # out_oobj MLP (Linear -> ReLU -> Linear), applied to subj and oobj reps together
    h1 = jnp.maximum(mm(so_rep, w_o1_ref[...]) + b_o1_ref[...], 0.0)
    so_dists = mm(h1, w_o2_ref[...]) + b_o2_ref[...]                      # (2R, PAD_CLS)
    so_out_ref[...] = so_dists

    # out_rel MLP on rel_rep (+union, already merged above)   (use_vision=True)
    h2 = jnp.maximum(mm(rel_in, w_r1_ref[...]) + b_r1_ref[...], 0.0)
    rel_dists = mm(h2, w_r2_ref[...]) + b_r2_ref[...]                     # (R, PAD_CLS)

    # FrequencyBias (bias_module): argmax over obj classes 1..8 (first max), one-hot @ table
    # TODO(synk): training-time GT-label substitution of bias_module not implemented (eval).
    cols = jax.lax.broadcasted_iota(jnp.int32, (2 * R, PAD_CLS), 1)
    colsf = cols.astype(f32)
    valid = (cols >= 1) & (cols < NUM_OBJ_CLS)
    m = jnp.where(valid, so_dists, -1e30)
    mx = jnp.max(m, axis=-1, keepdims=True)
    idx = jnp.min(jnp.where(m >= mx, colsf, 1e9), axis=-1, keepdims=True)  # (2R, 1)
    fidx = idx[0:R] * float(NUM_OBJ_CLS) + idx[R:2 * R]                    # (R, 1)
    frow = jax.lax.broadcasted_iota(jnp.int32, (R, FREQ_ROWS), 1).astype(f32)
    onehot = (frow == fidx).astype(f32)                                    # (R, FREQ_ROWS)
    rel_out_ref[...] = rel_dists + mm(onehot, freq_ref[...])


def uniter_fused_call(txt_emb, img_feat, img_pos, img_type, det_so, gather_mat,
                      union_pad, params):
    data = (txt_emb, img_feat, img_pos, img_type, det_so, gather_mat, union_pad)
    weights = tuple(params[k] for k in _WEIGHT_KEYS)
    args = data + weights
    in_specs = [pl.BlockSpec(a.shape, lambda i, _nd=a.ndim: (0,) * _nd) for a in args]
    out_shape = (jax.ShapeDtypeStruct((2 * N_REL_TOTAL, PAD_CLS), jnp.float32),
                 jax.ShapeDtypeStruct((N_REL_TOTAL, PAD_CLS), jnp.float32))
    out_specs = (pl.BlockSpec((2 * N_REL_TOTAL, PAD_CLS), lambda i: (0, 0)),
                 pl.BlockSpec((N_REL_TOTAL, PAD_CLS), lambda i: (0, 0)))
    return pl.pallas_call(
        _uniter_fused_kernel,
        out_shape=out_shape,
        grid=(1,),                      # whole batch in one VMEM-resident block
        in_specs=in_specs,
        out_specs=out_specs,
        compiler_params=pltpu.CompilerParams(dimension_semantics=("arbitrary",)),
    )(*args)


# ============================= forward (glue + fused kernel) ========================

def uniter_predictor_forward(proposals, rel_pair_idxs, roi_features, union_features,
                             params):
    """JAX/Pallas port of UniterPredictor.forward (eval, online-OD path)."""
    # prepare_online_od_feat
    det_dists = [jax.nn.softmax(p["predict_logits"], axis=-1) for p in proposals]
    det_norm_pos = []
    for p in proposals:
        box = p["bbox"]
        im_w, im_h = p["size"]
        x0 = box[:, 0] / im_w
        y0 = box[:, 1] / im_h
        x1 = box[:, 2] / im_w
        y1 = box[:, 3] / im_h
        w = x1 - x0
        h = y1 - y0
        det_norm_pos.append(jnp.stack([x0, y0, x1, y1, w, h, w * h], axis=1))

    num_objs = [int(p["bbox"].shape[0]) for p in proposals]
    num_rels = [int(r.shape[0]) for r in rel_pair_idxs]

    tok_tab = params["token_table"]
    pos_tab = params["pos_table"]
    type_tab = params["type_table"]

    txt_l, imgf_l, imgp_l, imgt_l = [], [], [], []
    dsub_l, doob_l, spos_l, opos_l = [], [], [], []
    off = 0
    for img_i, pairs in enumerate(rel_pair_idxs):
        no = num_objs[img_i]
        npair = num_rels[img_i]
        rf = roi_features[off:off + no]
        dd = det_dists[img_i]
        npos = det_norm_pos[img_i]
        off += no

        # det_glove_tag = argmax(det_dist[:, 1:]) + 1  (1-token tags per region)
        # TODO(synk): variable-length GloVe tag token sequences not supported (fixed length 1).
        tags = (jnp.argmax(dd[:, 1:], axis=-1) + 1).astype(jnp.int32)
        sub_tag = tags[pairs[:, 0]]
        obj_tag = tags[pairs[:, 1]]
        ids = jnp.stack([jnp.full((npair,), CLS_ID, jnp.int32), sub_tag,
                         jnp.full((npair,), MASK_ID, jnp.int32), obj_tag,
                         jnp.full((npair,), SEP_ID, jnp.int32)], axis=1)      # (npair, 5)
        txt = tok_tab[ids] + pos_tab[None, :N_TXT_TOKENS, :] + type_tab[0][None, None, :]
        txt_l.append(jnp.pad(txt, ((0, 0), (0, SEQ_LEN - N_TXT_TOKENS), (0, 0))))

        imgf = jnp.broadcast_to(rf[None], (npair, no, POOLING_DIM))
        imgf_l.append(jnp.pad(imgf, ((0, 0), (TXT_SLOTS, 0), (0, 0))))
        ipos = jnp.pad(npos, ((0, 0), (0, POS_DIM - 7)))
        ipos = jnp.broadcast_to(ipos[None], (npair, no, POS_DIM))
        imgp_l.append(jnp.pad(ipos, ((0, 0), (TXT_SLOTS, 0), (0, 0))))

        box_ids = jnp.arange(no, dtype=jnp.int32)[None, :]
        tids = jnp.where(box_ids == pairs[:, 1:2], 3,
                         jnp.where(box_ids == pairs[:, 0:1], 2, 1))
        imgt_l.append(jnp.pad(type_tab[tids], ((0, 0), (TXT_SLOTS, 0), (0, 0))))

        dsub_l.append(dd[pairs[:, 0]])
        doob_l.append(dd[pairs[:, 1]])
        spos_l.append(TXT_SLOTS + pairs[:, 0])
        opos_l.append(TXT_SLOTS + pairs[:, 1])

    R = sum(num_rels)
    assert R == N_REL_TOTAL, "kernel is specialized to the configured batch size"

    txt_emb  = jnp.concatenate(txt_l, 0).reshape(R * SEQ_LEN, HIDDEN)
    img_feat = jnp.concatenate(imgf_l, 0).reshape(R * SEQ_LEN, POOLING_DIM)
    img_pos  = jnp.concatenate(imgp_l, 0).reshape(R * SEQ_LEN, POS_DIM)
    img_type = jnp.concatenate(imgt_l, 0).reshape(R * SEQ_LEN, HIDDEN)
    det_so   = jnp.concatenate([jnp.concatenate(dsub_l, 0),
                                jnp.concatenate(doob_l, 0)], axis=0)          # (2R, DET)
    subj_pos = jnp.concatenate(spos_l, 0).astype(jnp.int32)
    oobj_pos = jnp.concatenate(opos_l, 0).astype(jnp.int32)

    base = jnp.arange(R, dtype=jnp.int32) * SEQ_LEN
    flat_idx = jnp.concatenate([base + subj_pos, base + oobj_pos,
                                base + MASK_POS, base + SUBJ_TOK_POS,
                                base + OOBJ_TOK_POS], axis=0)                 # (5R,)
    gather_mat = jax.nn.one_hot(flat_idx, R * SEQ_LEN, dtype=jnp.float32)     # (5R, R*S)

    union_pad = jnp.pad(union_features, ((0, 0), (0, UNION_PAD - POOLING_DIM)))

    so_pad, rel_pad = uniter_fused_call(
        txt_emb, img_feat, img_pos, img_type, det_so, gather_mat,
        union_pad, params)

    subj_dists = so_pad[:R, :NUM_OBJ_CLS]
    oobj_dists = so_pad[R:2 * R, :NUM_OBJ_CLS]
    rel_all = rel_pad[:, :NUM_REL_CLS]
    rel_dists = []
    ro = 0
    for nr in num_rels:
        rel_dists.append(rel_all[ro:ro + nr])
        ro += nr
    add_losses = {}
    return subj_dists, oobj_dists, rel_dists, add_losses


# ================================== param init ======================================

def init_params(key):
    ks = iter(jax.random.split(key, 64))

    def nrm(shape, std=0.02):
        return (std * jax.random.normal(next(ks), shape)).astype(jnp.float32)

    def xav(shape):
        std = (2.0 / (shape[0] + shape[-1])) ** 0.5
        return (std * jax.random.normal(next(ks), shape)).astype(jnp.float32)

    def ln_pair():
        return jnp.concatenate([jnp.ones((1, HIDDEN), jnp.float32),
                                jnp.zeros((1, HIDDEN), jnp.float32)], axis=0)

    def zb(n):
        return jnp.zeros((1, n), jnp.float32)

    # class-dim outputs padded to 128 lanes (pad columns zero; wrapper slices them off)
    w_o2 = jnp.zeros((HIDDEN, PAD_CLS), jnp.float32).at[:, :NUM_OBJ_CLS].set(
        xav((HIDDEN, NUM_OBJ_CLS)))
    w_r2 = jnp.zeros((HIDDEN, PAD_CLS), jnp.float32).at[:, :NUM_REL_CLS].set(
        xav((HIDDEN, NUM_REL_CLS)))
    freq = jnp.zeros((FREQ_ROWS, PAD_CLS), jnp.float32).at[
        :NUM_OBJ_CLS * NUM_OBJ_CLS, :NUM_REL_CLS].set(
        nrm((NUM_OBJ_CLS * NUM_OBJ_CLS, NUM_REL_CLS), 0.1))

    # merged [subj_text_proj | oobj_text_proj | rel_subj_proj | rel_oobj_proj | union_proj]
    w_union_pad = jnp.zeros((UNION_PAD, HIDDEN), jnp.float32).at[:POOLING_DIM, :].set(
        xav((POOLING_DIM, HIDDEN)))
    w_relmix = jnp.concatenate(
        [xav((HIDDEN, HIDDEN)) for _ in range(4)] + [w_union_pad], axis=0)    # (MIX_DIM, H)

    # obj_embed (GloVe) composed with obj_embed_proj (no nonlinearity between them)
    obj_tab = nrm((NUM_DET_CAT, EMBED_DIM), 0.1)
    w_objproj = xav((EMBED_DIM, HIDDEN))
    w_objemb = (obj_tab @ w_objproj).astype(jnp.float32)                      # (DET, H)

    params = dict(
        # embedding tables (UNITER word/pos/type + GloVe detection-tag table stand-ins)
        token_table=nrm((VOCAB_SIZE, HIDDEN)),
        pos_table=nrm((TXT_SLOTS, HIDDEN)),
        type_table=nrm((4, HIDDEN)),
        # UNITER image embedder
        w_img=xav((POOLING_DIM, HIDDEN)),
        w_ipos=xav((POS_DIM, HIDDEN)),
        b_iemb=zb(HIDDEN),                         # b_img + b_ipos pre-combined on host
        ln_txt=ln_pair(), ln_img=ln_pair(),
        # single encoder layer (q/k/v merged)
        w_qkv=nrm((HIDDEN, 3 * HIDDEN)), b_qkv=zb(3 * HIDDEN),
        w_ao=nrm((HIDDEN, HIDDEN)), b_ao=zb(HIDDEN), ln1=ln_pair(),
        w_ff1=nrm((HIDDEN, FFN_DIM)), b_ff1=zb(FFN_DIM),
        w_ff2=nrm((FFN_DIM, HIDDEN)), b_ff2=zb(HIDDEN), ln2=ln_pair(),
        # merged relation-mix projection (5 linears in one matmul)
        w_relmix=w_relmix,
        b_relmix=zb(HIDDEN),                       # sum of the 5 biases (zero-init)
        # composed obj_embed @ obj_embed_proj
        w_objemb=w_objemb, b_objemb=zb(HIDDEN),
        # out_oobj / out_rel MLPs (final layers padded to 128 classes)
        w_o1=xav((HIDDEN, HIDDEN)), b_o1=zb(HIDDEN), w_o2=w_o2, b_o2=zb(PAD_CLS),
        w_r1=xav((HIDDEN, HIDDEN)), b_r1=zb(HIDDEN), w_r2=w_r2, b_r2=zb(PAD_CLS),
        # FrequencyBias embedding table (num_obj_cls**2 rows, padded)
        freq_bias=freq,
    )
    return params


# ===================================== main =========================================

if __name__ == "__main__":
    key = jax.random.PRNGKey(0)
    kp, kroi, kuni, kbox, klog, kpair = jax.random.split(key, 6)

    params = init_params(kp)

    roi_features = jax.random.normal(kroi, (N_OBJ_TOTAL, POOLING_DIM), jnp.float32)
    union_features = jax.random.normal(kuni, (N_REL_TOTAL, POOLING_DIM), jnp.float32)

    proposals = []
    rel_pair_idxs = []
    for i in range(NUM_IMAGES):
        kb = jax.random.fold_in(kbox, i)
        kl = jax.random.fold_in(klog, i)
        kr = jax.random.fold_in(kpair, i)
        xy = jax.random.uniform(kb, (NUM_OBJS_PER_IMG, 4), minval=0.0, maxval=200.0)
        boxes = jnp.stack([jnp.minimum(xy[:, 0], xy[:, 2]),
                           jnp.minimum(xy[:, 1], xy[:, 3]),
                           jnp.maximum(xy[:, 0], xy[:, 2]),
                           jnp.maximum(xy[:, 1], xy[:, 3])], axis=1)
        proposals.append(dict(
            bbox=boxes,
            size=(256.0, 256.0),
            predict_logits=jax.random.normal(kl, (NUM_OBJS_PER_IMG, NUM_DET_CAT),
                                             jnp.float32)))
        rel_pair_idxs.append(
            jax.random.randint(kr, (NUM_RELS_PER_IMG, 2), 0, NUM_OBJS_PER_IMG,
                               dtype=jnp.int32))

    subj_dists, oobj_dists, rel_dists, add_losses = uniter_predictor_forward(
        proposals, rel_pair_idxs, roi_features, union_features, params)

    jax.block_until_ready(subj_dists)
    jax.block_until_ready(oobj_dists)
    for t in rel_dists:
        jax.block_until_ready(t)

    assert subj_dists.shape == (N_REL_TOTAL, NUM_OBJ_CLS)
    assert oobj_dists.shape == (N_REL_TOTAL, NUM_OBJ_CLS)
    assert len(rel_dists) == NUM_IMAGES
    assert rel_dists[0].shape == (NUM_RELS_PER_IMG, NUM_REL_CLS)
    assert bool(jnp.all(jnp.isfinite(subj_dists)))
    assert bool(jnp.all(jnp.isfinite(oobj_dists)))
    assert all(bool(jnp.all(jnp.isfinite(t))) for t in rel_dists)
    assert add_losses == {}

    print("KERNEL_OK")
</pallas_src>

<mosaic_0001>
module attributes {stable_mosaic.version = 11 : i64} {
  func.func @_uniter_fused_kernel(%arg0: i32, %arg1: memref<256x128xf32, #tpu.memory_space<vmem>>, %arg2: memref<256x64xf32, #tpu.memory_space<vmem>>, %arg3: memref<256x8xf32, #tpu.memory_space<vmem>>, %arg4: memref<256x128xf32, #tpu.memory_space<vmem>>, %arg5: memref<32x20xf32, #tpu.memory_space<vmem>>, %arg6: memref<80x256xf32, #tpu.memory_space<vmem>>, %arg7: memref<16x128xf32, #tpu.memory_space<vmem>>, %arg8: memref<64x128xf32, #tpu.memory_space<vmem>>, %arg9: memref<8x128xf32, #tpu.memory_space<vmem>>, %arg10: memref<1x128xf32, #tpu.memory_space<vmem>>, %arg11: memref<2x128xf32, #tpu.memory_space<vmem>>, %arg12: memref<2x128xf32, #tpu.memory_space<vmem>>, %arg13: memref<128x384xf32, #tpu.memory_space<vmem>>, %arg14: memref<1x384xf32, #tpu.memory_space<vmem>>, %arg15: memref<128x128xf32, #tpu.memory_space<vmem>>, %arg16: memref<1x128xf32, #tpu.memory_space<vmem>>, %arg17: memref<2x128xf32, #tpu.memory_space<vmem>>, %arg18: memref<128x256xf32, #tpu.memory_space<vmem>>, %arg19: memref<1x256xf32, #tpu.memory_space<vmem>>, %arg20: memref<256x128xf32, #tpu.memory_space<vmem>>, %arg21: memref<1x128xf32, #tpu.memory_space<vmem>>, %arg22: memref<2x128xf32, #tpu.memory_space<vmem>>, %arg23: memref<640x128xf32, #tpu.memory_space<vmem>>, %arg24: memref<1x128xf32, #tpu.memory_space<vmem>>, %arg25: memref<20x128xf32, #tpu.memory_space<vmem>>, %arg26: memref<1x128xf32, #tpu.memory_space<vmem>>, %arg27: memref<128x128xf32, #tpu.memory_space<vmem>>, %arg28: memref<1x128xf32, #tpu.memory_space<vmem>>, %arg29: memref<128x128xf32, #tpu.memory_space<vmem>>, %arg30: memref<1x128xf32, #tpu.memory_space<vmem>>, %arg31: memref<128x128xf32, #tpu.memory_space<vmem>>, %arg32: memref<1x128xf32, #tpu.memory_space<vmem>>, %arg33: memref<128x128xf32, #tpu.memory_space<vmem>>, %arg34: memref<1x128xf32, #tpu.memory_space<vmem>>, %arg35: memref<128x128xf32, #tpu.memory_space<vmem>>, %arg36: memref<32x128xf32, #tpu.memory_space<vmem>>, %arg37: memref<16x128xf32, #tpu.memory_space<vmem>>) attributes {dimension_semantics = [#tpu.dimension_semantics<arbitrary>], iteration_bounds = array<i64: 1>, scalar_prefetch = 0 : i64, scratch_operands = 0 : i64, tpu.core_type = #tpu.core_type<tc>, window_params = [{pipeline_mode = #tpu.pipeline_mode<synchronous>, transform_indices = @transform_0, window_bounds = array<i64: 256, 128>}, {pipeline_mode = #tpu.pipeline_mode<synchronous>, transform_indices = @transform_1, window_bounds = array<i64: 256, 64>}, {pipeline_mode = #tpu.pipeline_mode<synchronous>, transform_indices = @transform_2, window_bounds = array<i64: 256, 8>}, {pipeline_mode = #tpu.pipeline_mode<synchronous>, transform_indices = @transform_3, window_bounds = array<i64: 256, 128>}, {pipeline_mode = #tpu.pipeline_mode<synchronous>, transform_indices = @transform_4, window_bounds = array<i64: 32, 20>}, {pipeline_mode = #tpu.pipeline_mode<synchronous>, transform_indices = @transform_5, window_bounds = array<i64: 80, 256>}, {pipeline_mode = #tpu.pipeline_mode<synchronous>, transform_indices = @transform_6, window_bounds = array<i64: 16, 128>}, {pipeline_mode = #tpu.pipeline_mode<synchronous>, transform_indices = @transform_7, window_bounds = array<i64: 64, 128>}, {pipeline_mode = #tpu.pipeline_mode<synchronous>, transform_indices = @transform_8, window_bounds = array<i64: 8, 128>}, {pipeline_mode = #tpu.pipeline_mode<synchronous>, transform_indices = @transform_9, window_bounds = array<i64: 1, 128>}, {pipeline_mode = #tpu.pipeline_mode<synchronous>, transform_indices = @transform_10, window_bounds = array<i64: 2, 128>}, {pipeline_mode = #tpu.pipeline_mode<synchronous>, transform_indices = @transform_11, window_bounds = array<i64: 2, 128>}, {pipeline_mode = #tpu.pipeline_mode<synchronous>, transform_indices = @transform_12, window_bounds = array<i64: 128, 384>}, {pipeline_mode = #tpu.pipeline_mode<synchronous>, transform_indices = @transform_13, window_bounds = array<i64: 1, 384>}, {pipeline_mode = #tpu.pipeline_mode<synchronous>, transform_indices = @transform_14, window_bounds = array<i64: 128, 128>}, {pipeline_mode = #tpu.pipeline_mode<synchronous>, transform_indices = @transform_15, window_bounds = array<i64: 1, 128>}, {pipeline_mode = #tpu.pipeline_mode<synchronous>, transform_indices = @transform_16, window_bounds = array<i64: 2, 128>}, {pipeline_mode = #tpu.pipeline_mode<synchronous>, transform_indices = @transform_17, window_bounds = array<i64: 128, 256>}, {pipeline_mode = #tpu.pipeline_mode<synchronous>, transform_indices = @transform_18, window_bounds = array<i64: 1, 256>}, {pipeline_mode = #tpu.pipeline_mode<synchronous>, transform_indices = @transform_19, window_bounds = array<i64: 256, 128>}, {pipeline_mode = #tpu.pipeline_mode<synchronous>, transform_indices = @transform_20, window_bounds = array<i64: 1, 128>}, {pipeline_mode = #tpu.pipeline_mode<synchronous>, transform_indices = @transform_21, window_bounds = array<i64: 2, 128>}, {pipeline_mode = #tpu.pipeline_mode<synchronous>, transform_indices = @transform_22, window_bounds = array<i64: 640, 128>}, {pipeline_mode = #tpu.pipeline_mode<synchronous>, transform_indices = @transform_23, window_bounds = array<i64: 1, 128>}, {pipeline_mode = #tpu.pipeline_mode<synchronous>, transform_indices = @transform_24, window_bounds = array<i64: 20, 128>}, {pipeline_mode = #tpu.pipeline_mode<synchronous>, transform_indices = @transform_25, window_bounds = array<i64: 1, 128>}, {pipeline_mode = #tpu.pipeline_mode<synchronous>, transform_indices = @transform_26, window_bounds = array<i64: 128, 128>}, {pipeline_mode = #tpu.pipeline_mode<synchronous>, transform_indices = @transform_27, window_bounds = array<i64: 1, 128>}, {pipeline_mode = #tpu.pipeline_mode<synchronous>, transform_indices = @transform_28, window_bounds = array<i64: 128, 128>}, {pipeline_mode = #tpu.pipeline_mode<synchronous>, transform_indices = @transform_29, window_bounds = array<i64: 1, 128>}, {pipeline_mode = #tpu.pipeline_mode<synchronous>, transform_indices = @transform_30, window_bounds = array<i64: 128, 128>}, {pipeline_mode = #tpu.pipeline_mode<synchronous>, transform_indices = @transform_31, window_bounds = array<i64: 1, 128>}, {pipeline_mode = #tpu.pipeline_mode<synchronous>, transform_indices = @transform_32, window_bounds = array<i64: 128, 128>}, {pipeline_mode = #tpu.pipeline_mode<synchronous>, transform_indices = @transform_33, window_bounds = array<i64: 1, 128>}, {pipeline_mode = #tpu.pipeline_mode<synchronous>, transform_indices = @transform_34, window_bounds = array<i64: 128, 128>}, {pipeline_mode = #tpu.pipeline_mode<synchronous>, transform_indices = @transform_35, window_bounds = array<i64: 32, 128>}, {pipeline_mode = #tpu.pipeline_mode<synchronous>, transform_indices = @transform_36, window_bounds = array<i64: 16, 128>}]} {
    %0 = tpu.iota {dimensions = array<i32: 0>} : vector<256x1xi32>
    %c15_i32 = arith.constant 15 : i32
    %1 = vector.broadcast %c15_i32 : i32 to vector<256x1xi32>
    %2 = arith.andi %0, %1 : vector<256x1xi32>
    %c8_i32 = arith.constant 8 : i32
    %3 = vector.broadcast %c8_i32 : i32 to vector<256x1xi32>
    %4 = arith.cmpi sge, %2, %3 : vector<256x1xi32>
    %c0 = arith.constant 0 : index
    %c0_0 = arith.constant 0 : index
    %5 = vector.load %arg1[%c0, %c0_0] : memref<256x128xf32, #tpu.memory_space<vmem>>, vector<256x128xf32>
    %c0_1 = arith.constant 0 : index
    %c0_2 = arith.constant 0 : index
    %6 = vector.load %arg11[%c0_1, %c0_2] : memref<2x128xf32, #tpu.memory_space<vmem>>, vector<1x128xf32>
    %c1 = arith.constant 1 : index
    %c0_3 = arith.constant 0 : index
    %7 = vector.load %arg11[%c1, %c0_3] : memref<2x128xf32, #tpu.memory_space<vmem>>, vector<1x128xf32>
    %cst = arith.constant dense<0.000000e+00> : vector<256xf32>
    %8 = vector.multi_reduction <add>, %5, %cst [1] : vector<256x128xf32> to vector<256xf32>
    %9 = vector.shape_cast %8 : vector<256xf32> to vector<256x1xf32>
    %cst_4 = arith.constant 1.280000e+02 : f32
    %10 = vector.broadcast %cst_4 : f32 to vector<256x1xf32>
    %11 = arith.divf %9, %10 : vector<256x1xf32>
    %12 = vector.broadcast %11 : vector<256x1xf32> to vector<256x128xf32>
    %13 = arith.subf %5, %12 : vector<256x128xf32>
    %14 = arith.mulf %13, %13 : vector<256x128xf32>
    %cst_5 = arith.constant dense<0.000000e+00> : vector<256xf32>
    %15 = vector.multi_reduction <add>, %14, %cst_5 [1] : vector<256x128xf32> to vector<256xf32>
    %16 = vector.shape_cast %15 : vector<256xf32> to vector<256x1xf32>
    %cst_6 = arith.constant 1.280000e+02 : f32
    %17 = vector.broadcast %cst_6 : f32 to vector<256x1xf32>
    %18 = arith.divf %16, %17 : vector<256x1xf32>
    %cst_7 = arith.constant 9.99999996E-13 : f32
    %19 = vector.broadcast %cst_7 : f32 to vector<256x1xf32>
    %20 = arith.addf %18, %19 : vector<256x1xf32>
    %21 = math.rsqrt %20 : vector<256x1xf32>
    %22 = vector.broadcast %21 : vector<256x1xf32> to vector<256x128xf32>
    %23 = arith.mulf %13, %22 : vector<256x128xf32>
    %24 = vector.broadcast %6 : vector<1x128xf32> to vector<256x128xf32>
    %25 = arith.mulf %23, %24 : vector<256x128xf32>
    %26 = vector.broadcast %7 : vector<1x128xf32> to vector<256x128xf32>
    %27 = arith.addf %25, %26 : vector<256x128xf32>
    %c0_8 = arith.constant 0 : index
    %c0_9 = arith.constant 0 : index
    %28 = vector.load %arg2[%c0_8, %c0_9] : memref<256x64xf32, #tpu.memory_space<vmem>>, vector<256x64xf32>
    %c0_10 = arith.constant 0 : index
    %c0_11 = arith.constant 0 : index
    %29 = vector.load %arg8[%c0_10, %c0_11] : memref<64x128xf32, #tpu.memory_space<vmem>>, vector<64x128xf32>
    %cst_12 = arith.constant dense<0.000000e+00> : vector<256x128xf32>
    %30 = tpu.matmul %28, %29, %cst_12 {dimension_numbers = #tpu.dot_dimension_numbers<[1], [0], [0], [1], [0, 0, 1, 1], [], []>} : vector<256x64xf32>, vector<64x128xf32>, vector<256x128xf32> -> vector<256x128xf32>
    %c0_13 = arith.constant 0 : index
    %c0_14 = arith.constant 0 : index
    %31 = vector.load %arg3[%c0_13, %c0_14] : memref<256x8xf32, #tpu.memory_space<vmem>>, vector<256x8xf32>
    %c0_15 = arith.constant 0 : index
    %c0_16 = arith.constant 0 : index
    %32 = vector.load %arg9[%c0_15, %c0_16] : memref<8x128xf32, #tpu.memory_space<vmem>>, vector<8x128xf32>
    %cst_17 = arith.constant dense<0.000000e+00> : vector<256x128xf32>
    %33 = tpu.matmul %31, %32, %cst_17 {dimension_numbers = #tpu.dot_dimension_numbers<[1], [0], [0], [1], [0, 0, 1, 1], [], []>} : vector<256x8xf32>, vector<8x128xf32>, vector<256x128xf32> -> vector<256x128xf32>
    %34 = arith.addf %30, %33 : vector<256x128xf32>
    %c0_18 = arith.constant 0 : index
    %c0_19 = arith.constant 0 : index
    %35 = vector.load %arg10[%c0_18, %c0_19] : memref<1x128xf32, #tpu.memory_space<vmem>>, vector<1x128xf32>
    %36 = vector.broadcast %35 : vector<1x128xf32> to vector<256x128xf32>
    %37 = arith.addf %34, %36 : vector<256x128xf32>
    %c0_20 = arith.constant 0 : index
    %c0_21 = arith.constant 0 : index
    %38 = vector.load %arg4[%c0_20, %c0_21] : memref<256x128xf32, #tpu.memory_space<vmem>>, vector<256x128xf32>
    %39 = arith.addf %37, %38 : vector<256x128xf32>
    %c0_22 = arith.constant 0 : index
    %c0_23 = arith.constant 0 : index
    %40 = vector.load %arg12[%c0_22, %c0_23] : memref<2x128xf32, #tpu.memory_space<vmem>>, vector<1x128xf32>
    %c1_24 = arith.constant 1 : index
    %c0_25 = arith.constant 0 : index
    %41 = vector.load %arg12[%c1_24, %c0_25] : memref<2x128xf32, #tpu.memory_space<vmem>>, vector<1x128xf32>
    %cst_26 = arith.constant dense<0.000000e+00> : vector<256xf32>
    %42 = vector.multi_reduction <add>, %39, %cst_26 [1] : vector<256x128xf32> to vector<256xf32>
    %43 = vector.shape_cast %42 : vector<256xf32> to vector<256x1xf32>
    %cst_27 = arith.constant 1.280000e+02 : f32
    %44 = vector.broadcast %cst_27 : f32 to vector<256x1xf32>
    %45 = arith.divf %43, %44 : vector<256x1xf32>
    %46 = vector.broadcast %45 : vector<256x1xf32> to vector<256x128xf32>
    %47 = arith.subf %39, %46 : vector<256x128xf32>
    %48 = arith.mulf %47, %47 : vector<256x128xf32>
    %cst_28 = arith.constant dense<0.000000e+00> : vector<256xf32>
    %49 = vector.multi_reduction <add>, %48, %cst_28 [1] : vector<256x128xf32> to vector<256xf32>
    %50 = vector.shape_cast %49 : vector<256xf32> to vector<256x1xf32>
    %cst_29 = arith.constant 1.280000e+02 : f32
    %51 = vector.broadcast %cst_29 : f32 to vector<256x1xf32>
    %52 = arith.divf %50, %51 : vector<256x1xf32>
    %cst_30 = arith.constant 9.99999996E-13 : f32
    %53 = vector.broadcast %cst_30 : f32 to vector<256x1xf32>
    %54 = arith.addf %52, %53 : vector<256x1xf32>
    %55 = math.rsqrt %54 : vector<256x1xf32>
    %56 = vector.broadcast %55 : vector<256x1xf32> to vector<256x128xf32>
    %57 = arith.mulf %47, %56 : vector<256x128xf32>
    %58 = vector.broadcast %40 : vector<1x128xf32> to vector<256x128xf32>
    %59 = arith.mulf %57, %58 : vector<256x128xf32>
    %60 = vector.broadcast %41 : vector<1x128xf32> to vector<256x128xf32>
    %61 = arith.addf %59, %60 : vector<256x128xf32>
    %62 = vector.shape_cast %4 : vector<256x1xi1> to vector<256x1xi1>
    %63 = vector.broadcast %62 : vector<256x1xi1> to vector<256x128xi1>
    %64 = arith.select %63, %61, %27 : vector<256x128xi1>, vector<256x128xf32>
    %c0_31 = arith.constant 0 : index
    %c0_32 = arith.constant 0 : index
    %65 = vector.load %arg13[%c0_31, %c0_32] : memref<128x384xf32, #tpu.memory_space<vmem>>, vector<128x384xf32>
    %cst_33 = arith.constant dense<0.000000e+00> : vector<256x384xf32>
    %66 = tpu.matmul %64, %65, %cst_33 {dimension_numbers = #tpu.dot_dimension_numbers<[1], [0], [0], [1], [0, 0, 1, 1], [], []>} : vector<256x128xf32>, vector<128x384xf32>, vector<256x384xf32> -> vector<256x384xf32>
    %c0_34 = arith.constant 0 : index
    %c0_35 = arith.constant 0 : index
    %67 = vector.load %arg14[%c0_34, %c0_35] : memref<1x384xf32, #tpu.memory_space<vmem>>, vector<1x384xf32>
    %68 = vector.broadcast %67 : vector<1x384xf32> to vector<256x384xf32>
    %69 = arith.addf %66, %68 : vector<256x384xf32>
    %70 = vector.extract_strided_slice %69 {offsets = [0, 0], sizes = [256, 128], strides = [1, 1]} : vector<256x384xf32> to vector<256x128xf32>
    %71 = vector.extract_strided_slice %69 {offsets = [0, 128], sizes = [256, 128], strides = [1, 1]} : vector<256x384xf32> to vector<256x128xf32>
    %72 = vector.extract_strided_slice %69 {offsets = [0, 256], sizes = [256, 128], strides = [1, 1]} : vector<256x384xf32> to vector<256x128xf32>
    "tpu.trace_start"() <{level = 10 : i32, message = "qd,kd->qk"}> : () -> ()
    %cst_36 = arith.constant dense<0.000000e+00> : vector<256x256xf32>
    %73 = tpu.matmul %70, %71, %cst_36 {dimension_numbers = #tpu.dot_dimension_numbers<[1], [1], [0], [0], [0, 0, 1, 0], [], []>} : vector<256x128xf32>, vector<256x128xf32>, vector<256x256xf32> -> vector<256x256xf32>
    "tpu.trace_stop"() : () -> ()
    %cst_37 = arith.constant 0.0883883461 : f32
    %74 = vector.broadcast %cst_37 : f32 to vector<256x256xf32>
    %75 = arith.mulf %73, %74 : vector<256x256xf32>
    %76 = tpu.iota {dimensions = array<i32: 0>} : vector<256x1xi32>
    %77 = tpu.iota {dimensions = array<i32: 1>} : vector<1x256xi32>
    %c-16_i32 = arith.constant -16 : i32
    %78 = vector.broadcast %c-16_i32 : i32 to vector<256x1xi32>
    %79 = arith.andi %76, %78 : vector<256x1xi32>
    %c-16_i32_38 = arith.constant -16 : i32
    %80 = vector.broadcast %c-16_i32_38 : i32 to vector<1x256xi32>
    %81 = arith.andi %77, %80 : vector<1x256xi32>
    %82 = vector.broadcast %79 : vector<256x1xi32> to vector<256x256xi32>
    %83 = vector.broadcast %81 : vector<1x256xi32> to vector<256x256xi32>
    %84 = arith.cmpi eq, %82, %83 : vector<256x256xi32>
    %c15_i32_39 = arith.constant 15 : i32
    %85 = vector.broadcast %c15_i32_39 : i32 to vector<1x256xi32>
    %86 = arith.andi %77, %85 : vector<1x256xi32>
    %c5_i32 = arith.constant 5 : i32
    %87 = vector.broadcast %c5_i32 : i32 to vector<1x256xi32>
    %88 = arith.cmpi slt, %86, %87 : vector<1x256xi32>
    %c8_i32_40 = arith.constant 8 : i32
    %89 = vector.broadcast %c8_i32_40 : i32 to vector<1x256xi32>
    %90 = arith.cmpi sge, %86, %89 : vector<1x256xi32>
    %91 = arith.ori %88, %90 : vector<1x256xi1>
    %92 = vector.broadcast %91 : vector<1x256xi1> to vector<256x256xi1>
    %93 = arith.andi %84, %92 : vector<256x256xi1>
    %cst_41 = arith.constant -1.000000e+09 : f32
    %94 = vector.broadcast %cst_41 : f32 to vector<256x256xf32>
    %95 = arith.select %93, %75, %94 : vector<256x256xi1>, vector<256x256xf32>
    %cst_42 = arith.constant dense<0xFF800000> : vector<256xf32>
    %96 = vector.multi_reduction <maximumf>, %95, %cst_42 [1] : vector<256x256xf32> to vector<256xf32>
    %97 = vector.shape_cast %96 : vector<256xf32> to vector<256x1xf32>
    %98 = vector.broadcast %97 : vector<256x1xf32> to vector<256x256xf32>
    %99 = arith.subf %95, %98 : vector<256x256xf32>
    %100 = math.exp %99 : vector<256x256xf32>
    %cst_43 = arith.constant dense<0.000000e+00> : vector<256xf32>
    %101 = vector.multi_reduction <add>, %100, %cst_43 [1] : vector<256x256xf32> to vector<256xf32>
    %102 = vector.shape_cast %101 : vector<256xf32> to vector<256x1xf32>
    %103 = tpu.reciprocal %102 {approx = true} : vector<256x1xf32> -> vector<256x1xf32>
    %104 = vector.broadcast %103 : vector<256x1xf32> to vector<256x256xf32>
    %105 = arith.mulf %100, %104 : vector<256x256xf32>
    %cst_44 = arith.constant dense<0.000000e+00> : vector<256x128xf32>
    %106 = tpu.matmul %105, %72, %cst_44 {dimension_numbers = #tpu.dot_dimension_numbers<[1], [0], [0], [1], [0, 0, 1, 1], [], []>} : vector<256x256xf32>, vector<256x128xf32>, vector<256x128xf32> -> vector<256x128xf32>
    %c0_45 = arith.constant 0 : index
    %c0_46 = arith.constant 0 : index
    %107 = vector.load %arg15[%c0_45, %c0_46] : memref<128x128xf32, #tpu.memory_space<vmem>>, vector<128x128xf32>
    %cst_47 = arith.constant dense<0.000000e+00> : vector<256x128xf32>
    %108 = tpu.matmul %106, %107, %cst_47 {dimension_numbers = #tpu.dot_dimension_numbers<[1], [0], [0], [1], [0, 0, 1, 1], [], []>} : vector<256x128xf32>, vector<128x128xf32>, vector<256x128xf32> -> vector<256x128xf32>
    %c0_48 = arith.constant 0 : index
    %c0_49 = arith.constant 0 : index
    %109 = vector.load %arg16[%c0_48, %c0_49] : memref<1x128xf32, #tpu.memory_space<vmem>>, vector<1x128xf32>
    %110 = vector.broadcast %109 : vector<1x128xf32> to vector<256x128xf32>
    %111 = arith.addf %108, %110 : vector<256x128xf32>
    %112 = arith.addf %64, %111 : vector<256x128xf32>
    %c0_50 = arith.constant 0 : index
    %c0_51 = arith.constant 0 : index
    %113 = vector.load %arg17[%c0_50, %c0_51] : memref<2x128xf32, #tpu.memory_space<vmem>>, vector<1x128xf32>
    %c1_52 = arith.constant 1 : index
    %c0_53 = arith.constant 0 : index
    %114 = vector.load %arg17[%c1_52, %c0_53] : memref<2x128xf32, #tpu.memory_space<vmem>>, vector<1x128xf32>
    %cst_54 = arith.constant dense<0.000000e+00> : vector<256xf32>
    %115 = vector.multi_reduction <add>, %112, %cst_54 [1] : vector<256x128xf32> to vector<256xf32>
    %116 = vector.shape_cast %115 : vector<256xf32> to vector<256x1xf32>
    %cst_55 = arith.constant 1.280000e+02 : f32
    %117 = vector.broadcast %cst_55 : f32 to vector<256x1xf32>
    %118 = arith.divf %116, %117 : vector<256x1xf32>
    %119 = vector.broadcast %118 : vector<256x1xf32> to vector<256x128xf32>
    %120 = arith.subf %112, %119 : vector<256x128xf32>
    %121 = arith.mulf %120, %120 : vector<256x128xf32>
    %cst_56 = arith.constant dense<0.000000e+00> : vector<256xf32>
    %122 = vector.multi_reduction <add>, %121, %cst_56 [1] : vector<256x128xf32> to vector<256xf32>
    %123 = vector.shape_cast %122 : vector<256xf32> to vector<256x1xf32>
    %cst_57 = arith.constant 1.280000e+02 : f32
    %124 = vector.broadcast %cst_57 : f32 to vector<256x1xf32>
    %125 = arith.divf %123, %124 : vector<256x1xf32>
    %cst_58 = arith.constant 9.99999996E-13 : f32
    %126 = vector.broadcast %cst_58 : f32 to vector<256x1xf32>
    %127 = arith.addf %125, %126 : vector<256x1xf32>
    %128 = math.rsqrt %127 : vector<256x1xf32>
    %129 = vector.broadcast %128 : vector<256x1xf32> to vector<256x128xf32>
    %130 = arith.mulf %120, %129 : vector<256x128xf32>
    %131 = vector.broadcast %113 : vector<1x128xf32> to vector<256x128xf32>
    %132 = arith.mulf %130, %131 : vector<256x128xf32>
    %133 = vector.broadcast %114 : vector<1x128xf32> to vector<256x128xf32>
    %134 = arith.addf %132, %133 : vector<256x128xf32>
    %c0_59 = arith.constant 0 : index
    %c0_60 = arith.constant 0 : index
    %135 = vector.load %arg18[%c0_59, %c0_60] : memref<128x256xf32, #tpu.memory_space<vmem>>, vector<128x256xf32>
    %cst_61 = arith.constant dense<0.000000e+00> : vector<256x256xf32>
    %136 = tpu.matmul %134, %135, %cst_61 {dimension_numbers = #tpu.dot_dimension_numbers<[1], [0], [0], [1], [0, 0, 1, 1], [], []>} : vector<256x128xf32>, vector<128x256xf32>, vector<256x256xf32> -> vector<256x256xf32>
    %c0_62 = arith.constant 0 : index
    %c0_63 = arith.constant 0 : index
    %137 = vector.load %arg19[%c0_62, %c0_63] : memref<1x256xf32, #tpu.memory_space<vmem>>, vector<1x256xf32>
    %138 = vector.broadcast %137 : vector<1x256xf32> to vector<256x256xf32>
    %139 = arith.addf %136, %138 : vector<256x256xf32>
    %cst_64 = arith.constant 0.000000e+00 : f32
    %140 = vector.broadcast %cst_64 : f32 to vector<256x256xf32>
    %141 = arith.maximumf %139, %140 : vector<256x256xf32>
    %c0_65 = arith.constant 0 : index
    %c0_66 = arith.constant 0 : index
    %142 = vector.load %arg20[%c0_65, %c0_66] : memref<256x128xf32, #tpu.memory_space<vmem>>, vector<256x128xf32>
    %cst_67 = arith.constant dense<0.000000e+00> : vector<256x128xf32>
    %143 = tpu.matmul %141, %142, %cst_67 {dimension_numbers = #tpu.dot_dimension_numbers<[1], [0], [0], [1], [0, 0, 1, 1], [], []>} : vector<256x256xf32>, vector<256x128xf32>, vector<256x128xf32> -> vector<256x128xf32>
    %c0_68 = arith.constant 0 : index
    %c0_69 = arith.constant 0 : index
    %144 = vector.load %arg21[%c0_68, %c0_69] : memref<1x128xf32, #tpu.memory_space<vmem>>, vector<1x128xf32>
    %145 = vector.broadcast %144 : vector<1x128xf32> to vector<256x128xf32>
    %146 = arith.addf %143, %145 : vector<256x128xf32>
    %147 = arith.addf %134, %146 : vector<256x128xf32>
    %c0_70 = arith.constant 0 : index
    %c0_71 = arith.constant 0 : index
    %148 = vector.load %arg22[%c0_70, %c0_71] : memref<2x128xf32, #tpu.memory_space<vmem>>, vector<1x128xf32>
    %c1_72 = arith.constant 1 : index
    %c0_73 = arith.constant 0 : index
    %149 = vector.load %arg22[%c1_72, %c0_73] : memref<2x128xf32, #tpu.memory_space<vmem>>, vector<1x128xf32>
    %cst_74 = arith.constant dense<0.000000e+00> : vector<256xf32>
    %150 = vector.multi_reduction <add>, %147, %cst_74 [1] : vector<256x128xf32> to vector<256xf32>
    %151 = vector.shape_cast %150 : vector<256xf32> to vector<256x1xf32>
    %cst_75 = arith.constant 1.280000e+02 : f32
    %152 = vector.broadcast %cst_75 : f32 to vector<256x1xf32>
    %153 = arith.divf %151, %152 : vector<256x1xf32>
    %154 = vector.broadcast %153 : vector<256x1xf32> to vector<256x128xf32>
    %155 = arith.subf %147, %154 : vector<256x128xf32>
    %156 = arith.mulf %155, %155 : vector<256x128xf32>
    %cst_76 = arith.constant dense<0.000000e+00> : vector<256xf32>
    %157 = vector.multi_reduction <add>, %156, %cst_76 [1] : vector<256x128xf32> to vector<256xf32>
    %158 = vector.shape_cast %157 : vector<256xf32> to vector<256x1xf32>
    %cst_77 = arith.constant 1.280000e+02 : f32
    %159 = vector.broadcast %cst_77 : f32 to vector<256x1xf32>
    %160 = arith.divf %158, %159 : vector<256x1xf32>
    %cst_78 = arith.constant 9.99999996E-13 : f32
    %161 = vector.broadcast %cst_78 : f32 to vector<256x1xf32>
    %162 = arith.addf %160, %161 : vector<256x1xf32>
    %163 = math.rsqrt %162 : vector<256x1xf32>
    %164 = vector.broadcast %163 : vector<256x1xf32> to vector<256x128xf32>
    %165 = arith.mulf %155, %164 : vector<256x128xf32>
    %166 = vector.broadcast %148 : vector<1x128xf32> to vector<256x128xf32>
    %167 = arith.mulf %165, %166 : vector<256x128xf32>
    %168 = vector.broadcast %149 : vector<1x128xf32> to vector<256x128xf32>
    %169 = arith.addf %167, %168 : vector<256x128xf32>
    %c0_79 = arith.constant 0 : index
    %c0_80 = arith.constant 0 : index
    %170 = vector.load %arg6[%c0_79, %c0_80] : memref<80x256xf32, #tpu.memory_space<vmem>>, vector<80x256xf32>
    %cst_81 = arith.constant dense<0.000000e+00> : vector<80x128xf32>
    %171 = tpu.matmul %170, %169, %cst_81 {dimension_numbers = #tpu.dot_dimension_numbers<[1], [0], [0], [1], [0, 0, 1, 1], [], []>} : vector<80x256xf32>, vector<256x128xf32>, vector<80x128xf32> -> vector<80x128xf32>
    %172 = vector.extract_strided_slice %171 {offsets = [0, 0], sizes = [16, 128], strides = [1, 1]} : vector<80x128xf32> to vector<16x128xf32>
    %173 = vector.extract_strided_slice %171 {offsets = [16, 0], sizes = [16, 128], strides = [1, 1]} : vector<80x128xf32> to vector<16x128xf32>
    %174 = vector.extract_strided_slice %171 {offsets = [32, 0], sizes = [16, 128], strides = [1, 1]} : vector<80x128xf32> to vector<16x128xf32>
    %175 = vector.extract_strided_slice %171 {offsets = [48, 0], sizes = [16, 128], strides = [1, 1]} : vector<80x128xf32> to vector<16x128xf32>
    %176 = vector.extract_strided_slice %171 {offsets = [64, 0], sizes = [16, 128], strides = [1, 1]} : vector<80x128xf32> to vector<16x128xf32>
    %c0_82 = arith.constant 0 : index
    %c0_83 = arith.constant 0 : index
    %177 = vector.load %arg7[%c0_82, %c0_83] : memref<16x128xf32, #tpu.memory_space<vmem>>, vector<16x128xf32>
    %178 = tpu.concatenate %175, %176, %172, %173, %177 in 1 : vector<16x128xf32>, vector<16x128xf32>, vector<16x128xf32>, vector<16x128xf32>, vector<16x128xf32> -> vector<16x640xf32>
    %c0_84 = arith.constant 0 : index
    %c0_85 = arith.constant 0 : index
    %179 = vector.load %arg23[%c0_84, %c0_85] : memref<640x128xf32, #tpu.memory_space<vmem>>, vector<640x128xf32>
    %cst_86 = arith.constant dense<0.000000e+00> : vector<16x128xf32>
    %180 = tpu.matmul %178, %179, %cst_86 {dimension_numbers = #tpu.dot_dimension_numbers<[1], [0], [0], [1], [0, 0, 1, 1], [], []>} : vector<16x640xf32>, vector<640x128xf32>, vector<16x128xf32> -> vector<16x128xf32>
    %181 = arith.addf %174, %180 : vector<16x128xf32>
    %c0_87 = arith.constant 0 : index
    %c0_88 = arith.constant 0 : index
    %182 = vector.load %arg24[%c0_87, %c0_88] : memref<1x128xf32, #tpu.memory_space<vmem>>, vector<1x128xf32>
    %183 = vector.broadcast %182 : vector<1x128xf32> to vector<16x128xf32>
    %184 = arith.addf %181, %183 : vector<16x128xf32>
    %185 = vector.extract_strided_slice %171 {offsets = [0, 0], sizes = [32, 128], strides = [1, 1]} : vector<80x128xf32> to vector<32x128xf32>
    %c0_89 = arith.constant 0 : index
    %c0_90 = arith.constant 0 : index
    %186 = vector.load %arg5[%c0_89, %c0_90] : memref<32x20xf32, #tpu.memory_space<vmem>>, vector<32x20xf32>
    %c0_91 = arith.constant 0 : index
    %c0_92 = arith.constant 0 : index
    %187 = vector.load %arg25[%c0_91, %c0_92] : memref<20x128xf32, #tpu.memory_space<vmem>>, vector<20x128xf32>
    %cst_93 = arith.constant dense<0.000000e+00> : vector<32x128xf32>
    %188 = tpu.matmul %186, %187, %cst_93 {dimension_numbers = #tpu.dot_dimension_numbers<[1], [0], [0], [1], [0, 0, 1, 1], [], []>} : vector<32x20xf32>, vector<20x128xf32>, vector<32x128xf32> -> vector<32x128xf32>
    %189 = arith.addf %185, %188 : vector<32x128xf32>
    %c0_94 = arith.constant 0 : index
    %c0_95 = arith.constant 0 : index
    %190 = vector.load %arg26[%c0_94, %c0_95] : memref<1x128xf32, #tpu.memory_space<vmem>>, vector<1x128xf32>
    %191 = vector.broadcast %190 : vector<1x128xf32> to vector<32x128xf32>
    %192 = arith.addf %189, %191 : vector<32x128xf32>
    %c0_96 = arith.constant 0 : index
    %c0_97 = arith.constant 0 : index
    %193 = vector.load %arg27[%c0_96, %c0_97] : memref<128x128xf32, #tpu.memory_space<vmem>>, vector<128x128xf32>
    %cst_98 = arith.constant dense<0.000000e+00> : vector<32x128xf32>
    %194 = tpu.matmul %192, %193, %cst_98 {dimension_numbers = #tpu.dot_dimension_numbers<[1], [0], [0], [1], [0, 0, 1, 1], [], []>} : vector<32x128xf32>, vector<128x128xf32>, vector<32x128xf32> -> vector<32x128xf32>
    %c0_99 = arith.constant 0 : index
    %c0_100 = arith.constant 0 : index
    %195 = vector.load %arg28[%c0_99, %c0_100] : memref<1x128xf32, #tpu.memory_space<vmem>>, vector<1x128xf32>
    %196 = vector.broadcast %195 : vector<1x128xf32> to vector<32x128xf32>
    %197 = arith.addf %194, %196 : vector<32x128xf32>
    %cst_101 = arith.constant 0.000000e+00 : f32
    %198 = vector.broadcast %cst_101 : f32 to vector<32x128xf32>
    %199 = arith.maximumf %197, %198 : vector<32x128xf32>
    %c0_102 = arith.constant 0 : index
    %c0_103 = arith.constant 0 : index
    %200 = vector.load %arg29[%c0_102, %c0_103] : memref<128x128xf32, #tpu.memory_space<vmem>>, vector<128x128xf32>
    %cst_104 = arith.constant dense<0.000000e+00> : vector<32x128xf32>
    %201 = tpu.matmul %199, %200, %cst_104 {dimension_numbers = #tpu.dot_dimension_numbers<[1], [0], [0], [1], [0, 0, 1, 1], [], []>} : vector<32x128xf32>, vector<128x128xf32>, vector<32x128xf32> -> vector<32x128xf32>
    %c0_105 = arith.constant 0 : index
    %c0_106 = arith.constant 0 : index
    %202 = vector.load %arg30[%c0_105, %c0_106] : memref<1x128xf32, #tpu.memory_space<vmem>>, vector<1x128xf32>
    %203 = vector.broadcast %202 : vector<1x128xf32> to vector<32x128xf32>
    %204 = arith.addf %201, %203 : vector<32x128xf32>
    %c0_107 = arith.constant 0 : index
    %c0_108 = arith.constant 0 : index
    %205 = vector.load %arg36[%c0_107, %c0_108] : memref<32x128xf32, #tpu.memory_space<vmem>>, vector<32x128xf32>
    tpu.vector_store %arg36[%c0_107, %c0_108], %204 {strides = array<i32>} : memref<32x128xf32, #tpu.memory_space<vmem>>, vector<32x128xf32>,
    %c0_109 = arith.constant 0 : index
    %c0_110 = arith.constant 0 : index
    %206 = vector.load %arg31[%c0_109, %c0_110] : memref<128x128xf32, #tpu.memory_space<vmem>>, vector<128x128xf32>
    %cst_111 = arith.constant dense<0.000000e+00> : vector<16x128xf32>
    %207 = tpu.matmul %184, %206, %cst_111 {dimension_numbers = #tpu.dot_dimension_numbers<[1], [0], [0], [1], [0, 0, 1, 1], [], []>} : vector<16x128xf32>, vector<128x128xf32>, vector<16x128xf32> -> vector<16x128xf32>
    %c0_112 = arith.constant 0 : index
    %c0_113 = arith.constant 0 : index
    %208 = vector.load %arg32[%c0_112, %c0_113] : memref<1x128xf32, #tpu.memory_space<vmem>>, vector<1x128xf32>
    %209 = vector.broadcast %208 : vector<1x128xf32> to vector<16x128xf32>
    %210 = arith.addf %207, %209 : vector<16x128xf32>
    %cst_114 = arith.constant 0.000000e+00 : f32
    %211 = vector.broadcast %cst_114 : f32 to vector<16x128xf32>
    %212 = arith.maximumf %210, %211 : vector<16x128xf32>
    %c0_115 = arith.constant 0 : index
    %c0_116 = arith.constant 0 : index
    %213 = vector.load %arg33[%c0_115, %c0_116] : memref<128x128xf32, #tpu.memory_space<vmem>>, vector<128x128xf32>
    %cst_117 = arith.constant dense<0.000000e+00> : vector<16x128xf32>
    %214 = tpu.matmul %212, %213, %cst_117 {dimension_numbers = #tpu.dot_dimension_numbers<[1], [0], [0], [1], [0, 0, 1, 1], [], []>} : vector<16x128xf32>, vector<128x128xf32>, vector<16x128xf32> -> vector<16x128xf32>
    %c0_118 = arith.constant 0 : index
    %c0_119 = arith.constant 0 : index
    %215 = vector.load %arg34[%c0_118, %c0_119] : memref<1x128xf32, #tpu.memory_space<vmem>>, vector<1x128xf32>
    %216 = vector.broadcast %215 : vector<1x128xf32> to vector<16x128xf32>
    %217 = arith.addf %214, %216 : vector<16x128xf32>
    %218 = tpu.iota {dimensions = array<i32: 1>} : vector<32x128xi32>
    %219 = arith.sitofp %218 : vector<32x128xi32> to vector<32x128xf32>
    %c1_i32 = arith.constant 1 : i32
    %220 = vector.broadcast %c1_i32 : i32 to vector<32x128xi32>
    %221 = arith.cmpi sge, %218, %220 : vector<32x128xi32>
    %c9_i32 = arith.constant 9 : i32
    %222 = vector.broadcast %c9_i32 : i32 to vector<32x128xi32>
    %223 = arith.cmpi slt, %218, %222 : vector<32x128xi32>
    %224 = arith.andi %221, %223 : vector<32x128xi1>
    %cst_120 = arith.constant -1.000000e+30 : f32
    %225 = vector.broadcast %cst_120 : f32 to vector<32x128xf32>
    %226 = arith.select %224, %204, %225 : vector<32x128xi1>, vector<32x128xf32>
    %cst_121 = arith.constant dense<0xFF800000> : vector<32xf32>
    %227 = vector.multi_reduction <maximumf>, %226, %cst_121 [1] : vector<32x128xf32> to vector<32xf32>
    %228 = vector.shape_cast %227 : vector<32xf32> to vector<32x1xf32>
    %229 = vector.broadcast %228 : vector<32x1xf32> to vector<32x128xf32>
    %230 = arith.cmpf oge, %226, %229 : vector<32x128xf32>
    %cst_122 = arith.constant 1.000000e+09 : f32
    %231 = vector.broadcast %cst_122 : f32 to vector<32x128xf32>
    %232 = arith.select %230, %219, %231 : vector<32x128xi1>, vector<32x128xf32>
    %cst_123 = arith.constant dense<0x7F800000> : vector<32xf32>
    %233 = vector.multi_reduction <minimumf>, %232, %cst_123 [1] : vector<32x128xf32> to vector<32xf32>
    %234 = vector.shape_cast %233 : vector<32xf32> to vector<32x1xf32>
    %235 = vector.extract_strided_slice %234 {offsets = [0, 0], sizes = [16, 1], strides = [1, 1]} : vector<32x1xf32> to vector<16x1xf32>
    %cst_124 = arith.constant 9.000000e+00 : f32
    %236 = vector.broadcast %cst_124 : f32 to vector<16x1xf32>
    %237 = arith.mulf %235, %236 : vector<16x1xf32>
    %238 = vector.extract_strided_slice %234 {offsets = [16, 0], sizes = [16, 1], strides = [1, 1]} : vector<32x1xf32> to vector<16x1xf32>
    %239 = arith.addf %237, %238 : vector<16x1xf32>
    %240 = tpu.iota {dimensions = array<i32: 1>} : vector<16x128xi32>
    %241 = arith.sitofp %240 : vector<16x128xi32> to vector<16x128xf32>
    %242 = vector.broadcast %239 : vector<16x1xf32> to vector<16x128xf32>
    %243 = arith.cmpf oeq, %241, %242 : vector<16x128xf32>
    %244 = arith.extui %243 : vector<16x128xi1> to vector<16x128xi32>
    %245 = arith.sitofp %244 : vector<16x128xi32> to vector<16x128xf32>
    %c0_125 = arith.constant 0 : index
    %c0_126 = arith.constant 0 : index
    %246 = vector.load %arg35[%c0_125, %c0_126] : memref<128x128xf32, #tpu.memory_space<vmem>>, vector<128x128xf32>
    %cst_127 = arith.constant dense<0.000000e+00> : vector<16x128xf32>
    %247 = tpu.matmul %245, %246, %cst_127 {dimension_numbers = #tpu.dot_dimension_numbers<[1], [0], [0], [1], [0, 0, 1, 1], [], []>} : vector<16x128xf32>, vector<128x128xf32>, vector<16x128xf32> -> vector<16x128xf32>
    %248 = arith.addf %217, %247 : vector<16x128xf32>
    %c0_128 = arith.constant 0 : index
    %c0_129 = arith.constant 0 : index
    %249 = vector.load %arg37[%c0_128, %c0_129] : memref<16x128xf32, #tpu.memory_space<vmem>>, vector<16x128xf32>
    tpu.vector_store %arg37[%c0_128, %c0_129], %248 {strides = array<i32>} : memref<16x128xf32, #tpu.memory_space<vmem>>, vector<16x128xf32>,
    return
  }
  func.func @transform_0(%arg0: i32) -> (i32, i32) {
    %c0_i32 = arith.constant 0 : i32
    %c0_i32_0 = arith.constant 0 : i32
    %c0_i32_1 = arith.constant 0 : i32
    return %c0_i32, %c0_i32_0 : i32, i32
  }
  func.func @transform_1(%arg0: i32) -> (i32, i32) {
    %c0_i32 = arith.constant 0 : i32
    %c0_i32_0 = arith.constant 0 : i32
    %c0_i32_1 = arith.constant 0 : i32
    return %c0_i32, %c0_i32_0 : i32, i32
  }
  func.func @transform_2(%arg0: i32) -> (i32, i32) {
    %c0_i32 = arith.constant 0 : i32
    %c0_i32_0 = arith.constant 0 : i32
    %c0_i32_1 = arith.constant 0 : i32
    return %c0_i32, %c0_i32_0 : i32, i32
  }
  func.func @transform_3(%arg0: i32) -> (i32, i32) {
    %c0_i32 = arith.constant 0 : i32
    %c0_i32_0 = arith.constant 0 : i32
    %c0_i32_1 = arith.constant 0 : i32
    return %c0_i32, %c0_i32_0 : i32, i32
  }
  func.func @transform_4(%arg0: i32) -> (i32, i32) {
    %c0_i32 = arith.constant 0 : i32
    %c0_i32_0 = arith.constant 0 : i32
    %c0_i32_1 = arith.constant 0 : i32
    return %c0_i32, %c0_i32_0 : i32, i32
  }
  func.func @transform_5(%arg0: i32) -> (i32, i32) {
    %c0_i32 = arith.constant 0 : i32
    %c0_i32_0 = arith.constant 0 : i32
    %c0_i32_1 = arith.constant 0 : i32
    return %c0_i32, %c0_i32_0 : i32, i32
  }
  func.func @transform_6(%arg0: i32) -> (i32, i32) {
    %c0_i32 = arith.constant 0 : i32
    %c0_i32_0 = arith.constant 0 : i32
    %c0_i32_1 = arith.constant 0 : i32
    return %c0_i32, %c0_i32_0 : i32, i32
  }
  func.func @transform_7(%arg0: i32) -> (i32, i32) {
    %c0_i32 = arith.constant 0 : i32
    %c0_i32_0 = arith.constant 0 : i32
    %c0_i32_1 = arith.constant 0 : i32
    return %c0_i32, %c0_i32_0 : i32, i32
  }
  func.func @transform_8(%arg0: i32) -> (i32, i32) {
    %c0_i32 = arith.constant 0 : i32
    %c0_i32_0 = arith.constant 0 : i32
    %c0_i32_1 = arith.constant 0 : i32
    return %c0_i32, %c0_i32_0 : i32, i32
  }
  func.func @transform_9(%arg0: i32) -> (i32, i32) {
    %c0_i32 = arith.constant 0 : i32
    %c0_i32_0 = arith.constant 0 : i32
    %c0_i32_1 = arith.constant 0 : i32
    return %c0_i32, %c0_i32_0 : i32, i32
  }
  func.func @transform_10(%arg0: i32) -> (i32, i32) {
    %c0_i32 = arith.constant 0 : i32
    %c0_i32_0 = arith.constant 0 : i32
    %c0_i32_1 = arith.constant 0 : i32
    return %c0_i32, %c0_i32_0 : i32, i32
  }
  func.func @transform_11(%arg0: i32) -> (i32, i32) {
    %c0_i32 = arith.constant 0 : i32
    %c0_i32_0 = arith.constant 0 : i32
    %c0_i32_1 = arith.constant 0 : i32
    return %c0_i32, %c0_i32_0 : i32, i32
  }
  func.func @transform_12(%arg0: i32) -> (i32, i32) {
    %c0_i32 = arith.constant 0 : i32
    %c0_i32_0 = arith.constant 0 : i32
    %c0_i32_1 = arith.constant 0 : i32
    return %c0_i32, %c0_i32_0 : i32, i32
  }
  func.func @transform_13(%arg0: i32) -> (i32, i32) {
    %c0_i32 = arith.constant 0 : i32
    %c0_i32_0 = arith.constant 0 : i32
    %c0_i32_1 = arith.constant 0 : i32
    return %c0_i32, %c0_i32_0 : i32, i32
  }
  func.func @transform_14(%arg0: i32) -> (i32, i32) {
    %c0_i32 = arith.constant 0 : i32
    %c0_i32_0 = arith.constant 0 : i32
    %c0_i32_1 = arith.constant 0 : i32
    return %c0_i32, %c0_i32_0 : i32, i32
  }
  func.func @transform_15(%arg0: i32) -> (i32, i32) {
    %c0_i32 = arith.constant 0 : i32
    %c0_i32_0 = arith.constant 0 : i32
    %c0_i32_1 = arith.constant 0 : i32
    return %c0_i32, %c0_i32_0 : i32, i32
  }
  func.func @transform_16(%arg0: i32) -> (i32, i32) {
    %c0_i32 = arith.constant 0 : i32
    %c0_i32_0 = arith.constant 0 : i32
    %c0_i32_1 = arith.constant 0 : i32
    return %c0_i32, %c0_i32_0 : i32, i32
  }
  func.func @transform_17(%arg0: i32) -> (i32, i32) {
    %c0_i32 = arith.constant 0 : i32
    %c0_i32_0 = arith.constant 0 : i32
    %c0_i32_1 = arith.constant 0 : i32
    return %c0_i32, %c0_i32_0 : i32, i32
  }
  func.func @transform_18(%arg0: i32) -> (i32, i32) {
    %c0_i32 = arith.constant 0 : i32
    %c0_i32_0 = arith.constant 0 : i32
    %c0_i32_1 = arith.constant 0 : i32
    return %c0_i32, %c0_i32_0 : i32, i32
  }
  func.func @transform_19(%arg0: i32) -> (i32, i32) {
    %c0_i32 = arith.constant 0 : i32
    %c0_i32_0 = arith.constant 0 : i32
    %c0_i32_1 = arith.constant 0 : i32
    return %c0_i32, %c0_i32_0 : i32, i32
  }
  func.func @transform_20(%arg0: i32) -> (i32, i32) {
    %c0_i32 = arith.constant 0 : i32
    %c0_i32_0 = arith.constant 0 : i32
    %c0_i32_1 = arith.constant 0 : i32
    return %c0_i32, %c0_i32_0 : i32, i32
  }
  func.func @transform_21(%arg0: i32) -> (i32, i32) {
    %c0_i32 = arith.constant 0 : i32
    %c0_i32_0 = arith.constant 0 : i32
    %c0_i32_1 = arith.constant 0 : i32
    return %c0_i32, %c0_i32_0 : i32, i32
  }
  func.func @transform_22(%arg0: i32) -> (i32, i32) {
    %c0_i32 = arith.constant 0 : i32
    %c0_i32_0 = arith.constant 0 : i32
    %c0_i32_1 = arith.constant 0 : i32
    return %c0_i32, %c0_i32_0 : i32, i32
  }
  func.func @transform_23(%arg0: i32) -> (i32, i32) {
    %c0_i32 = arith.constant 0 : i32
    %c0_i32_0 = arith.constant 0 : i32
    %c0_i32_1 = arith.constant 0 : i32
    return %c0_i32, %c0_i32_0 : i32, i32
  }
  func.func @transform_24(%arg0: i32) -> (i32, i32) {
    %c0_i32 = arith.constant 0 : i32
    %c0_i32_0 = arith.constant 0 : i32
    %c0_i32_1 = arith.constant 0 : i32
    return %c0_i32, %c0_i32_0 : i32, i32
  }
  func.func @transform_25(%arg0: i32) -> (i32, i32) {
    %c0_i32 = arith.constant 0 : i32
    %c0_i32_0 = arith.constant 0 : i32
    %c0_i32_1 = arith.constant 0 : i32
    return %c0_i32, %c0_i32_0 : i32, i32
  }
  func.func @transform_26(%arg0: i32) -> (i32, i32) {
    %c0_i32 = arith.constant 0 : i32
    %c0_i32_0 = arith.constant 0 : i32
    %c0_i32_1 = arith.constant 0 : i32
    return %c0_i32, %c0_i32_0 : i32, i32
  }
  func.func @transform_27(%arg0: i32) -> (i32, i32) {
    %c0_i32 = arith.constant 0 : i32
    %c0_i32_0 = arith.constant 0 : i32
    %c0_i32_1 = arith.constant 0 : i32
    return %c0_i32, %c0_i32_0 : i32, i32
  }
  func.func @transform_28(%arg0: i32) -> (i32, i32) {
    %c0_i32 = arith.constant 0 : i32
    %c0_i32_0 = arith.constant 0 : i32
    %c0_i32_1 = arith.constant 0 : i32
    return %c0_i32, %c0_i32_0 : i32, i32
  }
  func.func @transform_29(%arg0: i32) -> (i32, i32) {
    %c0_i32 = arith.constant 0 : i32
    %c0_i32_0 = arith.constant 0 : i32
    %c0_i32_1 = arith.constant 0 : i32
    return %c0_i32, %c0_i32_0 : i32, i32
  }
  func.func @transform_30(%arg0: i32) -> (i32, i32) {
    %c0_i32 = arith.constant 0 : i32
    %c0_i32_0 = arith.constant 0 : i32
    %c0_i32_1 = arith.constant 0 : i32
    return %c0_i32, %c0_i32_0 : i32, i32
  }
  func.func @transform_31(%arg0: i32) -> (i32, i32) {
    %c0_i32 = arith.constant 0 : i32
    %c0_i32_0 = arith.constant 0 : i32
    %c0_i32_1 = arith.constant 0 : i32
    return %c0_i32, %c0_i32_0 : i32, i32
  }
  func.func @transform_32(%arg0: i32) -> (i32, i32) {
    %c0_i32 = arith.constant 0 : i32
    %c0_i32_0 = arith.constant 0 : i32
    %c0_i32_1 = arith.constant 0 : i32
    return %c0_i32, %c0_i32_0 : i32, i32
  }
  func.func @transform_33(%arg0: i32) -> (i32, i32) {
    %c0_i32 = arith.constant 0 : i32
    %c0_i32_0 = arith.constant 0 : i32
    %c0_i32_1 = arith.constant 0 : i32
    return %c0_i32, %c0_i32_0 : i32, i32
  }
  func.func @transform_34(%arg0: i32) -> (i32, i32) {
    %c0_i32 = arith.constant 0 : i32
    %c0_i32_0 = arith.constant 0 : i32
    %c0_i32_1 = arith.constant 0 : i32
    return %c0_i32, %c0_i32_0 : i32, i32
  }
  func.func @transform_35(%arg0: i32) -> (i32, i32) {
    %c0_i32 = arith.constant 0 : i32
    %c0_i32_0 = arith.constant 0 : i32
    %c0_i32_1 = arith.constant 0 : i32
    return %c0_i32, %c0_i32_0 : i32, i32
  }
  func.func @transform_36(%arg0: i32) -> (i32, i32) {
    %c0_i32 = arith.constant 0 : i32
    %c0_i32_0 = arith.constant 0 : i32
    %c0_i32_1 = arith.constant 0 : i32
    return %c0_i32, %c0_i32_0 : i32, i32
  }
}

</mosaic_0001>

<llo_original>
// kernel: tpu_custom_call.1
$region0: #{tpu_custom_call.1}
  #allocation0 [shape = 'u32[]', space=smem, size = 0x4, offset = 0x4, fixed_abs, tag = 'smem constant byte address 0x4 - core index']
  #allocation1 [shape = 'u32[144,128]{1,0:T(1,128)}', space=vmem, size = 0x12000, scoped, tag = 'internal scratch']
  %s0 = inlined_call_operand.smem [shape: u32[37], index: -1, kind: input, shape index: {}]
  %s1 = sld [smem:[%s0]]
  %s2 = scalar_lea.smem %s0, 1
  %s3 = sld [smem:[%s2]]
  %s4 = scalar_lea.smem %s0, 2
  %s5 = sld [smem:[%s4]]
  %s6 = scalar_lea.smem %s0, 3
  %s7 = sld [smem:[%s6]]
  %s8 = scalar_lea.smem %s0, 4
  %s9 = sld [smem:[%s8]]
  %s10 = scalar_lea.smem %s0, 5
  %s11 = sld [smem:[%s10]]
  %s12 = scalar_lea.smem %s0, 6
  %s13 = sld [smem:[%s12]]
  %s14 = scalar_lea.smem %s0, 7
  %s15 = sld [smem:[%s14]]
  %s16 = scalar_lea.smem %s0, 8
  %s17 = sld [smem:[%s16]]
  %s18 = scalar_lea.smem %s0, 9
  %s19 = sld [smem:[%s18]]
  %s20 = scalar_lea.smem %s0, 10
  %s21 = sld [smem:[%s20]]
  %s22 = scalar_lea.smem %s0, 11
  %s23 = sld [smem:[%s22]]
  %s24 = scalar_lea.smem %s0, 12
  %s25 = sld [smem:[%s24]]
  %s26 = scalar_lea.smem %s0, 13
  %s27 = sld [smem:[%s26]]
  %s28 = scalar_lea.smem %s0, 14
  %s29 = sld [smem:[%s28]]
  %s30 = scalar_lea.smem %s0, 15
  %s31 = sld [smem:[%s30]]
  %s32 = scalar_lea.smem %s0, 16
  %s33 = sld [smem:[%s32]]
  %s34 = scalar_lea.smem %s0, 17
  %s35 = sld [smem:[%s34]]
  %s36 = scalar_lea.smem %s0, 18
  %s37 = sld [smem:[%s36]]
  %s38 = scalar_lea.smem %s0, 19
  %s39 = sld [smem:[%s38]]
  %s40 = scalar_lea.smem %s0, 20
  %s41 = sld [smem:[%s40]]
  %s42 = scalar_lea.smem %s0, 21
  %s43 = sld [smem:[%s42]]
  %s44 = scalar_lea.smem %s0, 22
  %s45 = sld [smem:[%s44]]
  %s46 = scalar_lea.smem %s0, 23
  %s47 = sld [smem:[%s46]]
  %s48 = scalar_lea.smem %s0, 24
  %s49 = sld [smem:[%s48]]
  %s50 = scalar_lea.smem %s0, 25
  %s51 = sld [smem:[%s50]]
  %s52 = scalar_lea.smem %s0, 26
  %s53 = sld [smem:[%s52]]
  %s54 = scalar_lea.smem %s0, 27
  %s55 = sld [smem:[%s54]]
  %s56 = scalar_lea.smem %s0, 28
  %s57 = sld [smem:[%s56]]
  %s58 = scalar_lea.smem %s0, 29
  %s59 = sld [smem:[%s58]]
  %s60 = scalar_lea.smem %s0, 30
  %s61 = sld [smem:[%s60]]
  %s62 = scalar_lea.smem %s0, 31
  %s63 = sld [smem:[%s62]]
  %s64 = scalar_lea.smem %s0, 32
  %s65 = sld [smem:[%s64]]
  %s66 = scalar_lea.smem %s0, 33
  %s67 = sld [smem:[%s66]]
  %s68 = scalar_lea.smem %s0, 34
  %s69 = sld [smem:[%s68]]
  %s70 = scalar_lea.smem %s0, 35
  %s71 = sld [smem:[%s70]]
  %s72 = scalar_lea.smem %s0, 36
  %s73 = sld [smem:[%s72]]
  %74 = xla_tuple %s71, %s73
  %s75 = sld [smem:[#allocation0]]
  $region250: #{tpu_custom_call.1} parent=0
    _
  %s77 = ssub.s32 1, %s75
  %s78 = scalar_select 0, %s77, %s75
  $region1: #{tpu_custom_call.1} parent=0
    #allocation2 [shape = 'u8[131072]{0}', space=vmem, size = 0x20000, scoped, tag = 'input window, operand 0, single buffered']
    #allocation3 [shape = 's32[1]{0}', space=sflag, size = 0x4, scoped, tag = 'scoped memory for tpu_custom_call.1']
    #allocation4 [shape = 's32[1]{0}', space=sflag, size = 0x4, scoped, tag = 'scoped memory for tpu_custom_call.1']
    #allocation5 [shape = 'u8[131072]{0}', space=vmem, size = 0x20000, scoped, tag = 'input window, operand 3, single buffered']
    #allocation6 [shape = 's32[1]{0}', space=sflag, size = 0x4, scoped, tag = 'scoped memory for tpu_custom_call.1']
    #allocation7 [shape = 'u8[81920]{0}', space=vmem, size = 0x14000, scoped, tag = 'input window, operand 5, single buffered']
    #allocation8 [shape = 'u8[8192]{0}', space=vmem, size = 0x2000, scoped, tag = 'input window, operand 6, single buffered']
    #allocation9 [shape = 's32[1]{0}', space=sflag, size = 0x4, scoped, tag = 'scoped memory for tpu_custom_call.1']
    #allocation10 [shape = 'u8[32768]{0}', space=vmem, size = 0x8000, scoped, tag = 'input window, operand 7, single buffered']
    #allocation11 [shape = 'u8[4096]{0}', space=vmem, size = 0x1000, scoped, tag = 'input window, operand 8, single buffered']
    #allocation12 [shape = 's32[1]{0}', space=sflag, size = 0x4, scoped, tag = 'scoped memory for tpu_custom_call.1']
    #allocation13 [shape = 'u8[512]{0}', space=vmem, size = 0x400, scoped, tag = 'input window, operand 9, single buffered']
    #allocation14 [shape = 'u8[1024]{0}', space=vmem, size = 0x400, scoped, tag = 'input window, operand 10, single buffered']
    #allocation15 [shape = 's32[1]{0}', space=sflag, size = 0x4, scoped, tag = 'scoped memory for tpu_custom_call.1']
    #allocation16 [shape = 'u8[1024]{0}', space=vmem, size = 0x400, scoped, tag = 'input window, operand 11, single buffered']
    #allocation17 [shape = 'u8[196608]{0}', space=vmem, size = 0x30000, scoped, tag = 'input window, operand 12, single buffered']
    #allocation18 [shape = 's32[1]{0}', space=sflag, size = 0x4, scoped, tag = 'scoped memory for tpu_custom_call.1']
    #allocation19 [shape = 'u8[512]{0}', space=vmem, size = 0x400, scoped, tag = 'input window, operand 15, single buffered']
    #allocation20 [shape = 'u8[1024]{0}', space=vmem, size = 0x400, scoped, tag = 'input window, operand 16, single buffered']
    #allocation21 [shape = 's32[1]{0}', space=sflag, size = 0x4, scoped, tag = 'scoped memory for tpu_custom_call.1']
    #allocation22 [shape = 'u8[131072]{0}', space=vmem, size = 0x20000, scoped, tag = 'input window, operand 17, single buffered']
    #allocation23 [shape = 'u8[1024]{0}', space=vmem, size = 0x400, scoped, tag = 'input window, operand 18, single buffered']
    #allocation24 [shape = 's32[1]{0}', space=sflag, size = 0x4, scoped, tag = 'scoped memory for tpu_custom_call.1']
    #allocation25 [shape = 'u8[131072]{0}', space=vmem, size = 0x20000, scoped, tag = 'input window, operand 19, single buffered']
    #allocation26 [shape = 'u8[512]{0}', space=vmem, size = 0x400, scoped, tag = 'input window, operand 20, single buffered']
    #allocation27 [shape = 's32[1]{0}', space=sflag, size = 0x4, scoped, tag = 'scoped memory for tpu_custom_call.1']
    #allocation28 [shape = 'u8[1024]{0}', space=vmem, size = 0x400, scoped, tag = 'input window, operand 21, single buffered']
    #allocation29 [shape = 'u8[512]{0}', space=vmem, size = 0x400, scoped, tag = 'input window, operand 23, single buffered']
    #allocation30 [shape = 's32[1]{0}', space=sflag, size = 0x4, scoped, tag = 'scoped memory for tpu_custom_call.1']
    #allocation31 [shape = 'u8[65536]{0}', space=vmem, size = 0x10000, scoped, tag = 'input window, operand 26, single buffered']
    #allocation32 [shape = 'u8[65536]{0}', space=vmem, size = 0x10000, scoped, tag = 'input window, operand 28, single buffered']
    #allocation33 [shape = 's32[1]{0}', space=sflag, size = 0x4, scoped, tag = 'scoped memory for tpu_custom_call.1']
    #allocation34 [shape = 'u8[65536]{0}', space=vmem, size = 0x10000, scoped, tag = 'input window, operand 30, single buffered']
    #allocation35 [shape = 'u8[65536]{0}', space=vmem, size = 0x10000, scoped, tag = 'input window, operand 32, single buffered']
    #allocation36 [shape = 's32[1]{0}', space=sflag, size = 0x4, scoped, tag = 'scoped memory for tpu_custom_call.1']
    #allocation37 [shape = 'u8[65536]{0}', space=vmem, size = 0x10000, scoped, tag = 'input window, operand 34, single buffered']
    #allocation38 [shape = 'u8[16384]{0}', space=vmem, size = 0x4000, scoped, tag = 'output window, operand 0, single buffered']
    #allocation39 [shape = 'u8[8192]{0}', space=vmem, size = 0x2000, scoped, tag = 'output window, operand 1, single buffered']
    #allocation40 [shape = 's32[1]{0}', space=sflag, size = 0x4, scoped, tag = 'scoped memory for tpu_custom_call.1']
    %79 = vsyncpa [#allocation3], 0
    %80 = vsyncpa [#allocation6], 0
    %81 = vsyncpa [#allocation9], 0
    %82 = vsyncpa [#allocation12], 0
    %83 = vsyncpa [#allocation15], 0
    %84 = vsyncpa [#allocation18], 0
    %85 = vsyncpa [#allocation21], 0
    %86 = vsyncpa [#allocation24], 0
    %87 = vsyncpa [#allocation27], 0
    %88 = vsyncpa [#allocation30], 0
    %89 = vsyncpa [#allocation33], 0
    %90 = vsyncpa [#allocation36], 0
    %91 = vsyncpa [#allocation4], 0
    %92 = vsyncpa [#allocation40], 0
    // Predicated region
    $region2: #{tpu_custom_call.1} parent=1 // pred_check
      _
    $region3: #{tpu_custom_call.1} parent=1 // pred_check_branch
      %94 = sbr.rel (0) target = $region5
    $region4: #{tpu_custom_call.1} parent=1 // pred_region
      %s96 = ssub.s32 4096, 4096
      %97 = vsyncadd [#allocation3], %s96
      %s98 = sshll.u32 [#allocation2], 4
      %s99 = int_to_ptr.vmem [resolvable:$true] %s98
      %104 = dma.hbm_to_vmem [thread:$0]  %s1, 4096, %s99, [#allocation3], 128, 128, 8
    $region5: #{tpu_custom_call.1} parent=1 // pred_fallthru
      _
    // Predicated region
    $region6: #{tpu_custom_call.1} parent=1 // pred_check
      _
    $region7: #{tpu_custom_call.1} parent=1 // pred_check_branch
      %106 = sbr.rel (0) target = $region9
    $region8: #{tpu_custom_call.1} parent=1 // pred_region
      _
    $region9: #{tpu_custom_call.1} parent=1 // pred_fallthru
      _
    // Predicated region
    $region10: #{tpu_custom_call.1} parent=1 // pred_check
      _
    $region11: #{tpu_custom_call.1} parent=1 // pred_check_branch
      %108 = sbr.rel (0) target = $region13
    $region12: #{tpu_custom_call.1} parent=1 // pred_region
      _
    $region13: #{tpu_custom_call.1} parent=1 // pred_fallthru
      _
    // Predicated region
    $region14: #{tpu_custom_call.1} parent=1 // pred_check
      _
    $region15: #{tpu_custom_call.1} parent=1 // pred_check_branch
      %110 = sbr.rel (0) target = $region17
    $region16: #{tpu_custom_call.1} parent=1 // pred_region
      %s112 = ssub.s32 4096, 4096
      %113 = vsyncadd [#allocation6], %s112
      %s114 = sshll.u32 [#allocation5], 4
      %s115 = int_to_ptr.vmem [resolvable:$true] %s114
      %120 = dma.hbm_to_vmem [thread:$0]  %s7, 4096, %s115, [#allocation6], 128, 128, 8
    $region17: #{tpu_custom_call.1} parent=1 // pred_fallthru
      _
    // Predicated region
    $region18: #{tpu_custom_call.1} parent=1 // pred_check
      _
    $region19: #{tpu_custom_call.1} parent=1 // pred_check_branch
      %122 = sbr.rel (0) target = $region21
    $region20: #{tpu_custom_call.1} parent=1 // pred_region
      _
    $region21: #{tpu_custom_call.1} parent=1 // pred_fallthru
      _
    // Predicated region
    $region22: #{tpu_custom_call.1} parent=1 // pred_check
      _
    $region23: #{tpu_custom_call.1} parent=1 // pred_check_branch
      %124 = sbr.rel (0) target = $region25
    $region24: #{tpu_custom_call.1} parent=1 // pred_region
      %s126 = ssub.s32 2560, 2560
      %127 = vsyncadd [#allocation6], %s126
      %s128 = sshll.u32 [#allocation7], 4
      %s129 = int_to_ptr.vmem [resolvable:$true] %s128
      %134 = dma.hbm_to_vmem [thread:$0]  %s11, 2560, %s129, [#allocation6], 256, 256, 16
    $region25: #{tpu_custom_call.1} parent=1 // pred_fallthru
      _
    // Predicated region
    $region26: #{tpu_custom_call.1} parent=1 // pred_check
      _
    $region27: #{tpu_custom_call.1} parent=1 // pred_check_branch
      %136 = sbr.rel (0) target = $region29
    $region28: #{tpu_custom_call.1} parent=1 // pred_region
      %s138 = ssub.s32 256, 256
      %139 = vsyncadd [#allocation9], %s138
      %s140 = sshll.u32 [#allocation8], 4
      %s141 = int_to_ptr.vmem [resolvable:$true] %s140
      %146 = dma.hbm_to_vmem [thread:$0]  %s13, 256, %s141, [#allocation9], 128, 128, 8
    $region29: #{tpu_custom_call.1} parent=1 // pred_fallthru
      _
    // Predicated region
    $region30: #{tpu_custom_call.1} parent=1 // pred_check
      _
    $region31: #{tpu_custom_call.1} parent=1 // pred_check_branch
      %148 = sbr.rel (0) target = $region33
    $region32: #{tpu_custom_call.1} parent=1 // pred_region
      %s150 = ssub.s32 1024, 1024
      %151 = vsyncadd [#allocation9], %s150
      %s152 = sshll.u32 [#allocation10], 4
      %s153 = int_to_ptr.vmem [resolvable:$true] %s152
      %158 = dma.hbm_to_vmem [thread:$0]  %s15, 1024, %s153, [#allocation9], 128, 128, 8
    $region33: #{tpu_custom_call.1} parent=1 // pred_fallthru
      _
    // Predicated region
    $region34: #{tpu_custom_call.1} parent=1 // pred_check
      _
    $region35: #{tpu_custom_call.1} parent=1 // pred_check_branch
      %160 = sbr.rel (0) target = $region37
    $region36: #{tpu_custom_call.1} parent=1 // pred_region
      %s162 = ssub.s32 128, 128
      %163 = vsyncadd [#allocation12], %s162
      %s165 = sshll.u32 [#allocation11], 4
      %s166 = int_to_ptr.vmem [resolvable:$true] %s165
      %168 = dma.hbm_to_vmem [thread:$0]  %s17, 128, %s166, [#allocation12]
    $region37: #{tpu_custom_call.1} parent=1 // pred_fallthru
      _
    // Predicated region
    $region38: #{tpu_custom_call.1} parent=1 // pred_check
      _
    $region39: #{tpu_custom_call.1} parent=1 // pred_check_branch
      %170 = sbr.rel (0) target = $region41
    $region40: #{tpu_custom_call.1} parent=1 // pred_region
      %s172 = ssub.s32 16, 16
      %173 = vsyncadd [#allocation12], %s172
      %s175 = sshll.u32 [#allocation13], 4
      %s176 = int_to_ptr.vmem [resolvable:$true] %s175
      %178 = dma.hbm_to_vmem [thread:$0]  %s19, 16, %s176, [#allocation12]
    $region41: #{tpu_custom_call.1} parent=1 // pred_fallthru
      _
    // Predicated region
    $region42: #{tpu_custom_call.1} parent=1 // pred_check
      _
    $region43: #{tpu_custom_call.1} parent=1 // pred_check_branch
      %180 = sbr.rel (0) target = $region45
    $region44: #{tpu_custom_call.1} parent=1 // pred_region
      %s182 = ssub.s32 32, 32
      %183 = vsyncadd [#allocation15], %s182
      %s185 = sshll.u32 [#allocation14], 4
      %s186 = int_to_ptr.vmem [resolvable:$true] %s185
      %188 = dma.hbm_to_vmem [thread:$0]  %s21, 32, %s186, [#allocation15]
    $region45: #{tpu_custom_call.1} parent=1 // pred_fallthru
      _
    // Predicated region
    $region46: #{tpu_custom_call.1} parent=1 // pred_check
      _
    $region47: #{tpu_custom_call.1} parent=1 // pred_check_branch
      %190 = sbr.rel (0) target = $region49
    $region48: #{tpu_custom_call.1} parent=1 // pred_region
      %s192 = ssub.s32 32, 32
      %193 = vsyncadd [#allocation15], %s192
      %s195 = sshll.u32 [#allocation16], 4
      %s196 = int_to_ptr.vmem [resolvable:$true] %s195
      %198 = dma.hbm_to_vmem [thread:$0]  %s23, 32, %s196, [#allocation15]
    $region49: #{tpu_custom_call.1} parent=1 // pred_fallthru
      _
    // Predicated region
    $region50: #{tpu_custom_call.1} parent=1 // pred_check
      _
    $region51: #{tpu_custom_call.1} parent=1 // pred_check_branch
      %200 = sbr.rel (0) target = $region53
    $region52: #{tpu_custom_call.1} parent=1 // pred_region
      %s202 = ssub.s32 6144, 6144
      %203 = vsyncadd [#allocation18], %s202
      %s204 = sshll.u32 [#allocation17], 4
      %s205 = int_to_ptr.vmem [resolvable:$true] %s204
      %210 = dma.hbm_to_vmem [thread:$0]  %s25, 6144, %s205, [#allocation18], 384, 384, 24
    $region53: #{tpu_custom_call.1} parent=1 // pred_fallthru
      _
    // Predicated region
    $region54: #{tpu_custom_call.1} parent=1 // pred_check
      _
    $region55: #{tpu_custom_call.1} parent=1 // pred_check_branch
      %212 = sbr.rel (0) target = $region57
    $region56: #{tpu_custom_call.1} parent=1 // pred_region
      _
    $region57: #{tpu_custom_call.1} parent=1 // pred_fallthru
      _
    // Predicated region
    $region58: #{tpu_custom_call.1} parent=1 // pred_check
      _
    $region59: #{tpu_custom_call.1} parent=1 // pred_check_branch
      %214 = sbr.rel (0) target = $region61
    $region60: #{tpu_custom_call.1} parent=1 // pred_region
      _
    $region61: #{tpu_custom_call.1} parent=1 // pred_fallthru
      _
    // Predicated region
    $region62: #{tpu_custom_call.1} parent=1 // pred_check
      _
    $region63: #{tpu_custom_call.1} parent=1 // pred_check_branch
      %216 = sbr.rel (0) target = $region65
    $region64: #{tpu_custom_call.1} parent=1 // pred_region
      %s218 = ssub.s32 16, 16
      %219 = vsyncadd [#allocation18], %s218
      %s221 = sshll.u32 [#allocation19], 4
      %s222 = int_to_ptr.vmem [resolvable:$true] %s221
      %224 = dma.hbm_to_vmem [thread:$0]  %s31, 16, %s222, [#allocation18]
    $region65: #{tpu_custom_call.1} parent=1 // pred_fallthru
      _
    // Predicated region
    $region66: #{tpu_custom_call.1} parent=1 // pred_check
      _
    $region67: #{tpu_custom_call.1} parent=1 // pred_check_branch
      %226 = sbr.rel (0) target = $region69
    $region68: #{tpu_custom_call.1} parent=1 // pred_region
      %s228 = ssub.s32 32, 32
      %229 = vsyncadd [#allocation21], %s228
      %s231 = sshll.u32 [#allocation20], 4
      %s232 = int_to_ptr.vmem [resolvable:$true] %s231
      %234 = dma.hbm_to_vmem [thread:$0]  %s33, 32, %s232, [#allocation21]
    $region69: #{tpu_custom_call.1} parent=1 // pred_fallthru
      _
    // Predicated region
    $region70: #{tpu_custom_call.1} parent=1 // pred_check
      _
    $region71: #{tpu_custom_call.1} parent=1 // pred_check_branch
      %236 = sbr.rel (0) target = $region73
    $region72: #{tpu_custom_call.1} parent=1 // pred_region
      %s238 = ssub.s32 4096, 4096
      %239 = vsyncadd [#allocation21], %s238
      %s240 = sshll.u32 [#allocation22], 4
      %s241 = int_to_ptr.vmem [resolvable:$true] %s240
      %246 = dma.hbm_to_vmem [thread:$0]  %s35, 4096, %s241, [#allocation21], 256, 256, 16
    $region73: #{tpu_custom_call.1} parent=1 // pred_fallthru
      _
    // Predicated region
    $region74: #{tpu_custom_call.1} parent=1 // pred_check
      _
    $region75: #{tpu_custom_call.1} parent=1 // pred_check_branch
      %248 = sbr.rel (0) target = $region77
    $region76: #{tpu_custom_call.1} parent=1 // pred_region
      %s250 = ssub.s32 32, 32
      %251 = vsyncadd [#allocation24], %s250
      %s253 = sshll.u32 [#allocation23], 4
      %s254 = int_to_ptr.vmem [resolvable:$true] %s253
      %256 = dma.hbm_to_vmem [thread:$0]  %s37, 32, %s254, [#allocation24]
    $region77: #{tpu_custom_call.1} parent=1 // pred_fallthru
      _
    // Predicated region
    $region78: #{tpu_custom_call.1} parent=1 // pred_check
      _
    $region79: #{tpu_custom_call.1} parent=1 // pred_check_branch
      %258 = sbr.rel (0) target = $region81
    $region80: #{tpu_custom_call.1} parent=1 // pred_region
      %s260 = ssub.s32 4096, 4096
      %261 = vsyncadd [#allocation24], %s260
      %s262 = sshll.u32 [#allocation25], 4
      %s263 = int_to_ptr.vmem [resolvable:$true] %s262
      %268 = dma.hbm_to_vmem [thread:$0]  %s39, 4096, %s263, [#allocation24], 128, 128, 8
    $region81: #{tpu_custom_call.1} parent=1 // pred_fallthru
      _
    // Predicated region
    $region82: #{tpu_custom_call.1} parent=1 // pred_check
      _
    $region83: #{tpu_custom_call.1} parent=1 // pred_check_branch
      %270 = sbr.rel (0) target = $region85
    $region84: #{tpu_custom_call.1} parent=1 // pred_region
      %s272 = ssub.s32 16, 16
      %273 = vsyncadd [#allocation27], %s272
      %s275 = sshll.u32 [#allocation26], 4
      %s276 = int_to_ptr.vmem [resolvable:$true] %s275
      %278 = dma.hbm_to_vmem [thread:$0]  %s41, 16, %s276, [#allocation27]
    $region85: #{tpu_custom_call.1} parent=1 // pred_fallthru
      _
    // Predicated region
    $region86: #{tpu_custom_call.1} parent=1 // pred_check
      _
    $region87: #{tpu_custom_call.1} parent=1 // pred_check_branch
      %280 = sbr.rel (0) target = $region89
    $region88: #{tpu_custom_call.1} parent=1 // pred_region
      %s282 = ssub.s32 32, 32
      %283 = vsyncadd [#allocation27], %s282
      %s285 = sshll.u32 [#allocation28], 4
      %s286 = int_to_ptr.vmem [resolvable:$true] %s285
      %288 = dma.hbm_to_vmem [thread:$0]  %s43, 32, %s286, [#allocation27]
    $region89: #{tpu_custom_call.1} parent=1 // pred_fallthru
      _
    // Predicated region
    $region90: #{tpu_custom_call.1} parent=1 // pred_check
      _
    $region91: #{tpu_custom_call.1} parent=1 // pred_check_branch
      %290 = sbr.rel (0) target = $region93
    $region92: #{tpu_custom_call.1} parent=1 // pred_region
      _
    $region93: #{tpu_custom_call.1} parent=1 // pred_fallthru
      _
    // Predicated region
    $region94: #{tpu_custom_call.1} parent=1 // pred_check
      _
    $region95: #{tpu_custom_call.1} parent=1 // pred_check_branch
      %292 = sbr.rel (0) target = $region97
    $region96: #{tpu_custom_call.1} parent=1 // pred_region
      %s294 = ssub.s32 16, 16
      %295 = vsyncadd [#allocation30], %s294
      %s297 = sshll.u32 [#allocation29], 4
      %s298 = int_to_ptr.vmem [resolvable:$true] %s297
      %300 = dma.hbm_to_vmem [thread:$0]  %s47, 16, %s298, [#allocation30]
    $region97: #{tpu_custom_call.1} parent=1 // pred_fallthru
      _
    // Predicated region
    $region98: #{tpu_custom_call.1} parent=1 // pred_check
      _
    $region99: #{tpu_custom_call.1} parent=1 // pred_check_branch
      %302 = sbr.rel (0) target = $region101
    $region100: #{tpu_custom_call.1} parent=1 // pred_region
      _
    $region101: #{tpu_custom_call.1} parent=1 // pred_fallthru
      _
    // Predicated region
    $region102: #{tpu_custom_call.1} parent=1 // pred_check
      _
    $region103: #{tpu_custom_call.1} parent=1 // pred_check_branch
      %304 = sbr.rel (0) target = $region105
    $region104: #{tpu_custom_call.1} parent=1 // pred_region
      _
    $region105: #{tpu_custom_call.1} parent=1 // pred_fallthru
      _
    // Predicated region
    $region106: #{tpu_custom_call.1} parent=1 // pred_check
      _
    $region107: #{tpu_custom_call.1} parent=1 // pred_check_branch
      %306 = sbr.rel (0) target = $region109
    $region108: #{tpu_custom_call.1} parent=1 // pred_region
      %s308 = ssub.s32 2048, 2048
      %309 = vsyncadd [#allocation30], %s308
      %s310 = sshll.u32 [#allocation31], 4
      %s311 = int_to_ptr.vmem [resolvable:$true] %s310
      %316 = dma.hbm_to_vmem [thread:$0]  %s53, 2048, %s311, [#allocation30], 128, 128, 8
    $region109: #{tpu_custom_call.1} parent=1 // pred_fallthru
      _
    // Predicated region
    $region110: #{tpu_custom_call.1} parent=1 // pred_check
      _
    $region111: #{tpu_custom_call.1} parent=1 // pred_check_branch
      %318 = sbr.rel (0) target = $region113
    $region112: #{tpu_custom_call.1} parent=1 // pred_region
      _
    $region113: #{tpu_custom_call.1} parent=1 // pred_fallthru
      _
    // Predicated region
    $region114: #{tpu_custom_call.1} parent=1 // pred_check
      _
    $region115: #{tpu_custom_call.1} parent=1 // pred_check_branch
      %320 = sbr.rel (0) target = $region117
    $region116: #{tpu_custom_call.1} parent=1 // pred_region
      %s322 = ssub.s32 2048, 2048
      %323 = vsyncadd [#allocation33], %s322
      %s324 = sshll.u32 [#allocation32], 4
      %s325 = int_to_ptr.vmem [resolvable:$true] %s324
      %330 = dma.hbm_to_vmem [thread:$0]  %s57, 2048, %s325, [#allocation33], 128, 128, 8
    $region117: #{tpu_custom_call.1} parent=1 // pred_fallthru
      _
    // Predicated region
    $region118: #{tpu_custom_call.1} parent=1 // pred_check
      _
    $region119: #{tpu_custom_call.1} parent=1 // pred_check_branch
      %332 = sbr.rel (0) target = $region121
    $region120: #{tpu_custom_call.1} parent=1 // pred_region
      _
    $region121: #{tpu_custom_call.1} parent=1 // pred_fallthru
      _
    // Predicated region
    $region122: #{tpu_custom_call.1} parent=1 // pred_check
      _
    $region123: #{tpu_custom_call.1} parent=1 // pred_check_branch
      %334 = sbr.rel (0) target = $region125
    $region124: #{tpu_custom_call.1} parent=1 // pred_region
      %s336 = ssub.s32 2048, 2048
      %337 = vsyncadd [#allocation33], %s336
      %s338 = sshll.u32 [#allocation34], 4
      %s339 = int_to_ptr.vmem [resolvable:$true] %s338
      %344 = dma.hbm_to_vmem [thread:$0]  %s61, 2048, %s339, [#allocation33], 128, 128, 8
    $region125: #{tpu_custom_call.1} parent=1 // pred_fallthru
      _
    // Predicated region
    $region126: #{tpu_custom_call.1} parent=1 // pred_check
      _
    $region127: #{tpu_custom_call.1} parent=1 // pred_check_branch
      %346 = sbr.rel (0) target = $region129
    $region128: #{tpu_custom_call.1} parent=1 // pred_region
      _
    $region129: #{tpu_custom_call.1} parent=1 // pred_fallthru
      _
    // Predicated region
    $region130: #{tpu_custom_call.1} parent=1 // pred_check
      _
    $region131: #{tpu_custom_call.1} parent=1 // pred_check_branch
      %348 = sbr.rel (0) target = $region133
    $region132: #{tpu_custom_call.1} parent=1 // pred_region
      %s350 = ssub.s32 2048, 2048
      %351 = vsyncadd [#allocation36], %s350
      %s352 = sshll.u32 [#allocation35], 4
      %s353 = int_to_ptr.vmem [resolvable:$true] %s352
      %358 = dma.hbm_to_vmem [thread:$0]  %s65, 2048, %s353, [#allocation36], 128, 128, 8
    $region133: #{tpu_custom_call.1} parent=1 // pred_fallthru
      _
    // Predicated region
    $region134: #{tpu_custom_call.1} parent=1 // pred_check
      _
    $region135: #{tpu_custom_call.1} parent=1 // pred_check_branch
      %360 = sbr.rel (0) target = $region137
    $region136: #{tpu_custom_call.1} parent=1 // pred_region
      _
    $region137: #{tpu_custom_call.1} parent=1 // pred_fallthru
      _
    // Predicated region
    $region138: #{tpu_custom_call.1} parent=1 // pred_check
      _
    $region139: #{tpu_custom_call.1} parent=1 // pred_check_branch
      %362 = sbr.rel (0) target = $region141
    $region140: #{tpu_custom_call.1} parent=1 // pred_region
      %s364 = ssub.s32 2048, 2048
      %365 = vsyncadd [#allocation36], %s364
      %s366 = sshll.u32 [#allocation37], 4
      %s367 = int_to_ptr.vmem [resolvable:$true] %s366
      %372 = dma.hbm_to_vmem [thread:$0]  %s69, 2048, %s367, [#allocation36], 128, 128, 8
    $region141: #{tpu_custom_call.1} parent=1 // pred_fallthru
      _
    // Predicated region
    $region142: #{tpu_custom_call.1} parent=1 // pred_check
      _
    $region143: #{tpu_custom_call.1} parent=1 // pred_check_branch
      %374 = sbr.rel (0) target = $region145
    $region144: #{tpu_custom_call.1} parent=1 // pred_region
      %375 = dma.done [#allocation3], 4096
    $region145: #{tpu_custom_call.1} parent=1 // pred_fallthru
      _
    // Predicated region
    $region146: #{tpu_custom_call.1} parent=1 // pred_check
      _
    $region147: #{tpu_custom_call.1} parent=1 // pred_check_branch
      %377 = sbr.rel (0) target = $region149
    $region148: #{tpu_custom_call.1} parent=1 // pred_region
      %378 = dma.done [#allocation6], 4096
    $region149: #{tpu_custom_call.1} parent=1 // pred_fallthru
      _
    // Predicated region
    $region150: #{tpu_custom_call.1} parent=1 // pred_check
      _
    $region151: #{tpu_custom_call.1} parent=1 // pred_check_branch
      %380 = sbr.rel (0) target = $region153
    $region152: #{tpu_custom_call.1} parent=1 // pred_region
      %381 = dma.done [#allocation6], 2560
    $region153: #{tpu_custom_call.1} parent=1 // pred_fallthru
      _
    // Predicated region
    $region154: #{tpu_custom_call.1} parent=1 // pred_check
      _
    $region155: #{tpu_custom_call.1} parent=1 // pred_check_branch
      %383 = sbr.rel (0) target = $region157
    $region156: #{tpu_custom_call.1} parent=1 // pred_region
      %384 = dma.done [#allocation9], 256
    $region157: #{tpu_custom_call.1} parent=1 // pred_fallthru
      _
    // Predicated region
    $region158: #{tpu_custom_call.1} parent=1 // pred_check
      _
    $region159: #{tpu_custom_call.1} parent=1 // pred_check_branch
      %386 = sbr.rel (0) target = $region161
    $region160: #{tpu_custom_call.1} parent=1 // pred_region
      %387 = dma.done [#allocation9], 1024
    $region161: #{tpu_custom_call.1} parent=1 // pred_fallthru
      _
    // Predicated region
    $region162: #{tpu_custom_call.1} parent=1 // pred_check
      _
    $region163: #{tpu_custom_call.1} parent=1 // pred_check_branch
      %389 = sbr.rel (0) target = $region165
    $region164: #{tpu_custom_call.1} parent=1 // pred_region
      %390 = dma.done [#allocation12], 128
    $region165: #{tpu_custom_call.1} parent=1 // pred_fallthru
      _
    // Predicated region
    $region166: #{tpu_custom_call.1} parent=1 // pred_check
      _
    $region167: #{tpu_custom_call.1} parent=1 // pred_check_branch
      %392 = sbr.rel (0) target = $region169
    $region168: #{tpu_custom_call.1} parent=1 // pred_region
      %393 = dma.done [#allocation12], 16
    $region169: #{tpu_custom_call.1} parent=1 // pred_fallthru
      _
    // Predicated region
    $region170: #{tpu_custom_call.1} parent=1 // pred_check
      _
    $region171: #{tpu_custom_call.1} parent=1 // pred_check_branch
      %395 = sbr.rel (0) target = $region173
    $region172: #{tpu_custom_call.1} parent=1 // pred_region
      %396 = dma.done [#allocation15], 32
    $region173: #{tpu_custom_call.1} parent=1 // pred_fallthru
      _
    // Predicated region
    $region174: #{tpu_custom_call.1} parent=1 // pred_check
      _
    $region175: #{tpu_custom_call.1} parent=1 // pred_check_branch
      %398 = sbr.rel (0) target = $region177
    $region176: #{tpu_custom_call.1} parent=1 // pred_region
      %399 = dma.done [#allocation15], 32
    $region177: #{tpu_custom_call.1} parent=1 // pred_fallthru
      _
    // Predicated region
    $region178: #{tpu_custom_call.1} parent=1 // pred_check
      _
    $region179: #{tpu_custom_call.1} parent=1 // pred_check_branch
      %401 = sbr.rel (0) target = $region181
    $region180: #{tpu_custom_call.1} parent=1 // pred_region
      %402 = dma.done [#allocation18], 6144
    $region181: #{tpu_custom_call.1} parent=1 // pred_fallthru
      _
    // Predicated region
    $region182: #{tpu_custom_call.1} parent=1 // pred_check
      _
    $region183: #{tpu_custom_call.1} parent=1 // pred_check_branch
      %404 = sbr.rel (0) target = $region185
    $region184: #{tpu_custom_call.1} parent=1 // pred_region
      %405 = dma.done [#allocation18], 16
    $region185: #{tpu_custom_call.1} parent=1 // pred_fallthru
      _
    // Predicated region
    $region186: #{tpu_custom_call.1} parent=1 // pred_check
      _
    $region187: #{tpu_custom_call.1} parent=1 // pred_check_branch
      %407 = sbr.rel (0) target = $region189
    $region188: #{tpu_custom_call.1} parent=1 // pred_region
      %408 = dma.done [#allocation21], 32
    $region189: #{tpu_custom_call.1} parent=1 // pred_fallthru
      _
    // Predicated region
    $region190: #{tpu_custom_call.1} parent=1 // pred_check
      _
    $region191: #{tpu_custom_call.1} parent=1 // pred_check_branch
      %410 = sbr.rel (0) target = $region193
    $region192: #{tpu_custom_call.1} parent=1 // pred_region
      %411 = dma.done [#allocation21], 4096
    $region193: #{tpu_custom_call.1} parent=1 // pred_fallthru
      _
    // Predicated region
    $region194: #{tpu_custom_call.1} parent=1 // pred_check
      _
    $region195: #{tpu_custom_call.1} parent=1 // pred_check_branch
      %413 = sbr.rel (0) target = $region197
    $region196: #{tpu_custom_call.1} parent=1 // pred_region
      %414 = dma.done [#allocation24], 32
    $region197: #{tpu_custom_call.1} parent=1 // pred_fallthru
      _
    // Predicated region
    $region198: #{tpu_custom_call.1} parent=1 // pred_check
      _
    $region199: #{tpu_custom_call.1} parent=1 // pred_check_branch
      %416 = sbr.rel (0) target = $region201
    $region200: #{tpu_custom_call.1} parent=1 // pred_region
      %417 = dma.done [#allocation24], 4096
    $region201: #{tpu_custom_call.1} parent=1 // pred_fallthru
      _
    // Predicated region
    $region202: #{tpu_custom_call.1} parent=1 // pred_check
      _
    $region203: #{tpu_custom_call.1} parent=1 // pred_check_branch
      %419 = sbr.rel (0) target = $region205
    $region204: #{tpu_custom_call.1} parent=1 // pred_region
      %420 = dma.done [#allocation27], 16
    $region205: #{tpu_custom_call.1} parent=1 // pred_fallthru
      _
    // Predicated region
    $region206: #{tpu_custom_call.1} parent=1 // pred_check
      _
    $region207: #{tpu_custom_call.1} parent=1 // pred_check_branch
      %422 = sbr.rel (0) target = $region209
    $region208: #{tpu_custom_call.1} parent=1 // pred_region
      %423 = dma.done [#allocation27], 32
    $region209: #{tpu_custom_call.1} parent=1 // pred_fallthru
      _
    // Predicated region
    $region210: #{tpu_custom_call.1} parent=1 // pred_check
      _
    $region211: #{tpu_custom_call.1} parent=1 // pred_check_branch
      %425 = sbr.rel (0) target = $region213
    $region212: #{tpu_custom_call.1} parent=1 // pred_region
      %426 = dma.done [#allocation30], 16
    $region213: #{tpu_custom_call.1} parent=1 // pred_fallthru
      _
    // Predicated region
    $region214: #{tpu_custom_call.1} parent=1 // pred_check
      _
    $region215: #{tpu_custom_call.1} parent=1 // pred_check_branch
      %428 = sbr.rel (0) target = $region217
    $region216: #{tpu_custom_call.1} parent=1 // pred_region
      %429 = dma.done [#allocation30], 2048
    $region217: #{tpu_custom_call.1} parent=1 // pred_fallthru
      _
    // Predicated region
    $region218: #{tpu_custom_call.1} parent=1 // pred_check
      _
    $region219: #{tpu_custom_call.1} parent=1 // pred_check_branch
      %431 = sbr.rel (0) target = $region221
    $region220: #{tpu_custom_call.1} parent=1 // pred_region
      %432 = dma.done [#allocation33], 2048
    $region221: #{tpu_custom_call.1} parent=1 // pred_fallthru
      _
    // Predicated region
    $region222: #{tpu_custom_call.1} parent=1 // pred_check
      _
    $region223: #{tpu_custom_call.1} parent=1 // pred_check_branch
      %434 = sbr.rel (0) target = $region225
    $region224: #{tpu_custom_call.1} parent=1 // pred_region
      %435 = dma.done [#allocation33], 2048
    $region225: #{tpu_custom_call.1} parent=1 // pred_fallthru
      _
    // Predicated region
    $region226: #{tpu_custom_call.1} parent=1 // pred_check
      _
    $region227: #{tpu_custom_call.1} parent=1 // pred_check_branch
      %437 = sbr.rel (0) target = $region229
    $region228: #{tpu_custom_call.1} parent=1 // pred_region
      %438 = dma.done [#allocation36], 2048
    $region229: #{tpu_custom_call.1} parent=1 // pred_fallthru
      _
    // Predicated region
    $region230: #{tpu_custom_call.1} parent=1 // pred_check
      _
    $region231: #{tpu_custom_call.1} parent=1 // pred_check_branch
      %440 = sbr.rel (0) target = $region233
    $region232: #{tpu_custom_call.1} parent=1 // pred_region
      %441 = dma.done [#allocation36], 2048
    $region233: #{tpu_custom_call.1} parent=1 // pred_fallthru
      _
    %v442 = vlaneseq
    %v443 = vshrl.u32 %v442, 7
    %v444 = vadd.s32 %v443, 8
    %v445 = vadd.s32 %v443, 16
    %v446 = vadd.s32 %v443, 24
    %v447 = vadd.s32 %v443, 32
    %v448 = vadd.s32 %v443, 40
    %v449 = vadd.s32 %v443, 48
    %v450 = vadd.s32 %v443, 56
    %v451 = vadd.s32 %v443, 64
    %v452 = vadd.s32 %v443, 72
    %v453 = vadd.s32 %v443, 80
    %v454 = vadd.s32 %v443, 88
    %v455 = vadd.s32 %v443, 96
    %v456 = vadd.s32 %v443, 104
    %v457 = vadd.s32 %v443, 112
    %v458 = vadd.s32 %v443, 120
    %v459 = vadd.s32 %v443, 128
    %v460 = vadd.s32 %v443, 136
    %v461 = vadd.s32 %v443, 144
    %v462 = vadd.s32 %v443, 152
    %v463 = vadd.s32 %v443, 160
    %v464 = vadd.s32 %v443, 168
    %v465 = vadd.s32 %v443, 176
    %v466 = vadd.s32 %v443, 184
    %v467 = vadd.s32 %v443, 192
    %v468 = vadd.s32 %v443, 200
    %v469 = vadd.s32 %v443, 208
    %v470 = vadd.s32 %v443, 216
    %v471 = vadd.s32 %v443, 224
    %v472 = vadd.s32 %v443, 232
    %v473 = vadd.s32 %v443, 240
    %v474 = vadd.s32 %v443, 248
    %v475 = vand.u32 %v443, 15
    %v476 = vand.u32 %v444, 15
    %v477 = vand.u32 %v445, 15
    %v478 = vand.u32 %v446, 15
    %v479 = vand.u32 %v447, 15
    %v480 = vand.u32 %v448, 15
    %v481 = vand.u32 %v449, 15
    %v482 = vand.u32 %v450, 15
    %v483 = vand.u32 %v451, 15
    %v484 = vand.u32 %v452, 15
    %v485 = vand.u32 %v453, 15
    %v486 = vand.u32 %v454, 15
    %v487 = vand.u32 %v455, 15
    %v488 = vand.u32 %v456, 15
    %v489 = vand.u32 %v457, 15
    %v490 = vand.u32 %v458, 15
    %v491 = vand.u32 %v459, 15
    %v492 = vand.u32 %v460, 15
    %v493 = vand.u32 %v461, 15
    %v494 = vand.u32 %v462, 15
    %v495 = vand.u32 %v463, 15
    %v496 = vand.u32 %v464, 15
    %v497 = vand.u32 %v465, 15
    %v498 = vand.u32 %v466, 15
    %v499 = vand.u32 %v467, 15
    %v500 = vand.u32 %v468, 15
    %v501 = vand.u32 %v469, 15
    %v502 = vand.u32 %v470, 15
    %v503 = vand.u32 %v471, 15
    %v504 = vand.u32 %v472, 15
    %v505 = vand.u32 %v473, 15
    %v506 = vand.u32 %v474, 15
    %vm507 = vcmp.ge.s32.totalorder %v475, 8
    %vm508 = vcmp.ge.s32.totalorder %v476, 8
    %vm509 = vcmp.ge.s32.totalorder %v477, 8
    %vm510 = vcmp.ge.s32.totalorder %v478, 8
    %vm511 = vcmp.ge.s32.totalorder %v479, 8
    %vm512 = vcmp.ge.s32.totalorder %v480, 8
    %vm513 = vcmp.ge.s32.totalorder %v481, 8
    %vm514 = vcmp.ge.s32.totalorder %v482, 8
    %vm515 = vcmp.ge.s32.totalorder %v483, 8
    %vm516 = vcmp.ge.s32.totalorder %v484, 8
    %vm517 = vcmp.ge.s32.totalorder %v485, 8
    %vm518 = vcmp.ge.s32.totalorder %v486, 8
    %vm519 = vcmp.ge.s32.totalorder %v487, 8
    %vm520 = vcmp.ge.s32.totalorder %v488, 8
    %vm521 = vcmp.ge.s32.totalorder %v489, 8
    %vm522 = vcmp.ge.s32.totalorder %v490, 8
    %vm523 = vcmp.ge.s32.totalorder %v491, 8
    %vm524 = vcmp.ge.s32.totalorder %v492, 8
    %vm525 = vcmp.ge.s32.totalorder %v493, 8
    %vm526 = vcmp.ge.s32.totalorder %v494, 8
    %vm527 = vcmp.ge.s32.totalorder %v495, 8
    %vm528 = vcmp.ge.s32.totalorder %v496, 8
    %vm529 = vcmp.ge.s32.totalorder %v497, 8
    %vm530 = vcmp.ge.s32.totalorder %v498, 8
    %vm531 = vcmp.ge.s32.totalorder %v499, 8
    %vm532 = vcmp.ge.s32.totalorder %v500, 8
    %vm533 = vcmp.ge.s32.totalorder %v501, 8
    %vm534 = vcmp.ge.s32.totalorder %v502, 8
    %vm535 = vcmp.ge.s32.totalorder %v503, 8
    %vm536 = vcmp.ge.s32.totalorder %v504, 8
    %vm537 = vcmp.ge.s32.totalorder %v505, 8
    %vm538 = vcmp.ge.s32.totalorder %v506, 8
    %v539 = vld [vmem:[#allocation2] sm:$0xff]
    %v540 = vld [vmem:[#allocation2 + $0x8] sm:$0xff]
    %v541 = vld [vmem:[#allocation2 + $0x10] sm:$0xff]
    %v542 = vld [vmem:[#allocation2 + $0x18] sm:$0xff]
    %v543 = vld [vmem:[#allocation2 + $0x20] sm:$0xff]
    %v544 = vld [vmem:[#allocation2 + $0x28] sm:$0xff]
    %v545 = vld [vmem:[#allocation2 + $0x30] sm:$0xff]
    %v546 = vld [vmem:[#allocation2 + $0x38] sm:$0xff]
    %v547 = vld [vmem:[#allocation2 + $0x40] sm:$0xff]
    %v548 = vld [vmem:[#allocation2 + $0x48] sm:$0xff]
    %v549 = vld [vmem:[#allocation2 + $0x50] sm:$0xff]
    %v550 = vld [vmem:[#allocation2 + $0x58] sm:$0xff]
    %v551 = vld [vmem:[#allocation2 + $0x60] sm:$0xff]
    %v552 = vld [vmem:[#allocation2 + $0x68] sm:$0xff]
    %v553 = vld [vmem:[#allocation2 + $0x70] sm:$0xff]
    %v554 = vld [vmem:[#allocation2 + $0x78] sm:$0xff]
    %v555 = vld [vmem:[#allocation2 + $0x80] sm:$0xff]
    %v556 = vld [vmem:[#allocation2 + $0x88] sm:$0xff]
    %v557 = vld [vmem:[#allocation2 + $0x90] sm:$0xff]
    %v558 = vld [vmem:[#allocation2 + $0x98] sm:$0xff]
    %v559 = vld [vmem:[#allocation2 + $0xa0] sm:$0xff]
    %v560 = vld [vmem:[#allocation2 + $0xa8] sm:$0xff]
    %v561 = vld [vmem:[#allocation2 + $0xb0] sm:$0xff]
    %v562 = vld [vmem:[#allocation2 + $0xb8] sm:$0xff]
    %v563 = vld [vmem:[#allocation2 + $0xc0] sm:$0xff]
    %v564 = vld [vmem:[#allocation2 + $0xc8] sm:$0xff]
    %v565 = vld [vmem:[#allocation2 + $0xd0] sm:$0xff]
    %v566 = vld [vmem:[#allocation2 + $0xd8] sm:$0xff]
    %v567 = vld [vmem:[#allocation2 + $0xe0] sm:$0xff]
    %v568 = vld [vmem:[#allocation2 + $0xe8] sm:$0xff]
    %v569 = vld [vmem:[#allocation2 + $0xf0] sm:$0xff]
    %v570 = vld [vmem:[#allocation2 + $0xf8] sm:$0xff]
    %v571 = vld [vmem:[#allocation14] sm:$0x1]
    %v572 = vld [vmem:[#allocation14 + $0x1] sm:$0x1]
    %573 = vadd.xlane.f32.xlu0 %v539
    %v574 = vpop.xlane.xlu0 %573
    %575 = vadd.xlane.f32.xlu0 %v540
    %v576 = vpop.xlane.xlu0 %575
    %577 = vadd.xlane.f32.xlu0 %v541
    %v578 = vpop.xlane.xlu0 %577
    %579 = vadd.xlane.f32.xlu0 %v542
    %v580 = vpop.xlane.xlu0 %579
    %581 = vadd.xlane.f32.xlu0 %v543
    %v582 = vpop.xlane.xlu0 %581
    %583 = vadd.xlane.f32.xlu0 %v544
    %v584 = vpop.xlane.xlu0 %583
    %585 = vadd.xlane.f32.xlu0 %v545
    %v586 = vpop.xlane.xlu0 %585
    %587 = vadd.xlane.f32.xlu0 %v546
    %v588 = vpop.xlane.xlu0 %587
    %589 = vadd.xlane.f32.xlu0 %v547
    %v590 = vpop.xlane.xlu0 %589
    %591 = vadd.xlane.f32.xlu0 %v548
    %v592 = vpop.xlane.xlu0 %591
    %593 = vadd.xlane.f32.xlu0 %v549
    %v594 = vpop.xlane.xlu0 %593
    %595 = vadd.xlane.f32.xlu0 %v550
    %v596 = vpop.xlane.xlu0 %595
    %597 = vadd.xlane.f32.xlu0 %v551
    %v598 = vpop.xlane.xlu0 %597
    %599 = vadd.xlane.f32.xlu0 %v552
    %v600 = vpop.xlane.xlu0 %599
    %601 = vadd.xlane.f32.xlu0 %v553
    %v602 = vpop.xlane.xlu0 %601
    %603 = vadd.xlane.f32.xlu0 %v554
    %v604 = vpop.xlane.xlu0 %603
    %605 = vadd.xlane.f32.xlu0 %v555
    %v606 = vpop.xlane.xlu0 %605
    %607 = vadd.xlane.f32.xlu0 %v556
    %v608 = vpop.xlane.xlu0 %607
    %609 = vadd.xlane.f32.xlu0 %v557
    %v610 = vpop.xlane.xlu0 %609
    %611 = vadd.xlane.f32.xlu0 %v558
    %v612 = vpop.xlane.xlu0 %611
    %613 = vadd.xlane.f32.xlu0 %v559
    %v614 = vpop.xlane.xlu0 %613
    %615 = vadd.xlane.f32.xlu0 %v560
    %v616 = vpop.xlane.xlu0 %615
    %617 = vadd.xlane.f32.xlu0 %v561
    %v618 = vpop.xlane.xlu0 %617
    %619 = vadd.xlane.f32.xlu0 %v562
    %v620 = vpop.xlane.xlu0 %619
    %621 = vadd.xlane.f32.xlu0 %v563
    %v622 = vpop.xlane.xlu0 %621
    %623 = vadd.xlane.f32.xlu0 %v564
    %v624 = vpop.xlane.xlu0 %623
    %625 = vadd.xlane.f32.xlu0 %v565
    %v626 = vpop.xlane.xlu0 %625
    %627 = vadd.xlane.f32.xlu0 %v566
    %v628 = vpop.xlane.xlu0 %627
    %629 = vadd.xlane.f32.xlu0 %v567
    %v630 = vpop.xlane.xlu0 %629
    %631 = vadd.xlane.f32.xlu0 %v568
    %v632 = vpop.xlane.xlu0 %631
    %633 = vadd.xlane.f32.xlu0 %v569
    %v634 = vpop.xlane.xlu0 %633
    %635 = vadd.xlane.f32.xlu0 %v570
    %v636 = vpop.xlane.xlu0 %635
    %v637 = vrcp.pop 128.0
    %v638 = vmul.f32 %v574, %v637
    %v639 = vmul.f32 %v576, %v637
    %v640 = vmul.f32 %v578, %v637
    %v641 = vmul.f32 %v580, %v637
    %v642 = vmul.f32 %v582, %v637
    %v643 = vmul.f32 %v584, %v637
    %v644 = vmul.f32 %v586, %v637
    %v645 = vmul.f32 %v588, %v637
    %v646 = vmul.f32 %v590, %v637
    %v647 = vmul.f32 %v592, %v637
    %v648 = vmul.f32 %v594, %v637
    %v649 = vmul.f32 %v596, %v637
    %v650 = vmul.f32 %v598, %v637
    %v651 = vmul.f32 %v600, %v637
    %v652 = vmul.f32 %v602, %v637
    %v653 = vmul.f32 %v604, %v637
    %v654 = vmul.f32 %v606, %v637
    %v655 = vmul.f32 %v608, %v637
    %v656 = vmul.f32 %v610, %v637
    %v657 = vmul.f32 %v612, %v637
    %v658 = vmul.f32 %v614, %v637
    %v659 = vmul.f32 %v616, %v637
    %v660 = vmul.f32 %v618, %v637
    %v661 = vmul.f32 %v620, %v637
    %v662 = vmul.f32 %v622, %v637
    %v663 = vmul.f32 %v624, %v637
    %v664 = vmul.f32 %v626, %v637
    %v665 = vmul.f32 %v628, %v637
    %v666 = vmul.f32 %v630, %v637
    %v667 = vmul.f32 %v632, %v637
    %v668 = vmul.f32 %v634, %v637
    %v669 = vmul.f32 %v636, %v637
    %v670 = vsub.f32 %v539, %v638
    %v671 = vsub.f32 %v540, %v639
    %v672 = vsub.f32 %v541, %v640
    %v673 = vsub.f32 %v542, %v641
    %v674 = vsub.f32 %v543, %v642
    %v675 = vsub.f32 %v544, %v643
    %v676 = vsub.f32 %v545, %v644
    %v677 = vsub.f32 %v546, %v645
    %v678 = vsub.f32 %v547, %v646
    %v679 = vsub.f32 %v548, %v647
    %v680 = vsub.f32 %v549, %v648
    %v681 = vsub.f32 %v550, %v649
    %v682 = vsub.f32 %v551, %v650
    %v683 = vsub.f32 %v552, %v651
    %v684 = vsub.f32 %v553, %v652
    %v685 = vsub.f32 %v554, %v653
    %v686 = vsub.f32 %v555, %v654
    %v687 = vsub.f32 %v556, %v655
    %v688 = vsub.f32 %v557, %v656
    %v689 = vsub.f32 %v558, %v657
    %v690 = vsub.f32 %v559, %v658
    %v691 = vsub.f32 %v560, %v659
    %v692 = vsub.f32 %v561, %v660
    %v693 = vsub.f32 %v562, %v661
    %v694 = vsub.f32 %v563, %v662
    %v695 = vsub.f32 %v564, %v663
    %v696 = vsub.f32 %v565, %v664
    %v697 = vsub.f32 %v566, %v665
    %v698 = vsub.f32 %v567, %v666
    %v699 = vsub.f32 %v568, %v667
    %v700 = vsub.f32 %v569, %v668
    %v701 = vsub.f32 %v570, %v669
    %v702 = vmul.f32 %v670, %v670
    %v703 = vmul.f32 %v671, %v671
    %v704 = vmul.f32 %v672, %v672
    %v705 = vmul.f32 %v673, %v673
    %v706 = vmul.f32 %v674, %v674
    %v707 = vmul.f32 %v675, %v675
    %v708 = vmul.f32 %v676, %v676
    %v709 = vmul.f32 %v677, %v677
    %v710 = vmul.f32 %v678, %v678
    %v711 = vmul.f32 %v679, %v679
    %v712 = vmul.f32 %v680, %v680
    %v713 = vmul.f32 %v681, %v681
    %v714 = vmul.f32 %v682, %v682
    %v715 = vmul.f32 %v683, %v683
    %v716 = vmul.f32 %v684, %v684
    %v717 = vmul.f32 %v685, %v685
    %v718 = vmul.f32 %v686, %v686
    %v719 = vmul.f32 %v687, %v687
    %v720 = vmul.f32 %v688, %v688
    %v721 = vmul.f32 %v689, %v689
    %v722 = vmul.f32 %v690, %v690
    %v723 = vmul.f32 %v691, %v691
    %v724 = vmul.f32 %v692, %v692
    %v725 = vmul.f32 %v693, %v693
    %v726 = vmul.f32 %v694, %v694
    %v727 = vmul.f32 %v695, %v695
    %v728 = vmul.f32 %v696, %v696
    %v729 = vmul.f32 %v697, %v697
    %v730 = vmul.f32 %v698, %v698
    %v731 = vmul.f32 %v699, %v699
    %v732 = vmul.f32 %v700, %v700
    %v733 = vmul.f32 %v701, %v701
    %734 = vadd.xlane.f32.xlu0 %v702
    %v735 = vpop.xlane.xlu0 %734
    %736 = vadd.xlane.f32.xlu0 %v703
    %v737 = vpop.xlane.xlu0 %736
    %738 = vadd.xlane.f32.xlu0 %v704
    %v739 = vpop.xlane.xlu0 %738
    %740 = vadd.xlane.f32.xlu0 %v705
    %v741 = vpop.xlane.xlu0 %740
    %742 = vadd.xlane.f32.xlu0 %v706
    %v743 = vpop.xlane.xlu0 %742
    %744 = vadd.xlane.f32.xlu0 %v707
    %v745 = vpop.xlane.xlu0 %744
    %746 = vadd.xlane.f32.xlu0 %v708
    %v747 = vpop.xlane.xlu0 %746
    %748 = vadd.xlane.f32.xlu0 %v709
    %v749 = vpop.xlane.xlu0 %748
    %750 = vadd.xlane.f32.xlu0 %v710
    %v751 = vpop.xlane.xlu0 %750
    %752 = vadd.xlane.f32.xlu0 %v711
    %v753 = vpop.xlane.xlu0 %752
    %754 = vadd.xlane.f32.xlu0 %v712
    %v755 = vpop.xlane.xlu0 %754
    %756 = vadd.xlane.f32.xlu0 %v713
    %v757 = vpop.xlane.xlu0 %756
    %758 = vadd.xlane.f32.xlu0 %v714
    %v759 = vpop.xlane.xlu0 %758
    %760 = vadd.xlane.f32.xlu0 %v715
    %v761 = vpop.xlane.xlu0 %760
    %762 = vadd.xlane.f32.xlu0 %v716
    %v763 = vpop.xlane.xlu0 %762
    %764 = vadd.xlane.f32.xlu0 %v717
    %v765 = vpop.xlane.xlu0 %764
    %766 = vadd.xlane.f32.xlu0 %v718
    %v767 = vpop.xlane.xlu0 %766
    %768 = vadd.xlane.f32.xlu0 %v719
    %v769 = vpop.xlane.xlu0 %768
    %770 = vadd.xlane.f32.xlu0 %v720
    %v771 = vpop.xlane.xlu0 %770
    %772 = vadd.xlane.f32.xlu0 %v721
    %v773 = vpop.xlane.xlu0 %772
    %774 = vadd.xlane.f32.xlu0 %v722
    %v775 = vpop.xlane.xlu0 %774
    %776 = vadd.xlane.f32.xlu0 %v723
    %v777 = vpop.xlane.xlu0 %776
    %778 = vadd.xlane.f32.xlu0 %v724
    %v779 = vpop.xlane.xlu0 %778
    %780 = vadd.xlane.f32.xlu0 %v725
    %v781 = vpop.xlane.xlu0 %780
    %782 = vadd.xlane.f32.xlu0 %v726
    %v783 = vpop.xlane.xlu0 %782
    %784 = vadd.xlane.f32.xlu0 %v727
    %v785 = vpop.xlane.xlu0 %784
    %786 = vadd.xlane.f32.xlu0 %v728
    %v787 = vpop.xlane.xlu0 %786
    %788 = vadd.xlane.f32.xlu0 %v729
    %v789 = vpop.xlane.xlu0 %788
    %790 = vadd.xlane.f32.xlu0 %v730
    %v791 = vpop.xlane.xlu0 %790
    %792 = vadd.xlane.f32.xlu0 %v731
    %v793 = vpop.xlane.xlu0 %792
    %794 = vadd.xlane.f32.xlu0 %v732
    %v795 = vpop.xlane.xlu0 %794
    %796 = vadd.xlane.f32.xlu0 %v733
    %v797 = vpop.xlane.xlu0 %796
    %v798 = vmul.f32 %v735, %v637
    %v799 = vmul.f32 %v737, %v637
    %v800 = vmul.f32 %v739, %v637
    %v801 = vmul.f32 %v741, %v637
    %v802 = vmul.f32 %v743, %v637
    %v803 = vmul.f32 %v745, %v637
    %v804 = vmul.f32 %v747, %v637
    %v805 = vmul.f32 %v749, %v637
    %v806 = vmul.f32 %v751, %v637
    %v807 = vmul.f32 %v753, %v637
    %v808 = vmul.f32 %v755, %v637
    %v809 = vmul.f32 %v757, %v637
    %v810 = vmul.f32 %v759, %v637
    %v811 = vmul.f32 %v761, %v637
    %v812 = vmul.f32 %v763, %v637
    %v813 = vmul.f32 %v765, %v637
    %v814 = vmul.f32 %v767, %v637
    %v815 = vmul.f32 %v769, %v637
    %v816 = vmul.f32 %v771, %v637
    %v817 = vmul.f32 %v773, %v637
    %v818 = vmul.f32 %v775, %v637
    %v819 = vmul.f32 %v777, %v637
    %v820 = vmul.f32 %v779, %v637
    %v821 = vmul.f32 %v781, %v637
    %v822 = vmul.f32 %v783, %v637
    %v823 = vmul.f32 %v785, %v637
    %v824 = vmul.f32 %v787, %v637
    %v825 = vmul.f32 %v789, %v637
    %v826 = vmul.f32 %v791, %v637
    %v827 = vmul.f32 %v793, %v637
    %v828 = vmul.f32 %v795, %v637
    %v829 = vmul.f32 %v797, %v637
    %v830 = vadd.f32 %v798, 1e-12
    %v831 = vadd.f32 %v799, 1e-12
    %v832 = vadd.f32 %v800, 1e-12
    %v833 = vadd.f32 %v801, 1e-12
    %v834 = vadd.f32 %v802, 1e-12
    %v835 = vadd.f32 %v803, 1e-12
    %v836 = vadd.f32 %v804, 1e-12
    %v837 = vadd.f32 %v805, 1e-12
    %v838 = vadd.f32 %v806, 1e-12
    %v839 = vadd.f32 %v807, 1e-12
    %v840 = vadd.f32 %v808, 1e-12
    %v841 = vadd.f32 %v809, 1e-12
    %v842 = vadd.f32 %v810, 1e-12
    %v843 = vadd.f32 %v811, 1e-12
    %v844 = vadd.f32 %v812, 1e-12
    %v845 = vadd.f32 %v813, 1e-12
    %v846 = vadd.f32 %v814, 1e-12
    %v847 = vadd.f32 %v815, 1e-12
    %v848 = vadd.f32 %v816, 1e-12
    %v849 = vadd.f32 %v817, 1e-12
    %v850 = vadd.f32 %v818, 1e-12
    %v851 = vadd.f32 %v819, 1e-12
    %v852 = vadd.f32 %v820, 1e-12
    %v853 = vadd.f32 %v821, 1e-12
    %v854 = vadd.f32 %v822, 1e-12
    %v855 = vadd.f32 %v823, 1e-12
    %v856 = vadd.f32 %v824, 1e-12
    %v857 = vadd.f32 %v825, 1e-12
    %v858 = vadd.f32 %v826, 1e-12
    %v859 = vadd.f32 %v827, 1e-12
    %v860 = vadd.f32 %v828, 1e-12
    %v861 = vadd.f32 %v829, 1e-12
    %v862 = vrsqrt.pop %v830
    %v863 = vrsqrt.pop %v831
    %v864 = vrsqrt.pop %v832
    %v865 = vrsqrt.pop %v833
    %v866 = vrsqrt.pop %v834
    %v867 = vrsqrt.pop %v835
    %v868 = vrsqrt.pop %v836
    %v869 = vrsqrt.pop %v837
    %v870 = vrsqrt.pop %v838
    %v871 = vrsqrt.pop %v839
    %v872 = vrsqrt.pop %v840
    %v873 = vrsqrt.pop %v841
    %v874 = vrsqrt.pop %v842
    %v875 = vrsqrt.pop %v843
    %v876 = vrsqrt.pop %v844
    %v877 = vrsqrt.pop %v845
    %v878 = vrsqrt.pop %v846
    %v879 = vrsqrt.pop %v847
    %v880 = vrsqrt.pop %v848
    %v881 = vrsqrt.pop %v849
    %v882 = vrsqrt.pop %v850
    %v883 = vrsqrt.pop %v851
    %v884 = vrsqrt.pop %v852
    %v885 = vrsqrt.pop %v853
    %v886 = vrsqrt.pop %v854
    %v887 = vrsqrt.pop %v855
    %v888 = vrsqrt.pop %v856
    %v889 = vrsqrt.pop %v857
    %v890 = vrsqrt.pop %v858
    %v891 = vrsqrt.pop %v859
    %v892 = vrsqrt.pop %v860
    %v893 = vrsqrt.pop %v861
    %v894 = vmul.f32 %v670, %v862
    %v895 = vmul.f32 %v671, %v863
    %v896 = vmul.f32 %v672, %v864
    %v897 = vmul.f32 %v673, %v865
    %v898 = vmul.f32 %v674, %v866
    %v899 = vmul.f32 %v675, %v867
    %v900 = vmul.f32 %v676, %v868
    %v901 = vmul.f32 %v677, %v869
    %v902 = vmul.f32 %v678, %v870
    %v903 = vmul.f32 %v679, %v871
    %v904 = vmul.f32 %v680, %v872
    %v905 = vmul.f32 %v681, %v873
    %v906 = vmul.f32 %v682, %v874
    %v907 = vmul.f32 %v683, %v875
    %v908 = vmul.f32 %v684, %v876
    %v909 = vmul.f32 %v685, %v877
    %v910 = vmul.f32 %v686, %v878
    %v911 = vmul.f32 %v687, %v879
    %v912 = vmul.f32 %v688, %v880
    %v913 = vmul.f32 %v689, %v881
    %v914 = vmul.f32 %v690, %v882
    %v915 = vmul.f32 %v691, %v883
    %v916 = vmul.f32 %v692, %v884
    %v917 = vmul.f32 %v693, %v885
    %v918 = vmul.f32 %v694, %v886
    %v919 = vmul.f32 %v695, %v887
    %v920 = vmul.f32 %v696, %v888
    %v921 = vmul.f32 %v697, %v889
    %v922 = vmul.f32 %v698, %v890
    %v923 = vmul.f32 %v699, %v891
    %v924 = vmul.f32 %v700, %v892
    %v925 = vmul.f32 %v701, %v893
    %v926 = vlaneseq
    %v927 = vshrl.u32 %v926, 7
    %v928 = vsub.s32 0, %v927
    %v929 = vrot.slane %v571, %v928
    %v930 = vmul.f32 %v894, %v929
    %v931 = vmul.f32 %v895, %v929
    %v932 = vmul.f32 %v896, %v929
    %v933 = vmul.f32 %v897, %v929
    %v934 = vmul.f32 %v898, %v929
    %v935 = vmul.f32 %v899, %v929
    %v936 = vmul.f32 %v900, %v929
    %v937 = vmul.f32 %v901, %v929
    %v938 = vmul.f32 %v902, %v929
    %v939 = vmul.f32 %v903, %v929
    %v940 = vmul.f32 %v904, %v929
    %v941 = vmul.f32 %v905, %v929
    %v942 = vmul.f32 %v906, %v929
    %v943 = vmul.f32 %v907, %v929
    %v944 = vmul.f32 %v908, %v929
    %v945 = vmul.f32 %v909, %v929
    %v946 = vmul.f32 %v910, %v929
    %v947 = vmul.f32 %v911, %v929
    %v948 = vmul.f32 %v912, %v929
    %v949 = vmul.f32 %v913, %v929
    %v950 = vmul.f32 %v914, %v929
    %v951 = vmul.f32 %v915, %v929
    %v952 = vmul.f32 %v916, %v929
    %v953 = vmul.f32 %v917, %v929
    %v954 = vmul.f32 %v918, %v929
    %v955 = vmul.f32 %v919, %v929
    %v956 = vmul.f32 %v920, %v929
    %v957 = vmul.f32 %v921, %v929
    %v958 = vmul.f32 %v922, %v929
    %v959 = vmul.f32 %v923, %v929
    %v960 = vmul.f32 %v924, %v929
    %v961 = vmul.f32 %v925, %v929
    %v962 = vlaneseq
    %v963 = vshrl.u32 %v962, 7
    %v964 = vsub.s32 0, %v963
    %v965 = vrot.slane %v572, %v964
    %v966 = vadd.f32 %v930, %v965
    %v967 = vadd.f32 %v931, %v965
    %v968 = vadd.f32 %v932, %v965
    %v969 = vadd.f32 %v933, %v965
    %v970 = vadd.f32 %v934, %v965
    %v971 = vadd.f32 %v935, %v965
    %v972 = vadd.f32 %v936, %v965
    %v973 = vadd.f32 %v937, %v965
    %v974 = vadd.f32 %v938, %v965
    %v975 = vadd.f32 %v939, %v965
    %v976 = vadd.f32 %v940, %v965
    %v977 = vadd.f32 %v941, %v965
    %v978 = vadd.f32 %v942, %v965
    %v979 = vadd.f32 %v943, %v965
    %v980 = vadd.f32 %v944, %v965
    %v981 = vadd.f32 %v945, %v965
    %v982 = vadd.f32 %v946, %v965
    %v983 = vadd.f32 %v947, %v965
    %v984 = vadd.f32 %v948, %v965
    %v985 = vadd.f32 %v949, %v965
    %v986 = vadd.f32 %v950, %v965
    %v987 = vadd.f32 %v951, %v965
    %v988 = vadd.f32 %v952, %v965
    %v989 = vadd.f32 %v953, %v965
    %v990 = vadd.f32 %v954, %v965
    %v991 = vadd.f32 %v955, %v965
    %v992 = vadd.f32 %v956, %v965
    %v993 = vadd.f32 %v957, %v965
    %v994 = vadd.f32 %v958, %v965
    %v995 = vadd.f32 %v959, %v965
    %v996 = vadd.f32 %v960, %v965
    %v997 = vadd.f32 %v961, %v965
    %v998 = vld [vmem:[%s3] sm:$0xff]
    %v999 = vld [vmem:[%s3 + $0x8] sm:$0xff]
    %v1000 = vld [vmem:[%s3 + $0x10] sm:$0xff]
    %v1001 = vld [vmem:[%s3 + $0x18] sm:$0xff]
    %v1002 = vld [vmem:[%s3 + $0x20] sm:$0xff]
    %v1003 = vld [vmem:[%s3 + $0x28] sm:$0xff]
    %v1004 = vld [vmem:[%s3 + $0x30] sm:$0xff]
    %v1005 = vld [vmem:[%s3 + $0x38] sm:$0xff]
    %v1006 = vld [vmem:[%s3 + $0x40] sm:$0xff]
    %v1007 = vld [vmem:[%s3 + $0x48] sm:$0xff]
    %v1008 = vld [vmem:[%s3 + $0x50] sm:$0xff]
    %v1009 = vld [vmem:[%s3 + $0x58] sm:$0xff]
    %v1010 = vld [vmem:[%s3 + $0x60] sm:$0xff]
    %v1011 = vld [vmem:[%s3 + $0x68] sm:$0xff]
    %v1012 = vld [vmem:[%s3 + $0x70] sm:$0xff]
    %v1013 = vld [vmem:[%s3 + $0x78] sm:$0xff]
    %v1014 = vld [vmem:[%s3 + $0x80] sm:$0xff]
    %v1015 = vld [vmem:[%s3 + $0x88] sm:$0xff]
    %v1016 = vld [vmem:[%s3 + $0x90] sm:$0xff]
    %v1017 = vld [vmem:[%s3 + $0x98] sm:$0xff]
    %v1018 = vld [vmem:[%s3 + $0xa0] sm:$0xff]
    %v1019 = vld [vmem:[%s3 + $0xa8] sm:$0xff]
    %v1020 = vld [vmem:[%s3 + $0xb0] sm:$0xff]
    %v1021 = vld [vmem:[%s3 + $0xb8] sm:$0xff]
    %v1022 = vld [vmem:[%s3 + $0xc0] sm:$0xff]
    %v1023 = vld [vmem:[%s3 + $0xc8] sm:$0xff]
    %v1024 = vld [vmem:[%s3 + $0xd0] sm:$0xff]
    %v1025 = vld [vmem:[%s3 + $0xd8] sm:$0xff]
    %v1026 = vld [vmem:[%s3 + $0xe0] sm:$0xff]
    %v1027 = vld [vmem:[%s3 + $0xe8] sm:$0xff]
    %v1028 = vld [vmem:[%s3 + $0xf0] sm:$0xff]
    %v1029 = vld [vmem:[%s3 + $0xf8] sm:$0xff]
    %v1030 = vld [vmem:[#allocation10] sm:$0xff]
    %v1031 = vld [vmem:[#allocation10 + $0x8] sm:$0xff]
    %v1032 = vld [vmem:[#allocation10 + $0x10] sm:$0xff]
    %v1033 = vld [vmem:[#allocation10 + $0x18] sm:$0xff]
    %v1034 = vld [vmem:[#allocation10 + $0x20] sm:$0xff]
    %v1035 = vld [vmem:[#allocation10 + $0x28] sm:$0xff]
    %v1036 = vld [vmem:[#allocation10 + $0x30] sm:$0xff]
    %v1037 = vld [vmem:[#allocation10 + $0x38] sm:$0xff]
    %v1038 = vld [vmem:[%s5] sm:$0xff]
    %v1039 = vld [vmem:[%s5 + $0x8] sm:$0xff]
    %v1040 = vld [vmem:[%s5 + $0x10] sm:$0xff]
    %v1041 = vld [vmem:[%s5 + $0x18] sm:$0xff]
    %v1042 = vld [vmem:[%s5 + $0x20] sm:$0xff]
    %v1043 = vld [vmem:[%s5 + $0x28] sm:$0xff]
    %v1044 = vld [vmem:[%s5 + $0x30] sm:$0xff]
    %v1045 = vld [vmem:[%s5 + $0x38] sm:$0xff]
    %v1046 = vld [vmem:[%s5 + $0x40] sm:$0xff]
    %v1047 = vld [vmem:[%s5 + $0x48] sm:$0xff]
    %v1048 = vld [vmem:[%s5 + $0x50] sm:$0xff]
    %v1049 = vld [vmem:[%s5 + $0x58] sm:$0xff]
    %v1050 = vld [vmem:[%s5 + $0x60] sm:$0xff]
    %v1051 = vld [vmem:[%s5 + $0x68] sm:$0xff]
    %v1052 = vld [vmem:[%s5 + $0x70] sm:$0xff]
    %v1053 = vld [vmem:[%s5 + $0x78] sm:$0xff]
    %v1054 = vld [vmem:[%s5 + $0x80] sm:$0xff]
    %v1055 = vld [vmem:[%s5 + $0x88] sm:$0xff]
    %v1056 = vld [vmem:[%s5 + $0x90] sm:$0xff]
    %v1057 = vld [vmem:[%s5 + $0x98] sm:$0xff]
    %v1058 = vld [vmem:[%s5 + $0xa0] sm:$0xff]
    %v1059 = vld [vmem:[%s5 + $0xa8] sm:$0xff]
    %v1060 = vld [vmem:[%s5 + $0xb0] sm:$0xff]
    %v1061 = vld [vmem:[%s5 + $0xb8] sm:$0xff]
    %v1062 = vld [vmem:[%s5 + $0xc0] sm:$0xff]
    %v1063 = vld [vmem:[%s5 + $0xc8] sm:$0xff]
    %v1064 = vld [vmem:[%s5 + $0xd0] sm:$0xff]
    %v1065 = vld [vmem:[%s5 + $0xd8] sm:$0xff]
    %v1066 = vld [vmem:[%s5 + $0xe0] sm:$0xff]
    %v1067 = vld [vmem:[%s5 + $0xe8] sm:$0xff]
    %v1068 = vld [vmem:[%s5 + $0xf0] sm:$0xff]
    %v1069 = vld [vmem:[%s5 + $0xf8] sm:$0xff]
    %v1070 = vld [vmem:[#allocation11] sm:$0xff]
    %vm1071 = vcmask 64512
    %v1073 = vsel %vm1071, %v1038, 0
    %v1076 = vsel %vm1071, %v1039, 0
    %v1079 = vsel %vm1071, %v1040, 0
    %v1082 = vsel %vm1071, %v1041, 0
    %v1085 = vsel %vm1071, %v1042, 0
    %v1088 = vsel %vm1071, %v1043, 0
    %v1091 = vsel %vm1071, %v1044, 0
    %v1094 = vsel %vm1071, %v1045, 0
    %v1097 = vsel %vm1071, %v1046, 0
    %v1100 = vsel %vm1071, %v1047, 0
    %v1103 = vsel %vm1071, %v1048, 0
    %v1106 = vsel %vm1071, %v1049, 0
    %v1109 = vsel %vm1071, %v1050, 0
    %v1112 = vsel %vm1071, %v1051, 0
    %v1115 = vsel %vm1071, %v1052, 0
    %v1118 = vsel %vm1071, %v1053, 0
    %v1121 = vsel %vm1071, %v1054, 0
    %v1124 = vsel %vm1071, %v1055, 0
    %v1127 = vsel %vm1071, %v1056, 0
    %v1130 = vsel %vm1071, %v1057, 0
    %v1133 = vsel %vm1071, %v1058, 0
    %v1136 = vsel %vm1071, %v1059, 0
    %v1139 = vsel %vm1071, %v1060, 0
    %v1142 = vsel %vm1071, %v1061, 0
    %v1145 = vsel %vm1071, %v1062, 0
    %v1148 = vsel %vm1071, %v1063, 0
    %v1151 = vsel %vm1071, %v1064, 0
    %v1154 = vsel %vm1071, %v1065, 0
    %v1157 = vsel %vm1071, %v1066, 0
    %v1160 = vsel %vm1071, %v1067, 0
    %v1163 = vsel %vm1071, %v1068, 0
    %v1166 = vsel %vm1071, %v1069, 0
    %1168 = vmatprep.subr.mxu0 0.0
    %1169 = vmatpush1.msra.mxu0 %v1070
    %1170 = vmatprep.subr.mxu0 0.0
    %1171 = vmatpush1.msra.mxu0 0.0
    %1172 = vmatprep.subr.mxu0 0.0
    %1173 = vmatpush1.msra.mxu0 0.0
    %1174 = vmatprep.subr.mxu0 0.0
    %1175 = vmatpush1.msra.mxu0 0.0
    %1176 = vmatprep.subr.mxu0 0.0
    %1177 = vmatpush1.msra.mxu0 0.0
    %1178 = vmatprep.subr.mxu0 0.0
    %1179 = vmatpush1.msra.mxu0 0.0
    %1180 = vmatprep.subr.mxu0 0.0
    %1181 = vmatpush1.msra.mxu0 0.0
    %1182 = vmatprep.subr.mxu0 0.0
    %1183 = vmatpush1.msra.mxu0 0.0
    %1184 = vmatprep.subr.mxu0 0.0
    %1185 = vmatpush1.msra.mxu0 0.0
    %1186 = vmatprep.subr.mxu0 0.0
    %1187 = vmatpush1.msra.mxu0 0.0
    %1188 = vmatprep.subr.mxu0 0.0
    %1189 = vmatpush1.msra.mxu0 0.0
    %1190 = vmatprep.subr.mxu0 0.0
    %1191 = vmatpush1.msra.mxu0 0.0
    %1192 = vmatprep.subr.mxu0 0.0
    %1193 = vmatpush1.msra.mxu0 0.0
    %1194 = vmatprep.subr.mxu0 0.0
    %1195 = vmatpush1.msra.mxu0 0.0
    %1196 = vmatprep.subr.mxu0 0.0
    %1197 = vmatpush1.msra.mxu0 0.0
    %1198 = vmatprep.subr.mxu0 0.0
    %1199 = vmatpush1.msra.mxu0 0.0
    %1200 = vmatprep.subr.mxu0 0.0
    %1201 = vmatpush1.msra.mxu0 0.0
    %1202 = vmatprep.subr.mxu0 0.0
    %1203 = vmatpush1.msra.mxu0 0.0
    %1204 = vmatprep.subr.mxu0 0.0
    %1205 = vmatpush1.msra.mxu0 0.0
    %1206 = vmatprep.subr.mxu0 0.0
    %1207 = vmatpush1.msra.mxu0 0.0
    %1208 = vmatprep.subr.mxu0 0.0
    %1209 = vmatpush1.msra.mxu0 0.0
    %1210 = vmatprep.subr.mxu0 0.0
    %1211 = vmatpush1.msra.mxu0 0.0
    %1212 = vmatprep.subr.mxu0 0.0
    %1213 = vmatpush1.msra.mxu0 0.0
    %1214 = vmatprep.subr.mxu0 0.0
    %1215 = vmatpush1.msra.mxu0 0.0
    %1216 = vmatprep.subr.mxu0 0.0
    %1217 = vmatpush1.msra.mxu0 0.0
    %1218 = vmatprep.subr.mxu0 0.0
    %1219 = vmatpush1.msra.mxu0 0.0
    %1220 = vmatprep.subr.mxu0 0.0
    %1221 = vmatpush1.msra.mxu0 0.0
    %1222 = vmatprep.subr.mxu0 0.0
    %1223 = vmatpush1.msra.mxu0 0.0
    %1224 = vmatprep.subr.mxu0 0.0
    %1225 = vmatpush1.msra.mxu0 0.0
    %1226 = vmatprep.subr.mxu0 0.0
    %1227 = vmatpush1.msra.mxu0 0.0
    %1228 = vmatprep.subr.mxu0 0.0
    %1229 = vmatpush1.msra.mxu0 0.0
    %1230 = vmatprep.subr.mxu0 0.0
    %1231 = vmatpush1.msra.mxu0 0.0
    %1232 = vmatprep.mubr.f32.mxu0 0.0
    %1233 = vmatmul.mubr.f32.gmra.mrb[0].mxu0 %v1073
    %v1234 = vpop.f32.mrb[0].mxu0
    %v1235 = vadd.f32 0.0, %v1234
    %v1236 = vpop.f32.mrb[0].mxu0
    %1237 = vmatprep.mubr.f32.mxu0 0.0
    %1238 = vmatmul.mubr.f32.gmra.mrb[0].mxu0 %v1076
    %v1239 = vpop.f32.mrb[0].mxu0
    %v1240 = vadd.f32 0.0, %v1239
    %v1241 = vpop.f32.mrb[0].mxu0
    %1242 = vmatprep.mubr.f32.mxu0 0.0
    %1243 = vmatmul.mubr.f32.gmra.mrb[0].mxu0 %v1079
    %v1244 = vpop.f32.mrb[0].mxu0
    %v1245 = vadd.f32 0.0, %v1244
    %v1246 = vpop.f32.mrb[0].mxu0
    %1247 = vmatprep.mubr.f32.mxu0 0.0
    %1248 = vmatmul.mubr.f32.gmra.mrb[0].mxu0 %v1082
    %v1249 = vpop.f32.mrb[0].mxu0
    %v1250 = vadd.f32 0.0, %v1249
    %v1251 = vpop.f32.mrb[0].mxu0
    %1252 = vmatprep.mubr.f32.mxu0 0.0
    %1253 = vmatmul.mubr.f32.gmra.mrb[0].mxu0 %v1085
    %v1254 = vpop.f32.mrb[0].mxu0
    %v1255 = vadd.f32 0.0, %v1254
    %v1256 = vpop.f32.mrb[0].mxu0
    %1257 = vmatprep.mubr.f32.mxu0 0.0
    %1258 = vmatmul.mubr.f32.gmra.mrb[0].mxu0 %v1088
    %v1259 = vpop.f32.mrb[0].mxu0
    %v1260 = vadd.f32 0.0, %v1259
    %v1261 = vpop.f32.mrb[0].mxu0
    %1262 = vmatprep.mubr.f32.mxu0 0.0
    %1263 = vmatmul.mubr.f32.gmra.mrb[0].mxu0 %v1091
    %v1264 = vpop.f32.mrb[0].mxu0
    %v1265 = vadd.f32 0.0, %v1264
    %v1266 = vpop.f32.mrb[0].mxu0
    %1267 = vmatprep.mubr.f32.mxu0 0.0
    %1268 = vmatmul.mubr.f32.gmra.mrb[0].mxu0 %v1094
    %v1269 = vpop.f32.mrb[0].mxu0
    %v1270 = vadd.f32 0.0, %v1269
    %v1271 = vpop.f32.mrb[0].mxu0
    %1272 = vmatprep.mubr.f32.mxu0 0.0
    %1273 = vmatmul.mubr.f32.gmra.mrb[0].mxu0 %v1097
    %v1274 = vpop.f32.mrb[0].mxu0
    %v1275 = vadd.f32 0.0, %v1274
    %v1276 = vpop.f32.mrb[0].mxu0
    %1277 = vmatprep.mubr.f32.mxu0 0.0
    %1278 = vmatmul.mubr.f32.gmra.mrb[0].mxu0 %v1100
    %v1279 = vpop.f32.mrb[0].mxu0
    %v1280 = vadd.f32 0.0, %v1279
    %v1281 = vpop.f32.mrb[0].mxu0
    %1282 = vmatprep.mubr.f32.mxu0 0.0
    %1283 = vmatmul.mubr.f32.gmra.mrb[0].mxu0 %v1103
    %v1284 = vpop.f32.mrb[0].mxu0
    %v1285 = vadd.f32 0.0, %v1284
    %v1286 = vpop.f32.mrb[0].mxu0
    %1287 = vmatprep.mubr.f32.mxu0 0.0
    %1288 = vmatmul.mubr.f32.gmra.mrb[0].mxu0 %v1106
    %v1289 = vpop.f32.mrb[0].mxu0
    %v1290 = vadd.f32 0.0, %v1289
    %v1291 = vpop.f32.mrb[0].mxu0
    %1292 = vmatprep.mubr.f32.mxu0 0.0
    %1293 = vmatmul.mubr.f32.gmra.mrb[0].mxu0 %v1109
    %v1294 = vpop.f32.mrb[0].mxu0
    %v1295 = vadd.f32 0.0, %v1294
    %v1296 = vpop.f32.mrb[0].mxu0
    %1297 = vmatprep.mubr.f32.mxu0 0.0
    %1298 = vmatmul.mubr.f32.gmra.mrb[0].mxu0 %v1112
    %v1299 = vpop.f32.mrb[0].mxu0
    %v1300 = vadd.f32 0.0, %v1299
    %v1301 = vpop.f32.mrb[0].mxu0
    %1302 = vmatprep.mubr.f32.mxu0 0.0
    %1303 = vmatmul.mubr.f32.gmra.mrb[0].mxu0 %v1115
    %v1304 = vpop.f32.mrb[0].mxu0
    %v1305 = vadd.f32 0.0, %v1304
    %v1306 = vpop.f32.mrb[0].mxu0
    %1307 = vmatprep.mubr.f32.mxu0 0.0
    %1308 = vmatmul.mubr.f32.gmra.mrb[0].mxu0 %v1118
    %v1309 = vpop.f32.mrb[0].mxu0
    %v1310 = vadd.f32 0.0, %v1309
    %v1311 = vpop.f32.mrb[0].mxu0
    %1312 = vmatprep.mubr.f32.mxu0 0.0
    %1313 = vmatmul.mubr.f32.gmra.mrb[0].mxu0 %v1121
    %v1314 = vpop.f32.mrb[0].mxu0
    %v1315 = vadd.f32 0.0, %v1314
    %v1316 = vpop.f32.mrb[0].mxu0
    %1317 = vmatprep.mubr.f32.mxu0 0.0
    %1318 = vmatmul.mubr.f32.gmra.mrb[0].mxu0 %v1124
    %v1319 = vpop.f32.mrb[0].mxu0
    %v1320 = vadd.f32 0.0, %v1319
    %v1321 = vpop.f32.mrb[0].mxu0
    %1322 = vmatprep.mubr.f32.mxu0 0.0
    %1323 = vmatmul.mubr.f32.gmra.mrb[0].mxu0 %v1127
    %v1324 = vpop.f32.mrb[0].mxu0
    %v1325 = vadd.f32 0.0, %v1324
    %v1326 = vpop.f32.mrb[0].mxu0
    %1327 = vmatprep.mubr.f32.mxu0 0.0
    %1328 = vmatmul.mubr.f32.gmra.mrb[0].mxu0 %v1130
    %v1329 = vpop.f32.mrb[0].mxu0
    %v1330 = vadd.f32 0.0, %v1329
    %v1331 = vpop.f32.mrb[0].mxu0
    %1332 = vmatprep.mubr.f32.mxu0 0.0
    %1333 = vmatmul.mubr.f32.gmra.mrb[0].mxu0 %v1133
    %v1334 = vpop.f32.mrb[0].mxu0
    %v1335 = vadd.f32 0.0, %v1334
    %v1336 = vpop.f32.mrb[0].mxu0
    %1337 = vmatprep.mubr.f32.mxu0 0.0
    %1338 = vmatmul.mubr.f32.gmra.mrb[0].mxu0 %v1136
    %v1339 = vpop.f32.mrb[0].mxu0
    %v1340 = vadd.f32 0.0, %v1339
    %v1341 = vpop.f32.mrb[0].mxu0
    %1342 = vmatprep.mubr.f32.mxu0 0.0
    %1343 = vmatmul.mubr.f32.gmra.mrb[0].mxu0 %v1139
    %v1344 = vpop.f32.mrb[0].mxu0
    %v1345 = vadd.f32 0.0, %v1344
    %v1346 = vpop.f32.mrb[0].mxu0
    %1347 = vmatprep.mubr.f32.mxu0 0.0
    %1348 = vmatmul.mubr.f32.gmra.mrb[0].mxu0 %v1142
    %v1349 = vpop.f32.mrb[0].mxu0
    %v1350 = vadd.f32 0.0, %v1349
    %v1351 = vpop.f32.mrb[0].mxu0
    %1352 = vmatprep.mubr.f32.mxu0 0.0
    %1353 = vmatmul.mubr.f32.gmra.mrb[0].mxu0 %v1145
    %v1354 = vpop.f32.mrb[0].mxu0
    %v1355 = vadd.f32 0.0, %v1354
    %v1356 = vpop.f32.mrb[0].mxu0
    %1357 = vmatprep.mubr.f32.mxu0 0.0
    %1358 = vmatmul.mubr.f32.gmra.mrb[0].mxu0 %v1148
    %v1359 = vpop.f32.mrb[0].mxu0
    %v1360 = vadd.f32 0.0, %v1359
    %v1361 = vpop.f32.mrb[0].mxu0
    %1362 = vmatprep.mubr.f32.mxu0 0.0
    %1363 = vmatmul.mubr.f32.gmra.mrb[0].mxu0 %v1151
    %v1364 = vpop.f32.mrb[0].mxu0
    %v1365 = vadd.f32 0.0, %v1364
    %v1366 = vpop.f32.mrb[0].mxu0
    %1367 = vmatprep.mubr.f32.mxu0 0.0
    %1368 = vmatmul.mubr.f32.gmra.mrb[0].mxu0 %v1154
    %v1369 = vpop.f32.mrb[0].mxu0
    %v1370 = vadd.f32 0.0, %v1369
    %v1371 = vpop.f32.mrb[0].mxu0
    %1372 = vmatprep.mubr.f32.mxu0 0.0
    %1373 = vmatmul.mubr.f32.gmra.mrb[0].mxu0 %v1157
    %v1374 = vpop.f32.mrb[0].mxu0
    %v1375 = vadd.f32 0.0, %v1374
    %v1376 = vpop.f32.mrb[0].mxu0
    %1377 = vmatprep.mubr.f32.mxu0 0.0
    %1378 = vmatmul.mubr.f32.gmra.mrb[0].mxu0 %v1160
    %v1379 = vpop.f32.mrb[0].mxu0
    %v1380 = vadd.f32 0.0, %v1379
    %v1381 = vpop.f32.mrb[0].mxu0
    %1382 = vmatprep.mubr.f32.mxu0 0.0
    %1383 = vmatmul.mubr.f32.gmra.mrb[0].mxu0 %v1163
    %v1384 = vpop.f32.mrb[0].mxu0
    %v1385 = vadd.f32 0.0, %v1384
    %v1386 = vpop.f32.mrb[0].mxu0
    %1387 = vmatprep.mubr.f32.mxu0 0.0
    %1388 = vmatmul.mubr.f32.gmra.mrb[0].mxu0 %v1166
    %v1389 = vpop.f32.mrb[0].mxu0
    %v1390 = vadd.f32 0.0, %v1389
    %v1391 = vpop.f32.mrb[0].mxu0
    %1392 = vdwg.mxu0
    %vm1393 = vcmask 523264
    %v1395 = vsel %vm1393, %v998, 0
    %v1398 = vsel %vm1393, %v999, 0
    %v1401 = vsel %vm1393, %v1000, 0
    %v1404 = vsel %vm1393, %v1001, 0
    %v1407 = vsel %vm1393, %v1002, 0
    %v1410 = vsel %vm1393, %v1003, 0
    %v1413 = vsel %vm1393, %v1004, 0
    %v1416 = vsel %vm1393, %v1005, 0
    %v1419 = vsel %vm1393, %v1006, 0
    %v1422 = vsel %vm1393, %v1007, 0
    %v1425 = vsel %vm1393, %v1008, 0
    %v1428 = vsel %vm1393, %v1009, 0
    %v1431 = vsel %vm1393, %v1010, 0
    %v1434 = vsel %vm1393, %v1011, 0
    %v1437 = vsel %vm1393, %v1012, 0
    %v1440 = vsel %vm1393, %v1013, 0
    %v1443 = vsel %vm1393, %v1014, 0
    %v1446 = vsel %vm1393, %v1015, 0
    %v1449 = vsel %vm1393, %v1016, 0
    %v1452 = vsel %vm1393, %v1017, 0
    %v1455 = vsel %vm1393, %v1018, 0
    %v1458 = vsel %vm1393, %v1019, 0
    %v1461 = vsel %vm1393, %v1020, 0
    %v1464 = vsel %vm1393, %v1021, 0
    %v1467 = vsel %vm1393, %v1022, 0
    %v1470 = vsel %vm1393, %v1023, 0
    %v1473 = vsel %vm1393, %v1024, 0
    %v1476 = vsel %vm1393, %v1025, 0
    %v1479 = vsel %vm1393, %v1026, 0
    %v1482 = vsel %vm1393, %v1027, 0
    %v1485 = vsel %vm1393, %v1028, 0
    %v1488 = vsel %vm1393, %v1029, 0
    %1490 = vmatprep.subr.mxu0 0.0
    %1491 = vmatpush1.msra.mxu0 %v1030
    %1492 = vmatprep.subr.mxu0 0.0
    %1493 = vmatpush1.msra.mxu0 %v1031
    %1494 = vmatprep.subr.mxu0 0.0
    %1495 = vmatpush1.msra.mxu0 %v1032
    %1496 = vmatprep.subr.mxu0 0.0
    %1497 = vmatpush1.msra.mxu0 %v1033
    %1498 = vmatprep.subr.mxu0 0.0
    %1499 = vmatpush1.msra.mxu0 %v1034
    %1500 = vmatprep.subr.mxu0 0.0
    %1501 = vmatpush1.msra.mxu0 %v1035
    %1502 = vmatprep.subr.mxu0 0.0
    %1503 = vmatpush1.msra.mxu0 %v1036
    %1504 = vmatprep.subr.mxu0 0.0
    %1505 = vmatpush1.msra.mxu0 %v1037
    %1506 = vmatprep.subr.mxu0 0.0
    %1507 = vmatpush1.msra.mxu0 0.0
    %1508 = vmatprep.subr.mxu0 0.0
    %1509 = vmatpush1.msra.mxu0 0.0
    %1510 = vmatprep.subr.mxu0 0.0
    %1511 = vmatpush1.msra.mxu0 0.0
    %1512 = vmatprep.subr.mxu0 0.0
    %1513 = vmatpush1.msra.mxu0 0.0
    %1514 = vmatprep.subr.mxu0 0.0
    %1515 = vmatpush1.msra.mxu0 0.0
    %1516 = vmatprep.subr.mxu0 0.0
    %1517 = vmatpush1.msra.mxu0 0.0
    %1518 = vmatprep.subr.mxu0 0.0
    %1519 = vmatpush1.msra.mxu0 0.0
    %1520 = vmatprep.subr.mxu0 0.0
    %1521 = vmatpush1.msra.mxu0 0.0
    %1522 = vmatprep.subr.mxu0 0.0
    %1523 = vmatpush1.msra.mxu0 0.0
    %1524 = vmatprep.subr.mxu0 0.0
    %1525 = vmatpush1.msra.mxu0 0.0
    %1526 = vmatprep.subr.mxu0 0.0
    %1527 = vmatpush1.msra.mxu0 0.0
    %1528 = vmatprep.subr.mxu0 0.0
    %1529 = vmatpush1.msra.mxu0 0.0
    %1530 = vmatprep.subr.mxu0 0.0
    %1531 = vmatpush1.msra.mxu0 0.0
    %1532 = vmatprep.subr.mxu0 0.0
    %1533 = vmatpush1.msra.mxu0 0.0
    %1534 = vmatprep.subr.mxu0 0.0
    %1535 = vmatpush1.msra.mxu0 0.0
    %1536 = vmatprep.subr.mxu0 0.0
    %1537 = vmatpush1.msra.mxu0 0.0
    %1538 = vmatprep.subr.mxu0 0.0
    %1539 = vmatpush1.msra.mxu0 0.0
    %1540 = vmatprep.subr.mxu0 0.0
    %1541 = vmatpush1.msra.mxu0 0.0
    %1542 = vmatprep.subr.mxu0 0.0
    %1543 = vmatpush1.msra.mxu0 0.0
    %1544 = vmatprep.subr.mxu0 0.0
    %1545 = vmatpush1.msra.mxu0 0.0
    %1546 = vmatprep.subr.mxu0 0.0
    %1547 = vmatpush1.msra.mxu0 0.0
    %1548 = vmatprep.subr.mxu0 0.0
    %1549 = vmatpush1.msra.mxu0 0.0
    %1550 = vmatprep.subr.mxu0 0.0
    %1551 = vmatpush1.msra.mxu0 0.0
    %1552 = vmatprep.subr.mxu0 0.0
    %1553 = vmatpush1.msra.mxu0 0.0
    %1554 = vmatprep.mubr.f32.mxu0 0.0
    %1555 = vmatmul.mubr.f32.gmra.mrb[0].mxu0 %v1395
    %v1556 = vpop.f32.mrb[0].mxu0
    %v1557 = vadd.f32 %v1235, %v1556
    %v1558 = vpop.f32.mrb[0].mxu0
    %1559 = vmatprep.mubr.f32.mxu0 0.0
    %1560 = vmatmul.mubr.f32.gmra.mrb[0].mxu0 %v1398
    %v1561 = vpop.f32.mrb[0].mxu0
    %v1562 = vadd.f32 %v1240, %v1561
    %v1563 = vpop.f32.mrb[0].mxu0
    %1564 = vmatprep.mubr.f32.mxu0 0.0
    %1565 = vmatmul.mubr.f32.gmra.mrb[0].mxu0 %v1401
    %v1566 = vpop.f32.mrb[0].mxu0
    %v1567 = vadd.f32 %v1245, %v1566
    %v1568 = vpop.f32.mrb[0].mxu0
    %1569 = vmatprep.mubr.f32.mxu0 0.0
    %1570 = vmatmul.mubr.f32.gmra.mrb[0].mxu0 %v1404
    %v1571 = vpop.f32.mrb[0].mxu0
    %v1572 = vadd.f32 %v1250, %v1571
    %v1573 = vpop.f32.mrb[0].mxu0
    %1574 = vmatprep.mubr.f32.mxu0 0.0
    %1575 = vmatmul.mubr.f32.gmra.mrb[0].mxu0 %v1407
    %v1576 = vpop.f32.mrb[0].mxu0
    %v1577 = vadd.f32 %v1255, %v1576
    %v1578 = vpop.f32.mrb[0].mxu0
    %1579 = vmatprep.mubr.f32.mxu0 0.0
    %1580 = vmatmul.mubr.f32.gmra.mrb[0].mxu0 %v1410
    %v1581 = vpop.f32.mrb[0].mxu0
    %v1582 = vadd.f32 %v1260, %v1581
    %v1583 = vpop.f32.mrb[0].mxu0
    %1584 = vmatprep.mubr.f32.mxu0 0.0
    %1585 = vmatmul.mubr.f32.gmra.mrb[0].mxu0 %v1413
    %v1586 = vpop.f32.mrb[0].mxu0
    %v1587 = vadd.f32 %v1265, %v1586
    %v1588 = vpop.f32.mrb[0].mxu0
    %1589 = vmatprep.mubr.f32.mxu0 0.0
    %1590 = vmatmul.mubr.f32.gmra.mrb[0].mxu0 %v1416
    %v1591 = vpop.f32.mrb[0].mxu0
    %v1592 = vadd.f32 %v1270, %v1591
    %v1593 = vpop.f32.mrb[0].mxu0
    %1594 = vmatprep.mubr.f32.mxu0 0.0
    %1595 = vmatmul.mubr.f32.gmra.mrb[0].mxu0 %v1419
    %v1596 = vpop.f32.mrb[0].mxu0
    %v1597 = vadd.f32 %v1275, %v1596
    %v1598 = vpop.f32.mrb[0].mxu0
    %1599 = vmatprep.mubr.f32.mxu0 0.0
    %1600 = vmatmul.mubr.f32.gmra.mrb[0].mxu0 %v1422
    %v1601 = vpop.f32.mrb[0].mxu0
    %v1602 = vadd.f32 %v1280, %v1601
    %v1603 = vpop.f32.mrb[0].mxu0
    %1604 = vmatprep.mubr.f32.mxu0 0.0
    %1605 = vmatmul.mubr.f32.gmra.mrb[0].mxu0 %v1425
    %v1606 = vpop.f32.mrb[0].mxu0
    %v1607 = vadd.f32 %v1285, %v1606
    %v1608 = vpop.f32.mrb[0].mxu0
    %1609 = vmatprep.mubr.f32.mxu0 0.0
    %1610 = vmatmul.mubr.f32.gmra.mrb[0].mxu0 %v1428
    %v1611 = vpop.f32.mrb[0].mxu0
    %v1612 = vadd.f32 %v1290, %v1611
    %v1613 = vpop.f32.mrb[0].mxu0
    %1614 = vmatprep.mubr.f32.mxu0 0.0
    %1615 = vmatmul.mubr.f32.gmra.mrb[0].mxu0 %v1431
    %v1616 = vpop.f32.mrb[0].mxu0
    %v1617 = vadd.f32 %v1295, %v1616
    %v1618 = vpop.f32.mrb[0].mxu0
    %1619 = vmatprep.mubr.f32.mxu0 0.0
    %1620 = vmatmul.mubr.f32.gmra.mrb[0].mxu0 %v1434
    %v1621 = vpop.f32.mrb[0].mxu0
    %v1622 = vadd.f32 %v1300, %v1621
    %v1623 = vpop.f32.mrb[0].mxu0
    %1624 = vmatprep.mubr.f32.mxu0 0.0
    %1625 = vmatmul.mubr.f32.gmra.mrb[0].mxu0 %v1437
    %v1626 = vpop.f32.mrb[0].mxu0
    %v1627 = vadd.f32 %v1305, %v1626
    %v1628 = vpop.f32.mrb[0].mxu0
    %1629 = vmatprep.mubr.f32.mxu0 0.0
    %1630 = vmatmul.mubr.f32.gmra.mrb[0].mxu0 %v1440
    %v1631 = vpop.f32.mrb[0].mxu0
    %v1632 = vadd.f32 %v1310, %v1631
    %v1633 = vpop.f32.mrb[0].mxu0
    %1634 = vmatprep.mubr.f32.mxu0 0.0
    %1635 = vmatmul.mubr.f32.gmra.mrb[0].mxu0 %v1443
    %v1636 = vpop.f32.mrb[0].mxu0
    %v1637 = vadd.f32 %v1315, %v1636
    %v1638 = vpop.f32.mrb[0].mxu0
    %1639 = vmatprep.mubr.f32.mxu0 0.0
    %1640 = vmatmul.mubr.f32.gmra.mrb[0].mxu0 %v1446
    %v1641 = vpop.f32.mrb[0].mxu0
    %v1642 = vadd.f32 %v1320, %v1641
    %v1643 = vpop.f32.mrb[0].mxu0
    %1644 = vmatprep.mubr.f32.mxu0 0.0
    %1645 = vmatmul.mubr.f32.gmra.mrb[0].mxu0 %v1449
    %v1646 = vpop.f32.mrb[0].mxu0
    %v1647 = vadd.f32 %v1325, %v1646
    %v1648 = vpop.f32.mrb[0].mxu0
    %1649 = vmatprep.mubr.f32.mxu0 0.0
    %1650 = vmatmul.mubr.f32.gmra.mrb[0].mxu0 %v1452
    %v1651 = vpop.f32.mrb[0].mxu0
    %v1652 = vadd.f32 %v1330, %v1651
    %v1653 = vpop.f32.mrb[0].mxu0
    %1654 = vmatprep.mubr.f32.mxu0 0.0
    %1655 = vmatmul.mubr.f32.gmra.mrb[0].mxu0 %v1455
    %v1656 = vpop.f32.mrb[0].mxu0
    %v1657 = vadd.f32 %v1335, %v1656
    %v1658 = vpop.f32.mrb[0].mxu0
    %1659 = vmatprep.mubr.f32.mxu0 0.0
    %1660 = vmatmul.mubr.f32.gmra.mrb[0].mxu0 %v1458
    %v1661 = vpop.f32.mrb[0].mxu0
    %v1662 = vadd.f32 %v1340, %v1661
    %v1663 = vpop.f32.mrb[0].mxu0
    %1664 = vmatprep.mubr.f32.mxu0 0.0
    %1665 = vmatmul.mubr.f32.gmra.mrb[0].mxu0 %v1461
    %v1666 = vpop.f32.mrb[0].mxu0
    %v1667 = vadd.f32 %v1345, %v1666
    %v1668 = vpop.f32.mrb[0].mxu0
    %1669 = vmatprep.mubr.f32.mxu0 0.0
    %1670 = vmatmul.mubr.f32.gmra.mrb[0].mxu0 %v1464
    %v1671 = vpop.f32.mrb[0].mxu0
    %v1672 = vadd.f32 %v1350, %v1671
    %v1673 = vpop.f32.mrb[0].mxu0
    %1674 = vmatprep.mubr.f32.mxu0 0.0
    %1675 = vmatmul.mubr.f32.gmra.mrb[0].mxu0 %v1467
    %v1676 = vpop.f32.mrb[0].mxu0
    %v1677 = vadd.f32 %v1355, %v1676
    %v1678 = vpop.f32.mrb[0].mxu0
    %1679 = vmatprep.mubr.f32.mxu0 0.0
    %1680 = vmatmul.mubr.f32.gmra.mrb[0].mxu0 %v1470
    %v1681 = vpop.f32.mrb[0].mxu0
    %v1682 = vadd.f32 %v1360, %v1681
    %v1683 = vpop.f32.mrb[0].mxu0
    %1684 = vmatprep.mubr.f32.mxu0 0.0
    %1685 = vmatmul.mubr.f32.gmra.mrb[0].mxu0 %v1473
    %v1686 = vpop.f32.mrb[0].mxu0
    %v1687 = vadd.f32 %v1365, %v1686
    %v1688 = vpop.f32.mrb[0].mxu0
    %1689 = vmatprep.mubr.f32.mxu0 0.0
    %1690 = vmatmul.mubr.f32.gmra.mrb[0].mxu0 %v1476
    %v1691 = vpop.f32.mrb[0].mxu0
    %v1692 = vadd.f32 %v1370, %v1691
    %v1693 = vpop.f32.mrb[0].mxu0
    %1694 = vmatprep.mubr.f32.mxu0 0.0
    %1695 = vmatmul.mubr.f32.gmra.mrb[0].mxu0 %v1479
    %v1696 = vpop.f32.mrb[0].mxu0
    %v1697 = vadd.f32 %v1375, %v1696
    %v1698 = vpop.f32.mrb[0].mxu0
    %1699 = vmatprep.mubr.f32.mxu0 0.0
    %1700 = vmatmul.mubr.f32.gmra.mrb[0].mxu0 %v1482
    %v1701 = vpop.f32.mrb[0].mxu0
    %v1702 = vadd.f32 %v1380, %v1701
    %v1703 = vpop.f32.mrb[0].mxu0
    %1704 = vmatprep.mubr.f32.mxu0 0.0
    %1705 = vmatmul.mubr.f32.gmra.mrb[0].mxu0 %v1485
    %v1706 = vpop.f32.mrb[0].mxu0
    %v1707 = vadd.f32 %v1385, %v1706
    %v1708 = vpop.f32.mrb[0].mxu0
    %1709 = vmatprep.mubr.f32.mxu0 0.0
    %1710 = vmatmul.mubr.f32.gmra.mrb[0].mxu0 %v1488
    %v1711 = vpop.f32.mrb[0].mxu0
    %v1712 = vadd.f32 %v1390, %v1711
    %v1713 = vpop.f32.mrb[0].mxu0
    %1714 = vdwg.mxu0
    %v1715 = vld [vmem:[#allocation13] sm:$0x1]
    %v1717 = vlaneseq
    %v1718 = vshrl.u32 %v1717, 7
    %v1719 = vsub.s32 0, %v1718
    %v1720 = vrot.slane %v1715, %v1719
    %v1722 = vadd.f32 %v1557, %v1720
    %v1723 = vadd.f32 %v1562, %v1720
    %v1724 = vadd.f32 %v1567, %v1720
    %v1725 = vadd.f32 %v1572, %v1720
    %v1726 = vadd.f32 %v1577, %v1720
    %v1727 = vadd.f32 %v1582, %v1720
    %v1728 = vadd.f32 %v1587, %v1720
    %v1729 = vadd.f32 %v1592, %v1720
    %v1730 = vadd.f32 %v1597, %v1720
    %v1731 = vadd.f32 %v1602, %v1720
    %v1732 = vadd.f32 %v1607, %v1720
    %v1733 = vadd.f32 %v1612, %v1720
    %v1734 = vadd.f32 %v1617, %v1720
    %v1735 = vadd.f32 %v1622, %v1720
    %v1736 = vadd.f32 %v1627, %v1720
    %v1737 = vadd.f32 %v1632, %v1720
    %v1738 = vadd.f32 %v1637, %v1720
    %v1739 = vadd.f32 %v1642, %v1720
    %v1740 = vadd.f32 %v1647, %v1720
    %v1741 = vadd.f32 %v1652, %v1720
    %v1742 = vadd.f32 %v1657, %v1720
    %v1743 = vadd.f32 %v1662, %v1720
    %v1744 = vadd.f32 %v1667, %v1720
    %v1745 = vadd.f32 %v1672, %v1720
    %v1746 = vadd.f32 %v1677, %v1720
    %v1747 = vadd.f32 %v1682, %v1720
    %v1748 = vadd.f32 %v1687, %v1720
    %v1749 = vadd.f32 %v1692, %v1720
    %v1750 = vadd.f32 %v1697, %v1720
    %v1751 = vadd.f32 %v1702, %v1720
    %v1752 = vadd.f32 %v1707, %v1720
    %v1753 = vadd.f32 %v1712, %v1720
    %v1754 = vld [vmem:[#allocation5] sm:$0xff]
    %v1755 = vld [vmem:[#allocation5 + $0x8] sm:$0xff]
    %v1756 = vld [vmem:[#allocation5 + $0x10] sm:$0xff]
    %v1757 = vld [vmem:[#allocation5 + $0x18] sm:$0xff]
    %v1758 = vld [vmem:[#allocation5 + $0x20] sm:$0xff]
    %v1759 = vld [vmem:[#allocation5 + $0x28] sm:$0xff]
    %v1760 = vld [vmem:[#allocation5 + $0x30] sm:$0xff]
    %v1761 = vld [vmem:[#allocation5 + $0x38] sm:$0xff]
    %v1762 = vld [vmem:[#allocation5 + $0x40] sm:$0xff]
    %v1763 = vld [vmem:[#allocation5 + $0x48] sm:$0xff]
    %v1764 = vld [vmem:[#allocation5 + $0x50] sm:$0xff]
    %v1765 = vld [vmem:[#allocation5 + $0x58] sm:$0xff]
    %v1766 = vld [vmem:[#allocation5 + $0x60] sm:$0xff]
    %v1767 = vld [vmem:[#allocation5 + $0x68] sm:$0xff]
    %v1768 = vld [vmem:[#allocation5 + $0x70] sm:$0xff]
    %v1769 = vld [vmem:[#allocation5 + $0x78] sm:$0xff]
    %v1770 = vld [vmem:[#allocation5 + $0x80] sm:$0xff]
    %v1771 = vld [vmem:[#allocation5 + $0x88] sm:$0xff]
    %v1772 = vld [vmem:[#allocation5 + $0x90] sm:$0xff]
    %v1773 = vld [vmem:[#allocation5 + $0x98] sm:$0xff]
    %v1774 = vld [vmem:[#allocation5 + $0xa0] sm:$0xff]
    %v1775 = vld [vmem:[#allocation5 + $0xa8] sm:$0xff]
    %v1776 = vld [vmem:[#allocation5 + $0xb0] sm:$0xff]
    %v1777 = vld [vmem:[#allocation5 + $0xb8] sm:$0xff]
    %v1778 = vld [vmem:[#allocation5 + $0xc0] sm:$0xff]
    %v1779 = vld [vmem:[#allocation5 + $0xc8] sm:$0xff]
    %v1780 = vld [vmem:[#allocation5 + $0xd0] sm:$0xff]
    %v1781 = vld [vmem:[#allocation5 + $0xd8] sm:$0xff]
    %v1782 = vld [vmem:[#allocation5 + $0xe0] sm:$0xff]
    %v1783 = vld [vmem:[#allocation5 + $0xe8] sm:$0xff]
    %v1784 = vld [vmem:[#allocation5 + $0xf0] sm:$0xff]
    %v1785 = vld [vmem:[#allocation5 + $0xf8] sm:$0xff]
    %v1786 = vadd.f32 %v1722, %v1754
    %v1787 = vadd.f32 %v1723, %v1755
    %v1788 = vadd.f32 %v1724, %v1756
    %v1789 = vadd.f32 %v1725, %v1757
    %v1790 = vadd.f32 %v1726, %v1758
    %v1791 = vadd.f32 %v1727, %v1759
    %v1792 = vadd.f32 %v1728, %v1760
    %v1793 = vadd.f32 %v1729, %v1761
    %v1794 = vadd.f32 %v1730, %v1762
    %v1795 = vadd.f32 %v1731, %v1763
    %v1796 = vadd.f32 %v1732, %v1764
    %v1797 = vadd.f32 %v1733, %v1765
    %v1798 = vadd.f32 %v1734, %v1766
    %v1799 = vadd.f32 %v1735, %v1767
    %v1800 = vadd.f32 %v1736, %v1768
    %v1801 = vadd.f32 %v1737, %v1769
    %v1802 = vadd.f32 %v1738, %v1770
    %v1803 = vadd.f32 %v1739, %v1771
    %v1804 = vadd.f32 %v1740, %v1772
    %v1805 = vadd.f32 %v1741, %v1773
    %v1806 = vadd.f32 %v1742, %v1774
    %v1807 = vadd.f32 %v1743, %v1775
    %v1808 = vadd.f32 %v1744, %v1776
    %v1809 = vadd.f32 %v1745, %v1777
    %v1810 = vadd.f32 %v1746, %v1778
    %v1811 = vadd.f32 %v1747, %v1779
    %v1812 = vadd.f32 %v1748, %v1780
    %v1813 = vadd.f32 %v1749, %v1781
    %v1814 = vadd.f32 %v1750, %v1782
    %v1815 = vadd.f32 %v1751, %v1783
    %v1816 = vadd.f32 %v1752, %v1784
    %v1817 = vadd.f32 %v1753, %v1785
    %v1818 = vld [vmem:[#allocation16] sm:$0x1]
    %v1819 = vld [vmem:[#allocation16 + $0x1] sm:$0x1]
    %1820 = vadd.xlane.f32.xlu0 %v1786
    %v1821 = vpop.xlane.xlu0 %1820
    %1822 = vadd.xlane.f32.xlu0 %v1787
    %v1823 = vpop.xlane.xlu0 %1822
    %1824 = vadd.xlane.f32.xlu0 %v1788
    %v1825 = vpop.xlane.xlu0 %1824
    %1826 = vadd.xlane.f32.xlu0 %v1789
    %v1827 = vpop.xlane.xlu0 %1826
    %1828 = vadd.xlane.f32.xlu0 %v1790
    %v1829 = vpop.xlane.xlu0 %1828
    %1830 = vadd.xlane.f32.xlu0 %v1791
    %v1831 = vpop.xlane.xlu0 %1830
    %1832 = vadd.xlane.f32.xlu0 %v1792
    %v1833 = vpop.xlane.xlu0 %1832
    %1834 = vadd.xlane.f32.xlu0 %v1793
    %v1835 = vpop.xlane.xlu0 %1834
    %1836 = vadd.xlane.f32.xlu0 %v1794
    %v1837 = vpop.xlane.xlu0 %1836
    %1838 = vadd.xlane.f32.xlu0 %v1795
    %v1839 = vpop.xlane.xlu0 %1838
    %1840 = vadd.xlane.f32.xlu0 %v1796
    %v1841 = vpop.xlane.xlu0 %1840
    %1842 = vadd.xlane.f32.xlu0 %v1797
    %v1843 = vpop.xlane.xlu0 %1842
    %1844 = vadd.xlane.f32.xlu0 %v1798
    %v1845 = vpop.xlane.xlu0 %1844
    %1846 = vadd.xlane.f32.xlu0 %v1799
    %v1847 = vpop.xlane.xlu0 %1846
    %1848 = vadd.xlane.f32.xlu0 %v1800
    %v1849 = vpop.xlane.xlu0 %1848
    %1850 = vadd.xlane.f32.xlu0 %v1801
    %v1851 = vpop.xlane.xlu0 %1850
    %1852 = vadd.xlane.f32.xlu0 %v1802
    %v1853 = vpop.xlane.xlu0 %1852
    %1854 = vadd.xlane.f32.xlu0 %v1803
    %v1855 = vpop.xlane.xlu0 %1854
    %1856 = vadd.xlane.f32.xlu0 %v1804
    %v1857 = vpop.xlane.xlu0 %1856
    %1858 = vadd.xlane.f32.xlu0 %v1805
    %v1859 = vpop.xlane.xlu0 %1858
    %1860 = vadd.xlane.f32.xlu0 %v1806
    %v1861 = vpop.xlane.xlu0 %1860
    %1862 = vadd.xlane.f32.xlu0 %v1807
    %v1863 = vpop.xlane.xlu0 %1862
    %1864 = vadd.xlane.f32.xlu0 %v1808
    %v1865 = vpop.xlane.xlu0 %1864
    %1866 = vadd.xlane.f32.xlu0 %v1809
    %v1867 = vpop.xlane.xlu0 %1866
    %1868 = vadd.xlane.f32.xlu0 %v1810
    %v1869 = vpop.xlane.xlu0 %1868
    %1870 = vadd.xlane.f32.xlu0 %v1811
    %v1871 = vpop.xlane.xlu0 %1870
    %1872 = vadd.xlane.f32.xlu0 %v1812
    %v1873 = vpop.xlane.xlu0 %1872
    %1874 = vadd.xlane.f32.xlu0 %v1813
    %v1875 = vpop.xlane.xlu0 %1874
    %1876 = vadd.xlane.f32.xlu0 %v1814
    %v1877 = vpop.xlane.xlu0 %1876
    %1878 = vadd.xlane.f32.xlu0 %v1815
    %v1879 = vpop.xlane.xlu0 %1878
    %1880 = vadd.xlane.f32.xlu0 %v1816
    %v1881 = vpop.xlane.xlu0 %1880
    %1882 = vadd.xlane.f32.xlu0 %v1817
    %v1883 = vpop.xlane.xlu0 %1882
    %v1884 = vmul.f32 %v1821, %v637
    %v1885 = vmul.f32 %v1823, %v637
    %v1886 = vmul.f32 %v1825, %v637
    %v1887 = vmul.f32 %v1827, %v637
    %v1888 = vmul.f32 %v1829, %v637
    %v1889 = vmul.f32 %v1831, %v637
    %v1890 = vmul.f32 %v1833, %v637
    %v1891 = vmul.f32 %v1835, %v637
    %v1892 = vmul.f32 %v1837, %v637
    %v1893 = vmul.f32 %v1839, %v637
    %v1894 = vmul.f32 %v1841, %v637
    %v1895 = vmul.f32 %v1843, %v637
    %v1896 = vmul.f32 %v1845, %v637
    %v1897 = vmul.f32 %v1847, %v637
    %v1898 = vmul.f32 %v1849, %v637
    %v1899 = vmul.f32 %v1851, %v637
    %v1900 = vmul.f32 %v1853, %v637
    %v1901 = vmul.f32 %v1855, %v637
    %v1902 = vmul.f32 %v1857, %v637
    %v1903 = vmul.f32 %v1859, %v637
    %v1904 = vmul.f32 %v1861, %v637
    %v1905 = vmul.f32 %v1863, %v637
    %v1906 = vmul.f32 %v1865, %v637
    %v1907 = vmul.f32 %v1867, %v637
    %v1908 = vmul.f32 %v1869, %v637
    %v1909 = vmul.f32 %v1871, %v637
    %v1910 = vmul.f32 %v1873, %v637
    %v1911 = vmul.f32 %v1875, %v637
    %v1912 = vmul.f32 %v1877, %v637
    %v1913 = vmul.f32 %v1879, %v637
    %v1914 = vmul.f32 %v1881, %v637
    %v1915 = vmul.f32 %v1883, %v637
    %v1916 = vsub.f32 %v1786, %v1884
    %v1917 = vsub.f32 %v1787, %v1885
    %v1918 = vsub.f32 %v1788, %v1886
    %v1919 = vsub.f32 %v1789, %v1887
    %v1920 = vsub.f32 %v1790, %v1888
    %v1921 = vsub.f32 %v1791, %v1889
    %v1922 = vsub.f32 %v1792, %v1890
    %v1923 = vsub.f32 %v1793, %v1891
    %v1924 = vsub.f32 %v1794, %v1892
    %v1925 = vsub.f32 %v1795, %v1893
    %v1926 = vsub.f32 %v1796, %v1894
    %v1927 = vsub.f32 %v1797, %v1895
    %v1928 = vsub.f32 %v1798, %v1896
    %v1929 = vsub.f32 %v1799, %v1897
    %v1930 = vsub.f32 %v1800, %v1898
    %v1931 = vsub.f32 %v1801, %v1899
    %v1932 = vsub.f32 %v1802, %v1900
    %v1933 = vsub.f32 %v1803, %v1901
    %v1934 = vsub.f32 %v1804, %v1902
    %v1935 = vsub.f32 %v1805, %v1903
    %v1936 = vsub.f32 %v1806, %v1904
    %v1937 = vsub.f32 %v1807, %v1905
    %v1938 = vsub.f32 %v1808, %v1906
    %v1939 = vsub.f32 %v1809, %v1907
    %v1940 = vsub.f32 %v1810, %v1908
    %v1941 = vsub.f32 %v1811, %v1909
    %v1942 = vsub.f32 %v1812, %v1910
    %v1943 = vsub.f32 %v1813, %v1911
    %v1944 = vsub.f32 %v1814, %v1912
    %v1945 = vsub.f32 %v1815, %v1913
    %v1946 = vsub.f32 %v1816, %v1914
    %v1947 = vsub.f32 %v1817, %v1915
    %v1948 = vmul.f32 %v1916, %v1916
    %v1949 = vmul.f32 %v1917, %v1917
    %v1950 = vmul.f32 %v1918, %v1918
    %v1951 = vmul.f32 %v1919, %v1919
    %v1952 = vmul.f32 %v1920, %v1920
    %v1953 = vmul.f32 %v1921, %v1921
    %v1954 = vmul.f32 %v1922, %v1922
    %v1955 = vmul.f32 %v1923, %v1923
    %v1956 = vmul.f32 %v1924, %v1924
    %v1957 = vmul.f32 %v1925, %v1925
    %v1958 = vmul.f32 %v1926, %v1926
    %v1959 = vmul.f32 %v1927, %v1927
    %v1960 = vmul.f32 %v1928, %v1928
    %v1961 = vmul.f32 %v1929, %v1929
    %v1962 = vmul.f32 %v1930, %v1930
    %v1963 = vmul.f32 %v1931, %v1931
    %v1964 = vmul.f32 %v1932, %v1932
    %v1965 = vmul.f32 %v1933, %v1933
    %v1966 = vmul.f32 %v1934, %v1934
    %v1967 = vmul.f32 %v1935, %v1935
    %v1968 = vmul.f32 %v1936, %v1936
    %v1969 = vmul.f32 %v1937, %v1937
    %v1970 = vmul.f32 %v1938, %v1938
    %v1971 = vmul.f32 %v1939, %v1939
    %v1972 = vmul.f32 %v1940, %v1940
    %v1973 = vmul.f32 %v1941, %v1941
    %v1974 = vmul.f32 %v1942, %v1942
    %v1975 = vmul.f32 %v1943, %v1943
    %v1976 = vmul.f32 %v1944, %v1944
    %v1977 = vmul.f32 %v1945, %v1945
    %v1978 = vmul.f32 %v1946, %v1946
    %v1979 = vmul.f32 %v1947, %v1947
    %1980 = vadd.xlane.f32.xlu0 %v1948
    %v1981 = vpop.xlane.xlu0 %1980
    %1982 = vadd.xlane.f32.xlu0 %v1949
    %v1983 = vpop.xlane.xlu0 %1982
    %1984 = vadd.xlane.f32.xlu0 %v1950
    %v1985 = vpop.xlane.xlu0 %1984
    %1986 = vadd.xlane.f32.xlu0 %v1951
    %v1987 = vpop.xlane.xlu0 %1986
    %1988 = vadd.xlane.f32.xlu0 %v1952
    %v1989 = vpop.xlane.xlu0 %1988
    %1990 = vadd.xlane.f32.xlu0 %v1953
    %v1991 = vpop.xlane.xlu0 %1990
    %1992 = vadd.xlane.f32.xlu0 %v1954
    %v1993 = vpop.xlane.xlu0 %1992
    %1994 = vadd.xlane.f32.xlu0 %v1955
    %v1995 = vpop.xlane.xlu0 %1994
    %1996 = vadd.xlane.f32.xlu0 %v1956
    %v1997 = vpop.xlane.xlu0 %1996
    %1998 = vadd.xlane.f32.xlu0 %v1957
    %v1999 = vpop.xlane.xlu0 %1998
    %2000 = vadd.xlane.f32.xlu0 %v1958
    %v2001 = vpop.xlane.xlu0 %2000
    %2002 = vadd.xlane.f32.xlu0 %v1959
    %v2003 = vpop.xlane.xlu0 %2002
    %2004 = vadd.xlane.f32.xlu0 %v1960
    %v2005 = vpop.xlane.xlu0 %2004
    %2006 = vadd.xlane.f32.xlu0 %v1961
    %v2007 = vpop.xlane.xlu0 %2006
    %2008 = vadd.xlane.f32.xlu0 %v1962
    %v2009 = vpop.xlane.xlu0 %2008
    %2010 = vadd.xlane.f32.xlu0 %v1963
    %v2011 = vpop.xlane.xlu0 %2010
    %2012 = vadd.xlane.f32.xlu0 %v1964
    %v2013 = vpop.xlane.xlu0 %2012
    %2014 = vadd.xlane.f32.xlu0 %v1965
    %v2015 = vpop.xlane.xlu0 %2014
    %2016 = vadd.xlane.f32.xlu0 %v1966
    %v2017 = vpop.xlane.xlu0 %2016
    %2018 = vadd.xlane.f32.xlu0 %v1967
    %v2019 = vpop.xlane.xlu0 %2018
    %2020 = vadd.xlane.f32.xlu0 %v1968
    %v2021 = vpop.xlane.xlu0 %2020
    %2022 = vadd.xlane.f32.xlu0 %v1969
    %v2023 = vpop.xlane.xlu0 %2022
    %2024 = vadd.xlane.f32.xlu0 %v1970
    %v2025 = vpop.xlane.xlu0 %2024
    %2026 = vadd.xlane.f32.xlu0 %v1971
    %v2027 = vpop.xlane.xlu0 %2026
    %2028 = vadd.xlane.f32.xlu0 %v1972
    %v2029 = vpop.xlane.xlu0 %2028
    %2030 = vadd.xlane.f32.xlu0 %v1973
    %v2031 = vpop.xlane.xlu0 %2030
    %2032 = vadd.xlane.f32.xlu0 %v1974
    %v2033 = vpop.xlane.xlu0 %2032
    %2034 = vadd.xlane.f32.xlu0 %v1975
    %v2035 = vpop.xlane.xlu0 %2034
    %2036 = vadd.xlane.f32.xlu0 %v1976
    %v2037 = vpop.xlane.xlu0 %2036
    %2038 = vadd.xlane.f32.xlu0 %v1977
    %v2039 = vpop.xlane.xlu0 %2038
    %2040 = vadd.xlane.f32.xlu0 %v1978
    %v2041 = vpop.xlane.xlu0 %2040
    %2042 = vadd.xlane.f32.xlu0 %v1979
    %v2043 = vpop.xlane.xlu0 %2042
    %v2044 = vmul.f32 %v1981, %v637
    %v2045 = vmul.f32 %v1983, %v637
    %v2046 = vmul.f32 %v1985, %v637
    %v2047 = vmul.f32 %v1987, %v637
    %v2048 = vmul.f32 %v1989, %v637
    %v2049 = vmul.f32 %v1991, %v637
    %v2050 = vmul.f32 %v1993, %v637
    %v2051 = vmul.f32 %v1995, %v637
    %v2052 = vmul.f32 %v1997, %v637
    %v2053 = vmul.f32 %v1999, %v637
    %v2054 = vmul.f32 %v2001, %v637
    %v2055 = vmul.f32 %v2003, %v637
    %v2056 = vmul.f32 %v2005, %v637
    %v2057 = vmul.f32 %v2007, %v637
    %v2058 = vmul.f32 %v2009, %v637
    %v2059 = vmul.f32 %v2011, %v637
    %v2060 = vmul.f32 %v2013, %v637
    %v2061 = vmul.f32 %v2015, %v637
    %v2062 = vmul.f32 %v2017, %v637
    %v2063 = vmul.f32 %v2019, %v637
    %v2064 = vmul.f32 %v2021, %v637
    %v2065 = vmul.f32 %v2023, %v637
    %v2066 = vmul.f32 %v2025, %v637
    %v2067 = vmul.f32 %v2027, %v637
    %v2068 = vmul.f32 %v2029, %v637
    %v2069 = vmul.f32 %v2031, %v637
    %v2070 = vmul.f32 %v2033, %v637
    %v2071 = vmul.f32 %v2035, %v637
    %v2072 = vmul.f32 %v2037, %v637
    %v2073 = vmul.f32 %v2039, %v637
    %v2074 = vmul.f32 %v2041, %v637
    %v2075 = vmul.f32 %v2043, %v637
    %v2076 = vadd.f32 %v2044, 1e-12
    %v2077 = vadd.f32 %v2045, 1e-12
    %v2078 = vadd.f32 %v2046, 1e-12
    %v2079 = vadd.f32 %v2047, 1e-12
    %v2080 = vadd.f32 %v2048, 1e-12
    %v2081 = vadd.f32 %v2049, 1e-12
    %v2082 = vadd.f32 %v2050, 1e-12
    %v2083 = vadd.f32 %v2051, 1e-12
    %v2084 = vadd.f32 %v2052, 1e-12
    %v2085 = vadd.f32 %v2053, 1e-12
    %v2086 = vadd.f32 %v2054, 1e-12
    %v2087 = vadd.f32 %v2055, 1e-12
    %v2088 = vadd.f32 %v2056, 1e-12
    %v2089 = vadd.f32 %v2057, 1e-12
    %v2090 = vadd.f32 %v2058, 1e-12
    %v2091 = vadd.f32 %v2059, 1e-12
    %v2092 = vadd.f32 %v2060, 1e-12
    %v2093 = vadd.f32 %v2061, 1e-12
    %v2094 = vadd.f32 %v2062, 1e-12
    %v2095 = vadd.f32 %v2063, 1e-12
    %v2096 = vadd.f32 %v2064, 1e-12
    %v2097 = vadd.f32 %v2065, 1e-12
    %v2098 = vadd.f32 %v2066, 1e-12
    %v2099 = vadd.f32 %v2067, 1e-12
    %v2100 = vadd.f32 %v2068, 1e-12
    %v2101 = vadd.f32 %v2069, 1e-12
    %v2102 = vadd.f32 %v2070, 1e-12
    %v2103 = vadd.f32 %v2071, 1e-12
    %v2104 = vadd.f32 %v2072, 1e-12
    %v2105 = vadd.f32 %v2073, 1e-12
    %v2106 = vadd.f32 %v2074, 1e-12
    %v2107 = vadd.f32 %v2075, 1e-12
    %v2108 = vrsqrt.pop %v2076
    %v2109 = vrsqrt.pop %v2077
    %v2110 = vrsqrt.pop %v2078
    %v2111 = vrsqrt.pop %v2079
    %v2112 = vrsqrt.pop %v2080
    %v2113 = vrsqrt.pop %v2081
    %v2114 = vrsqrt.pop %v2082
    %v2115 = vrsqrt.pop %v2083
    %v2116 = vrsqrt.pop %v2084
    %v2117 = vrsqrt.pop %v2085
    %v2118 = vrsqrt.pop %v2086
    %v2119 = vrsqrt.pop %v2087
    %v2120 = vrsqrt.pop %v2088
    %v2121 = vrsqrt.pop %v2089
    %v2122 = vrsqrt.pop %v2090
    %v2123 = vrsqrt.pop %v2091
    %v2124 = vrsqrt.pop %v2092
    %v2125 = vrsqrt.pop %v2093
    %v2126 = vrsqrt.pop %v2094
    %v2127 = vrsqrt.pop %v2095
    %v2128 = vrsqrt.pop %v2096
    %v2129 = vrsqrt.pop %v2097
    %v2130 = vrsqrt.pop %v2098
    %v2131 = vrsqrt.pop %v2099
    %v2132 = vrsqrt.pop %v2100
    %v2133 = vrsqrt.pop %v2101
    %v2134 = vrsqrt.pop %v2102
    %v2135 = vrsqrt.pop %v2103
    %v2136 = vrsqrt.pop %v2104
    %v2137 = vrsqrt.pop %v2105
    %v2138 = vrsqrt.pop %v2106
    %v2139 = vrsqrt.pop %v2107
    %v2140 = vmul.f32 %v1916, %v2108
    %v2141 = vmul.f32 %v1917, %v2109
    %v2142 = vmul.f32 %v1918, %v2110
    %v2143 = vmul.f32 %v1919, %v2111
    %v2144 = vmul.f32 %v1920, %v2112
    %v2145 = vmul.f32 %v1921, %v2113
    %v2146 = vmul.f32 %v1922, %v2114
    %v2147 = vmul.f32 %v1923, %v2115
    %v2148 = vmul.f32 %v1924, %v2116
    %v2149 = vmul.f32 %v1925, %v2117
    %v2150 = vmul.f32 %v1926, %v2118
    %v2151 = vmul.f32 %v1927, %v2119
    %v2152 = vmul.f32 %v1928, %v2120
    %v2153 = vmul.f32 %v1929, %v2121
    %v2154 = vmul.f32 %v1930, %v2122
    %v2155 = vmul.f32 %v1931, %v2123
    %v2156 = vmul.f32 %v1932, %v2124
    %v2157 = vmul.f32 %v1933, %v2125
    %v2158 = vmul.f32 %v1934, %v2126
    %v2159 = vmul.f32 %v1935, %v2127
    %v2160 = vmul.f32 %v1936, %v2128
    %v2161 = vmul.f32 %v1937, %v2129
    %v2162 = vmul.f32 %v1938, %v2130
    %v2163 = vmul.f32 %v1939, %v2131
    %v2164 = vmul.f32 %v1940, %v2132
    %v2165 = vmul.f32 %v1941, %v2133
    %v2166 = vmul.f32 %v1942, %v2134
    %v2167 = vmul.f32 %v1943, %v2135
    %v2168 = vmul.f32 %v1944, %v2136
    %v2169 = vmul.f32 %v1945, %v2137
    %v2170 = vmul.f32 %v1946, %v2138
    %v2171 = vmul.f32 %v1947, %v2139
    %v2172 = vlaneseq
    %v2173 = vshrl.u32 %v2172, 7
    %v2174 = vsub.s32 0, %v2173
    %v2175 = vrot.slane %v1818, %v2174
    %v2176 = vmul.f32 %v2140, %v2175
    %v2177 = vmul.f32 %v2141, %v2175
    %v2178 = vmul.f32 %v2142, %v2175
    %v2179 = vmul.f32 %v2143, %v2175
    %v2180 = vmul.f32 %v2144, %v2175
    %v2181 = vmul.f32 %v2145, %v2175
    %v2182 = vmul.f32 %v2146, %v2175
    %v2183 = vmul.f32 %v2147, %v2175
    %v2184 = vmul.f32 %v2148, %v2175
    %v2185 = vmul.f32 %v2149, %v2175
    %v2186 = vmul.f32 %v2150, %v2175
    %v2187 = vmul.f32 %v2151, %v2175
    %v2188 = vmul.f32 %v2152, %v2175
    %v2189 = vmul.f32 %v2153, %v2175
    %v2190 = vmul.f32 %v2154, %v2175
    %v2191 = vmul.f32 %v2155, %v2175
    %v2192 = vmul.f32 %v2156, %v2175
    %v2193 = vmul.f32 %v2157, %v2175
    %v2194 = vmul.f32 %v2158, %v2175
    %v2195 = vmul.f32 %v2159, %v2175
    %v2196 = vmul.f32 %v2160, %v2175
    %v2197 = vmul.f32 %v2161, %v2175
    %v2198 = vmul.f32 %v2162, %v2175
    %v2199 = vmul.f32 %v2163, %v2175
    %v2200 = vmul.f32 %v2164, %v2175
    %v2201 = vmul.f32 %v2165, %v2175
    %v2202 = vmul.f32 %v2166, %v2175
    %v2203 = vmul.f32 %v2167, %v2175
    %v2204 = vmul.f32 %v2168, %v2175
    %v2205 = vmul.f32 %v2169, %v2175
    %v2206 = vmul.f32 %v2170, %v2175
    %v2207 = vmul.f32 %v2171, %v2175
    %v2208 = vlaneseq
    %v2209 = vshrl.u32 %v2208, 7
    %v2210 = vsub.s32 0, %v2209
    %v2211 = vrot.slane %v1819, %v2210
    %v2212 = vadd.f32 %v2176, %v2211
    %v2213 = vadd.f32 %v2177, %v2211
    %v2214 = vadd.f32 %v2178, %v2211
    %v2215 = vadd.f32 %v2179, %v2211
    %v2216 = vadd.f32 %v2180, %v2211
    %v2217 = vadd.f32 %v2181, %v2211
    %v2218 = vadd.f32 %v2182, %v2211
    %v2219 = vadd.f32 %v2183, %v2211
    %v2220 = vadd.f32 %v2184, %v2211
    %v2221 = vadd.f32 %v2185, %v2211
    %v2222 = vadd.f32 %v2186, %v2211
    %v2223 = vadd.f32 %v2187, %v2211
    %v2224 = vadd.f32 %v2188, %v2211
    %v2225 = vadd.f32 %v2189, %v2211
    %v2226 = vadd.f32 %v2190, %v2211
    %v2227 = vadd.f32 %v2191, %v2211
    %v2228 = vadd.f32 %v2192, %v2211
    %v2229 = vadd.f32 %v2193, %v2211
    %v2230 = vadd.f32 %v2194, %v2211
    %v2231 = vadd.f32 %v2195, %v2211
    %v2232 = vadd.f32 %v2196, %v2211
    %v2233 = vadd.f32 %v2197, %v2211
    %v2234 = vadd.f32 %v2198, %v2211
    %v2235 = vadd.f32 %v2199, %v2211
    %v2236 = vadd.f32 %v2200, %v2211
    %v2237 = vadd.f32 %v2201, %v2211
    %v2238 = vadd.f32 %v2202, %v2211
    %v2239 = vadd.f32 %v2203, %v2211
    %v2240 = vadd.f32 %v2204, %v2211
    %v2241 = vadd.f32 %v2205, %v2211
    %v2242 = vadd.f32 %v2206, %v2211
    %v2243 = vadd.f32 %v2207, %v2211
    %v2244 = vsel %vm507, 1, 0
    %v2245 = vsel %vm508, 1, 0
    %v2246 = vsel %vm509, 1, 0
    %v2247 = vsel %vm510, 1, 0
    %v2248 = vsel %vm511, 1, 0
    %v2249 = vsel %vm512, 1, 0
    %v2250 = vsel %vm513, 1, 0
    %v2251 = vsel %vm514, 1, 0
    %v2252 = vsel %vm515, 1, 0
    %v2253 = vsel %vm516, 1, 0
    %v2254 = vsel %vm517, 1, 0
    %v2255 = vsel %vm518, 1, 0
    %v2256 = vsel %vm519, 1, 0
    %v2257 = vsel %vm520, 1, 0
    %v2258 = vsel %vm521, 1, 0
    %v2259 = vsel %vm522, 1, 0
    %v2260 = vsel %vm523, 1, 0
    %v2261 = vsel %vm524, 1, 0
    %v2262 = vsel %vm525, 1, 0
    %v2263 = vsel %vm526, 1, 0
    %v2264 = vsel %vm527, 1, 0
    %v2265 = vsel %vm528, 1, 0
    %v2266 = vsel %vm529, 1, 0
    %v2267 = vsel %vm530, 1, 0
    %v2268 = vsel %vm531, 1, 0
    %v2269 = vsel %vm532, 1, 0
    %v2270 = vsel %vm533, 1, 0
    %v2271 = vsel %vm534, 1, 0
    %v2272 = vsel %vm535, 1, 0
    %v2273 = vsel %vm536, 1, 0
    %v2274 = vsel %vm537, 1, 0
    %v2275 = vsel %vm538, 1, 0
    %vm2276 = vcmp.eq.s32.totalorder %v2244, 1
    %vm2277 = vcmp.eq.s32.totalorder %v2245, 1
    %vm2278 = vcmp.eq.s32.totalorder %v2246, 1
    %vm2279 = vcmp.eq.s32.totalorder %v2247, 1
    %vm2280 = vcmp.eq.s32.totalorder %v2248, 1
    %vm2281 = vcmp.eq.s32.totalorder %v2249, 1
    %vm2282 = vcmp.eq.s32.totalorder %v2250, 1
    %vm2283 = vcmp.eq.s32.totalorder %v2251, 1
    %vm2284 = vcmp.eq.s32.totalorder %v2252, 1
    %vm2285 = vcmp.eq.s32.totalorder %v2253, 1
    %vm2286 = vcmp.eq.s32.totalorder %v2254, 1
    %vm2287 = vcmp.eq.s32.totalorder %v2255, 1
    %vm2288 = vcmp.eq.s32.totalorder %v2256, 1
    %vm2289 = vcmp.eq.s32.totalorder %v2257, 1
    %vm2290 = vcmp.eq.s32.totalorder %v2258, 1
    %vm2291 = vcmp.eq.s32.totalorder %v2259, 1
    %vm2292 = vcmp.eq.s32.totalorder %v2260, 1
    %vm2293 = vcmp.eq.s32.totalorder %v2261, 1
    %vm2294 = vcmp.eq.s32.totalorder %v2262, 1
    %vm2295 = vcmp.eq.s32.totalorder %v2263, 1
    %vm2296 = vcmp.eq.s32.totalorder %v2264, 1
    %vm2297 = vcmp.eq.s32.totalorder %v2265, 1
    %vm2298 = vcmp.eq.s32.totalorder %v2266, 1
    %vm2299 = vcmp.eq.s32.totalorder %v2267, 1
    %vm2300 = vcmp.eq.s32.totalorder %v2268, 1
    %vm2301 = vcmp.eq.s32.totalorder %v2269, 1
    %vm2302 = vcmp.eq.s32.totalorder %v2270, 1
    %vm2303 = vcmp.eq.s32.totalorder %v2271, 1
    %vm2304 = vcmp.eq.s32.totalorder %v2272, 1
    %vm2305 = vcmp.eq.s32.totalorder %v2273, 1
    %vm2306 = vcmp.eq.s32.totalorder %v2274, 1
    %vm2307 = vcmp.eq.s32.totalorder %v2275, 1
    %v2308 = vsel %vm2276, %v2212, %v966
    %v2309 = vsel %vm2277, %v2213, %v967
    %v2310 = vsel %vm2278, %v2214, %v968
    %v2311 = vsel %vm2279, %v2215, %v969
    %v2312 = vsel %vm2280, %v2216, %v970
    %v2313 = vsel %vm2281, %v2217, %v971
    %v2314 = vsel %vm2282, %v2218, %v972
    %v2315 = vsel %vm2283, %v2219, %v973
    %v2316 = vsel %vm2284, %v2220, %v974
    %v2317 = vsel %vm2285, %v2221, %v975
    %v2318 = vsel %vm2286, %v2222, %v976
    %v2319 = vsel %vm2287, %v2223, %v977
    %v2320 = vsel %vm2288, %v2224, %v978
    %v2321 = vsel %vm2289, %v2225, %v979
    %v2322 = vsel %vm2290, %v2226, %v980
    %v2323 = vsel %vm2291, %v2227, %v981
    %v2324 = vsel %vm2292, %v2228, %v982
    %v2325 = vsel %vm2293, %v2229, %v983
    %v2326 = vsel %vm2294, %v2230, %v984
    %v2327 = vsel %vm2295, %v2231, %v985
    %v2328 = vsel %vm2296, %v2232, %v986
    %v2329 = vsel %vm2297, %v2233, %v987
    %v2330 = vsel %vm2298, %v2234, %v988
    %v2331 = vsel %vm2299, %v2235, %v989
    %v2332 = vsel %vm2300, %v2236, %v990
    %v2333 = vsel %vm2301, %v2237, %v991
    %v2334 = vsel %vm2302, %v2238, %v992
    %v2335 = vsel %vm2303, %v2239, %v993
    %v2336 = vsel %vm2304, %v2240, %v994
    %v2337 = vsel %vm2305, %v2241, %v995
    %v2338 = vsel %vm2306, %v2242, %v996
    %v2339 = vsel %vm2307, %v2243, %v997
    %v2340 = vld [vmem:[#allocation17] sm:$0xff]
    %v2341 = vld [vmem:[#allocation17 + $0x8] sm:$0xff]
    %v2342 = vld [vmem:[#allocation17 + $0x10] sm:$0xff]
    %v2343 = vld [vmem:[#allocation17 + $0x18] sm:$0xff]
    %v2344 = vld [vmem:[#allocation17 + $0x20] sm:$0xff]
    %v2345 = vld [vmem:[#allocation17 + $0x28] sm:$0xff]
    %v2346 = vld [vmem:[#allocation17 + $0x30] sm:$0xff]
    %v2347 = vld [vmem:[#allocation17 + $0x38] sm:$0xff]
    %v2348 = vld [vmem:[#allocation17 + $0x40] sm:$0xff]
    %v2349 = vld [vmem:[#allocation17 + $0x48] sm:$0xff]
    %v2350 = vld [vmem:[#allocation17 + $0x50] sm:$0xff]
    %v2351 = vld [vmem:[#allocation17 + $0x58] sm:$0xff]
    %v2352 = vld [vmem:[#allocation17 + $0x60] sm:$0xff]
    %v2353 = vld [vmem:[#allocation17 + $0x68] sm:$0xff]
    %v2354 = vld [vmem:[#allocation17 + $0x70] sm:$0xff]
    %v2355 = vld [vmem:[#allocation17 + $0x78] sm:$0xff]
    %v2356 = vld [vmem:[#allocation17 + $0x80] sm:$0xff]
    %v2357 = vld [vmem:[#allocation17 + $0x88] sm:$0xff]
    %v2358 = vld [vmem:[#allocation17 + $0x90] sm:$0xff]
    %v2359 = vld [vmem:[#allocation17 + $0x98] sm:$0xff]
    %v2360 = vld [vmem:[#allocation17 + $0xa0] sm:$0xff]
    %v2361 = vld [vmem:[#allocation17 + $0xa8] sm:$0xff]
    %v2362 = vld [vmem:[#allocation17 + $0xb0] sm:$0xff]
    %v2363 = vld [vmem:[#allocation17 + $0xb8] sm:$0xff]
    %v2364 = vld [vmem:[#allocation17 + $0xc0] sm:$0xff]
    %v2365 = vld [vmem:[#allocation17 + $0xc8] sm:$0xff]
    %v2366 = vld [vmem:[#allocation17 + $0xd0] sm:$0xff]
    %v2367 = vld [vmem:[#allocation17 + $0xd8] sm:$0xff]
    %v2368 = vld [vmem:[#allocation17 + $0xe0] sm:$0xff]
    %v2369 = vld [vmem:[#allocation17 + $0xe8] sm:$0xff]
    %v2370 = vld [vmem:[#allocation17 + $0xf0] sm:$0xff]
    %v2371 = vld [vmem:[#allocation17 + $0xf8] sm:$0xff]
    %v2372 = vld [vmem:[#allocation17 + $0x100] sm:$0xff]
    %v2373 = vld [vmem:[#allocation17 + $0x108] sm:$0xff]
    %v2374 = vld [vmem:[#allocation17 + $0x110] sm:$0xff]
    %v2375 = vld [vmem:[#allocation17 + $0x118] sm:$0xff]
    %v2376 = vld [vmem:[#allocation17 + $0x120] sm:$0xff]
    %v2377 = vld [vmem:[#allocation17 + $0x128] sm:$0xff]
    %v2378 = vld [vmem:[#allocation17 + $0x130] sm:$0xff]
    %v2379 = vld [vmem:[#allocation17 + $0x138] sm:$0xff]
    %v2380 = vld [vmem:[#allocation17 + $0x140] sm:$0xff]
    %v2381 = vld [vmem:[#allocation17 + $0x148] sm:$0xff]
    %v2382 = vld [vmem:[#allocation17 + $0x150] sm:$0xff]
    %v2383 = vld [vmem:[#allocation17 + $0x158] sm:$0xff]
    %v2384 = vld [vmem:[#allocation17 + $0x160] sm:$0xff]
    %v2385 = vld [vmem:[#allocation17 + $0x168] sm:$0xff]
    %v2386 = vld [vmem:[#allocation17 + $0x170] sm:$0xff]
    %v2387 = vld [vmem:[#allocation17 + $0x178] sm:$0xff]
    %v2388 = vld [vmem:[%s27] sm:$0x7]
    %v2390 = vlaneseq
    %v2391 = vshrl.u32 %v2390, 7
    %v2392 = vsub.s32 0, %v2391
    %v2393 = vrot.slane %v2388, %v2392
    %v2394 = vlaneseq
    %v2395 = vshrl.u32 %v2394, 7
    %v2396 = vsub.s32 1, %v2395
    %v2397 = vrot.slane %v2388, %v2396
    %v2398 = vlaneseq
    %v2399 = vshrl.u32 %v2398, 7
    %v2400 = vsub.s32 2, %v2399
    %v2401 = vrot.slane %v2388, %v2400
    %2405 = vmatprep.subr.mxu0 %v2341
    %2406 = vmatpush1.msra.mxu0 %v2340
    %2407 = vmatprep.subr.mxu0 %v2344
    %2408 = vmatpush1.msra.mxu0 %v2343
    %2409 = vmatprep.subr.mxu0 %v2347
    %2410 = vmatpush1.msra.mxu0 %v2346
    %2411 = vmatprep.subr.mxu0 %v2350
    %2412 = vmatpush1.msra.mxu0 %v2349
    %2413 = vmatprep.subr.mxu0 %v2353
    %2414 = vmatpush1.msra.mxu0 %v2352
    %2415 = vmatprep.subr.mxu0 %v2356
    %2416 = vmatpush1.msra.mxu0 %v2355
    %2417 = vmatprep.subr.mxu0 %v2359
    %2418 = vmatpush1.msra.mxu0 %v2358
    %2419 = vmatprep.subr.mxu0 %v2362
    %2420 = vmatpush1.msra.mxu0 %v2361
    %2421 = vmatprep.subr.mxu0 %v2365
    %2422 = vmatpush1.msra.mxu0 %v2364
    %2423 = vmatprep.subr.mxu0 %v2368
    %2424 = vmatpush1.msra.mxu0 %v2367
    %2425 = vmatprep.subr.mxu0 %v2371
    %2426 = vmatpush1.msra.mxu0 %v2370
    %2427 = vmatprep.subr.mxu0 %v2374
    %2428 = vmatpush1.msra.mxu0 %v2373
    %2429 = vmatprep.subr.mxu0 %v2377
    %2430 = vmatpush1.msra.mxu0 %v2376
    %2431 = vmatprep.subr.mxu0 %v2380
    %2432 = vmatpush1.msra.mxu0 %v2379
    %2433 = vmatprep.subr.mxu0 %v2383
    %2434 = vmatpush1.msra.mxu0 %v2382
    %2435 = vmatprep.subr.mxu0 %v2386
    %2436 = vmatpush1.msra.mxu0 %v2385
    %2437 = vmatprep.subr.mxu0 0.0
    %2438 = vmatpush1.msra.mxu0 0.0
    %2439 = vmatprep.subr.mxu0 0.0
    %2440 = vmatpush1.msra.mxu0 0.0
    %2441 = vmatprep.subr.mxu0 0.0
    %2442 = vmatpush1.msra.mxu0 0.0
    %2443 = vmatprep.subr.mxu0 0.0
    %2444 = vmatpush1.msra.mxu0 0.0
    %2445 = vmatprep.subr.mxu0 0.0
    %2446 = vmatpush1.msra.mxu0 0.0
    %2447 = vmatprep.subr.mxu0 0.0
    %2448 = vmatpush1.msra.mxu0 0.0
    %2449 = vmatprep.subr.mxu0 0.0
    %2450 = vmatpush1.msra.mxu0 0.0
    %2451 = vmatprep.subr.mxu0 0.0
    %2452 = vmatpush1.msra.mxu0 0.0
    %2453 = vmatprep.subr.mxu0 0.0
    %2454 = vmatpush1.msra.mxu0 0.0
    %2455 = vmatprep.subr.mxu0 0.0
    %2456 = vmatpush1.msra.mxu0 0.0
    %2457 = vmatprep.subr.mxu0 0.0
    %2458 = vmatpush1.msra.mxu0 0.0
    %2459 = vmatprep.subr.mxu0 0.0
    %2460 = vmatpush1.msra.mxu0 0.0
    %2461 = vmatprep.subr.mxu0 0.0
    %2462 = vmatpush1.msra.mxu0 0.0
    %2463 = vmatprep.subr.mxu0 0.0
    %2464 = vmatpush1.msra.mxu0 0.0
    %2465 = vmatprep.subr.mxu0 0.0
    %2466 = vmatpush1.msra.mxu0 0.0
    %2467 = vmatprep.subr.mxu0 0.0
    %2468 = vmatpush1.msra.mxu0 0.0
    %2469 = vmatprep.mubr.f32.mxu0 0.0
    %2470 = vmatmul.mubr.f32.gmra.mrb[0].mxu0 %v2308
    %v2471 = vpop.f32.mrb[0].mxu0
    %v2472 = vadd.f32 %v2393, %v2471
    %v2473 = vpop.f32.mrb[0].mxu0
    %v2474 = vadd.f32 %v2397, %v2473
    %2475 = vmatprep.mubr.f32.mxu0 0.0
    %2476 = vmatmul.mubr.f32.gmra.mrb[0].mxu0 %v2309
    %v2477 = vpop.f32.mrb[0].mxu0
    %v2478 = vadd.f32 %v2393, %v2477
    %v2479 = vpop.f32.mrb[0].mxu0
    %v2480 = vadd.f32 %v2397, %v2479
    %2481 = vmatprep.mubr.f32.mxu0 0.0
    %2482 = vmatmul.mubr.f32.gmra.mrb[0].mxu0 %v2310
    %v2483 = vpop.f32.mrb[0].mxu0
    %v2484 = vadd.f32 %v2393, %v2483
    %v2485 = vpop.f32.mrb[0].mxu0
    %v2486 = vadd.f32 %v2397, %v2485
    %2487 = vmatprep.mubr.f32.mxu0 0.0
    %2488 = vmatmul.mubr.f32.gmra.mrb[0].mxu0 %v2311
    %v2489 = vpop.f32.mrb[0].mxu0
    %v2490 = vadd.f32 %v2393, %v2489
    %v2491 = vpop.f32.mrb[0].mxu0
    %v2492 = vadd.f32 %v2397, %v2491
    %2493 = vmatprep.mubr.f32.mxu0 0.0
    %2494 = vmatmul.mubr.f32.gmra.mrb[0].mxu0 %v2312
    %v2495 = vpop.f32.mrb[0].mxu0
    %v2496 = vadd.f32 %v2393, %v2495
    %v2497 = vpop.f32.mrb[0].mxu0
    %v2498 = vadd.f32 %v2397, %v2497
    %2499 = vmatprep.mubr.f32.mxu0 0.0
    %2500 = vmatmul.mubr.f32.gmra.mrb[0].mxu0 %v2313
    %v2501 = vpop.f32.mrb[0].mxu0
    %v2502 = vadd.f32 %v2393, %v2501
    %v2503 = vpop.f32.mrb[0].mxu0
    %v2504 = vadd.f32 %v2397, %v2503
    %2505 = vmatprep.mubr.f32.mxu0 0.0
    %2506 = vmatmul.mubr.f32.gmra.mrb[0].mxu0 %v2314
    %v2507 = vpop.f32.mrb[0].mxu0
    %v2508 = vadd.f32 %v2393, %v2507
    %v2509 = vpop.f32.mrb[0].mxu0
    %v2510 = vadd.f32 %v2397, %v2509
    %2511 = vmatprep.mubr.f32.mxu0 0.0
    %2512 = vmatmul.mubr.f32.gmra.mrb[0].mxu0 %v2315
    %v2513 = vpop.f32.mrb[0].mxu0
    %v2514 = vadd.f32 %v2393, %v2513
    %v2515 = vpop.f32.mrb[0].mxu0
    %v2516 = vadd.f32 %v2397, %v2515
    %2517 = vmatprep.mubr.f32.mxu0 0.0
    %2518 = vmatmul.mubr.f32.gmra.mrb[0].mxu0 %v2316
    %v2519 = vpop.f32.mrb[0].mxu0
    %v2520 = vadd.f32 %v2393, %v2519
    %v2521 = vpop.f32.mrb[0].mxu0
    %v2522 = vadd.f32 %v2397, %v2521
    %2523 = vmatprep.mubr.f32.mxu0 0.0
    %2524 = vmatmul.mubr.f32.gmra.mrb[0].mxu0 %v2317
    %v2525 = vpop.f32.mrb[0].mxu0
    %v2526 = vadd.f32 %v2393, %v2525
    %v2527 = vpop.f32.mrb[0].mxu0
    %v2528 = vadd.f32 %v2397, %v2527
    %2529 = vmatprep.mubr.f32.mxu0 0.0
    %2530 = vmatmul.mubr.f32.gmra.mrb[0].mxu0 %v2318
    %v2531 = vpop.f32.mrb[0].mxu0
    %v2532 = vadd.f32 %v2393, %v2531
    %v2533 = vpop.f32.mrb[0].mxu0
    %v2534 = vadd.f32 %v2397, %v2533
    %2535 = vmatprep.mubr.f32.mxu0 0.0
    %2536 = vmatmul.mubr.f32.gmra.mrb[0].mxu0 %v2319
    %v2537 = vpop.f32.mrb[0].mxu0
    %v2538 = vadd.f32 %v2393, %v2537
    %v2539 = vpop.f32.mrb[0].mxu0
    %v2540 = vadd.f32 %v2397, %v2539
    %2541 = vmatprep.mubr.f32.mxu0 0.0
    %2542 = vmatmul.mubr.f32.gmra.mrb[0].mxu0 %v2320
    %v2543 = vpop.f32.mrb[0].mxu0
    %v2544 = vadd.f32 %v2393, %v2543
    %v2545 = vpop.f32.mrb[0].mxu0
    %v2546 = vadd.f32 %v2397, %v2545
    %2547 = vmatprep.mubr.f32.mxu0 0.0
    %2548 = vmatmul.mubr.f32.gmra.mrb[0].mxu0 %v2321
    %v2549 = vpop.f32.mrb[0].mxu0
    %v2550 = vadd.f32 %v2393, %v2549
    %v2551 = vpop.f32.mrb[0].mxu0
    %v2552 = vadd.f32 %v2397, %v2551
    %2553 = vmatprep.mubr.f32.mxu0 0.0
    %2554 = vmatmul.mubr.f32.gmra.mrb[0].mxu0 %v2322
    %v2555 = vpop.f32.mrb[0].mxu0
    %v2556 = vadd.f32 %v2393, %v2555
    %v2557 = vpop.f32.mrb[0].mxu0
    %v2558 = vadd.f32 %v2397, %v2557
    %2559 = vmatprep.mubr.f32.mxu0 0.0
    %2560 = vmatmul.mubr.f32.gmra.mrb[0].mxu0 %v2323
    %v2561 = vpop.f32.mrb[0].mxu0
    %v2562 = vadd.f32 %v2393, %v2561
    %v2563 = vpop.f32.mrb[0].mxu0
    %v2564 = vadd.f32 %v2397, %v2563
    %2565 = vmatprep.mubr.f32.mxu0 0.0
    %2566 = vmatmul.mubr.f32.gmra.mrb[0].mxu0 %v2324
    %v2567 = vpop.f32.mrb[0].mxu0
    %v2568 = vadd.f32 %v2393, %v2567
    %v2569 = vpop.f32.mrb[0].mxu0
    %v2570 = vadd.f32 %v2397, %v2569
    %2571 = vmatprep.mubr.f32.mxu0 0.0
    %2572 = vmatmul.mubr.f32.gmra.mrb[0].mxu0 %v2325
    %v2573 = vpop.f32.mrb[0].mxu0
    %v2574 = vadd.f32 %v2393, %v2573
    %v2575 = vpop.f32.mrb[0].mxu0
    %v2576 = vadd.f32 %v2397, %v2575
    %2577 = vmatprep.mubr.f32.mxu0 0.0
    %2578 = vmatmul.mubr.f32.gmra.mrb[0].mxu0 %v2326
    %v2579 = vpop.f32.mrb[0].mxu0
    %v2580 = vadd.f32 %v2393, %v2579
    %v2581 = vpop.f32.mrb[0].mxu0
    %v2582 = vadd.f32 %v2397, %v2581
    %2583 = vmatprep.mubr.f32.mxu0 0.0
    %2584 = vmatmul.mubr.f32.gmra.mrb[0].mxu0 %v2327
    %v2585 = vpop.f32.mrb[0].mxu0
    %v2586 = vadd.f32 %v2393, %v2585
    %v2587 = vpop.f32.mrb[0].mxu0
    %v2588 = vadd.f32 %v2397, %v2587
    %2589 = vmatprep.mubr.f32.mxu0 0.0
    %2590 = vmatmul.mubr.f32.gmra.mrb[0].mxu0 %v2328
    %v2591 = vpop.f32.mrb[0].mxu0
    %v2592 = vadd.f32 %v2393, %v2591
    %v2593 = vpop.f32.mrb[0].mxu0
    %v2594 = vadd.f32 %v2397, %v2593
    %2595 = vmatprep.mubr.f32.mxu0 0.0
    %2596 = vmatmul.mubr.f32.gmra.mrb[0].mxu0 %v2329
    %v2597 = vpop.f32.mrb[0].mxu0
    %v2598 = vadd.f32 %v2393, %v2597
    %v2599 = vpop.f32.mrb[0].mxu0
    %v2600 = vadd.f32 %v2397, %v2599
    %2601 = vmatprep.mubr.f32.mxu0 0.0
    %2602 = vmatmul.mubr.f32.gmra.mrb[0].mxu0 %v2330
    %v2603 = vpop.f32.mrb[0].mxu0
    %v2604 = vadd.f32 %v2393, %v2603
    %v2605 = vpop.f32.mrb[0].mxu0
    %v2606 = vadd.f32 %v2397, %v2605
    %2607 = vmatprep.mubr.f32.mxu0 0.0
    %2608 = vmatmul.mubr.f32.gmra.mrb[0].mxu0 %v2331
    %v2609 = vpop.f32.mrb[0].mxu0
    %v2610 = vadd.f32 %v2393, %v2609
    %v2611 = vpop.f32.mrb[0].mxu0
    %v2612 = vadd.f32 %v2397, %v2611
    %2613 = vmatprep.mubr.f32.mxu0 0.0
    %2614 = vmatmul.mubr.f32.gmra.mrb[0].mxu0 %v2332
    %v2615 = vpop.f32.mrb[0].mxu0
    %v2616 = vadd.f32 %v2393, %v2615
    %v2617 = vpop.f32.mrb[0].mxu0
    %v2618 = vadd.f32 %v2397, %v2617
    %2619 = vmatprep.mubr.f32.mxu0 0.0
    %2620 = vmatmul.mubr.f32.gmra.mrb[0].mxu0 %v2333
    %v2621 = vpop.f32.mrb[0].mxu0
    %v2622 = vadd.f32 %v2393, %v2621
    %v2623 = vpop.f32.mrb[0].mxu0
    %v2624 = vadd.f32 %v2397, %v2623
    %2625 = vmatprep.mubr.f32.mxu0 0.0
    %2626 = vmatmul.mubr.f32.gmra.mrb[0].mxu0 %v2334
    %v2627 = vpop.f32.mrb[0].mxu0
    %v2628 = vadd.f32 %v2393, %v2627
    %v2629 = vpop.f32.mrb[0].mxu0
    %v2630 = vadd.f32 %v2397, %v2629
    %2631 = vmatprep.mubr.f32.mxu0 0.0
    %2632 = vmatmul.mubr.f32.gmra.mrb[0].mxu0 %v2335
    %v2633 = vpop.f32.mrb[0].mxu0
    %v2634 = vadd.f32 %v2393, %v2633
    %v2635 = vpop.f32.mrb[0].mxu0
    %v2636 = vadd.f32 %v2397, %v2635
    %2637 = vmatprep.mubr.f32.mxu0 0.0
    %2638 = vmatmul.mubr.f32.gmra.mrb[0].mxu0 %v2336
    %v2639 = vpop.f32.mrb[0].mxu0
    %v2640 = vadd.f32 %v2393, %v2639
    %v2641 = vpop.f32.mrb[0].mxu0
    %v2642 = vadd.f32 %v2397, %v2641
    %2643 = vmatprep.mubr.f32.mxu0 0.0
    %2644 = vmatmul.mubr.f32.gmra.mrb[0].mxu0 %v2337
    %v2645 = vpop.f32.mrb[0].mxu0
    %v2646 = vadd.f32 %v2393, %v2645
    %v2647 = vpop.f32.mrb[0].mxu0
    %v2648 = vadd.f32 %v2397, %v2647
    %2649 = vmatprep.mubr.f32.mxu0 0.0
    %2650 = vmatmul.mubr.f32.gmra.mrb[0].mxu0 %v2338
    %v2651 = vpop.f32.mrb[0].mxu0
    %v2652 = vadd.f32 %v2393, %v2651
    %v2653 = vpop.f32.mrb[0].mxu0
    %v2654 = vadd.f32 %v2397, %v2653
    %2655 = vmatprep.mubr.f32.mxu0 0.0
    %2656 = vmatmul.mubr.f32.gmra.mrb[0].mxu0 %v2339
    %v2657 = vpop.f32.mrb[0].mxu0
    %v2658 = vadd.f32 %v2393, %v2657
    %v2659 = vpop.f32.mrb[0].mxu0
    %v2660 = vadd.f32 %v2397, %v2659
    %2661 = vdwg.mxu0
    %2662 = vmatprep.subr.mxu0 0.0
    %2663 = vmatpush1.msra.mxu0 %v2342
    %2664 = vmatprep.subr.mxu0 0.0
    %2665 = vmatpush1.msra.mxu0 %v2345
    %2666 = vmatprep.subr.mxu0 0.0
    %2667 = vmatpush1.msra.mxu0 %v2348
    %2668 = vmatprep.subr.mxu0 0.0
    %2669 = vmatpush1.msra.mxu0 %v2351
    %2670 = vmatprep.subr.mxu0 0.0
    %2671 = vmatpush1.msra.mxu0 %v2354
    %2672 = vmatprep.subr.mxu0 0.0
    %2673 = vmatpush1.msra.mxu0 %v2357
    %2674 = vmatprep.subr.mxu0 0.0
    %2675 = vmatpush1.msra.mxu0 %v2360
    %2676 = vmatprep.subr.mxu0 0.0
    %2677 = vmatpush1.msra.mxu0 %v2363
    %2678 = vmatprep.subr.mxu0 0.0
    %2679 = vmatpush1.msra.mxu0 %v2366
    %2680 = vmatprep.subr.mxu0 0.0
    %2681 = vmatpush1.msra.mxu0 %v2369
    %2682 = vmatprep.subr.mxu0 0.0
    %2683 = vmatpush1.msra.mxu0 %v2372
    %2684 = vmatprep.subr.mxu0 0.0
    %2685 = vmatpush1.msra.mxu0 %v2375
    %2686 = vmatprep.subr.mxu0 0.0
    %2687 = vmatpush1.msra.mxu0 %v2378
    %2688 = vmatprep.subr.mxu0 0.0
    %2689 = vmatpush1.msra.mxu0 %v2381
    %2690 = vmatprep.subr.mxu0 0.0
    %2691 = vmatpush1.msra.mxu0 %v2384
    %2692 = vmatprep.subr.mxu0 0.0
    %2693 = vmatpush1.msra.mxu0 %v2387
    %2694 = vmatprep.subr.mxu0 0.0
    %2695 = vmatpush1.msra.mxu0 0.0
    %2696 = vmatprep.subr.mxu0 0.0
    %2697 = vmatpush1.msra.mxu0 0.0
    %2698 = vmatprep.subr.mxu0 0.0
    %2699 = vmatpush1.msra.mxu0 0.0
    %2700 = vmatprep.subr.mxu0 0.0
    %2701 = vmatpush1.msra.mxu0 0.0
    %2702 = vmatprep.subr.mxu0 0.0
    %2703 = vmatpush1.msra.mxu0 0.0
    %2704 = vmatprep.subr.mxu0 0.0
    %2705 = vmatpush1.msra.mxu0 0.0
    %2706 = vmatprep.subr.mxu0 0.0
    %2707 = vmatpush1.msra.mxu0 0.0
    %2708 = vmatprep.subr.mxu0 0.0
    %2709 = vmatpush1.msra.mxu0 0.0
    %2710 = vmatprep.subr.mxu0 0.0
    %2711 = vmatpush1.msra.mxu0 0.0
    %2712 = vmatprep.subr.mxu0 0.0
    %2713 = vmatpush1.msra.mxu0 0.0
    %2714 = vmatprep.subr.mxu0 0.0
    %2715 = vmatpush1.msra.mxu0 0.0
    %2716 = vmatprep.subr.mxu0 0.0
    %2717 = vmatpush1.msra.mxu0 0.0
    %2718 = vmatprep.subr.mxu0 0.0
    %2719 = vmatpush1.msra.mxu0 0.0
    %2720 = vmatprep.subr.mxu0 0.0
    %2721 = vmatpush1.msra.mxu0 0.0
    %2722 = vmatprep.subr.mxu0 0.0
    %2723 = vmatpush1.msra.mxu0 0.0
    %2724 = vmatprep.subr.mxu0 0.0
    %2725 = vmatpush1.msra.mxu0 0.0
    %2726 = vmatprep.mubr.f32.mxu0 0.0
    %2727 = vmatmul.mubr.f32.gmra.mrb[0].mxu0 %v2308
    %v2728 = vpop.f32.mrb[0].mxu0
    %v2729 = vadd.f32 %v2401, %v2728
    %v2730 = vpop.f32.mrb[0].mxu0
    %2731 = vmatprep.mubr.f32.mxu0 0.0
    %2732 = vmatmul.mubr.f32.gmra.mrb[0].mxu0 %v2309
    %v2733 = vpop.f32.mrb[0].mxu0
    %v2734 = vadd.f32 %v2401, %v2733
    %v2735 = vpop.f32.mrb[0].mxu0
    %2736 = vmatprep.mubr.f32.mxu0 0.0
    %2737 = vmatmul.mubr.f32.gmra.mrb[0].mxu0 %v2310
    %v2738 = vpop.f32.mrb[0].mxu0
    %v2739 = vadd.f32 %v2401, %v2738
    %v2740 = vpop.f32.mrb[0].mxu0
    %2741 = vmatprep.mubr.f32.mxu0 0.0
    %2742 = vmatmul.mubr.f32.gmra.mrb[0].mxu0 %v2311
    %v2743 = vpop.f32.mrb[0].mxu0
    %v2744 = vadd.f32 %v2401, %v2743
    %v2745 = vpop.f32.mrb[0].mxu0
    %2746 = vmatprep.mubr.f32.mxu0 0.0
    %2747 = vmatmul.mubr.f32.gmra.mrb[0].mxu0 %v2312
    %v2748 = vpop.f32.mrb[0].mxu0
    %v2749 = vadd.f32 %v2401, %v2748
    %v2750 = vpop.f32.mrb[0].mxu0
    %2751 = vmatprep.mubr.f32.mxu0 0.0
    %2752 = vmatmul.mubr.f32.gmra.mrb[0].mxu0 %v2313
    %v2753 = vpop.f32.mrb[0].mxu0
    %v2754 = vadd.f32 %v2401, %v2753
    %v2755 = vpop.f32.mrb[0].mxu0
    %2756 = vmatprep.mubr.f32.mxu0 0.0
    %2757 = vmatmul.mubr.f32.gmra.mrb[0].mxu0 %v2314
    %v2758 = vpop.f32.mrb[0].mxu0
    %v2759 = vadd.f32 %v2401, %v2758
    %v2760 = vpop.f32.mrb[0].mxu0
    %2761 = vmatprep.mubr.f32.mxu0 0.0
    %2762 = vmatmul.mubr.f32.gmra.mrb[0].mxu0 %v2315
    %v2763 = vpop.f32.mrb[0].mxu0
    %v2764 = vadd.f32 %v2401, %v2763
    %v2765 = vpop.f32.mrb[0].mxu0
    %2766 = vmatprep.mubr.f32.mxu0 0.0
    %2767 = vmatmul.mubr.f32.gmra.mrb[0].mxu0 %v2316
    %v2768 = vpop.f32.mrb[0].mxu0
    %v2769 = vadd.f32 %v2401, %v2768
    %v2770 = vpop.f32.mrb[0].mxu0
    %2771 = vmatprep.mubr.f32.mxu0 0.0
    %2772 = vmatmul.mubr.f32.gmra.mrb[0].mxu0 %v2317
    %v2773 = vpop.f32.mrb[0].mxu0
    %v2774 = vadd.f32 %v2401, %v2773
    %v2775 = vpop.f32.mrb[0].mxu0
    %2776 = vmatprep.mubr.f32.mxu0 0.0
    %2777 = vmatmul.mubr.f32.gmra.mrb[0].mxu0 %v2318
    %v2778 = vpop.f32.mrb[0].mxu0
    %v2779 = vadd.f32 %v2401, %v2778
    %v2780 = vpop.f32.mrb[0].mxu0
    %2781 = vmatprep.mubr.f32.mxu0 0.0
    %2782 = vmatmul.mubr.f32.gmra.mrb[0].mxu0 %v2319
    %v2783 = vpop.f32.mrb[0].mxu0
    %v2784 = vadd.f32 %v2401, %v2783
    %v2785 = vpop.f32.mrb[0].mxu0
    %2786 = vmatprep.mubr.f32.mxu0 0.0
    %2787 = vmatmul.mubr.f32.gmra.mrb[0].mxu0 %v2320
    %v2788 = vpop.f32.mrb[0].mxu0
    %v2789 = vadd.f32 %v2401, %v2788
    %v2790 = vpop.f32.mrb[0].mxu0
    %2791 = vmatprep.mubr.f32.mxu0 0.0
    %2792 = vmatmul.mubr.f32.gmra.mrb[0].mxu0 %v2321
    %v2793 = vpop.f32.mrb[0].mxu0
    %v2794 = vadd.f32 %v2401, %v2793
    %v2795 = vpop.f32.mrb[0].mxu0
    %2796 = vmatprep.mubr.f32.mxu0 0.0
    %2797 = vmatmul.mubr.f32.gmra.mrb[0].mxu0 %v2322
    %v2798 = vpop.f32.mrb[0].mxu0
    %v2799 = vadd.f32 %v2401, %v2798
    %v2800 = vpop.f32.mrb[0].mxu0
    %2801 = vmatprep.mubr.f32.mxu0 0.0
    %2802 = vmatmul.mubr.f32.gmra.mrb[0].mxu0 %v2323
    %v2803 = vpop.f32.mrb[0].mxu0
    %v2804 = vadd.f32 %v2401, %v2803
    %v2805 = vpop.f32.mrb[0].mxu0
    %2806 = vmatprep.mubr.f32.mxu0 0.0
    %2807 = vmatmul.mubr.f32.gmra.mrb[0].mxu0 %v2324
    %v2808 = vpop.f32.mrb[0].mxu0
    %v2809 = vadd.f32 %v2401, %v2808
    %v2810 = vpop.f32.mrb[0].mxu0
    %2811 = vmatprep.mubr.f32.mxu0 0.0
    %2812 = vmatmul.mubr.f32.gmra.mrb[0].mxu0 %v2325
    %v2813 = vpop.f32.mrb[0].mxu0
    %v2814 = vadd.f32 %v2401, %v2813
    %v2815 = vpop.f32.mrb[0].mxu0
    %2816 = vmatprep.mubr.f32.mxu0 0.0
    %2817 = vmatmul.mubr.f32.gmra.mrb[0].mxu0 %v2326
    %v2818 = vpop.f32.mrb[0].mxu0
    %v2819 = vadd.f32 %v2401, %v2818
    %v2820 = vpop.f32.mrb[0].mxu0
    %2821 = vmatprep.mubr.f32.mxu0 0.0
    %2822 = vmatmul.mubr.f32.gmra.mrb[0].mxu0 %v2327
    %v2823 = vpop.f32.mrb[0].mxu0
    %v2824 = vadd.f32 %v2401, %v2823
    %v2825 = vpop.f32.mrb[0].mxu0
    %2826 = vmatprep.mubr.f32.mxu0 0.0
    %2827 = vmatmul.mubr.f32.gmra.mrb[0].mxu0 %v2328
    %v2828 = vpop.f32.mrb[0].mxu0
    %v2829 = vadd.f32 %v2401, %v2828
    %v2830 = vpop.f32.mrb[0].mxu0
    %2831 = vmatprep.mubr.f32.mxu0 0.0
    %2832 = vmatmul.mubr.f32.gmra.mrb[0].mxu0 %v2329
    %v2833 = vpop.f32.mrb[0].mxu0
    %v2834 = vadd.f32 %v2401, %v2833
    %v2835 = vpop.f32.mrb[0].mxu0
    %2836 = vmatprep.mubr.f32.mxu0 0.0
    %2837 = vmatmul.mubr.f32.gmra.mrb[0].mxu0 %v2330
    %v2838 = vpop.f32.mrb[0].mxu0
    %v2839 = vadd.f32 %v2401, %v2838
    %v2840 = vpop.f32.mrb[0].mxu0
    %2841 = vmatprep.mubr.f32.mxu0 0.0
    %2842 = vmatmul.mubr.f32.gmra.mrb[0].mxu0 %v2331
    %v2843 = vpop.f32.mrb[0].mxu0
    %v2844 = vadd.f32 %v2401, %v2843
    %v2845 = vpop.f32.mrb[0].mxu0
    %2846 = vmatprep.mubr.f32.mxu0 0.0
    %2847 = vmatmul.mubr.f32.gmra.mrb[0].mxu0 %v2332
    %v2848 = vpop.f32.mrb[0].mxu0
    %v2849 = vadd.f32 %v2401, %v2848
    %v2850 = vpop.f32.mrb[0].mxu0
    %2851 = vmatprep.mubr.f32.mxu0 0.0
    %2852 = vmatmul.mubr.f32.gmra.mrb[0].mxu0 %v2333
    %v2853 = vpop.f32.mrb[0].mxu0
    %v2854 = vadd.f32 %v2401, %v2853
    %v2855 = vpop.f32.mrb[0].mxu0
    %2856 = vmatprep.mubr.f32.mxu0 0.0
    %2857 = vmatmul.mubr.f32.gmra.mrb[0].mxu0 %v2334
    %v2858 = vpop.f32.mrb[0].mxu0
    %v2859 = vadd.f32 %v2401, %v2858
    %v2860 = vpop.f32.mrb[0].mxu0
    %2861 = vmatprep.mubr.f32.mxu0 0.0
    %2862 = vmatmul.mubr.f32.gmra.mrb[0].mxu0 %v2335
    %v2863 = vpop.f32.mrb[0].mxu0
    %v2864 = vadd.f32 %v2401, %v2863
    %v2865 = vpop.f32.mrb[0].mxu0
    %2866 = vmatprep.mubr.f32.mxu0 0.0
    %2867 = vmatmul.mubr.f32.gmra.mrb[0].mxu0 %v2336
    %v2868 = vpop.f32.mrb[0].mxu0
    %v2869 = vadd.f32 %v2401, %v2868
    %v2870 = vpop.f32.mrb[0].mxu0
    %2871 = vmatprep.mubr.f32.mxu0 0.0
    %2872 = vmatmul.mubr.f32.gmra.mrb[0].mxu0 %v2337
    %v2873 = vpop.f32.mrb[0].mxu0
    %v2874 = vadd.f32 %v2401, %v2873
    %v2875 = vpop.f32.mrb[0].mxu0
    %2876 = vmatprep.mubr.f32.mxu0 0.0
    %2877 = vmatmul.mubr.f32.gmra.mrb[0].mxu0 %v2338
    %v2878 = vpop.f32.mrb[0].mxu0
    %v2879 = vadd.f32 %v2401, %v2878
    %v2880 = vpop.f32.mrb[0].mxu0
    %2881 = vmatprep.mubr.f32.mxu0 0.0
    %2882 = vmatmul.mubr.f32.gmra.mrb[0].mxu0 %v2339
    %v2883 = vpop.f32.mrb[0].mxu0
    %v2884 = vadd.f32 %v2401, %v2883
    %v2885 = vpop.f32.mrb[0].mxu0
    %2886 = vdwg.mxu0
    %2887 = vmatprep.subr.mxu0 0.0
    %2888 = vmatpush1.xpose.msra.mxu0 %v2474
    %2889 = vmatprep.subr.mxu0 0.0
    %2890 = vmatpush1.xpose.msra.mxu0 %v2480
    %2891 = vmatprep.subr.mxu0 0.0
    %2892 = vmatpush1.xpose.msra.mxu0 %v2486
    %2893 = vmatprep.subr.mxu0 0.0
    %2894 = vmatpush1.xpose.msra.mxu0 %v2492
    %2895 = vmatprep.subr.mxu0 0.0
    %2896 = vmatpush1.xpose.msra.mxu0 %v2498
    %2897 = vmatprep.subr.mxu0 0.0
    %2898 = vmatpush1.xpose.msra.mxu0 %v2504
    %2899 = vmatprep.subr.mxu0 0.0
    %2900 = vmatpush1.xpose.msra.mxu0 %v2510
    %2901 = vmatprep.subr.mxu0 0.0
    %2902 = vmatpush1.xpose.msra.mxu0 %v2516
    %2903 = vmatprep.subr.mxu0 0.0
    %2904 = vmatpush1.xpose.msra.mxu0 %v2522
    %2905 = vmatprep.subr.mxu0 0.0
    %2906 = vmatpush1.xpose.msra.mxu0 %v2528
    %2907 = vmatprep.subr.mxu0 0.0
    %2908 = vmatpush1.xpose.msra.mxu0 %v2534
    %2909 = vmatprep.subr.mxu0 0.0
    %2910 = vmatpush1.xpose.msra.mxu0 %v2540
    %2911 = vmatprep.subr.mxu0 0.0
    %2912 = vmatpush1.xpose.msra.mxu0 %v2546
    %2913 = vmatprep.subr.mxu0 0.0
    %2914 = vmatpush1.xpose.msra.mxu0 %v2552
    %2915 = vmatprep.subr.mxu0 0.0
    %2916 = vmatpush1.xpose.msra.mxu0 %v2558
    %2917 = vmatprep.subr.mxu0 0.0
    %2918 = vmatpush1.xpose.msra.mxu0 %v2564
    %2919 = vmatprep.subr.mxu0 0.0
    %2920 = vmatpush1.xpose.msra.mxu0 %v2570
    %2921 = vmatprep.subr.mxu0 0.0
    %2922 = vmatpush1.xpose.msra.mxu0 %v2576
    %2923 = vmatprep.subr.mxu0 0.0
    %2924 = vmatpush1.xpose.msra.mxu0 %v2582
    %2925 = vmatprep.subr.mxu0 0.0
    %2926 = vmatpush1.xpose.msra.mxu0 %v2588
    %2927 = vmatprep.subr.mxu0 0.0
    %2928 = vmatpush1.xpose.msra.mxu0 %v2594
    %2929 = vmatprep.subr.mxu0 0.0
    %2930 = vmatpush1.xpose.msra.mxu0 %v2600
    %2931 = vmatprep.subr.mxu0 0.0
    %2932 = vmatpush1.xpose.msra.mxu0 %v2606
    %2933 = vmatprep.subr.mxu0 0.0
    %2934 = vmatpush1.xpose.msra.mxu0 %v2612
    %2935 = vmatprep.subr.mxu0 0.0
    %2936 = vmatpush1.xpose.msra.mxu0 %v2618
    %2937 = vmatprep.subr.mxu0 0.0
    %2938 = vmatpush1.xpose.msra.mxu0 %v2624
    %2939 = vmatprep.subr.mxu0 0.0
    %2940 = vmatpush1.xpose.msra.mxu0 %v2630
    %2941 = vmatprep.subr.mxu0 0.0
    %2942 = vmatpush1.xpose.msra.mxu0 %v2636
    %2943 = vmatprep.subr.mxu0 0.0
    %2944 = vmatpush1.xpose.msra.mxu0 %v2642
    %2945 = vmatprep.subr.mxu0 0.0
    %2946 = vmatpush1.xpose.msra.mxu0 %v2648
    %2947 = vmatprep.subr.mxu0 0.0
    %2948 = vmatpush1.xpose.msra.mxu0 %v2654
    %2949 = vmatprep.subr.mxu0 0.0
    %2950 = vmatpush1.xpose.msra.mxu0 %v2660
    %2951 = vmatprep.mubr.f32.mxu0 0.0
    %2952 = vmatmul.mubr.f32.gmra.mrb[0].mxu0 %v2472
    %v2953 = vpop.f32.mrb[0].mxu0
    %v2954 = vadd.f32 0.0, %v2953
    %v2955 = vpop.f32.mrb[0].mxu0
    %v2956 = vadd.f32 0.0, %v2955
    %2957 = vmatprep.mubr.f32.mxu0 0.0
    %2958 = vmatmul.mubr.f32.gmra.mrb[0].mxu0 %v2478
    %v2959 = vpop.f32.mrb[0].mxu0
    %v2960 = vadd.f32 0.0, %v2959
    %v2961 = vpop.f32.mrb[0].mxu0
    %v2962 = vadd.f32 0.0, %v2961
    %2963 = vmatprep.mubr.f32.mxu0 0.0
    %2964 = vmatmul.mubr.f32.gmra.mrb[0].mxu0 %v2484
    %v2965 = vpop.f32.mrb[0].mxu0
    %v2966 = vadd.f32 0.0, %v2965
    %v2967 = vpop.f32.mrb[0].mxu0
    %v2968 = vadd.f32 0.0, %v2967
    %2969 = vmatprep.mubr.f32.mxu0 0.0
    %2970 = vmatmul.mubr.f32.gmra.mrb[0].mxu0 %v2490
    %v2971 = vpop.f32.mrb[0].mxu0
    %v2972 = vadd.f32 0.0, %v2971
    %v2973 = vpop.f32.mrb[0].mxu0
    %v2974 = vadd.f32 0.0, %v2973
    %2975 = vmatprep.mubr.f32.mxu0 0.0
    %2976 = vmatmul.mubr.f32.gmra.mrb[0].mxu0 %v2496
    %v2977 = vpop.f32.mrb[0].mxu0
    %v2978 = vadd.f32 0.0, %v2977
    %v2979 = vpop.f32.mrb[0].mxu0
    %v2980 = vadd.f32 0.0, %v2979
    %2981 = vmatprep.mubr.f32.mxu0 0.0
    %2982 = vmatmul.mubr.f32.gmra.mrb[0].mxu0 %v2502
    %v2983 = vpop.f32.mrb[0].mxu0
    %v2984 = vadd.f32 0.0, %v2983
    %v2985 = vpop.f32.mrb[0].mxu0
    %v2986 = vadd.f32 0.0, %v2985
    %2987 = vmatprep.mubr.f32.mxu0 0.0
    %2988 = vmatmul.mubr.f32.gmra.mrb[0].mxu0 %v2508
    %v2989 = vpop.f32.mrb[0].mxu0
    %v2990 = vadd.f32 0.0, %v2989
    %v2991 = vpop.f32.mrb[0].mxu0
    %v2992 = vadd.f32 0.0, %v2991
    %2993 = vmatprep.mubr.f32.mxu0 0.0
    %2994 = vmatmul.mubr.f32.gmra.mrb[0].mxu0 %v2514
    %v2995 = vpop.f32.mrb[0].mxu0
    %v2996 = vadd.f32 0.0, %v2995
    %v2997 = vpop.f32.mrb[0].mxu0
    %v2998 = vadd.f32 0.0, %v2997
    %2999 = vmatprep.mubr.f32.mxu0 0.0
    %3000 = vmatmul.mubr.f32.gmra.mrb[0].mxu0 %v2520
    %v3001 = vpop.f32.mrb[0].mxu0
    %v3002 = vadd.f32 0.0, %v3001
    %v3003 = vpop.f32.mrb[0].mxu0
    %v3004 = vadd.f32 0.0, %v3003
    %3005 = vmatprep.mubr.f32.mxu0 0.0
    %3006 = vmatmul.mubr.f32.gmra.mrb[0].mxu0 %v2526
    %v3007 = vpop.f32.mrb[0].mxu0
    %v3008 = vadd.f32 0.0, %v3007
    %v3009 = vpop.f32.mrb[0].mxu0
    %v3010 = vadd.f32 0.0, %v3009
    %3011 = vmatprep.mubr.f32.mxu0 0.0
    %3012 = vmatmul.mubr.f32.gmra.mrb[0].mxu0 %v2532
    %v3013 = vpop.f32.mrb[0].mxu0
    %v3014 = vadd.f32 0.0, %v3013
    %v3015 = vpop.f32.mrb[0].mxu0
    %v3016 = vadd.f32 0.0, %v3015
    %3017 = vmatprep.mubr.f32.mxu0 0.0
    %3018 = vmatmul.mubr.f32.gmra.mrb[0].mxu0 %v2538
    %v3019 = vpop.f32.mrb[0].mxu0
    %v3020 = vadd.f32 0.0, %v3019
    %v3021 = vpop.f32.mrb[0].mxu0
    %v3022 = vadd.f32 0.0, %v3021
    %3023 = vmatprep.mubr.f32.mxu0 0.0
    %3024 = vmatmul.mubr.f32.gmra.mrb[0].mxu0 %v2544
    %v3025 = vpop.f32.mrb[0].mxu0
    %v3026 = vadd.f32 0.0, %v3025
    %v3027 = vpop.f32.mrb[0].mxu0
    %v3028 = vadd.f32 0.0, %v3027
    %3029 = vmatprep.mubr.f32.mxu0 0.0
    %3030 = vmatmul.mubr.f32.gmra.mrb[0].mxu0 %v2550
    %v3031 = vpop.f32.mrb[0].mxu0
    %v3032 = vadd.f32 0.0, %v3031
    %v3033 = vpop.f32.mrb[0].mxu0
    %v3034 = vadd.f32 0.0, %v3033
    %3035 = vmatprep.mubr.f32.mxu0 0.0
    %3036 = vmatmul.mubr.f32.gmra.mrb[0].mxu0 %v2556
    %v3037 = vpop.f32.mrb[0].mxu0
    %v3038 = vadd.f32 0.0, %v3037
    %v3039 = vpop.f32.mrb[0].mxu0
    %v3040 = vadd.f32 0.0, %v3039
    %3041 = vmatprep.mubr.f32.mxu0 0.0
    %3042 = vmatmul.mubr.f32.gmra.mrb[0].mxu0 %v2562
    %v3043 = vpop.f32.mrb[0].mxu0
    %v3044 = vadd.f32 0.0, %v3043
    %v3045 = vpop.f32.mrb[0].mxu0
    %v3046 = vadd.f32 0.0, %v3045
    %3047 = vmatprep.mubr.f32.mxu0 0.0
    %3048 = vmatmul.mubr.f32.gmra.mrb[0].mxu0 %v2568
    %v3049 = vpop.f32.mrb[0].mxu0
    %v3050 = vadd.f32 0.0, %v3049
    %v3051 = vpop.f32.mrb[0].mxu0
    %v3052 = vadd.f32 0.0, %v3051
    %3053 = vmatprep.mubr.f32.mxu0 0.0
    %3054 = vmatmul.mubr.f32.gmra.mrb[0].mxu0 %v2574
    %v3055 = vpop.f32.mrb[0].mxu0
    %v3056 = vadd.f32 0.0, %v3055
    %v3057 = vpop.f32.mrb[0].mxu0
    %v3058 = vadd.f32 0.0, %v3057
    %3059 = vmatprep.mubr.f32.mxu0 0.0
    %3060 = vmatmul.mubr.f32.gmra.mrb[0].mxu0 %v2580
    %v3061 = vpop.f32.mrb[0].mxu0
    %v3062 = vadd.f32 0.0, %v3061
    %v3063 = vpop.f32.mrb[0].mxu0
    %v3064 = vadd.f32 0.0, %v3063
    %3065 = vmatprep.mubr.f32.mxu0 0.0
    %3066 = vmatmul.mubr.f32.gmra.mrb[0].mxu0 %v2586
    %v3067 = vpop.f32.mrb[0].mxu0
    %v3068 = vadd.f32 0.0, %v3067
    %v3069 = vpop.f32.mrb[0].mxu0
    %v3070 = vadd.f32 0.0, %v3069
    %3071 = vmatprep.mubr.f32.mxu0 0.0
    %3072 = vmatmul.mubr.f32.gmra.mrb[0].mxu0 %v2592
    %v3073 = vpop.f32.mrb[0].mxu0
    %v3074 = vadd.f32 0.0, %v3073
    %v3075 = vpop.f32.mrb[0].mxu0
    %v3076 = vadd.f32 0.0, %v3075
    %3077 = vmatprep.mubr.f32.mxu0 0.0
    %3078 = vmatmul.mubr.f32.gmra.mrb[0].mxu0 %v2598
    %v3079 = vpop.f32.mrb[0].mxu0
    %v3080 = vadd.f32 0.0, %v3079
    %v3081 = vpop.f32.mrb[0].mxu0
    %v3082 = vadd.f32 0.0, %v3081
    %3083 = vmatprep.mubr.f32.mxu0 0.0
    %3084 = vmatmul.mubr.f32.gmra.mrb[0].mxu0 %v2604
    %v3085 = vpop.f32.mrb[0].mxu0
    %v3086 = vadd.f32 0.0, %v3085
    %v3087 = vpop.f32.mrb[0].mxu0
    %v3088 = vadd.f32 0.0, %v3087
    %3089 = vmatprep.mubr.f32.mxu0 0.0
    %3090 = vmatmul.mubr.f32.gmra.mrb[0].mxu0 %v2610
    %v3091 = vpop.f32.mrb[0].mxu0
    %v3092 = vadd.f32 0.0, %v3091
    %v3093 = vpop.f32.mrb[0].mxu0
    %v3094 = vadd.f32 0.0, %v3093
    %3095 = vmatprep.mubr.f32.mxu0 0.0
    %3096 = vmatmul.mubr.f32.gmra.mrb[0].mxu0 %v2616
    %v3097 = vpop.f32.mrb[0].mxu0
    %v3098 = vadd.f32 0.0, %v3097
    %v3099 = vpop.f32.mrb[0].mxu0
    %v3100 = vadd.f32 0.0, %v3099
    %3101 = vmatprep.mubr.f32.mxu0 0.0
    %3102 = vmatmul.mubr.f32.gmra.mrb[0].mxu0 %v2622
    %v3103 = vpop.f32.mrb[0].mxu0
    %v3104 = vadd.f32 0.0, %v3103
    %v3105 = vpop.f32.mrb[0].mxu0
    %v3106 = vadd.f32 0.0, %v3105
    %3107 = vmatprep.mubr.f32.mxu0 0.0
    %3108 = vmatmul.mubr.f32.gmra.mrb[0].mxu0 %v2628
    %v3109 = vpop.f32.mrb[0].mxu0
    %v3110 = vadd.f32 0.0, %v3109
    %v3111 = vpop.f32.mrb[0].mxu0
    %v3112 = vadd.f32 0.0, %v3111
    %3113 = vmatprep.mubr.f32.mxu0 0.0
    %3114 = vmatmul.mubr.f32.gmra.mrb[0].mxu0 %v2634
    %v3115 = vpop.f32.mrb[0].mxu0
    %v3116 = vadd.f32 0.0, %v3115
    %v3117 = vpop.f32.mrb[0].mxu0
    %v3118 = vadd.f32 0.0, %v3117
    %3119 = vmatprep.mubr.f32.mxu0 0.0
    %3120 = vmatmul.mubr.f32.gmra.mrb[0].mxu0 %v2640
    %v3121 = vpop.f32.mrb[0].mxu0
    %v3122 = vadd.f32 0.0, %v3121
    %v3123 = vpop.f32.mrb[0].mxu0
    %v3124 = vadd.f32 0.0, %v3123
    %3125 = vmatprep.mubr.f32.mxu0 0.0
    %3126 = vmatmul.mubr.f32.gmra.mrb[0].mxu0 %v2646
    %v3127 = vpop.f32.mrb[0].mxu0
    %v3128 = vadd.f32 0.0, %v3127
    %v3129 = vpop.f32.mrb[0].mxu0
    %v3130 = vadd.f32 0.0, %v3129
    %3131 = vmatprep.mubr.f32.mxu0 0.0
    %3132 = vmatmul.mubr.f32.gmra.mrb[0].mxu0 %v2652
    %v3133 = vpop.f32.mrb[0].mxu0
    %v3134 = vadd.f32 0.0, %v3133
    %v3135 = vpop.f32.mrb[0].mxu0
    %v3136 = vadd.f32 0.0, %v3135
    %3137 = vmatprep.mubr.f32.mxu0 0.0
    %3138 = vmatmul.mubr.f32.gmra.mrb[0].mxu0 %v2658
    %v3139 = vpop.f32.mrb[0].mxu0
    %v3140 = vadd.f32 0.0, %v3139
    %v3141 = vpop.f32.mrb[0].mxu0
    %v3142 = vadd.f32 0.0, %v3141
    %3143 = vdwg.mxu0
    %v3144 = vmul.f32 %v2954, 0.088388346
    %v3145 = vmul.f32 %v2956, 0.088388346
    %v3146 = vmul.f32 %v2960, 0.088388346
    %v3147 = vmul.f32 %v2962, 0.088388346
    %v3148 = vmul.f32 %v2966, 0.088388346
    %v3149 = vmul.f32 %v2968, 0.088388346
    %v3150 = vmul.f32 %v2972, 0.088388346
    %v3151 = vmul.f32 %v2974, 0.088388346
    %v3152 = vmul.f32 %v2978, 0.088388346
    %v3153 = vmul.f32 %v2980, 0.088388346
    %v3154 = vmul.f32 %v2984, 0.088388346
    %v3155 = vmul.f32 %v2986, 0.088388346
    %v3156 = vmul.f32 %v2990, 0.088388346
    %v3157 = vmul.f32 %v2992, 0.088388346
    %v3158 = vmul.f32 %v2996, 0.088388346
    %v3159 = vmul.f32 %v2998, 0.088388346
    %v3160 = vmul.f32 %v3002, 0.088388346
    %v3161 = vmul.f32 %v3004, 0.088388346
    %v3162 = vmul.f32 %v3008, 0.088388346
    %v3163 = vmul.f32 %v3010, 0.088388346
    %v3164 = vmul.f32 %v3014, 0.088388346
    %v3165 = vmul.f32 %v3016, 0.088388346
    %v3166 = vmul.f32 %v3020, 0.088388346
    %v3167 = vmul.f32 %v3022, 0.088388346
    %v3168 = vmul.f32 %v3026, 0.088388346
    %v3169 = vmul.f32 %v3028, 0.088388346
    %v3170 = vmul.f32 %v3032, 0.088388346
    %v3171 = vmul.f32 %v3034, 0.088388346
    %v3172 = vmul.f32 %v3038, 0.088388346
    %v3173 = vmul.f32 %v3040, 0.088388346
    %v3174 = vmul.f32 %v3044, 0.088388346
    %v3175 = vmul.f32 %v3046, 0.088388346
    %v3176 = vmul.f32 %v3050, 0.088388346
    %v3177 = vmul.f32 %v3052, 0.088388346
    %v3178 = vmul.f32 %v3056, 0.088388346
    %v3179 = vmul.f32 %v3058, 0.088388346
    %v3180 = vmul.f32 %v3062, 0.088388346
    %v3181 = vmul.f32 %v3064, 0.088388346
    %v3182 = vmul.f32 %v3068, 0.088388346
    %v3183 = vmul.f32 %v3070, 0.088388346
    %v3184 = vmul.f32 %v3074, 0.088388346
    %v3185 = vmul.f32 %v3076, 0.088388346
    %v3186 = vmul.f32 %v3080, 0.088388346
    %v3187 = vmul.f32 %v3082, 0.088388346
    %v3188 = vmul.f32 %v3086, 0.088388346
    %v3189 = vmul.f32 %v3088, 0.088388346
    %v3190 = vmul.f32 %v3092, 0.088388346
    %v3191 = vmul.f32 %v3094, 0.088388346
    %v3192 = vmul.f32 %v3098, 0.088388346
    %v3193 = vmul.f32 %v3100, 0.088388346
    %v3194 = vmul.f32 %v3104, 0.088388346
    %v3195 = vmul.f32 %v3106, 0.088388346
    %v3196 = vmul.f32 %v3110, 0.088388346
    %v3197 = vmul.f32 %v3112, 0.088388346
    %v3198 = vmul.f32 %v3116, 0.088388346
    %v3199 = vmul.f32 %v3118, 0.088388346
    %v3200 = vmul.f32 %v3122, 0.088388346
    %v3201 = vmul.f32 %v3124, 0.088388346
    %v3202 = vmul.f32 %v3128, 0.088388346
    %v3203 = vmul.f32 %v3130, 0.088388346
    %v3204 = vmul.f32 %v3134, 0.088388346
    %v3205 = vmul.f32 %v3136, 0.088388346
    %v3206 = vmul.f32 %v3140, 0.088388346
    %v3207 = vmul.f32 %v3142, 0.088388346
    %v3208 = vlaneseq
    %v3209 = vand.u32 %v3208, 127
    %v3210 = vadd.s32 %v3209, 128
    %v3211 = vand.u32 %v443, 4294967280
    %v3212 = vand.u32 %v444, 4294967280
    %v3213 = vand.u32 %v445, 4294967280
    %v3214 = vand.u32 %v446, 4294967280
    %v3215 = vand.u32 %v447, 4294967280
    %v3216 = vand.u32 %v448, 4294967280
    %v3217 = vand.u32 %v449, 4294967280
    %v3218 = vand.u32 %v450, 4294967280
    %v3219 = vand.u32 %v451, 4294967280
    %v3220 = vand.u32 %v452, 4294967280
    %v3221 = vand.u32 %v453, 4294967280
    %v3222 = vand.u32 %v454, 4294967280
    %v3223 = vand.u32 %v455, 4294967280
    %v3224 = vand.u32 %v456, 4294967280
    %v3225 = vand.u32 %v457, 4294967280
    %v3226 = vand.u32 %v458, 4294967280
    %v3227 = vand.u32 %v459, 4294967280
    %v3228 = vand.u32 %v460, 4294967280
    %v3229 = vand.u32 %v461, 4294967280
    %v3230 = vand.u32 %v462, 4294967280
    %v3231 = vand.u32 %v463, 4294967280
    %v3232 = vand.u32 %v464, 4294967280
    %v3233 = vand.u32 %v465, 4294967280
    %v3234 = vand.u32 %v466, 4294967280
    %v3235 = vand.u32 %v467, 4294967280
    %v3236 = vand.u32 %v468, 4294967280
    %v3237 = vand.u32 %v469, 4294967280
    %v3238 = vand.u32 %v470, 4294967280
    %v3239 = vand.u32 %v471, 4294967280
    %v3240 = vand.u32 %v472, 4294967280
    %v3241 = vand.u32 %v473, 4294967280
    %v3242 = vand.u32 %v474, 4294967280
    %v3243 = vand.u32 %v3209, 4294967280
    %v3244 = vand.u32 %v3210, 4294967280
    %vm3245 = vcmp.eq.s32.totalorder %v3211, %v3243
    %vm3246 = vcmp.eq.s32.totalorder %v3211, %v3244
    %vm3247 = vcmp.eq.s32.totalorder %v3212, %v3243
    %vm3248 = vcmp.eq.s32.totalorder %v3212, %v3244
    %vm3249 = vcmp.eq.s32.totalorder %v3213, %v3243
    %vm3250 = vcmp.eq.s32.totalorder %v3213, %v3244
    %vm3251 = vcmp.eq.s32.totalorder %v3214, %v3243
    %vm3252 = vcmp.eq.s32.totalorder %v3214, %v3244
    %vm3253 = vcmp.eq.s32.totalorder %v3215, %v3243
    %vm3254 = vcmp.eq.s32.totalorder %v3215, %v3244
    %vm3255 = vcmp.eq.s32.totalorder %v3216, %v3243
    %vm3256 = vcmp.eq.s32.totalorder %v3216, %v3244
    %vm3257 = vcmp.eq.s32.totalorder %v3217, %v3243
    %vm3258 = vcmp.eq.s32.totalorder %v3217, %v3244
    %vm3259 = vcmp.eq.s32.totalorder %v3218, %v3243
    %vm3260 = vcmp.eq.s32.totalorder %v3218, %v3244
    %vm3261 = vcmp.eq.s32.totalorder %v3219, %v3243
    %vm3262 = vcmp.eq.s32.totalorder %v3219, %v3244
    %vm3263 = vcmp.eq.s32.totalorder %v3220, %v3243
    %vm3264 = vcmp.eq.s32.totalorder %v3220, %v3244
    %vm3265 = vcmp.eq.s32.totalorder %v3221, %v3243
    %vm3266 = vcmp.eq.s32.totalorder %v3221, %v3244
    %vm3267 = vcmp.eq.s32.totalorder %v3222, %v3243
    %vm3268 = vcmp.eq.s32.totalorder %v3222, %v3244
    %vm3269 = vcmp.eq.s32.totalorder %v3223, %v3243
    %vm3270 = vcmp.eq.s32.totalorder %v3223, %v3244
    %vm3271 = vcmp.eq.s32.totalorder %v3224, %v3243
    %vm3272 = vcmp.eq.s32.totalorder %v3224, %v3244
    %vm3273 = vcmp.eq.s32.totalorder %v3225, %v3243
    %vm3274 = vcmp.eq.s32.totalorder %v3225, %v3244
    %vm3275 = vcmp.eq.s32.totalorder %v3226, %v3243
    %vm3276 = vcmp.eq.s32.totalorder %v3226, %v3244
    %vm3277 = vcmp.eq.s32.totalorder %v3227, %v3243
    %vm3278 = vcmp.eq.s32.totalorder %v3227, %v3244
    %vm3279 = vcmp.eq.s32.totalorder %v3228, %v3243
    %vm3280 = vcmp.eq.s32.totalorder %v3228, %v3244
    %vm3281 = vcmp.eq.s32.totalorder %v3229, %v3243
    %vm3282 = vcmp.eq.s32.totalorder %v3229, %v3244
    %vm3283 = vcmp.eq.s32.totalorder %v3230, %v3243
    %vm3284 = vcmp.eq.s32.totalorder %v3230, %v3244
    %vm3285 = vcmp.eq.s32.totalorder %v3231, %v3243
    %vm3286 = vcmp.eq.s32.totalorder %v3231, %v3244
    %vm3287 = vcmp.eq.s32.totalorder %v3232, %v3243
    %vm3288 = vcmp.eq.s32.totalorder %v3232, %v3244
    %vm3289 = vcmp.eq.s32.totalorder %v3233, %v3243
    %vm3290 = vcmp.eq.s32.totalorder %v3233, %v3244
    %vm3291 = vcmp.eq.s32.totalorder %v3234, %v3243
    %vm3292 = vcmp.eq.s32.totalorder %v3234, %v3244
    %vm3293 = vcmp.eq.s32.totalorder %v3235, %v3243
    %vm3294 = vcmp.eq.s32.totalorder %v3235, %v3244
    %vm3295 = vcmp.eq.s32.totalorder %v3236, %v3243
    %vm3296 = vcmp.eq.s32.totalorder %v3236, %v3244
    %vm3297 = vcmp.eq.s32.totalorder %v3237, %v3243
    %vm3298 = vcmp.eq.s32.totalorder %v3237, %v3244
    %vm3299 = vcmp.eq.s32.totalorder %v3238, %v3243
    %vm3300 = vcmp.eq.s32.totalorder %v3238, %v3244
    %vm3301 = vcmp.eq.s32.totalorder %v3239, %v3243
    %vm3302 = vcmp.eq.s32.totalorder %v3239, %v3244
    %vm3303 = vcmp.eq.s32.totalorder %v3240, %v3243
    %vm3304 = vcmp.eq.s32.totalorder %v3240, %v3244
    %vm3305 = vcmp.eq.s32.totalorder %v3241, %v3243
    %vm3306 = vcmp.eq.s32.totalorder %v3241, %v3244
    %vm3307 = vcmp.eq.s32.totalorder %v3242, %v3243
    %vm3308 = vcmp.eq.s32.totalorder %v3242, %v3244
    %v3309 = vand.u32 %v3209, 15
    %v3310 = vand.u32 %v3210, 15
    %vm3311 = vcmp.lt.s32.totalorder %v3309, 5
    %vm3312 = vcmp.lt.s32.totalorder %v3310, 5
    %vm3313 = vcmp.ge.s32.totalorder %v3309, 8
    %vm3314 = vcmp.ge.s32.totalorder %v3310, 8
    %vm3315 = vmor %vm3311, %vm3313
    %vm3316 = vmor %vm3312, %vm3314
    %v3317 = vsel %vm3315, 1, 0
    %v3318 = vsel %vm3316, 1, 0
    %vm3319 = vcmp.eq.s32.totalorder %v3317, 1
    %vm3320 = vcmp.eq.s32.totalorder %v3318, 1
    %vm3321 = vmand %vm3245, %vm3319
    %vm3322 = vmand %vm3246, %vm3320
    %vm3323 = vmand %vm3247, %vm3319
    %vm3324 = vmand %vm3248, %vm3320
    %vm3325 = vmand %vm3249, %vm3319
    %vm3326 = vmand %vm3250, %vm3320
    %vm3327 = vmand %vm3251, %vm3319
    %vm3328 = vmand %vm3252, %vm3320
    %vm3329 = vmand %vm3253, %vm3319
    %vm3330 = vmand %vm3254, %vm3320
    %vm3331 = vmand %vm3255, %vm3319
    %vm3332 = vmand %vm3256, %vm3320
    %vm3333 = vmand %vm3257, %vm3319
    %vm3334 = vmand %vm3258, %vm3320
    %vm3335 = vmand %vm3259, %vm3319
    %vm3336 = vmand %vm3260, %vm3320
    %vm3337 = vmand %vm3261, %vm3319
    %vm3338 = vmand %vm3262, %vm3320
    %vm3339 = vmand %vm3263, %vm3319
    %vm3340 = vmand %vm3264, %vm3320
    %vm3341 = vmand %vm3265, %vm3319
    %vm3342 = vmand %vm3266, %vm3320
    %vm3343 = vmand %vm3267, %vm3319
    %vm3344 = vmand %vm3268, %vm3320
    %vm3345 = vmand %vm3269, %vm3319
    %vm3346 = vmand %vm3270, %vm3320
    %vm3347 = vmand %vm3271, %vm3319
    %vm3348 = vmand %vm3272, %vm3320
    %vm3349 = vmand %vm3273, %vm3319
    %vm3350 = vmand %vm3274, %vm3320
    %vm3351 = vmand %vm3275, %vm3319
    %vm3352 = vmand %vm3276, %vm3320
    %vm3353 = vmand %vm3277, %vm3319
    %vm3354 = vmand %vm3278, %vm3320
    %vm3355 = vmand %vm3279, %vm3319
    %vm3356 = vmand %vm3280, %vm3320
    %vm3357 = vmand %vm3281, %vm3319
    %vm3358 = vmand %vm3282, %vm3320
    %vm3359 = vmand %vm3283, %vm3319
    %vm3360 = vmand %vm3284, %vm3320
    %vm3361 = vmand %vm3285, %vm3319
    %vm3362 = vmand %vm3286, %vm3320
    %vm3363 = vmand %vm3287, %vm3319
    %vm3364 = vmand %vm3288, %vm3320
    %vm3365 = vmand %vm3289, %vm3319
    %vm3366 = vmand %vm3290, %vm3320
    %vm3367 = vmand %vm3291, %vm3319
    %vm3368 = vmand %vm3292, %vm3320
    %vm3369 = vmand %vm3293, %vm3319
    %vm3370 = vmand %vm3294, %vm3320
    %vm3371 = vmand %vm3295, %vm3319
    %vm3372 = vmand %vm3296, %vm3320
    %vm3373 = vmand %vm3297, %vm3319
    %vm3374 = vmand %vm3298, %vm3320
    %vm3375 = vmand %vm3299, %vm3319
    %vm3376 = vmand %vm3300, %vm3320
    %vm3377 = vmand %vm3301, %vm3319
    %vm3378 = vmand %vm3302, %vm3320
    %vm3379 = vmand %vm3303, %vm3319
    %vm3380 = vmand %vm3304, %vm3320
    %vm3381 = vmand %vm3305, %vm3319
    %vm3382 = vmand %vm3306, %vm3320
    %vm3383 = vmand %vm3307, %vm3319
    %vm3384 = vmand %vm3308, %vm3320
    %v3385 = vsel %vm3321, %v3144, -1e+09
    %v3386 = vsel %vm3322, %v3145, -1e+09
    %v3387 = vsel %vm3323, %v3146, -1e+09
    %v3388 = vsel %vm3324, %v3147, -1e+09
    %v3389 = vsel %vm3325, %v3148, -1e+09
    %v3390 = vsel %vm3326, %v3149, -1e+09
    %v3391 = vsel %vm3327, %v3150, -1e+09
    %v3392 = vsel %vm3328, %v3151, -1e+09
    %v3393 = vsel %vm3329, %v3152, -1e+09
    %v3394 = vsel %vm3330, %v3153, -1e+09
    %v3395 = vsel %vm3331, %v3154, -1e+09
    %v3396 = vsel %vm3332, %v3155, -1e+09
    %v3397 = vsel %vm3333, %v3156, -1e+09
    %v3398 = vsel %vm3334, %v3157, -1e+09
    %v3399 = vsel %vm3335, %v3158, -1e+09
    %v3400 = vsel %vm3336, %v3159, -1e+09
    %v3401 = vsel %vm3337, %v3160, -1e+09
    %v3402 = vsel %vm3338, %v3161, -1e+09
    %v3403 = vsel %vm3339, %v3162, -1e+09
    %v3404 = vsel %vm3340, %v3163, -1e+09
    %v3405 = vsel %vm3341, %v3164, -1e+09
    %v3406 = vsel %vm3342, %v3165, -1e+09
    %v3407 = vsel %vm3343, %v3166, -1e+09
    %v3408 = vsel %vm3344, %v3167, -1e+09
    %v3409 = vsel %vm3345, %v3168, -1e+09
    %v3410 = vsel %vm3346, %v3169, -1e+09
    %v3411 = vsel %vm3347, %v3170, -1e+09
    %v3412 = vsel %vm3348, %v3171, -1e+09
    %v3413 = vsel %vm3349, %v3172, -1e+09
    %v3414 = vsel %vm3350, %v3173, -1e+09
    %v3415 = vsel %vm3351, %v3174, -1e+09
    %v3416 = vsel %vm3352, %v3175, -1e+09
    %v3417 = vsel %vm3353, %v3176, -1e+09
    %v3418 = vsel %vm3354, %v3177, -1e+09
    %v3419 = vsel %vm3355, %v3178, -1e+09
    %v3420 = vsel %vm3356, %v3179, -1e+09
    %v3421 = vsel %vm3357, %v3180, -1e+09
    %v3422 = vsel %vm3358, %v3181, -1e+09
    %v3423 = vsel %vm3359, %v3182, -1e+09
    %v3424 = vsel %vm3360, %v3183, -1e+09
    %v3425 = vsel %vm3361, %v3184, -1e+09
    %v3426 = vsel %vm3362, %v3185, -1e+09
    %v3427 = vsel %vm3363, %v3186, -1e+09
    %v3428 = vsel %vm3364, %v3187, -1e+09
    %v3429 = vsel %vm3365, %v3188, -1e+09
    %v3430 = vsel %vm3366, %v3189, -1e+09
    %v3431 = vsel %vm3367, %v3190, -1e+09
    %v3432 = vsel %vm3368, %v3191, -1e+09
    %v3433 = vsel %vm3369, %v3192, -1e+09
    %v3434 = vsel %vm3370, %v3193, -1e+09
    %v3435 = vsel %vm3371, %v3194, -1e+09
    %v3436 = vsel %vm3372, %v3195, -1e+09
    %v3437 = vsel %vm3373, %v3196, -1e+09
    %v3438 = vsel %vm3374, %v3197, -1e+09
    %v3439 = vsel %vm3375, %v3198, -1e+09
    %v3440 = vsel %vm3376, %v3199, -1e+09
    %v3441 = vsel %vm3377, %v3200, -1e+09
    %v3442 = vsel %vm3378, %v3201, -1e+09
    %v3443 = vsel %vm3379, %v3202, -1e+09
    %v3444 = vsel %vm3380, %v3203, -1e+09
    %v3445 = vsel %vm3381, %v3204, -1e+09
    %v3446 = vsel %vm3382, %v3205, -1e+09
    %v3447 = vsel %vm3383, %v3206, -1e+09
    %v3448 = vsel %vm3384, %v3207, -1e+09
    %v3449 = vmax.f32 %v3385, %v3386
    %3450 = vmax.xlane.f32.xlu0 %v3449
    %v3451 = vpop.xlane.xlu0 %3450
    %v3452 = vmax.f32 %v3387, %v3388
    %3453 = vmax.xlane.f32.xlu0 %v3452
    %v3454 = vpop.xlane.xlu0 %3453
    %v3455 = vmax.f32 %v3389, %v3390
    %3456 = vmax.xlane.f32.xlu0 %v3455
    %v3457 = vpop.xlane.xlu0 %3456
    %v3458 = vmax.f32 %v3391, %v3392
    %3459 = vmax.xlane.f32.xlu0 %v3458
    %v3460 = vpop.xlane.xlu0 %3459
    %v3461 = vmax.f32 %v3393, %v3394
    %3462 = vmax.xlane.f32.xlu0 %v3461
    %v3463 = vpop.xlane.xlu0 %3462
    %v3464 = vmax.f32 %v3395, %v3396
    %3465 = vmax.xlane.f32.xlu0 %v3464
    %v3466 = vpop.xlane.xlu0 %3465
    %v3467 = vmax.f32 %v3397, %v3398
    %3468 = vmax.xlane.f32.xlu0 %v3467
    %v3469 = vpop.xlane.xlu0 %3468
    %v3470 = vmax.f32 %v3399, %v3400
    %3471 = vmax.xlane.f32.xlu0 %v3470
    %v3472 = vpop.xlane.xlu0 %3471
    %v3473 = vmax.f32 %v3401, %v3402
    %3474 = vmax.xlane.f32.xlu0 %v3473
    %v3475 = vpop.xlane.xlu0 %3474
    %v3476 = vmax.f32 %v3403, %v3404
    %3477 = vmax.xlane.f32.xlu0 %v3476
    %v3478 = vpop.xlane.xlu0 %3477
    %v3479 = vmax.f32 %v3405, %v3406
    %3480 = vmax.xlane.f32.xlu0 %v3479
    %v3481 = vpop.xlane.xlu0 %3480
    %v3482 = vmax.f32 %v3407, %v3408
    %3483 = vmax.xlane.f32.xlu0 %v3482
    %v3484 = vpop.xlane.xlu0 %3483
    %v3485 = vmax.f32 %v3409, %v3410
    %3486 = vmax.xlane.f32.xlu0 %v3485
    %v3487 = vpop.xlane.xlu0 %3486
    %v3488 = vmax.f32 %v3411, %v3412
    %3489 = vmax.xlane.f32.xlu0 %v3488
    %v3490 = vpop.xlane.xlu0 %3489
    %v3491 = vmax.f32 %v3413, %v3414
    %3492 = vmax.xlane.f32.xlu0 %v3491
    %v3493 = vpop.xlane.xlu0 %3492
    %v3494 = vmax.f32 %v3415, %v3416
    %3495 = vmax.xlane.f32.xlu0 %v3494
    %v3496 = vpop.xlane.xlu0 %3495
    %v3497 = vmax.f32 %v3417, %v3418
    %3498 = vmax.xlane.f32.xlu0 %v3497
    %v3499 = vpop.xlane.xlu0 %3498
    %v3500 = vmax.f32 %v3419, %v3420
    %3501 = vmax.xlane.f32.xlu0 %v3500
    %v3502 = vpop.xlane.xlu0 %3501
    %v3503 = vmax.f32 %v3421, %v3422
    %3504 = vmax.xlane.f32.xlu0 %v3503
    %v3505 = vpop.xlane.xlu0 %3504
    %v3506 = vmax.f32 %v3423, %v3424
    %3507 = vmax.xlane.f32.xlu0 %v3506
    %v3508 = vpop.xlane.xlu0 %3507
    %v3509 = vmax.f32 %v3425, %v3426
    %3510 = vmax.xlane.f32.xlu0 %v3509
    %v3511 = vpop.xlane.xlu0 %3510
    %v3512 = vmax.f32 %v3427, %v3428
    %3513 = vmax.xlane.f32.xlu0 %v3512
    %v3514 = vpop.xlane.xlu0 %3513
    %v3515 = vmax.f32 %v3429, %v3430
    %3516 = vmax.xlane.f32.xlu0 %v3515
    %v3517 = vpop.xlane.xlu0 %3516
    %v3518 = vmax.f32 %v3431, %v3432
    %3519 = vmax.xlane.f32.xlu0 %v3518
    %v3520 = vpop.xlane.xlu0 %3519
    %v3521 = vmax.f32 %v3433, %v3434
    %3522 = vmax.xlane.f32.xlu0 %v3521
    %v3523 = vpop.xlane.xlu0 %3522
    %v3524 = vmax.f32 %v3435, %v3436
    %3525 = vmax.xlane.f32.xlu0 %v3524
    %v3526 = vpop.xlane.xlu0 %3525
    %v3527 = vmax.f32 %v3437, %v3438
    %3528 = vmax.xlane.f32.xlu0 %v3527
    %v3529 = vpop.xlane.xlu0 %3528
    %v3530 = vmax.f32 %v3439, %v3440
    %3531 = vmax.xlane.f32.xlu0 %v3530
    %v3532 = vpop.xlane.xlu0 %3531
    %v3533 = vmax.f32 %v3441, %v3442
    %3534 = vmax.xlane.f32.xlu0 %v3533
    %v3535 = vpop.xlane.xlu0 %3534
    %v3536 = vmax.f32 %v3443, %v3444
    %3537 = vmax.xlane.f32.xlu0 %v3536
    %v3538 = vpop.xlane.xlu0 %3537
    %v3539 = vmax.f32 %v3445, %v3446
    %3540 = vmax.xlane.f32.xlu0 %v3539
    %v3541 = vpop.xlane.xlu0 %3540
    %v3542 = vmax.f32 %v3447, %v3448
    %3543 = vmax.xlane.f32.xlu0 %v3542
    %v3544 = vpop.xlane.xlu0 %3543
    %v3545 = vsub.f32 %v3385, %v3451
    %v3546 = vsub.f32 %v3386, %v3451
    %v3547 = vsub.f32 %v3387, %v3454
    %v3548 = vsub.f32 %v3388, %v3454
    %v3549 = vsub.f32 %v3389, %v3457
    %v3550 = vsub.f32 %v3390, %v3457
    %v3551 = vsub.f32 %v3391, %v3460
    %v3552 = vsub.f32 %v3392, %v3460
    %v3553 = vsub.f32 %v3393, %v3463
    %v3554 = vsub.f32 %v3394, %v3463
    %v3555 = vsub.f32 %v3395, %v3466
    %v3556 = vsub.f32 %v3396, %v3466
    %v3557 = vsub.f32 %v3397, %v3469
    %v3558 = vsub.f32 %v3398, %v3469
    %v3559 = vsub.f32 %v3399, %v3472
    %v3560 = vsub.f32 %v3400, %v3472
    %v3561 = vsub.f32 %v3401, %v3475
    %v3562 = vsub.f32 %v3402, %v3475
    %v3563 = vsub.f32 %v3403, %v3478
    %v3564 = vsub.f32 %v3404, %v3478
    %v3565 = vsub.f32 %v3405, %v3481
    %v3566 = vsub.f32 %v3406, %v3481
    %v3567 = vsub.f32 %v3407, %v3484
    %v3568 = vsub.f32 %v3408, %v3484
    %v3569 = vsub.f32 %v3409, %v3487
    %v3570 = vsub.f32 %v3410, %v3487
    %v3571 = vsub.f32 %v3411, %v3490
    %v3572 = vsub.f32 %v3412, %v3490
    %v3573 = vsub.f32 %v3413, %v3493
    %v3574 = vsub.f32 %v3414, %v3493
    %v3575 = vsub.f32 %v3415, %v3496
    %v3576 = vsub.f32 %v3416, %v3496
    %v3577 = vsub.f32 %v3417, %v3499
    %v3578 = vsub.f32 %v3418, %v3499
    %v3579 = vsub.f32 %v3419, %v3502
    %v3580 = vsub.f32 %v3420, %v3502
    %v3581 = vsub.f32 %v3421, %v3505
    %v3582 = vsub.f32 %v3422, %v3505
    %v3583 = vsub.f32 %v3423, %v3508
    %v3584 = vsub.f32 %v3424, %v3508
    %v3585 = vsub.f32 %v3425, %v3511
    %v3586 = vsub.f32 %v3426, %v3511
    %v3587 = vsub.f32 %v3427, %v3514
    %v3588 = vsub.f32 %v3428, %v3514
    %v3589 = vsub.f32 %v3429, %v3517
    %v3590 = vsub.f32 %v3430, %v3517
    %v3591 = vsub.f32 %v3431, %v3520
    %v3592 = vsub.f32 %v3432, %v3520
    %v3593 = vsub.f32 %v3433, %v3523
    %v3594 = vsub.f32 %v3434, %v3523
    %v3595 = vsub.f32 %v3435, %v3526
    %v3596 = vsub.f32 %v3436, %v3526
    %v3597 = vsub.f32 %v3437, %v3529
    %v3598 = vsub.f32 %v3438, %v3529
    %v3599 = vsub.f32 %v3439, %v3532
    %v3600 = vsub.f32 %v3440, %v3532
    %v3601 = vsub.f32 %v3441, %v3535
    %v3602 = vsub.f32 %v3442, %v3535
    %v3603 = vsub.f32 %v3443, %v3538
    %v3604 = vsub.f32 %v3444, %v3538
    %v3605 = vsub.f32 %v3445, %v3541
    %v3606 = vsub.f32 %v3446, %v3541
    %v3607 = vsub.f32 %v3447, %v3544
    %v3608 = vsub.f32 %v3448, %v3544
    %v3609 = vmul.f32 %v3545, 1.442695
    %v3610 = vpow.pop %v3609
    %v3611 = vmul.f32 %v3546, 1.442695
    %v3612 = vpow.pop %v3611
    %v3613 = vmul.f32 %v3547, 1.442695
    %v3614 = vpow.pop %v3613
    %v3615 = vmul.f32 %v3548, 1.442695
    %v3616 = vpow.pop %v3615
    %v3617 = vmul.f32 %v3549, 1.442695
    %v3618 = vpow.pop %v3617
    %v3619 = vmul.f32 %v3550, 1.442695
    %v3620 = vpow.pop %v3619
    %v3621 = vmul.f32 %v3551, 1.442695
    %v3622 = vpow.pop %v3621
    %v3623 = vmul.f32 %v3552, 1.442695
    %v3624 = vpow.pop %v3623
    %v3625 = vmul.f32 %v3553, 1.442695
    %v3626 = vpow.pop %v3625
    %v3627 = vmul.f32 %v3554, 1.442695
    %v3628 = vpow.pop %v3627
    %v3629 = vmul.f32 %v3555, 1.442695
    %v3630 = vpow.pop %v3629
    %v3631 = vmul.f32 %v3556, 1.442695
    %v3632 = vpow.pop %v3631
    %v3633 = vmul.f32 %v3557, 1.442695
    %v3634 = vpow.pop %v3633
    %v3635 = vmul.f32 %v3558, 1.442695
    %v3636 = vpow.pop %v3635
    %v3637 = vmul.f32 %v3559, 1.442695
    %v3638 = vpow.pop %v3637
    %v3639 = vmul.f32 %v3560, 1.442695
    %v3640 = vpow.pop %v3639
    %v3641 = vmul.f32 %v3561, 1.442695
    %v3642 = vpow.pop %v3641
    %v3643 = vmul.f32 %v3562, 1.442695
    %v3644 = vpow.pop %v3643
    %v3645 = vmul.f32 %v3563, 1.442695
    %v3646 = vpow.pop %v3645
    %v3647 = vmul.f32 %v3564, 1.442695
    %v3648 = vpow.pop %v3647
    %v3649 = vmul.f32 %v3565, 1.442695
    %v3650 = vpow.pop %v3649
    %v3651 = vmul.f32 %v3566, 1.442695
    %v3652 = vpow.pop %v3651
    %v3653 = vmul.f32 %v3567, 1.442695
    %v3654 = vpow.pop %v3653
    %v3655 = vmul.f32 %v3568, 1.442695
    %v3656 = vpow.pop %v3655
    %v3657 = vmul.f32 %v3569, 1.442695
    %v3658 = vpow.pop %v3657
    %v3659 = vmul.f32 %v3570, 1.442695
    %v3660 = vpow.pop %v3659
    %v3661 = vmul.f32 %v3571, 1.442695
    %v3662 = vpow.pop %v3661
    %v3663 = vmul.f32 %v3572, 1.442695
    %v3664 = vpow.pop %v3663
    %v3665 = vmul.f32 %v3573, 1.442695
    %v3666 = vpow.pop %v3665
    %v3667 = vmul.f32 %v3574, 1.442695
    %v3668 = vpow.pop %v3667
    %v3669 = vmul.f32 %v3575, 1.442695
    %v3670 = vpow.pop %v3669
    %v3671 = vmul.f32 %v3576, 1.442695
    %v3672 = vpow.pop %v3671
    %v3673 = vmul.f32 %v3577, 1.442695
    %v3674 = vpow.pop %v3673
    %v3675 = vmul.f32 %v3578, 1.442695
    %v3676 = vpow.pop %v3675
    %v3677 = vmul.f32 %v3579, 1.442695
    %v3678 = vpow.pop %v3677
    %v3679 = vmul.f32 %v3580, 1.442695
    %v3680 = vpow.pop %v3679
    %v3681 = vmul.f32 %v3581, 1.442695
    %v3682 = vpow.pop %v3681
    %v3683 = vmul.f32 %v3582, 1.442695
    %v3684 = vpow.pop %v3683
    %v3685 = vmul.f32 %v3583, 1.442695
    %v3686 = vpow.pop %v3685
    %v3687 = vmul.f32 %v3584, 1.442695
    %v3688 = vpow.pop %v3687
    %v3689 = vmul.f32 %v3585, 1.442695
    %v3690 = vpow.pop %v3689
    %v3691 = vmul.f32 %v3586, 1.442695
    %v3692 = vpow.pop %v3691
    %v3693 = vmul.f32 %v3587, 1.442695
    %v3694 = vpow.pop %v3693
    %v3695 = vmul.f32 %v3588, 1.442695
    %v3696 = vpow.pop %v3695
    %v3697 = vmul.f32 %v3589, 1.442695
    %v3698 = vpow.pop %v3697
    %v3699 = vmul.f32 %v3590, 1.442695
    %v3700 = vpow.pop %v3699
    %v3701 = vmul.f32 %v3591, 1.442695
    %v3702 = vpow.pop %v3701
    %v3703 = vmul.f32 %v3592, 1.442695
    %v3704 = vpow.pop %v3703
    %v3705 = vmul.f32 %v3593, 1.442695
    %v3706 = vpow.pop %v3705
    %v3707 = vmul.f32 %v3594, 1.442695
    %v3708 = vpow.pop %v3707
    %v3709 = vmul.f32 %v3595, 1.442695
    %v3710 = vpow.pop %v3709
    %v3711 = vmul.f32 %v3596, 1.442695
    %v3712 = vpow.pop %v3711
    %v3713 = vmul.f32 %v3597, 1.442695
    %v3714 = vpow.pop %v3713
    %v3715 = vmul.f32 %v3598, 1.442695
    %v3716 = vpow.pop %v3715
    %v3717 = vmul.f32 %v3599, 1.442695
    %v3718 = vpow.pop %v3717
    %v3719 = vmul.f32 %v3600, 1.442695
    %v3720 = vpow.pop %v3719
    %v3721 = vmul.f32 %v3601, 1.442695
    %v3722 = vpow.pop %v3721
    %v3723 = vmul.f32 %v3602, 1.442695
    %v3724 = vpow.pop %v3723
    %v3725 = vmul.f32 %v3603, 1.442695
    %v3726 = vpow.pop %v3725
    %v3727 = vmul.f32 %v3604, 1.442695
    %v3728 = vpow.pop %v3727
    %v3729 = vmul.f32 %v3605, 1.442695
    %v3730 = vpow.pop %v3729
    %v3731 = vmul.f32 %v3606, 1.442695
    %v3732 = vpow.pop %v3731
    %v3733 = vmul.f32 %v3607, 1.442695
    %v3734 = vpow.pop %v3733
    %v3735 = vmul.f32 %v3608, 1.442695
    %v3736 = vpow.pop %v3735
    %v3737 = vadd.f32 %v3610, %v3612
    %3738 = vadd.xlane.f32.xlu0 %v3737
    %v3739 = vpop.xlane.xlu0 %3738
    %v3740 = vadd.f32 %v3614, %v3616
    %3741 = vadd.xlane.f32.xlu0 %v3740
    %v3742 = vpop.xlane.xlu0 %3741
    %v3743 = vadd.f32 %v3618, %v3620
    %3744 = vadd.xlane.f32.xlu0 %v3743
    %v3745 = vpop.xlane.xlu0 %3744
    %v3746 = vadd.f32 %v3622, %v3624
    %3747 = vadd.xlane.f32.xlu0 %v3746
    %v3748 = vpop.xlane.xlu0 %3747
    %v3749 = vadd.f32 %v3626, %v3628
    %3750 = vadd.xlane.f32.xlu0 %v3749
    %v3751 = vpop.xlane.xlu0 %3750
    %v3752 = vadd.f32 %v3630, %v3632
    %3753 = vadd.xlane.f32.xlu0 %v3752
    %v3754 = vpop.xlane.xlu0 %3753
    %v3755 = vadd.f32 %v3634, %v3636
    %3756 = vadd.xlane.f32.xlu0 %v3755
    %v3757 = vpop.xlane.xlu0 %3756
    %v3758 = vadd.f32 %v3638, %v3640
    %3759 = vadd.xlane.f32.xlu0 %v3758
    %v3760 = vpop.xlane.xlu0 %3759
    %v3761 = vadd.f32 %v3642, %v3644
    %3762 = vadd.xlane.f32.xlu0 %v3761
    %v3763 = vpop.xlane.xlu0 %3762
    %v3764 = vadd.f32 %v3646, %v3648
    %3765 = vadd.xlane.f32.xlu0 %v3764
    %v3766 = vpop.xlane.xlu0 %3765
    %v3767 = vadd.f32 %v3650, %v3652
    %3768 = vadd.xlane.f32.xlu0 %v3767
    %v3769 = vpop.xlane.xlu0 %3768
    %v3770 = vadd.f32 %v3654, %v3656
    %3771 = vadd.xlane.f32.xlu0 %v3770
    %v3772 = vpop.xlane.xlu0 %3771
    %v3773 = vadd.f32 %v3658, %v3660
    %3774 = vadd.xlane.f32.xlu0 %v3773
    %v3775 = vpop.xlane.xlu0 %3774
    %v3776 = vadd.f32 %v3662, %v3664
    %3777 = vadd.xlane.f32.xlu0 %v3776
    %v3778 = vpop.xlane.xlu0 %3777
    %v3779 = vadd.f32 %v3666, %v3668
    %3780 = vadd.xlane.f32.xlu0 %v3779
    %v3781 = vpop.xlane.xlu0 %3780
    %v3782 = vadd.f32 %v3670, %v3672
    %3783 = vadd.xlane.f32.xlu0 %v3782
    %v3784 = vpop.xlane.xlu0 %3783
    %v3785 = vadd.f32 %v3674, %v3676
    %3786 = vadd.xlane.f32.xlu0 %v3785
    %v3787 = vpop.xlane.xlu0 %3786
    %v3788 = vadd.f32 %v3678, %v3680
    %3789 = vadd.xlane.f32.xlu0 %v3788
    %v3790 = vpop.xlane.xlu0 %3789
    %v3791 = vadd.f32 %v3682, %v3684
    %3792 = vadd.xlane.f32.xlu0 %v3791
    %v3793 = vpop.xlane.xlu0 %3792
    %v3794 = vadd.f32 %v3686, %v3688
    %3795 = vadd.xlane.f32.xlu0 %v3794
    %v3796 = vpop.xlane.xlu0 %3795
    %v3797 = vadd.f32 %v3690, %v3692
    %3798 = vadd.xlane.f32.xlu0 %v3797
    %v3799 = vpop.xlane.xlu0 %3798
    %v3800 = vadd.f32 %v3694, %v3696
    %3801 = vadd.xlane.f32.xlu0 %v3800
    %v3802 = vpop.xlane.xlu0 %3801
    %v3803 = vadd.f32 %v3698, %v3700
    %3804 = vadd.xlane.f32.xlu0 %v3803
    %v3805 = vpop.xlane.xlu0 %3804
    %v3806 = vadd.f32 %v3702, %v3704
    %3807 = vadd.xlane.f32.xlu0 %v3806
    %v3808 = vpop.xlane.xlu0 %3807
    %v3809 = vadd.f32 %v3706, %v3708
    %3810 = vadd.xlane.f32.xlu0 %v3809
    %v3811 = vpop.xlane.xlu0 %3810
    %v3812 = vadd.f32 %v3710, %v3712
    %3813 = vadd.xlane.f32.xlu0 %v3812
    %v3814 = vpop.xlane.xlu0 %3813
    %v3815 = vadd.f32 %v3714, %v3716
    %3816 = vadd.xlane.f32.xlu0 %v3815
    %v3817 = vpop.xlane.xlu0 %3816
    %v3818 = vadd.f32 %v3718, %v3720
    %3819 = vadd.xlane.f32.xlu0 %v3818
    %v3820 = vpop.xlane.xlu0 %3819
    %v3821 = vadd.f32 %v3722, %v3724
    %3822 = vadd.xlane.f32.xlu0 %v3821
    %v3823 = vpop.xlane.xlu0 %3822
    %v3824 = vadd.f32 %v3726, %v3728
    %3825 = vadd.xlane.f32.xlu0 %v3824
    %v3826 = vpop.xlane.xlu0 %3825
    %v3827 = vadd.f32 %v3730, %v3732
    %3828 = vadd.xlane.f32.xlu0 %v3827
    %v3829 = vpop.xlane.xlu0 %3828
    %v3830 = vadd.f32 %v3734, %v3736
    %3831 = vadd.xlane.f32.xlu0 %v3830
    %v3832 = vpop.xlane.xlu0 %3831
    %v3833 = vrcp.pop %v3739
    %v3834 = vrcp.pop %v3742
    %v3835 = vrcp.pop %v3745
    %v3836 = vrcp.pop %v3748
    %v3837 = vrcp.pop %v3751
    %v3838 = vrcp.pop %v3754
    %v3839 = vrcp.pop %v3757
    %v3840 = vrcp.pop %v3760
    %v3841 = vrcp.pop %v3763
    %v3842 = vrcp.pop %v3766
    %v3843 = vrcp.pop %v3769
    %v3844 = vrcp.pop %v3772
    %v3845 = vrcp.pop %v3775
    %v3846 = vrcp.pop %v3778
    %v3847 = vrcp.pop %v3781
    %v3848 = vrcp.pop %v3784
    %v3849 = vrcp.pop %v3787
    %v3850 = vrcp.pop %v3790
    %v3851 = vrcp.pop %v3793
    %v3852 = vrcp.pop %v3796
    %v3853 = vrcp.pop %v3799
    %v3854 = vrcp.pop %v3802
    %v3855 = vrcp.pop %v3805
    %v3856 = vrcp.pop %v3808
    %v3857 = vrcp.pop %v3811
    %v3858 = vrcp.pop %v3814
    %v3859 = vrcp.pop %v3817
    %v3860 = vrcp.pop %v3820
    %v3861 = vrcp.pop %v3823
    %v3862 = vrcp.pop %v3826
    %v3863 = vrcp.pop %v3829
    %v3864 = vrcp.pop %v3832
    %v3865 = vmul.f32 %v3610, %v3833
    %v3866 = vmul.f32 %v3612, %v3833
    %v3867 = vmul.f32 %v3614, %v3834
    %v3868 = vmul.f32 %v3616, %v3834
    %v3869 = vmul.f32 %v3618, %v3835
    %v3870 = vmul.f32 %v3620, %v3835
    %v3871 = vmul.f32 %v3622, %v3836
    %v3872 = vmul.f32 %v3624, %v3836
    %v3873 = vmul.f32 %v3626, %v3837
    %v3874 = vmul.f32 %v3628, %v3837
    %v3875 = vmul.f32 %v3630, %v3838
    %v3876 = vmul.f32 %v3632, %v3838
    %v3877 = vmul.f32 %v3634, %v3839
    %v3878 = vmul.f32 %v3636, %v3839
    %v3879 = vmul.f32 %v3638, %v3840
    %v3880 = vmul.f32 %v3640, %v3840
    %v3881 = vmul.f32 %v3642, %v3841
    %v3882 = vmul.f32 %v3644, %v3841
    %v3883 = vmul.f32 %v3646, %v3842
    %v3884 = vmul.f32 %v3648, %v3842
    %v3885 = vmul.f32 %v3650, %v3843
    %v3886 = vmul.f32 %v3652, %v3843
    %v3887 = vmul.f32 %v3654, %v3844
    %v3888 = vmul.f32 %v3656, %v3844
    %v3889 = vmul.f32 %v3658, %v3845
    %v3890 = vmul.f32 %v3660, %v3845
    %v3891 = vmul.f32 %v3662, %v3846
    %v3892 = vmul.f32 %v3664, %v3846
    %v3893 = vmul.f32 %v3666, %v3847
    %v3894 = vmul.f32 %v3668, %v3847
    %v3895 = vmul.f32 %v3670, %v3848
    %v3896 = vmul.f32 %v3672, %v3848
    %v3897 = vmul.f32 %v3674, %v3849
    %v3898 = vmul.f32 %v3676, %v3849
    %v3899 = vmul.f32 %v3678, %v3850
    %v3900 = vmul.f32 %v3680, %v3850
    %v3901 = vmul.f32 %v3682, %v3851
    %v3902 = vmul.f32 %v3684, %v3851
    %v3903 = vmul.f32 %v3686, %v3852
    %v3904 = vmul.f32 %v3688, %v3852
    %v3905 = vmul.f32 %v3690, %v3853
    %v3906 = vmul.f32 %v3692, %v3853
    %v3907 = vmul.f32 %v3694, %v3854
    %v3908 = vmul.f32 %v3696, %v3854
    %v3909 = vmul.f32 %v3698, %v3855
    %v3910 = vmul.f32 %v3700, %v3855
    %v3911 = vmul.f32 %v3702, %v3856
    %v3912 = vmul.f32 %v3704, %v3856
    %v3913 = vmul.f32 %v3706, %v3857
    %v3914 = vmul.f32 %v3708, %v3857
    %v3915 = vmul.f32 %v3710, %v3858
    %v3916 = vmul.f32 %v3712, %v3858
    %v3917 = vmul.f32 %v3714, %v3859
    %v3918 = vmul.f32 %v3716, %v3859
    %v3919 = vmul.f32 %v3718, %v3860
    %v3920 = vmul.f32 %v3720, %v3860
    %v3921 = vmul.f32 %v3722, %v3861
    %v3922 = vmul.f32 %v3724, %v3861
    %v3923 = vmul.f32 %v3726, %v3862
    %v3924 = vmul.f32 %v3728, %v3862
    %v3925 = vmul.f32 %v3730, %v3863
    %v3926 = vmul.f32 %v3732, %v3863
    %v3927 = vmul.f32 %v3734, %v3864
    %v3928 = vmul.f32 %v3736, %v3864
    %3929 = vmatprep.subr.mxu0 0.0
    %3930 = vmatpush1.msra.mxu0 %v2729
    %3931 = vmatprep.subr.mxu0 0.0
    %3932 = vmatpush1.msra.mxu0 %v2734
    %3933 = vmatprep.subr.mxu0 0.0
    %3934 = vmatpush1.msra.mxu0 %v2739
    %3935 = vmatprep.subr.mxu0 0.0
    %3936 = vmatpush1.msra.mxu0 %v2744
    %3937 = vmatprep.subr.mxu0 0.0
    %3938 = vmatpush1.msra.mxu0 %v2749
    %3939 = vmatprep.subr.mxu0 0.0
    %3940 = vmatpush1.msra.mxu0 %v2754
    %3941 = vmatprep.subr.mxu0 0.0
    %3942 = vmatpush1.msra.mxu0 %v2759
    %3943 = vmatprep.subr.mxu0 0.0
    %3944 = vmatpush1.msra.mxu0 %v2764
    %3945 = vmatprep.subr.mxu0 0.0
    %3946 = vmatpush1.msra.mxu0 %v2769
    %3947 = vmatprep.subr.mxu0 0.0
    %3948 = vmatpush1.msra.mxu0 %v2774
    %3949 = vmatprep.subr.mxu0 0.0
    %3950 = vmatpush1.msra.mxu0 %v2779
    %3951 = vmatprep.subr.mxu0 0.0
    %3952 = vmatpush1.msra.mxu0 %v2784
    %3953 = vmatprep.subr.mxu0 0.0
    %3954 = vmatpush1.msra.mxu0 %v2789
    %3955 = vmatprep.subr.mxu0 0.0
    %3956 = vmatpush1.msra.mxu0 %v2794
    %3957 = vmatprep.subr.mxu0 0.0
    %3958 = vmatpush1.msra.mxu0 %v2799
    %3959 = vmatprep.subr.mxu0 0.0
    %3960 = vmatpush1.msra.mxu0 %v2804
    %3961 = vmatprep.subr.mxu0 0.0
    %3962 = vmatpush1.msra.mxu0 %v2809
    %3963 = vmatprep.subr.mxu0 0.0
    %3964 = vmatpush1.msra.mxu0 %v2814
    %3965 = vmatprep.subr.mxu0 0.0
    %3966 = vmatpush1.msra.mxu0 %v2819
    %3967 = vmatprep.subr.mxu0 0.0
    %3968 = vmatpush1.msra.mxu0 %v2824
    %3969 = vmatprep.subr.mxu0 0.0
    %3970 = vmatpush1.msra.mxu0 %v2829
    %3971 = vmatprep.subr.mxu0 0.0
    %3972 = vmatpush1.msra.mxu0 %v2834
    %3973 = vmatprep.subr.mxu0 0.0
    %3974 = vmatpush1.msra.mxu0 %v2839
    %3975 = vmatprep.subr.mxu0 0.0
    %3976 = vmatpush1.msra.mxu0 %v2844
    %3977 = vmatprep.subr.mxu0 0.0
    %3978 = vmatpush1.msra.mxu0 %v2849
    %3979 = vmatprep.subr.mxu0 0.0
    %3980 = vmatpush1.msra.mxu0 %v2854
    %3981 = vmatprep.subr.mxu0 0.0
    %3982 = vmatpush1.msra.mxu0 %v2859
    %3983 = vmatprep.subr.mxu0 0.0
    %3984 = vmatpush1.msra.mxu0 %v2864
    %3985 = vmatprep.subr.mxu0 0.0
    %3986 = vmatpush1.msra.mxu0 %v2869
    %3987 = vmatprep.subr.mxu0 0.0
    %3988 = vmatpush1.msra.mxu0 %v2874
    %3989 = vmatprep.subr.mxu0 0.0
    %3990 = vmatpush1.msra.mxu0 %v2879
    %3991 = vmatprep.subr.mxu0 0.0
    %3992 = vmatpush1.msra.mxu0 %v2884
    %3993 = vmatprep.mubr.f32.mxu0 %v3866
    %3994 = vmatmul.mubr.f32.gmra.mrb[0].mxu0 %v3865
    %v3995 = vpop.f32.mrb[0].mxu0
    %v3996 = vadd.f32 0.0, %v3995
    %v3997 = vpop.f32.mrb[0].mxu0
    %3998 = vmatprep.mubr.f32.mxu0 %v3868
    %3999 = vmatmul.mubr.f32.gmra.mrb[0].mxu0 %v3867
    %v4000 = vpop.f32.mrb[0].mxu0
    %v4001 = vadd.f32 0.0, %v4000
    %v4002 = vpop.f32.mrb[0].mxu0
    %4003 = vmatprep.mubr.f32.mxu0 %v3870
    %4004 = vmatmul.mubr.f32.gmra.mrb[0].mxu0 %v3869
    %v4005 = vpop.f32.mrb[0].mxu0
    %v4006 = vadd.f32 0.0, %v4005
    %v4007 = vpop.f32.mrb[0].mxu0
    %4008 = vmatprep.mubr.f32.mxu0 %v3872
    %4009 = vmatmul.mubr.f32.gmra.mrb[0].mxu0 %v3871
    %v4010 = vpop.f32.mrb[0].mxu0
    %v4011 = vadd.f32 0.0, %v4010
    %v4012 = vpop.f32.mrb[0].mxu0
    %4013 = vmatprep.mubr.f32.mxu0 %v3874
    %4014 = vmatmul.mubr.f32.gmra.mrb[0].mxu0 %v3873
    %v4015 = vpop.f32.mrb[0].mxu0
    %v4016 = vadd.f32 0.0, %v4015
    %v4017 = vpop.f32.mrb[0].mxu0
    %4018 = vmatprep.mubr.f32.mxu0 %v3876
    %4019 = vmatmul.mubr.f32.gmra.mrb[0].mxu0 %v3875
    %v4020 = vpop.f32.mrb[0].mxu0
    %v4021 = vadd.f32 0.0, %v4020
    %v4022 = vpop.f32.mrb[0].mxu0
    %4023 = vmatprep.mubr.f32.mxu0 %v3878
    %4024 = vmatmul.mubr.f32.gmra.mrb[0].mxu0 %v3877
    %v4025 = vpop.f32.mrb[0].mxu0
    %v4026 = vadd.f32 0.0, %v4025
    %v4027 = vpop.f32.mrb[0].mxu0
    %4028 = vmatprep.mubr.f32.mxu0 %v3880
    %4029 = vmatmul.mubr.f32.gmra.mrb[0].mxu0 %v3879
    %v4030 = vpop.f32.mrb[0].mxu0
    %v4031 = vadd.f32 0.0, %v4030
    %v4032 = vpop.f32.mrb[0].mxu0
    %4033 = vmatprep.mubr.f32.mxu0 %v3882
    %4034 = vmatmul.mubr.f32.gmra.mrb[0].mxu0 %v3881
    %v4035 = vpop.f32.mrb[0].mxu0
    %v4036 = vadd.f32 0.0, %v4035
    %v4037 = vpop.f32.mrb[0].mxu0
    %4038 = vmatprep.mubr.f32.mxu0 %v3884
    %4039 = vmatmul.mubr.f32.gmra.mrb[0].mxu0 %v3883
    %v4040 = vpop.f32.mrb[0].mxu0
    %v4041 = vadd.f32 0.0, %v4040
    %v4042 = vpop.f32.mrb[0].mxu0
    %4043 = vmatprep.mubr.f32.mxu0 %v3886
    %4044 = vmatmul.mubr.f32.gmra.mrb[0].mxu0 %v3885
    %v4045 = vpop.f32.mrb[0].mxu0
    %v4046 = vadd.f32 0.0, %v4045
    %v4047 = vpop.f32.mrb[0].mxu0
    %4048 = vmatprep.mubr.f32.mxu0 %v3888
    %4049 = vmatmul.mubr.f32.gmra.mrb[0].mxu0 %v3887
    %v4050 = vpop.f32.mrb[0].mxu0
    %v4051 = vadd.f32 0.0, %v4050
    %v4052 = vpop.f32.mrb[0].mxu0
    %4053 = vmatprep.mubr.f32.mxu0 %v3890
    %4054 = vmatmul.mubr.f32.gmra.mrb[0].mxu0 %v3889
    %v4055 = vpop.f32.mrb[0].mxu0
    %v4056 = vadd.f32 0.0, %v4055
    %v4057 = vpop.f32.mrb[0].mxu0
    %4058 = vmatprep.mubr.f32.mxu0 %v3892
    %4059 = vmatmul.mubr.f32.gmra.mrb[0].mxu0 %v3891
    %v4060 = vpop.f32.mrb[0].mxu0
    %v4061 = vadd.f32 0.0, %v4060
    %v4062 = vpop.f32.mrb[0].mxu0
    %4063 = vmatprep.mubr.f32.mxu0 %v3894
    %4064 = vmatmul.mubr.f32.gmra.mrb[0].mxu0 %v3893
    %v4065 = vpop.f32.mrb[0].mxu0
    %v4066 = vadd.f32 0.0, %v4065
    %v4067 = vpop.f32.mrb[0].mxu0
    %4068 = vmatprep.mubr.f32.mxu0 %v3896
    %4069 = vmatmul.mubr.f32.gmra.mrb[0].mxu0 %v3895
    %v4070 = vpop.f32.mrb[0].mxu0
    %v4071 = vadd.f32 0.0, %v4070
    %v4072 = vpop.f32.mrb[0].mxu0
    %4073 = vmatprep.mubr.f32.mxu0 %v3898
    %4074 = vmatmul.mubr.f32.gmra.mrb[0].mxu0 %v3897
    %v4075 = vpop.f32.mrb[0].mxu0
    %v4076 = vadd.f32 0.0, %v4075
    %v4077 = vpop.f32.mrb[0].mxu0
    %4078 = vmatprep.mubr.f32.mxu0 %v3900
    %4079 = vmatmul.mubr.f32.gmra.mrb[0].mxu0 %v3899
    %v4080 = vpop.f32.mrb[0].mxu0
    %v4081 = vadd.f32 0.0, %v4080
    %v4082 = vpop.f32.mrb[0].mxu0
    %4083 = vmatprep.mubr.f32.mxu0 %v3902
    %4084 = vmatmul.mubr.f32.gmra.mrb[0].mxu0 %v3901
    %v4085 = vpop.f32.mrb[0].mxu0
    %v4086 = vadd.f32 0.0, %v4085
    %v4087 = vpop.f32.mrb[0].mxu0
    %4088 = vmatprep.mubr.f32.mxu0 %v3904
    %4089 = vmatmul.mubr.f32.gmra.mrb[0].mxu0 %v3903
    %v4090 = vpop.f32.mrb[0].mxu0
    %v4091 = vadd.f32 0.0, %v4090
    %v4092 = vpop.f32.mrb[0].mxu0
    %4093 = vmatprep.mubr.f32.mxu0 %v3906
    %4094 = vmatmul.mubr.f32.gmra.mrb[0].mxu0 %v3905
    %v4095 = vpop.f32.mrb[0].mxu0
    %v4096 = vadd.f32 0.0, %v4095
    %v4097 = vpop.f32.mrb[0].mxu0
    %4098 = vmatprep.mubr.f32.mxu0 %v3908
    %4099 = vmatmul.mubr.f32.gmra.mrb[0].mxu0 %v3907
    %v4100 = vpop.f32.mrb[0].mxu0
    %v4101 = vadd.f32 0.0, %v4100
    %v4102 = vpop.f32.mrb[0].mxu0
    %4103 = vmatprep.mubr.f32.mxu0 %v3910
    %4104 = vmatmul.mubr.f32.gmra.mrb[0].mxu0 %v3909
    %v4105 = vpop.f32.mrb[0].mxu0
    %v4106 = vadd.f32 0.0, %v4105
    %v4107 = vpop.f32.mrb[0].mxu0
    %4108 = vmatprep.mubr.f32.mxu0 %v3912
    %4109 = vmatmul.mubr.f32.gmra.mrb[0].mxu0 %v3911
    %v4110 = vpop.f32.mrb[0].mxu0
    %v4111 = vadd.f32 0.0, %v4110
    %v4112 = vpop.f32.mrb[0].mxu0
    %4113 = vmatprep.mubr.f32.mxu0 %v3914
    %4114 = vmatmul.mubr.f32.gmra.mrb[0].mxu0 %v3913
    %v4115 = vpop.f32.mrb[0].mxu0
    %v4116 = vadd.f32 0.0, %v4115
    %v4117 = vpop.f32.mrb[0].mxu0
    %4118 = vmatprep.mubr.f32.mxu0 %v3916
    %4119 = vmatmul.mubr.f32.gmra.mrb[0].mxu0 %v3915
    %v4120 = vpop.f32.mrb[0].mxu0
    %v4121 = vadd.f32 0.0, %v4120
    %v4122 = vpop.f32.mrb[0].mxu0
    %4123 = vmatprep.mubr.f32.mxu0 %v3918
    %4124 = vmatmul.mubr.f32.gmra.mrb[0].mxu0 %v3917
    %v4125 = vpop.f32.mrb[0].mxu0
    %v4126 = vadd.f32 0.0, %v4125
    %v4127 = vpop.f32.mrb[0].mxu0
    %4128 = vmatprep.mubr.f32.mxu0 %v3920
    %4129 = vmatmul.mubr.f32.gmra.mrb[0].mxu0 %v3919
    %v4130 = vpop.f32.mrb[0].mxu0
    %v4131 = vadd.f32 0.0, %v4130
    %v4132 = vpop.f32.mrb[0].mxu0
    %4133 = vmatprep.mubr.f32.mxu0 %v3922
    %4134 = vmatmul.mubr.f32.gmra.mrb[0].mxu0 %v3921
    %v4135 = vpop.f32.mrb[0].mxu0
    %v4136 = vadd.f32 0.0, %v4135
    %v4137 = vpop.f32.mrb[0].mxu0
    %4138 = vmatprep.mubr.f32.mxu0 %v3924
    %4139 = vmatmul.mubr.f32.gmra.mrb[0].mxu0 %v3923
    %v4140 = vpop.f32.mrb[0].mxu0
    %v4141 = vadd.f32 0.0, %v4140
    %v4142 = vpop.f32.mrb[0].mxu0
    %4143 = vmatprep.mubr.f32.mxu0 %v3926
    %4144 = vmatmul.mubr.f32.gmra.mrb[0].mxu0 %v3925
    %v4145 = vpop.f32.mrb[0].mxu0
    %v4146 = vadd.f32 0.0, %v4145
    %v4147 = vpop.f32.mrb[0].mxu0
    %4148 = vmatprep.mubr.f32.mxu0 %v3928
    %4149 = vmatmul.mubr.f32.gmra.mrb[0].mxu0 %v3927
    %v4150 = vpop.f32.mrb[0].mxu0
    %v4151 = vadd.f32 0.0, %v4150
    %v4152 = vpop.f32.mrb[0].mxu0
    %4153 = vdwg.mxu0
    %v4154 = vld [vmem:[%s29] sm:$0xff]
    %v4155 = vld [vmem:[%s29 + $0x8] sm:$0xff]
    %v4156 = vld [vmem:[%s29 + $0x10] sm:$0xff]
    %v4157 = vld [vmem:[%s29 + $0x18] sm:$0xff]
    %v4158 = vld [vmem:[%s29 + $0x20] sm:$0xff]
    %v4159 = vld [vmem:[%s29 + $0x28] sm:$0xff]
    %v4160 = vld [vmem:[%s29 + $0x30] sm:$0xff]
    %v4161 = vld [vmem:[%s29 + $0x38] sm:$0xff]
    %v4162 = vld [vmem:[%s29 + $0x40] sm:$0xff]
    %v4163 = vld [vmem:[%s29 + $0x48] sm:$0xff]
    %v4164 = vld [vmem:[%s29 + $0x50] sm:$0xff]
    %v4165 = vld [vmem:[%s29 + $0x58] sm:$0xff]
    %v4166 = vld [vmem:[%s29 + $0x60] sm:$0xff]
    %v4167 = vld [vmem:[%s29 + $0x68] sm:$0xff]
    %v4168 = vld [vmem:[%s29 + $0x70] sm:$0xff]
    %v4169 = vld [vmem:[%s29 + $0x78] sm:$0xff]
    %v4170 = vld [vmem:[#allocation19] sm:$0x1]
    %v4172 = vlaneseq
    %v4173 = vshrl.u32 %v4172, 7
    %v4174 = vsub.s32 0, %v4173
    %v4175 = vrot.slane %v4170, %v4174
    %4177 = vmatprep.subr.mxu0 0.0
    %4178 = vmatpush1.msra.mxu0 %v4154
    %4179 = vmatprep.subr.mxu0 0.0
    %4180 = vmatpush1.msra.mxu0 %v4155
    %4181 = vmatprep.subr.mxu0 0.0
    %4182 = vmatpush1.msra.mxu0 %v4156
    %4183 = vmatprep.subr.mxu0 0.0
    %4184 = vmatpush1.msra.mxu0 %v4157
    %4185 = vmatprep.subr.mxu0 0.0
    %4186 = vmatpush1.msra.mxu0 %v4158
    %4187 = vmatprep.subr.mxu0 0.0
    %4188 = vmatpush1.msra.mxu0 %v4159
    %4189 = vmatprep.subr.mxu0 0.0
    %4190 = vmatpush1.msra.mxu0 %v4160
    %4191 = vmatprep.subr.mxu0 0.0
    %4192 = vmatpush1.msra.mxu0 %v4161
    %4193 = vmatprep.subr.mxu0 0.0
    %4194 = vmatpush1.msra.mxu0 %v4162
    %4195 = vmatprep.subr.mxu0 0.0
    %4196 = vmatpush1.msra.mxu0 %v4163
    %4197 = vmatprep.subr.mxu0 0.0
    %4198 = vmatpush1.msra.mxu0 %v4164
    %4199 = vmatprep.subr.mxu0 0.0
    %4200 = vmatpush1.msra.mxu0 %v4165
    %4201 = vmatprep.subr.mxu0 0.0
    %4202 = vmatpush1.msra.mxu0 %v4166
    %4203 = vmatprep.subr.mxu0 0.0
    %4204 = vmatpush1.msra.mxu0 %v4167
    %4205 = vmatprep.subr.mxu0 0.0
    %4206 = vmatpush1.msra.mxu0 %v4168
    %4207 = vmatprep.subr.mxu0 0.0
    %4208 = vmatpush1.msra.mxu0 %v4169
    %4209 = vmatprep.subr.mxu0 0.0
    %4210 = vmatpush1.msra.mxu0 0.0
    %4211 = vmatprep.subr.mxu0 0.0
    %4212 = vmatpush1.msra.mxu0 0.0
    %4213 = vmatprep.subr.mxu0 0.0
    %4214 = vmatpush1.msra.mxu0 0.0
    %4215 = vmatprep.subr.mxu0 0.0
    %4216 = vmatpush1.msra.mxu0 0.0
    %4217 = vmatprep.subr.mxu0 0.0
    %4218 = vmatpush1.msra.mxu0 0.0
    %4219 = vmatprep.subr.mxu0 0.0
    %4220 = vmatpush1.msra.mxu0 0.0
    %4221 = vmatprep.subr.mxu0 0.0
    %4222 = vmatpush1.msra.mxu0 0.0
    %4223 = vmatprep.subr.mxu0 0.0
    %4224 = vmatpush1.msra.mxu0 0.0
    %4225 = vmatprep.subr.mxu0 0.0
    %4226 = vmatpush1.msra.mxu0 0.0
    %4227 = vmatprep.subr.mxu0 0.0
    %4228 = vmatpush1.msra.mxu0 0.0
    %4229 = vmatprep.subr.mxu0 0.0
    %4230 = vmatpush1.msra.mxu0 0.0
    %4231 = vmatprep.subr.mxu0 0.0
    %4232 = vmatpush1.msra.mxu0 0.0
    %4233 = vmatprep.subr.mxu0 0.0
    %4234 = vmatpush1.msra.mxu0 0.0
    %4235 = vmatprep.subr.mxu0 0.0
    %4236 = vmatpush1.msra.mxu0 0.0
    %4237 = vmatprep.subr.mxu0 0.0
    %4238 = vmatpush1.msra.mxu0 0.0
    %4239 = vmatprep.subr.mxu0 0.0
    %4240 = vmatpush1.msra.mxu0 0.0
    %4241 = vmatprep.mubr.f32.mxu0 0.0
    %4242 = vmatmul.mubr.f32.gmra.mrb[0].mxu0 %v3996
    %v4243 = vpop.f32.mrb[0].mxu0
    %v4244 = vadd.f32 %v4175, %v4243
    %v4245 = vpop.f32.mrb[0].mxu0
    %4246 = vmatprep.mubr.f32.mxu0 0.0
    %4247 = vmatmul.mubr.f32.gmra.mrb[0].mxu0 %v4001
    %v4248 = vpop.f32.mrb[0].mxu0
    %v4249 = vadd.f32 %v4175, %v4248
    %v4250 = vpop.f32.mrb[0].mxu0
    %4251 = vmatprep.mubr.f32.mxu0 0.0
    %4252 = vmatmul.mubr.f32.gmra.mrb[0].mxu0 %v4006
    %v4253 = vpop.f32.mrb[0].mxu0
    %v4254 = vadd.f32 %v4175, %v4253
    %v4255 = vpop.f32.mrb[0].mxu0
    %4256 = vmatprep.mubr.f32.mxu0 0.0
    %4257 = vmatmul.mubr.f32.gmra.mrb[0].mxu0 %v4011
    %v4258 = vpop.f32.mrb[0].mxu0
    %v4259 = vadd.f32 %v4175, %v4258
    %v4260 = vpop.f32.mrb[0].mxu0
    %4261 = vmatprep.mubr.f32.mxu0 0.0
    %4262 = vmatmul.mubr.f32.gmra.mrb[0].mxu0 %v4016
    %v4263 = vpop.f32.mrb[0].mxu0
    %v4264 = vadd.f32 %v4175, %v4263
    %v4265 = vpop.f32.mrb[0].mxu0
    %4266 = vmatprep.mubr.f32.mxu0 0.0
    %4267 = vmatmul.mubr.f32.gmra.mrb[0].mxu0 %v4021
    %v4268 = vpop.f32.mrb[0].mxu0
    %v4269 = vadd.f32 %v4175, %v4268
    %v4270 = vpop.f32.mrb[0].mxu0
    %4271 = vmatprep.mubr.f32.mxu0 0.0
    %4272 = vmatmul.mubr.f32.gmra.mrb[0].mxu0 %v4026
    %v4273 = vpop.f32.mrb[0].mxu0
    %v4274 = vadd.f32 %v4175, %v4273
    %v4275 = vpop.f32.mrb[0].mxu0
    %4276 = vmatprep.mubr.f32.mxu0 0.0
    %4277 = vmatmul.mubr.f32.gmra.mrb[0].mxu0 %v4031
    %v4278 = vpop.f32.mrb[0].mxu0
    %v4279 = vadd.f32 %v4175, %v4278
    %v4280 = vpop.f32.mrb[0].mxu0
    %4281 = vmatprep.mubr.f32.mxu0 0.0
    %4282 = vmatmul.mubr.f32.gmra.mrb[0].mxu0 %v4036
    %v4283 = vpop.f32.mrb[0].mxu0
    %v4284 = vadd.f32 %v4175, %v4283
    %v4285 = vpop.f32.mrb[0].mxu0
    %4286 = vmatprep.mubr.f32.mxu0 0.0
    %4287 = vmatmul.mubr.f32.gmra.mrb[0].mxu0 %v4041
    %v4288 = vpop.f32.mrb[0].mxu0
    %v4289 = vadd.f32 %v4175, %v4288
    %v4290 = vpop.f32.mrb[0].mxu0
    %4291 = vmatprep.mubr.f32.mxu0 0.0
    %4292 = vmatmul.mubr.f32.gmra.mrb[0].mxu0 %v4046
    %v4293 = vpop.f32.mrb[0].mxu0
    %v4294 = vadd.f32 %v4175, %v4293
    %v4295 = vpop.f32.mrb[0].mxu0
    %4296 = vmatprep.mubr.f32.mxu0 0.0
    %4297 = vmatmul.mubr.f32.gmra.mrb[0].mxu0 %v4051
    %v4298 = vpop.f32.mrb[0].mxu0
    %v4299 = vadd.f32 %v4175, %v4298
    %v4300 = vpop.f32.mrb[0].mxu0
    %4301 = vmatprep.mubr.f32.mxu0 0.0
    %4302 = vmatmul.mubr.f32.gmra.mrb[0].mxu0 %v4056
    %v4303 = vpop.f32.mrb[0].mxu0
    %v4304 = vadd.f32 %v4175, %v4303
    %v4305 = vpop.f32.mrb[0].mxu0
    %4306 = vmatprep.mubr.f32.mxu0 0.0
    %4307 = vmatmul.mubr.f32.gmra.mrb[0].mxu0 %v4061
    %v4308 = vpop.f32.mrb[0].mxu0
    %v4309 = vadd.f32 %v4175, %v4308
    %v4310 = vpop.f32.mrb[0].mxu0
    %4311 = vmatprep.mubr.f32.mxu0 0.0
    %4312 = vmatmul.mubr.f32.gmra.mrb[0].mxu0 %v4066
    %v4313 = vpop.f32.mrb[0].mxu0
    %v4314 = vadd.f32 %v4175, %v4313
    %v4315 = vpop.f32.mrb[0].mxu0
    %4316 = vmatprep.mubr.f32.mxu0 0.0
    %4317 = vmatmul.mubr.f32.gmra.mrb[0].mxu0 %v4071
    %v4318 = vpop.f32.mrb[0].mxu0
    %v4319 = vadd.f32 %v4175, %v4318
    %v4320 = vpop.f32.mrb[0].mxu0
    %4321 = vmatprep.mubr.f32.mxu0 0.0
    %4322 = vmatmul.mubr.f32.gmra.mrb[0].mxu0 %v4076
    %v4323 = vpop.f32.mrb[0].mxu0
    %v4324 = vadd.f32 %v4175, %v4323
    %v4325 = vpop.f32.mrb[0].mxu0
    %4326 = vmatprep.mubr.f32.mxu0 0.0
    %4327 = vmatmul.mubr.f32.gmra.mrb[0].mxu0 %v4081
    %v4328 = vpop.f32.mrb[0].mxu0
    %v4329 = vadd.f32 %v4175, %v4328
    %v4330 = vpop.f32.mrb[0].mxu0
    %4331 = vmatprep.mubr.f32.mxu0 0.0
    %4332 = vmatmul.mubr.f32.gmra.mrb[0].mxu0 %v4086
    %v4333 = vpop.f32.mrb[0].mxu0
    %v4334 = vadd.f32 %v4175, %v4333
    %v4335 = vpop.f32.mrb[0].mxu0
    %4336 = vmatprep.mubr.f32.mxu0 0.0
    %4337 = vmatmul.mubr.f32.gmra.mrb[0].mxu0 %v4091
    %v4338 = vpop.f32.mrb[0].mxu0
    %v4339 = vadd.f32 %v4175, %v4338
    %v4340 = vpop.f32.mrb[0].mxu0
    %4341 = vmatprep.mubr.f32.mxu0 0.0
    %4342 = vmatmul.mubr.f32.gmra.mrb[0].mxu0 %v4096
    %v4343 = vpop.f32.mrb[0].mxu0
    %v4344 = vadd.f32 %v4175, %v4343
    %v4345 = vpop.f32.mrb[0].mxu0
    %4346 = vmatprep.mubr.f32.mxu0 0.0
    %4347 = vmatmul.mubr.f32.gmra.mrb[0].mxu0 %v4101
    %v4348 = vpop.f32.mrb[0].mxu0
    %v4349 = vadd.f32 %v4175, %v4348
    %v4350 = vpop.f32.mrb[0].mxu0
    %4351 = vmatprep.mubr.f32.mxu0 0.0
    %4352 = vmatmul.mubr.f32.gmra.mrb[0].mxu0 %v4106
    %v4353 = vpop.f32.mrb[0].mxu0
    %v4354 = vadd.f32 %v4175, %v4353
    %v4355 = vpop.f32.mrb[0].mxu0
    %4356 = vmatprep.mubr.f32.mxu0 0.0
    %4357 = vmatmul.mubr.f32.gmra.mrb[0].mxu0 %v4111
    %v4358 = vpop.f32.mrb[0].mxu0
    %v4359 = vadd.f32 %v4175, %v4358
    %v4360 = vpop.f32.mrb[0].mxu0
    %4361 = vmatprep.mubr.f32.mxu0 0.0
    %4362 = vmatmul.mubr.f32.gmra.mrb[0].mxu0 %v4116
    %v4363 = vpop.f32.mrb[0].mxu0
    %v4364 = vadd.f32 %v4175, %v4363
    %v4365 = vpop.f32.mrb[0].mxu0
    %4366 = vmatprep.mubr.f32.mxu0 0.0
    %4367 = vmatmul.mubr.f32.gmra.mrb[0].mxu0 %v4121
    %v4368 = vpop.f32.mrb[0].mxu0
    %v4369 = vadd.f32 %v4175, %v4368
    %v4370 = vpop.f32.mrb[0].mxu0
    %4371 = vmatprep.mubr.f32.mxu0 0.0
    %4372 = vmatmul.mubr.f32.gmra.mrb[0].mxu0 %v4126
    %v4373 = vpop.f32.mrb[0].mxu0
    %v4374 = vadd.f32 %v4175, %v4373
    %v4375 = vpop.f32.mrb[0].mxu0
    %4376 = vmatprep.mubr.f32.mxu0 0.0
    %4377 = vmatmul.mubr.f32.gmra.mrb[0].mxu0 %v4131
    %v4378 = vpop.f32.mrb[0].mxu0
    %v4379 = vadd.f32 %v4175, %v4378
    %v4380 = vpop.f32.mrb[0].mxu0
    %4381 = vmatprep.mubr.f32.mxu0 0.0
    %4382 = vmatmul.mubr.f32.gmra.mrb[0].mxu0 %v4136
    %v4383 = vpop.f32.mrb[0].mxu0
    %v4384 = vadd.f32 %v4175, %v4383
    %v4385 = vpop.f32.mrb[0].mxu0
    %4386 = vmatprep.mubr.f32.mxu0 0.0
    %4387 = vmatmul.mubr.f32.gmra.mrb[0].mxu0 %v4141
    %v4388 = vpop.f32.mrb[0].mxu0
    %v4389 = vadd.f32 %v4175, %v4388
    %v4390 = vpop.f32.mrb[0].mxu0
    %4391 = vmatprep.mubr.f32.mxu0 0.0
    %4392 = vmatmul.mubr.f32.gmra.mrb[0].mxu0 %v4146
    %v4393 = vpop.f32.mrb[0].mxu0
    %v4394 = vadd.f32 %v4175, %v4393
    %v4395 = vpop.f32.mrb[0].mxu0
    %4396 = vmatprep.mubr.f32.mxu0 0.0
    %4397 = vmatmul.mubr.f32.gmra.mrb[0].mxu0 %v4151
    %v4398 = vpop.f32.mrb[0].mxu0
    %v4399 = vadd.f32 %v4175, %v4398
    %v4400 = vpop.f32.mrb[0].mxu0
    %4401 = vdwg.mxu0
    %v4402 = vadd.f32 %v2308, %v4244
    %v4403 = vadd.f32 %v2309, %v4249
    %v4404 = vadd.f32 %v2310, %v4254
    %v4405 = vadd.f32 %v2311, %v4259
    %v4406 = vadd.f32 %v2312, %v4264
    %v4407 = vadd.f32 %v2313, %v4269
    %v4408 = vadd.f32 %v2314, %v4274
    %v4409 = vadd.f32 %v2315, %v4279
    %v4410 = vadd.f32 %v2316, %v4284
    %v4411 = vadd.f32 %v2317, %v4289
    %v4412 = vadd.f32 %v2318, %v4294
    %v4413 = vadd.f32 %v2319, %v4299
    %v4414 = vadd.f32 %v2320, %v4304
    %v4415 = vadd.f32 %v2321, %v4309
    %v4416 = vadd.f32 %v2322, %v4314
    %v4417 = vadd.f32 %v2323, %v4319
    %v4418 = vadd.f32 %v2324, %v4324
    %v4419 = vadd.f32 %v2325, %v4329
    %v4420 = vadd.f32 %v2326, %v4334
    %v4421 = vadd.f32 %v2327, %v4339
    %v4422 = vadd.f32 %v2328, %v4344
    %v4423 = vadd.f32 %v2329, %v4349
    %v4424 = vadd.f32 %v2330, %v4354
    %v4425 = vadd.f32 %v2331, %v4359
    %v4426 = vadd.f32 %v2332, %v4364
    %v4427 = vadd.f32 %v2333, %v4369
    %v4428 = vadd.f32 %v2334, %v4374
    %v4429 = vadd.f32 %v2335, %v4379
    %v4430 = vadd.f32 %v2336, %v4384
    %v4431 = vadd.f32 %v2337, %v4389
    %v4432 = vadd.f32 %v2338, %v4394
    %v4433 = vadd.f32 %v2339, %v4399
    %v4434 = vld [vmem:[#allocation20] sm:$0x1]
    %v4435 = vld [vmem:[#allocation20 + $0x1] sm:$0x1]
    %4436 = vadd.xlane.f32.xlu0 %v4402
    %v4437 = vpop.xlane.xlu0 %4436
    %4438 = vadd.xlane.f32.xlu0 %v4403
    %v4439 = vpop.xlane.xlu0 %4438
    %4440 = vadd.xlane.f32.xlu0 %v4404
    %v4441 = vpop.xlane.xlu0 %4440
    %4442 = vadd.xlane.f32.xlu0 %v4405
    %v4443 = vpop.xlane.xlu0 %4442
    %4444 = vadd.xlane.f32.xlu0 %v4406
    %v4445 = vpop.xlane.xlu0 %4444
    %4446 = vadd.xlane.f32.xlu0 %v4407
    %v4447 = vpop.xlane.xlu0 %4446
    %4448 = vadd.xlane.f32.xlu0 %v4408
    %v4449 = vpop.xlane.xlu0 %4448
    %4450 = vadd.xlane.f32.xlu0 %v4409
    %v4451 = vpop.xlane.xlu0 %4450
    %4452 = vadd.xlane.f32.xlu0 %v4410
    %v4453 = vpop.xlane.xlu0 %4452
    %4454 = vadd.xlane.f32.xlu0 %v4411
    %v4455 = vpop.xlane.xlu0 %4454
    %4456 = vadd.xlane.f32.xlu0 %v4412
    %v4457 = vpop.xlane.xlu0 %4456
    %4458 = vadd.xlane.f32.xlu0 %v4413
    %v4459 = vpop.xlane.xlu0 %4458
    %4460 = vadd.xlane.f32.xlu0 %v4414
    %v4461 = vpop.xlane.xlu0 %4460
    %4462 = vadd.xlane.f32.xlu0 %v4415
    %v4463 = vpop.xlane.xlu0 %4462
    %4464 = vadd.xlane.f32.xlu0 %v4416
    %v4465 = vpop.xlane.xlu0 %4464
    %4466 = vadd.xlane.f32.xlu0 %v4417
    %v4467 = vpop.xlane.xlu0 %4466
    %4468 = vadd.xlane.f32.xlu0 %v4418
    %v4469 = vpop.xlane.xlu0 %4468
    %4470 = vadd.xlane.f32.xlu0 %v4419
    %v4471 = vpop.xlane.xlu0 %4470
    %4472 = vadd.xlane.f32.xlu0 %v4420
    %v4473 = vpop.xlane.xlu0 %4472
    %4474 = vadd.xlane.f32.xlu0 %v4421
    %v4475 = vpop.xlane.xlu0 %4474
    %4476 = vadd.xlane.f32.xlu0 %v4422
    %v4477 = vpop.xlane.xlu0 %4476
    %4478 = vadd.xlane.f32.xlu0 %v4423
    %v4479 = vpop.xlane.xlu0 %4478
    %4480 = vadd.xlane.f32.xlu0 %v4424
    %v4481 = vpop.xlane.xlu0 %4480
    %4482 = vadd.xlane.f32.xlu0 %v4425
    %v4483 = vpop.xlane.xlu0 %4482
    %4484 = vadd.xlane.f32.xlu0 %v4426
    %v4485 = vpop.xlane.xlu0 %4484
    %4486 = vadd.xlane.f32.xlu0 %v4427
    %v4487 = vpop.xlane.xlu0 %4486
    %4488 = vadd.xlane.f32.xlu0 %v4428
    %v4489 = vpop.xlane.xlu0 %4488
    %4490 = vadd.xlane.f32.xlu0 %v4429
    %v4491 = vpop.xlane.xlu0 %4490
    %4492 = vadd.xlane.f32.xlu0 %v4430
    %v4493 = vpop.xlane.xlu0 %4492
    %4494 = vadd.xlane.f32.xlu0 %v4431
    %v4495 = vpop.xlane.xlu0 %4494
    %4496 = vadd.xlane.f32.xlu0 %v4432
    %v4497 = vpop.xlane.xlu0 %4496
    %4498 = vadd.xlane.f32.xlu0 %v4433
    %v4499 = vpop.xlane.xlu0 %4498
    %v4500 = vmul.f32 %v4437, %v637
    %v4501 = vmul.f32 %v4439, %v637
    %v4502 = vmul.f32 %v4441, %v637
    %v4503 = vmul.f32 %v4443, %v637
    %v4504 = vmul.f32 %v4445, %v637
    %v4505 = vmul.f32 %v4447, %v637
    %v4506 = vmul.f32 %v4449, %v637
    %v4507 = vmul.f32 %v4451, %v637
    %v4508 = vmul.f32 %v4453, %v637
    %v4509 = vmul.f32 %v4455, %v637
    %v4510 = vmul.f32 %v4457, %v637
    %v4511 = vmul.f32 %v4459, %v637
    %v4512 = vmul.f32 %v4461, %v637
    %v4513 = vmul.f32 %v4463, %v637
    %v4514 = vmul.f32 %v4465, %v637
    %v4515 = vmul.f32 %v4467, %v637
    %v4516 = vmul.f32 %v4469, %v637
    %v4517 = vmul.f32 %v4471, %v637
    %v4518 = vmul.f32 %v4473, %v637
    %v4519 = vmul.f32 %v4475, %v637
    %v4520 = vmul.f32 %v4477, %v637
    %v4521 = vmul.f32 %v4479, %v637
    %v4522 = vmul.f32 %v4481, %v637
    %v4523 = vmul.f32 %v4483, %v637
    %v4524 = vmul.f32 %v4485, %v637
    %v4525 = vmul.f32 %v4487, %v637
    %v4526 = vmul.f32 %v4489, %v637
    %v4527 = vmul.f32 %v4491, %v637
    %v4528 = vmul.f32 %v4493, %v637
    %v4529 = vmul.f32 %v4495, %v637
    %v4530 = vmul.f32 %v4497, %v637
    %v4531 = vmul.f32 %v4499, %v637
    %v4532 = vsub.f32 %v4402, %v4500
    %v4533 = vsub.f32 %v4403, %v4501
    %v4534 = vsub.f32 %v4404, %v4502
    %v4535 = vsub.f32 %v4405, %v4503
    %v4536 = vsub.f32 %v4406, %v4504
    %v4537 = vsub.f32 %v4407, %v4505
    %v4538 = vsub.f32 %v4408, %v4506
    %v4539 = vsub.f32 %v4409, %v4507
    %v4540 = vsub.f32 %v4410, %v4508
    %v4541 = vsub.f32 %v4411, %v4509
    %v4542 = vsub.f32 %v4412, %v4510
    %v4543 = vsub.f32 %v4413, %v4511
    %v4544 = vsub.f32 %v4414, %v4512
    %v4545 = vsub.f32 %v4415, %v4513
    %v4546 = vsub.f32 %v4416, %v4514
    %v4547 = vsub.f32 %v4417, %v4515
    %v4548 = vsub.f32 %v4418, %v4516
    %v4549 = vsub.f32 %v4419, %v4517
    %v4550 = vsub.f32 %v4420, %v4518
    %v4551 = vsub.f32 %v4421, %v4519
    %v4552 = vsub.f32 %v4422, %v4520
    %v4553 = vsub.f32 %v4423, %v4521
    %v4554 = vsub.f32 %v4424, %v4522
    %v4555 = vsub.f32 %v4425, %v4523
    %v4556 = vsub.f32 %v4426, %v4524
    %v4557 = vsub.f32 %v4427, %v4525
    %v4558 = vsub.f32 %v4428, %v4526
    %v4559 = vsub.f32 %v4429, %v4527
    %v4560 = vsub.f32 %v4430, %v4528
    %v4561 = vsub.f32 %v4431, %v4529
    %v4562 = vsub.f32 %v4432, %v4530
    %v4563 = vsub.f32 %v4433, %v4531
    %v4564 = vmul.f32 %v4532, %v4532
    %v4565 = vmul.f32 %v4533, %v4533
    %v4566 = vmul.f32 %v4534, %v4534
    %v4567 = vmul.f32 %v4535, %v4535
    %v4568 = vmul.f32 %v4536, %v4536
    %v4569 = vmul.f32 %v4537, %v4537
    %v4570 = vmul.f32 %v4538, %v4538
    %v4571 = vmul.f32 %v4539, %v4539
    %v4572 = vmul.f32 %v4540, %v4540
    %v4573 = vmul.f32 %v4541, %v4541
    %v4574 = vmul.f32 %v4542, %v4542
    %v4575 = vmul.f32 %v4543, %v4543
    %v4576 = vmul.f32 %v4544, %v4544
    %v4577 = vmul.f32 %v4545, %v4545
    %v4578 = vmul.f32 %v4546, %v4546
    %v4579 = vmul.f32 %v4547, %v4547
    %v4580 = vmul.f32 %v4548, %v4548
    %v4581 = vmul.f32 %v4549, %v4549
    %v4582 = vmul.f32 %v4550, %v4550
    %v4583 = vmul.f32 %v4551, %v4551
    %v4584 = vmul.f32 %v4552, %v4552
    %v4585 = vmul.f32 %v4553, %v4553
    %v4586 = vmul.f32 %v4554, %v4554
    %v4587 = vmul.f32 %v4555, %v4555
    %v4588 = vmul.f32 %v4556, %v4556
    %v4589 = vmul.f32 %v4557, %v4557
    %v4590 = vmul.f32 %v4558, %v4558
    %v4591 = vmul.f32 %v4559, %v4559
    %v4592 = vmul.f32 %v4560, %v4560
    %v4593 = vmul.f32 %v4561, %v4561
    %v4594 = vmul.f32 %v4562, %v4562
    %v4595 = vmul.f32 %v4563, %v4563
    %4596 = vadd.xlane.f32.xlu0 %v4564
    %v4597 = vpop.xlane.xlu0 %4596
    %4598 = vadd.xlane.f32.xlu0 %v4565
    %v4599 = vpop.xlane.xlu0 %4598
    %4600 = vadd.xlane.f32.xlu0 %v4566
    %v4601 = vpop.xlane.xlu0 %4600
    %4602 = vadd.xlane.f32.xlu0 %v4567
    %v4603 = vpop.xlane.xlu0 %4602
    %4604 = vadd.xlane.f32.xlu0 %v4568
    %v4605 = vpop.xlane.xlu0 %4604
    %4606 = vadd.xlane.f32.xlu0 %v4569
    %v4607 = vpop.xlane.xlu0 %4606
    %4608 = vadd.xlane.f32.xlu0 %v4570
    %v4609 = vpop.xlane.xlu0 %4608
    %4610 = vadd.xlane.f32.xlu0 %v4571
    %v4611 = vpop.xlane.xlu0 %4610
    %4612 = vadd.xlane.f32.xlu0 %v4572
    %v4613 = vpop.xlane.xlu0 %4612
    %4614 = vadd.xlane.f32.xlu0 %v4573
    %v4615 = vpop.xlane.xlu0 %4614
    %4616 = vadd.xlane.f32.xlu0 %v4574
    %v4617 = vpop.xlane.xlu0 %4616
    %4618 = vadd.xlane.f32.xlu0 %v4575
    %v4619 = vpop.xlane.xlu0 %4618
    %4620 = vadd.xlane.f32.xlu0 %v4576
    %v4621 = vpop.xlane.xlu0 %4620
    %4622 = vadd.xlane.f32.xlu0 %v4577
    %v4623 = vpop.xlane.xlu0 %4622
    %4624 = vadd.xlane.f32.xlu0 %v4578
    %v4625 = vpop.xlane.xlu0 %4624
    %4626 = vadd.xlane.f32.xlu0 %v4579
    %v4627 = vpop.xlane.xlu0 %4626
    %4628 = vadd.xlane.f32.xlu0 %v4580
    %v4629 = vpop.xlane.xlu0 %4628
    %4630 = vadd.xlane.f32.xlu0 %v4581
    %v4631 = vpop.xlane.xlu0 %4630
    %4632 = vadd.xlane.f32.xlu0 %v4582
    %v4633 = vpop.xlane.xlu0 %4632
    %4634 = vadd.xlane.f32.xlu0 %v4583
    %v4635 = vpop.xlane.xlu0 %4634
    %4636 = vadd.xlane.f32.xlu0 %v4584
    %v4637 = vpop.xlane.xlu0 %4636
    %4638 = vadd.xlane.f32.xlu0 %v4585
    %v4639 = vpop.xlane.xlu0 %4638
    %4640 = vadd.xlane.f32.xlu0 %v4586
    %v4641 = vpop.xlane.xlu0 %4640
    %4642 = vadd.xlane.f32.xlu0 %v4587
    %v4643 = vpop.xlane.xlu0 %4642
    %4644 = vadd.xlane.f32.xlu0 %v4588
    %v4645 = vpop.xlane.xlu0 %4644
    %4646 = vadd.xlane.f32.xlu0 %v4589
    %v4647 = vpop.xlane.xlu0 %4646
    %4648 = vadd.xlane.f32.xlu0 %v4590
    %v4649 = vpop.xlane.xlu0 %4648
    %4650 = vadd.xlane.f32.xlu0 %v4591
    %v4651 = vpop.xlane.xlu0 %4650
    %4652 = vadd.xlane.f32.xlu0 %v4592
    %v4653 = vpop.xlane.xlu0 %4652
    %4654 = vadd.xlane.f32.xlu0 %v4593
    %v4655 = vpop.xlane.xlu0 %4654
    %4656 = vadd.xlane.f32.xlu0 %v4594
    %v4657 = vpop.xlane.xlu0 %4656
    %4658 = vadd.xlane.f32.xlu0 %v4595
    %v4659 = vpop.xlane.xlu0 %4658
    %v4660 = vmul.f32 %v4597, %v637
    %v4661 = vmul.f32 %v4599, %v637
    %v4662 = vmul.f32 %v4601, %v637
    %v4663 = vmul.f32 %v4603, %v637
    %v4664 = vmul.f32 %v4605, %v637
    %v4665 = vmul.f32 %v4607, %v637
    %v4666 = vmul.f32 %v4609, %v637
    %v4667 = vmul.f32 %v4611, %v637
    %v4668 = vmul.f32 %v4613, %v637
    %v4669 = vmul.f32 %v4615, %v637
    %v4670 = vmul.f32 %v4617, %v637
    %v4671 = vmul.f32 %v4619, %v637
    %v4672 = vmul.f32 %v4621, %v637
    %v4673 = vmul.f32 %v4623, %v637
    %v4674 = vmul.f32 %v4625, %v637
    %v4675 = vmul.f32 %v4627, %v637
    %v4676 = vmul.f32 %v4629, %v637
    %v4677 = vmul.f32 %v4631, %v637
    %v4678 = vmul.f32 %v4633, %v637
    %v4679 = vmul.f32 %v4635, %v637
    %v4680 = vmul.f32 %v4637, %v637
    %v4681 = vmul.f32 %v4639, %v637
    %v4682 = vmul.f32 %v4641, %v637
    %v4683 = vmul.f32 %v4643, %v637
    %v4684 = vmul.f32 %v4645, %v637
    %v4685 = vmul.f32 %v4647, %v637
    %v4686 = vmul.f32 %v4649, %v637
    %v4687 = vmul.f32 %v4651, %v637
    %v4688 = vmul.f32 %v4653, %v637
    %v4689 = vmul.f32 %v4655, %v637
    %v4690 = vmul.f32 %v4657, %v637
    %v4691 = vmul.f32 %v4659, %v637
    %v4692 = vadd.f32 %v4660, 1e-12
    %v4693 = vadd.f32 %v4661, 1e-12
    %v4694 = vadd.f32 %v4662, 1e-12
    %v4695 = vadd.f32 %v4663, 1e-12
    %v4696 = vadd.f32 %v4664, 1e-12
    %v4697 = vadd.f32 %v4665, 1e-12
    %v4698 = vadd.f32 %v4666, 1e-12
    %v4699 = vadd.f32 %v4667, 1e-12
    %v4700 = vadd.f32 %v4668, 1e-12
    %v4701 = vadd.f32 %v4669, 1e-12
    %v4702 = vadd.f32 %v4670, 1e-12
    %v4703 = vadd.f32 %v4671, 1e-12
    %v4704 = vadd.f32 %v4672, 1e-12
    %v4705 = vadd.f32 %v4673, 1e-12
    %v4706 = vadd.f32 %v4674, 1e-12
    %v4707 = vadd.f32 %v4675, 1e-12
    %v4708 = vadd.f32 %v4676, 1e-12
    %v4709 = vadd.f32 %v4677, 1e-12
    %v4710 = vadd.f32 %v4678, 1e-12
    %v4711 = vadd.f32 %v4679, 1e-12
    %v4712 = vadd.f32 %v4680, 1e-12
    %v4713 = vadd.f32 %v4681, 1e-12
    %v4714 = vadd.f32 %v4682, 1e-12
    %v4715 = vadd.f32 %v4683, 1e-12
    %v4716 = vadd.f32 %v4684, 1e-12
    %v4717 = vadd.f32 %v4685, 1e-12
    %v4718 = vadd.f32 %v4686, 1e-12
    %v4719 = vadd.f32 %v4687, 1e-12
    %v4720 = vadd.f32 %v4688, 1e-12
    %v4721 = vadd.f32 %v4689, 1e-12
    %v4722 = vadd.f32 %v4690, 1e-12
    %v4723 = vadd.f32 %v4691, 1e-12
    %v4724 = vrsqrt.pop %v4692
    %v4725 = vrsqrt.pop %v4693
    %v4726 = vrsqrt.pop %v4694
    %v4727 = vrsqrt.pop %v4695
    %v4728 = vrsqrt.pop %v4696
    %v4729 = vrsqrt.pop %v4697
    %v4730 = vrsqrt.pop %v4698
    %v4731 = vrsqrt.pop %v4699
    %v4732 = vrsqrt.pop %v4700
    %v4733 = vrsqrt.pop %v4701
    %v4734 = vrsqrt.pop %v4702
    %v4735 = vrsqrt.pop %v4703
    %v4736 = vrsqrt.pop %v4704
    %v4737 = vrsqrt.pop %v4705
    %v4738 = vrsqrt.pop %v4706
    %v4739 = vrsqrt.pop %v4707
    %v4740 = vrsqrt.pop %v4708
    %v4741 = vrsqrt.pop %v4709
    %v4742 = vrsqrt.pop %v4710
    %v4743 = vrsqrt.pop %v4711
    %v4744 = vrsqrt.pop %v4712
    %v4745 = vrsqrt.pop %v4713
    %v4746 = vrsqrt.pop %v4714
    %v4747 = vrsqrt.pop %v4715
    %v4748 = vrsqrt.pop %v4716
    %v4749 = vrsqrt.pop %v4717
    %v4750 = vrsqrt.pop %v4718
    %v4751 = vrsqrt.pop %v4719
    %v4752 = vrsqrt.pop %v4720
    %v4753 = vrsqrt.pop %v4721
    %v4754 = vrsqrt.pop %v4722
    %v4755 = vrsqrt.pop %v4723
    %v4756 = vmul.f32 %v4532, %v4724
    %v4757 = vmul.f32 %v4533, %v4725
    %v4758 = vmul.f32 %v4534, %v4726
    %v4759 = vmul.f32 %v4535, %v4727
    %v4760 = vmul.f32 %v4536, %v4728
    %v4761 = vmul.f32 %v4537, %v4729
    %v4762 = vmul.f32 %v4538, %v4730
    %v4763 = vmul.f32 %v4539, %v4731
    %v4764 = vmul.f32 %v4540, %v4732
    %v4765 = vmul.f32 %v4541, %v4733
    %v4766 = vmul.f32 %v4542, %v4734
    %v4767 = vmul.f32 %v4543, %v4735
    %v4768 = vmul.f32 %v4544, %v4736
    %v4769 = vmul.f32 %v4545, %v4737
    %v4770 = vmul.f32 %v4546, %v4738
    %v4771 = vmul.f32 %v4547, %v4739
    %v4772 = vmul.f32 %v4548, %v4740
    %v4773 = vmul.f32 %v4549, %v4741
    %v4774 = vmul.f32 %v4550, %v4742
    %v4775 = vmul.f32 %v4551, %v4743
    %v4776 = vmul.f32 %v4552, %v4744
    %v4777 = vmul.f32 %v4553, %v4745
    %v4778 = vmul.f32 %v4554, %v4746
    %v4779 = vmul.f32 %v4555, %v4747
    %v4780 = vmul.f32 %v4556, %v4748
    %v4781 = vmul.f32 %v4557, %v4749
    %v4782 = vmul.f32 %v4558, %v4750
    %v4783 = vmul.f32 %v4559, %v4751
    %v4784 = vmul.f32 %v4560, %v4752
    %v4785 = vmul.f32 %v4561, %v4753
    %v4786 = vmul.f32 %v4562, %v4754
    %v4787 = vmul.f32 %v4563, %v4755
    %v4788 = vlaneseq
    %v4789 = vshrl.u32 %v4788, 7
    %v4790 = vsub.s32 0, %v4789
    %v4791 = vrot.slane %v4434, %v4790
    %v4792 = vmul.f32 %v4756, %v4791
    %v4793 = vmul.f32 %v4757, %v4791
    %v4794 = vmul.f32 %v4758, %v4791
    %v4795 = vmul.f32 %v4759, %v4791
    %v4796 = vmul.f32 %v4760, %v4791
    %v4797 = vmul.f32 %v4761, %v4791
    %v4798 = vmul.f32 %v4762, %v4791
    %v4799 = vmul.f32 %v4763, %v4791
    %v4800 = vmul.f32 %v4764, %v4791
    %v4801 = vmul.f32 %v4765, %v4791
    %v4802 = vmul.f32 %v4766, %v4791
    %v4803 = vmul.f32 %v4767, %v4791
    %v4804 = vmul.f32 %v4768, %v4791
    %v4805 = vmul.f32 %v4769, %v4791
    %v4806 = vmul.f32 %v4770, %v4791
    %v4807 = vmul.f32 %v4771, %v4791
    %v4808 = vmul.f32 %v4772, %v4791
    %v4809 = vmul.f32 %v4773, %v4791
    %v4810 = vmul.f32 %v4774, %v4791
    %v4811 = vmul.f32 %v4775, %v4791
    %v4812 = vmul.f32 %v4776, %v4791
    %v4813 = vmul.f32 %v4777, %v4791
    %v4814 = vmul.f32 %v4778, %v4791
    %v4815 = vmul.f32 %v4779, %v4791
    %v4816 = vmul.f32 %v4780, %v4791
    %v4817 = vmul.f32 %v4781, %v4791
    %v4818 = vmul.f32 %v4782, %v4791
    %v4819 = vmul.f32 %v4783, %v4791
    %v4820 = vmul.f32 %v4784, %v4791
    %v4821 = vmul.f32 %v4785, %v4791
    %v4822 = vmul.f32 %v4786, %v4791
    %v4823 = vmul.f32 %v4787, %v4791
    %v4824 = vlaneseq
    %v4825 = vshrl.u32 %v4824, 7
    %v4826 = vsub.s32 0, %v4825
    %v4827 = vrot.slane %v4435, %v4826
    %v4828 = vadd.f32 %v4792, %v4827
    %v4829 = vadd.f32 %v4793, %v4827
    %v4830 = vadd.f32 %v4794, %v4827
    %v4831 = vadd.f32 %v4795, %v4827
    %v4832 = vadd.f32 %v4796, %v4827
    %v4833 = vadd.f32 %v4797, %v4827
    %v4834 = vadd.f32 %v4798, %v4827
    %v4835 = vadd.f32 %v4799, %v4827
    %v4836 = vadd.f32 %v4800, %v4827
    %v4837 = vadd.f32 %v4801, %v4827
    %v4838 = vadd.f32 %v4802, %v4827
    %v4839 = vadd.f32 %v4803, %v4827
    %v4840 = vadd.f32 %v4804, %v4827
    %v4841 = vadd.f32 %v4805, %v4827
    %v4842 = vadd.f32 %v4806, %v4827
    %v4843 = vadd.f32 %v4807, %v4827
    %v4844 = vadd.f32 %v4808, %v4827
    %v4845 = vadd.f32 %v4809, %v4827
    %v4846 = vadd.f32 %v4810, %v4827
    %v4847 = vadd.f32 %v4811, %v4827
    %v4848 = vadd.f32 %v4812, %v4827
    %v4849 = vadd.f32 %v4813, %v4827
    %v4850 = vadd.f32 %v4814, %v4827
    %v4851 = vadd.f32 %v4815, %v4827
    %v4852 = vadd.f32 %v4816, %v4827
    %v4853 = vadd.f32 %v4817, %v4827
    %v4854 = vadd.f32 %v4818, %v4827
    %v4855 = vadd.f32 %v4819, %v4827
    %v4856 = vadd.f32 %v4820, %v4827
    %v4857 = vadd.f32 %v4821, %v4827
    %v4858 = vadd.f32 %v4822, %v4827
    %v4859 = vadd.f32 %v4823, %v4827
    %v4860 = vld [vmem:[#allocation22] sm:$0xff]
    %v4861 = vld [vmem:[#allocation22 + $0x8] sm:$0xff]
    %v4862 = vld [vmem:[#allocation22 + $0x10] sm:$0xff]
    %v4863 = vld [vmem:[#allocation22 + $0x18] sm:$0xff]
    %v4864 = vld [vmem:[#allocation22 + $0x20] sm:$0xff]
    %v4865 = vld [vmem:[#allocation22 + $0x28] sm:$0xff]
    %v4866 = vld [vmem:[#allocation22 + $0x30] sm:$0xff]
    %v4867 = vld [vmem:[#allocation22 + $0x38] sm:$0xff]
    %v4868 = vld [vmem:[#allocation22 + $0x40] sm:$0xff]
    %v4869 = vld [vmem:[#allocation22 + $0x48] sm:$0xff]
    %v4870 = vld [vmem:[#allocation22 + $0x50] sm:$0xff]
    %v4871 = vld [vmem:[#allocation22 + $0x58] sm:$0xff]
    %v4872 = vld [vmem:[#allocation22 + $0x60] sm:$0xff]
    %v4873 = vld [vmem:[#allocation22 + $0x68] sm:$0xff]
    %v4874 = vld [vmem:[#allocation22 + $0x70] sm:$0xff]
    %v4875 = vld [vmem:[#allocation22 + $0x78] sm:$0xff]
    %v4876 = vld [vmem:[#allocation22 + $0x80] sm:$0xff]
    %v4877 = vld [vmem:[#allocation22 + $0x88] sm:$0xff]
    %v4878 = vld [vmem:[#allocation22 + $0x90] sm:$0xff]
    %v4879 = vld [vmem:[#allocation22 + $0x98] sm:$0xff]
    %v4880 = vld [vmem:[#allocation22 + $0xa0] sm:$0xff]
    %v4881 = vld [vmem:[#allocation22 + $0xa8] sm:$0xff]
    %v4882 = vld [vmem:[#allocation22 + $0xb0] sm:$0xff]
    %v4883 = vld [vmem:[#allocation22 + $0xb8] sm:$0xff]
    %v4884 = vld [vmem:[#allocation22 + $0xc0] sm:$0xff]
    %v4885 = vld [vmem:[#allocation22 + $0xc8] sm:$0xff]
    %v4886 = vld [vmem:[#allocation22 + $0xd0] sm:$0xff]
    %v4887 = vld [vmem:[#allocation22 + $0xd8] sm:$0xff]
    %v4888 = vld [vmem:[#allocation22 + $0xe0] sm:$0xff]
    %v4889 = vld [vmem:[#allocation22 + $0xe8] sm:$0xff]
    %v4890 = vld [vmem:[#allocation22 + $0xf0] sm:$0xff]
    %v4891 = vld [vmem:[#allocation22 + $0xf8] sm:$0xff]
    %v4892 = vld [vmem:[#allocation23] sm:$0x3]
    %v4894 = vlaneseq
    %v4895 = vshrl.u32 %v4894, 7
    %v4896 = vsub.s32 0, %v4895
    %v4897 = vrot.slane %v4892, %v4896
    %v4898 = vlaneseq
    %v4899 = vshrl.u32 %v4898, 7
    %v4900 = vsub.s32 1, %v4899
    %v4901 = vrot.slane %v4892, %v4900
    %4904 = vmatprep.subr.mxu0 %v4861
    %4905 = vmatpush1.msra.mxu0 %v4860
    %4906 = vmatprep.subr.mxu0 %v4863
    %4907 = vmatpush1.msra.mxu0 %v4862
    %4908 = vmatprep.subr.mxu0 %v4865
    %4909 = vmatpush1.msra.mxu0 %v4864
    %4910 = vmatprep.subr.mxu0 %v4867
    %4911 = vmatpush1.msra.mxu0 %v4866
    %4912 = vmatprep.subr.mxu0 %v4869
    %4913 = vmatpush1.msra.mxu0 %v4868
    %4914 = vmatprep.subr.mxu0 %v4871
    %4915 = vmatpush1.msra.mxu0 %v4870
    %4916 = vmatprep.subr.mxu0 %v4873
    %4917 = vmatpush1.msra.mxu0 %v4872
    %4918 = vmatprep.subr.mxu0 %v4875
    %4919 = vmatpush1.msra.mxu0 %v4874
    %4920 = vmatprep.subr.mxu0 %v4877
    %4921 = vmatpush1.msra.mxu0 %v4876
    %4922 = vmatprep.subr.mxu0 %v4879
    %4923 = vmatpush1.msra.mxu0 %v4878
    %4924 = vmatprep.subr.mxu0 %v4881
    %4925 = vmatpush1.msra.mxu0 %v4880
    %4926 = vmatprep.subr.mxu0 %v4883
    %4927 = vmatpush1.msra.mxu0 %v4882
    %4928 = vmatprep.subr.mxu0 %v4885
    %4929 = vmatpush1.msra.mxu0 %v4884
    %4930 = vmatprep.subr.mxu0 %v4887
    %4931 = vmatpush1.msra.mxu0 %v4886
    %4932 = vmatprep.subr.mxu0 %v4889
    %4933 = vmatpush1.msra.mxu0 %v4888
    %4934 = vmatprep.subr.mxu0 %v4891
    %4935 = vmatpush1.msra.mxu0 %v4890
    %4936 = vmatprep.subr.mxu0 0.0
    %4937 = vmatpush1.msra.mxu0 0.0
    %4938 = vmatprep.subr.mxu0 0.0
    %4939 = vmatpush1.msra.mxu0 0.0
    %4940 = vmatprep.subr.mxu0 0.0
    %4941 = vmatpush1.msra.mxu0 0.0
    %4942 = vmatprep.subr.mxu0 0.0
    %4943 = vmatpush1.msra.mxu0 0.0
    %4944 = vmatprep.subr.mxu0 0.0
    %4945 = vmatpush1.msra.mxu0 0.0
    %4946 = vmatprep.subr.mxu0 0.0
    %4947 = vmatpush1.msra.mxu0 0.0
    %4948 = vmatprep.subr.mxu0 0.0
    %4949 = vmatpush1.msra.mxu0 0.0
    %4950 = vmatprep.subr.mxu0 0.0
    %4951 = vmatpush1.msra.mxu0 0.0
    %4952 = vmatprep.subr.mxu0 0.0
    %4953 = vmatpush1.msra.mxu0 0.0
    %4954 = vmatprep.subr.mxu0 0.0
    %4955 = vmatpush1.msra.mxu0 0.0
    %4956 = vmatprep.subr.mxu0 0.0
    %4957 = vmatpush1.msra.mxu0 0.0
    %4958 = vmatprep.subr.mxu0 0.0
    %4959 = vmatpush1.msra.mxu0 0.0
    %4960 = vmatprep.subr.mxu0 0.0
    %4961 = vmatpush1.msra.mxu0 0.0
    %4962 = vmatprep.subr.mxu0 0.0
    %4963 = vmatpush1.msra.mxu0 0.0
    %4964 = vmatprep.subr.mxu0 0.0
    %4965 = vmatpush1.msra.mxu0 0.0
    %4966 = vmatprep.subr.mxu0 0.0
    %4967 = vmatpush1.msra.mxu0 0.0
    %4968 = vmatprep.mubr.f32.mxu0 0.0
    %4969 = vmatmul.mubr.f32.gmra.mrb[0].mxu0 %v4828
    %v4970 = vpop.f32.mrb[0].mxu0
    %v4971 = vadd.f32 %v4897, %v4970
    %v4972 = vpop.f32.mrb[0].mxu0
    %v4973 = vadd.f32 %v4901, %v4972
    %4974 = vmatprep.mubr.f32.mxu0 0.0
    %4975 = vmatmul.mubr.f32.gmra.mrb[0].mxu0 %v4829
    %v4976 = vpop.f32.mrb[0].mxu0
    %v4977 = vadd.f32 %v4897, %v4976
    %v4978 = vpop.f32.mrb[0].mxu0
    %v4979 = vadd.f32 %v4901, %v4978
    %4980 = vmatprep.mubr.f32.mxu0 0.0
    %4981 = vmatmul.mubr.f32.gmra.mrb[0].mxu0 %v4830
    %v4982 = vpop.f32.mrb[0].mxu0
    %v4983 = vadd.f32 %v4897, %v4982
    %v4984 = vpop.f32.mrb[0].mxu0
    %v4985 = vadd.f32 %v4901, %v4984
    %4986 = vmatprep.mubr.f32.mxu0 0.0
    %4987 = vmatmul.mubr.f32.gmra.mrb[0].mxu0 %v4831
    %v4988 = vpop.f32.mrb[0].mxu0
    %v4989 = vadd.f32 %v4897, %v4988
    %v4990 = vpop.f32.mrb[0].mxu0
    %v4991 = vadd.f32 %v4901, %v4990
    %4992 = vmatprep.mubr.f32.mxu0 0.0
    %4993 = vmatmul.mubr.f32.gmra.mrb[0].mxu0 %v4832
    %v4994 = vpop.f32.mrb[0].mxu0
    %v4995 = vadd.f32 %v4897, %v4994
    %v4996 = vpop.f32.mrb[0].mxu0
    %v4997 = vadd.f32 %v4901, %v4996
    %4998 = vmatprep.mubr.f32.mxu0 0.0
    %4999 = vmatmul.mubr.f32.gmra.mrb[0].mxu0 %v4833
    %v5000 = vpop.f32.mrb[0].mxu0
    %v5001 = vadd.f32 %v4897, %v5000
    %v5002 = vpop.f32.mrb[0].mxu0
    %v5003 = vadd.f32 %v4901, %v5002
    %5004 = vmatprep.mubr.f32.mxu0 0.0
    %5005 = vmatmul.mubr.f32.gmra.mrb[0].mxu0 %v4834
    %v5006 = vpop.f32.mrb[0].mxu0
    %v5007 = vadd.f32 %v4897, %v5006
    %v5008 = vpop.f32.mrb[0].mxu0
    %v5009 = vadd.f32 %v4901, %v5008
    %5010 = vmatprep.mubr.f32.mxu0 0.0
    %5011 = vmatmul.mubr.f32.gmra.mrb[0].mxu0 %v4835
    %v5012 = vpop.f32.mrb[0].mxu0
    %v5013 = vadd.f32 %v4897, %v5012
    %v5014 = vpop.f32.mrb[0].mxu0
    %v5015 = vadd.f32 %v4901, %v5014
    %5016 = vmatprep.mubr.f32.mxu0 0.0
    %5017 = vmatmul.mubr.f32.gmra.mrb[0].mxu0 %v4836
    %v5018 = vpop.f32.mrb[0].mxu0
    %v5019 = vadd.f32 %v4897, %v5018
    %v5020 = vpop.f32.mrb[0].mxu0
    %v5021 = vadd.f32 %v4901, %v5020
    %5022 = vmatprep.mubr.f32.mxu0 0.0
    %5023 = vmatmul.mubr.f32.gmra.mrb[0].mxu0 %v4837
    %v5024 = vpop.f32.mrb[0].mxu0
    %v5025 = vadd.f32 %v4897, %v5024
    %v5026 = vpop.f32.mrb[0].mxu0
    %v5027 = vadd.f32 %v4901, %v5026
    %5028 = vmatprep.mubr.f32.mxu0 0.0
    %5029 = vmatmul.mubr.f32.gmra.mrb[0].mxu0 %v4838
    %v5030 = vpop.f32.mrb[0].mxu0
    %v5031 = vadd.f32 %v4897, %v5030
    %v5032 = vpop.f32.mrb[0].mxu0
    %v5033 = vadd.f32 %v4901, %v5032
    %5034 = vmatprep.mubr.f32.mxu0 0.0
    %5035 = vmatmul.mubr.f32.gmra.mrb[0].mxu0 %v4839
    %v5036 = vpop.f32.mrb[0].mxu0
    %v5037 = vadd.f32 %v4897, %v5036
    %v5038 = vpop.f32.mrb[0].mxu0
    %v5039 = vadd.f32 %v4901, %v5038
    %5040 = vmatprep.mubr.f32.mxu0 0.0
    %5041 = vmatmul.mubr.f32.gmra.mrb[0].mxu0 %v4840
    %v5042 = vpop.f32.mrb[0].mxu0
    %v5043 = vadd.f32 %v4897, %v5042
    %v5044 = vpop.f32.mrb[0].mxu0
    %v5045 = vadd.f32 %v4901, %v5044
    %5046 = vmatprep.mubr.f32.mxu0 0.0
    %5047 = vmatmul.mubr.f32.gmra.mrb[0].mxu0 %v4841
    %v5048 = vpop.f32.mrb[0].mxu0
    %v5049 = vadd.f32 %v4897, %v5048
    %v5050 = vpop.f32.mrb[0].mxu0
    %v5051 = vadd.f32 %v4901, %v5050
    %5052 = vmatprep.mubr.f32.mxu0 0.0
    %5053 = vmatmul.mubr.f32.gmra.mrb[0].mxu0 %v4842
    %v5054 = vpop.f32.mrb[0].mxu0
    %v5055 = vadd.f32 %v4897, %v5054
    %v5056 = vpop.f32.mrb[0].mxu0
    %v5057 = vadd.f32 %v4901, %v5056
    %5058 = vmatprep.mubr.f32.mxu0 0.0
    %5059 = vmatmul.mubr.f32.gmra.mrb[0].mxu0 %v4843
    %v5060 = vpop.f32.mrb[0].mxu0
    %v5061 = vadd.f32 %v4897, %v5060
    %v5062 = vpop.f32.mrb[0].mxu0
    %v5063 = vadd.f32 %v4901, %v5062
    %5064 = vmatprep.mubr.f32.mxu0 0.0
    %5065 = vmatmul.mubr.f32.gmra.mrb[0].mxu0 %v4844
    %v5066 = vpop.f32.mrb[0].mxu0
    %v5067 = vadd.f32 %v4897, %v5066
    %v5068 = vpop.f32.mrb[0].mxu0
    %v5069 = vadd.f32 %v4901, %v5068
    %5070 = vmatprep.mubr.f32.mxu0 0.0
    %5071 = vmatmul.mubr.f32.gmra.mrb[0].mxu0 %v4845
    %v5072 = vpop.f32.mrb[0].mxu0
    %v5073 = vadd.f32 %v4897, %v5072
    %v5074 = vpop.f32.mrb[0].mxu0
    %v5075 = vadd.f32 %v4901, %v5074
    %5076 = vmatprep.mubr.f32.mxu0 0.0
    %5077 = vmatmul.mubr.f32.gmra.mrb[0].mxu0 %v4846
    %v5078 = vpop.f32.mrb[0].mxu0
    %v5079 = vadd.f32 %v4897, %v5078
    %v5080 = vpop.f32.mrb[0].mxu0
    %v5081 = vadd.f32 %v4901, %v5080
    %5082 = vmatprep.mubr.f32.mxu0 0.0
    %5083 = vmatmul.mubr.f32.gmra.mrb[0].mxu0 %v4847
    %v5084 = vpop.f32.mrb[0].mxu0
    %v5085 = vadd.f32 %v4897, %v5084
    %v5086 = vpop.f32.mrb[0].mxu0
    %v5087 = vadd.f32 %v4901, %v5086
    %5088 = vmatprep.mubr.f32.mxu0 0.0
    %5089 = vmatmul.mubr.f32.gmra.mrb[0].mxu0 %v4848
    %v5090 = vpop.f32.mrb[0].mxu0
    %v5091 = vadd.f32 %v4897, %v5090
    %v5092 = vpop.f32.mrb[0].mxu0
    %v5093 = vadd.f32 %v4901, %v5092
    %5094 = vmatprep.mubr.f32.mxu0 0.0
    %5095 = vmatmul.mubr.f32.gmra.mrb[0].mxu0 %v4849
    %v5096 = vpop.f32.mrb[0].mxu0
    %v5097 = vadd.f32 %v4897, %v5096
    %v5098 = vpop.f32.mrb[0].mxu0
    %v5099 = vadd.f32 %v4901, %v5098
    %5100 = vmatprep.mubr.f32.mxu0 0.0
    %5101 = vmatmul.mubr.f32.gmra.mrb[0].mxu0 %v4850
    %v5102 = vpop.f32.mrb[0].mxu0
    %v5103 = vadd.f32 %v4897, %v5102
    %v5104 = vpop.f32.mrb[0].mxu0
    %v5105 = vadd.f32 %v4901, %v5104
    %5106 = vmatprep.mubr.f32.mxu0 0.0
    %5107 = vmatmul.mubr.f32.gmra.mrb[0].mxu0 %v4851
    %v5108 = vpop.f32.mrb[0].mxu0
    %v5109 = vadd.f32 %v4897, %v5108
    %v5110 = vpop.f32.mrb[0].mxu0
    %v5111 = vadd.f32 %v4901, %v5110
    %5112 = vmatprep.mubr.f32.mxu0 0.0
    %5113 = vmatmul.mubr.f32.gmra.mrb[0].mxu0 %v4852
    %v5114 = vpop.f32.mrb[0].mxu0
    %v5115 = vadd.f32 %v4897, %v5114
    %v5116 = vpop.f32.mrb[0].mxu0
    %v5117 = vadd.f32 %v4901, %v5116
    %5118 = vmatprep.mubr.f32.mxu0 0.0
    %5119 = vmatmul.mubr.f32.gmra.mrb[0].mxu0 %v4853
    %v5120 = vpop.f32.mrb[0].mxu0
    %v5121 = vadd.f32 %v4897, %v5120
    %v5122 = vpop.f32.mrb[0].mxu0
    %v5123 = vadd.f32 %v4901, %v5122
    %5124 = vmatprep.mubr.f32.mxu0 0.0
    %5125 = vmatmul.mubr.f32.gmra.mrb[0].mxu0 %v4854
    %v5126 = vpop.f32.mrb[0].mxu0
    %v5127 = vadd.f32 %v4897, %v5126
    %v5128 = vpop.f32.mrb[0].mxu0
    %v5129 = vadd.f32 %v4901, %v5128
    %5130 = vmatprep.mubr.f32.mxu0 0.0
    %5131 = vmatmul.mubr.f32.gmra.mrb[0].mxu0 %v4855
    %v5132 = vpop.f32.mrb[0].mxu0
    %v5133 = vadd.f32 %v4897, %v5132
    %v5134 = vpop.f32.mrb[0].mxu0
    %v5135 = vadd.f32 %v4901, %v5134
    %5136 = vmatprep.mubr.f32.mxu0 0.0
    %5137 = vmatmul.mubr.f32.gmra.mrb[0].mxu0 %v4856
    %v5138 = vpop.f32.mrb[0].mxu0
    %v5139 = vadd.f32 %v4897, %v5138
    %v5140 = vpop.f32.mrb[0].mxu0
    %v5141 = vadd.f32 %v4901, %v5140
    %5142 = vmatprep.mubr.f32.mxu0 0.0
    %5143 = vmatmul.mubr.f32.gmra.mrb[0].mxu0 %v4857
    %v5144 = vpop.f32.mrb[0].mxu0
    %v5145 = vadd.f32 %v4897, %v5144
    %v5146 = vpop.f32.mrb[0].mxu0
    %v5147 = vadd.f32 %v4901, %v5146
    %5148 = vmatprep.mubr.f32.mxu0 0.0
    %5149 = vmatmul.mubr.f32.gmra.mrb[0].mxu0 %v4858
    %v5150 = vpop.f32.mrb[0].mxu0
    %v5151 = vadd.f32 %v4897, %v5150
    %v5152 = vpop.f32.mrb[0].mxu0
    %v5153 = vadd.f32 %v4901, %v5152
    %5154 = vmatprep.mubr.f32.mxu0 0.0
    %5155 = vmatmul.mubr.f32.gmra.mrb[0].mxu0 %v4859
    %v5156 = vpop.f32.mrb[0].mxu0
    %v5157 = vadd.f32 %v4897, %v5156
    %v5158 = vpop.f32.mrb[0].mxu0
    %v5159 = vadd.f32 %v4901, %v5158
    %5160 = vdwg.mxu0
    %v5161 = vmax.f32 %v4971, 0.0
    %v5162 = vmax.f32 %v4973, 0.0
    %v5163 = vmax.f32 %v4977, 0.0
    %v5164 = vmax.f32 %v4979, 0.0
    %v5165 = vmax.f32 %v4983, 0.0
    %v5166 = vmax.f32 %v4985, 0.0
    %v5167 = vmax.f32 %v4989, 0.0
    %v5168 = vmax.f32 %v4991, 0.0
    %v5169 = vmax.f32 %v4995, 0.0
    %v5170 = vmax.f32 %v4997, 0.0
    %v5171 = vmax.f32 %v5001, 0.0
    %v5172 = vmax.f32 %v5003, 0.0
    %v5173 = vmax.f32 %v5007, 0.0
    %v5174 = vmax.f32 %v5009, 0.0
    %v5175 = vmax.f32 %v5013, 0.0
    %v5176 = vmax.f32 %v5015, 0.0
    %v5177 = vmax.f32 %v5019, 0.0
    %v5178 = vmax.f32 %v5021, 0.0
    %v5179 = vmax.f32 %v5025, 0.0
    %v5180 = vmax.f32 %v5027, 0.0
    %v5181 = vmax.f32 %v5031, 0.0
    %v5182 = vmax.f32 %v5033, 0.0
    %v5183 = vmax.f32 %v5037, 0.0
    %v5184 = vmax.f32 %v5039, 0.0
    %v5185 = vmax.f32 %v5043, 0.0
    %v5186 = vmax.f32 %v5045, 0.0
    %v5187 = vmax.f32 %v5049, 0.0
    %v5188 = vmax.f32 %v5051, 0.0
    %v5189 = vmax.f32 %v5055, 0.0
    %v5190 = vmax.f32 %v5057, 0.0
    %v5191 = vmax.f32 %v5061, 0.0
    %v5192 = vmax.f32 %v5063, 0.0
    %v5193 = vmax.f32 %v5067, 0.0
    %v5194 = vmax.f32 %v5069, 0.0
    %v5195 = vmax.f32 %v5073, 0.0
    %v5196 = vmax.f32 %v5075, 0.0
    %v5197 = vmax.f32 %v5079, 0.0
    %v5198 = vmax.f32 %v5081, 0.0
    %v5199 = vmax.f32 %v5085, 0.0
    %v5200 = vmax.f32 %v5087, 0.0
    %v5201 = vmax.f32 %v5091, 0.0
    %v5202 = vmax.f32 %v5093, 0.0
    %v5203 = vmax.f32 %v5097, 0.0
    %v5204 = vmax.f32 %v5099, 0.0
    %v5205 = vmax.f32 %v5103, 0.0
    %v5206 = vmax.f32 %v5105, 0.0
    %v5207 = vmax.f32 %v5109, 0.0
    %v5208 = vmax.f32 %v5111, 0.0
    %v5209 = vmax.f32 %v5115, 0.0
    %v5210 = vmax.f32 %v5117, 0.0
    %v5211 = vmax.f32 %v5121, 0.0
    %v5212 = vmax.f32 %v5123, 0.0
    %v5213 = vmax.f32 %v5127, 0.0
    %v5214 = vmax.f32 %v5129, 0.0
    %v5215 = vmax.f32 %v5133, 0.0
    %v5216 = vmax.f32 %v5135, 0.0
    %v5217 = vmax.f32 %v5139, 0.0
    %v5218 = vmax.f32 %v5141, 0.0
    %v5219 = vmax.f32 %v5145, 0.0
    %v5220 = vmax.f32 %v5147, 0.0
    %v5221 = vmax.f32 %v5151, 0.0
    %v5222 = vmax.f32 %v5153, 0.0
    %v5223 = vmax.f32 %v5157, 0.0
    %v5224 = vmax.f32 %v5159, 0.0
    %v5225 = vld [vmem:[#allocation25] sm:$0xff]
    %v5226 = vld [vmem:[#allocation25 + $0x8] sm:$0xff]
    %v5227 = vld [vmem:[#allocation25 + $0x10] sm:$0xff]
    %v5228 = vld [vmem:[#allocation25 + $0x18] sm:$0xff]
    %v5229 = vld [vmem:[#allocation25 + $0x20] sm:$0xff]
    %v5230 = vld [vmem:[#allocation25 + $0x28] sm:$0xff]
    %v5231 = vld [vmem:[#allocation25 + $0x30] sm:$0xff]
    %v5232 = vld [vmem:[#allocation25 + $0x38] sm:$0xff]
    %v5233 = vld [vmem:[#allocation25 + $0x40] sm:$0xff]
    %v5234 = vld [vmem:[#allocation25 + $0x48] sm:$0xff]
    %v5235 = vld [vmem:[#allocation25 + $0x50] sm:$0xff]
    %v5236 = vld [vmem:[#allocation25 + $0x58] sm:$0xff]
    %v5237 = vld [vmem:[#allocation25 + $0x60] sm:$0xff]
    %v5238 = vld [vmem:[#allocation25 + $0x68] sm:$0xff]
    %v5239 = vld [vmem:[#allocation25 + $0x70] sm:$0xff]
    %v5240 = vld [vmem:[#allocation25 + $0x78] sm:$0xff]
    %v5241 = vld [vmem:[#allocation25 + $0x80] sm:$0xff]
    %v5242 = vld [vmem:[#allocation25 + $0x88] sm:$0xff]
    %v5243 = vld [vmem:[#allocation25 + $0x90] sm:$0xff]
    %v5244 = vld [vmem:[#allocation25 + $0x98] sm:$0xff]
    %v5245 = vld [vmem:[#allocation25 + $0xa0] sm:$0xff]
    %v5246 = vld [vmem:[#allocation25 + $0xa8] sm:$0xff]
    %v5247 = vld [vmem:[#allocation25 + $0xb0] sm:$0xff]
    %v5248 = vld [vmem:[#allocation25 + $0xb8] sm:$0xff]
    %v5249 = vld [vmem:[#allocation25 + $0xc0] sm:$0xff]
    %v5250 = vld [vmem:[#allocation25 + $0xc8] sm:$0xff]
    %v5251 = vld [vmem:[#allocation25 + $0xd0] sm:$0xff]
    %v5252 = vld [vmem:[#allocation25 + $0xd8] sm:$0xff]
    %v5253 = vld [vmem:[#allocation25 + $0xe0] sm:$0xff]
    %v5254 = vld [vmem:[#allocation25 + $0xe8] sm:$0xff]
    %v5255 = vld [vmem:[#allocation25 + $0xf0] sm:$0xff]
    %v5256 = vld [vmem:[#allocation25 + $0xf8] sm:$0xff]
    %v5257 = vld [vmem:[#allocation26] sm:$0x1]
    %v5259 = vlaneseq
    %v5260 = vshrl.u32 %v5259, 7
    %v5261 = vsub.s32 0, %v5260
    %v5262 = vrot.slane %v5257, %v5261
    %5264 = vmatprep.subr.mxu0 0.0
    %5265 = vmatpush1.msra.mxu0 %v5225
    %5266 = vmatprep.subr.mxu0 0.0
    %5267 = vmatpush1.msra.mxu0 %v5226
    %5268 = vmatprep.subr.mxu0 0.0
    %5269 = vmatpush1.msra.mxu0 %v5227
    %5270 = vmatprep.subr.mxu0 0.0
    %5271 = vmatpush1.msra.mxu0 %v5228
    %5272 = vmatprep.subr.mxu0 0.0
    %5273 = vmatpush1.msra.mxu0 %v5229
    %5274 = vmatprep.subr.mxu0 0.0
    %5275 = vmatpush1.msra.mxu0 %v5230
    %5276 = vmatprep.subr.mxu0 0.0
    %5277 = vmatpush1.msra.mxu0 %v5231
    %5278 = vmatprep.subr.mxu0 0.0
    %5279 = vmatpush1.msra.mxu0 %v5232
    %5280 = vmatprep.subr.mxu0 0.0
    %5281 = vmatpush1.msra.mxu0 %v5233
    %5282 = vmatprep.subr.mxu0 0.0
    %5283 = vmatpush1.msra.mxu0 %v5234
    %5284 = vmatprep.subr.mxu0 0.0
    %5285 = vmatpush1.msra.mxu0 %v5235
    %5286 = vmatprep.subr.mxu0 0.0
    %5287 = vmatpush1.msra.mxu0 %v5236
    %5288 = vmatprep.subr.mxu0 0.0
    %5289 = vmatpush1.msra.mxu0 %v5237
    %5290 = vmatprep.subr.mxu0 0.0
    %5291 = vmatpush1.msra.mxu0 %v5238
    %5292 = vmatprep.subr.mxu0 0.0
    %5293 = vmatpush1.msra.mxu0 %v5239
    %5294 = vmatprep.subr.mxu0 0.0
    %5295 = vmatpush1.msra.mxu0 %v5240
    %5296 = vmatprep.subr.mxu0 0.0
    %5297 = vmatpush1.msra.mxu0 %v5241
    %5298 = vmatprep.subr.mxu0 0.0
    %5299 = vmatpush1.msra.mxu0 %v5242
    %5300 = vmatprep.subr.mxu0 0.0
    %5301 = vmatpush1.msra.mxu0 %v5243
    %5302 = vmatprep.subr.mxu0 0.0
    %5303 = vmatpush1.msra.mxu0 %v5244
    %5304 = vmatprep.subr.mxu0 0.0
    %5305 = vmatpush1.msra.mxu0 %v5245
    %5306 = vmatprep.subr.mxu0 0.0
    %5307 = vmatpush1.msra.mxu0 %v5246
    %5308 = vmatprep.subr.mxu0 0.0
    %5309 = vmatpush1.msra.mxu0 %v5247
    %5310 = vmatprep.subr.mxu0 0.0
    %5311 = vmatpush1.msra.mxu0 %v5248
    %5312 = vmatprep.subr.mxu0 0.0
    %5313 = vmatpush1.msra.mxu0 %v5249
    %5314 = vmatprep.subr.mxu0 0.0
    %5315 = vmatpush1.msra.mxu0 %v5250
    %5316 = vmatprep.subr.mxu0 0.0
    %5317 = vmatpush1.msra.mxu0 %v5251
    %5318 = vmatprep.subr.mxu0 0.0
    %5319 = vmatpush1.msra.mxu0 %v5252
    %5320 = vmatprep.subr.mxu0 0.0
    %5321 = vmatpush1.msra.mxu0 %v5253
    %5322 = vmatprep.subr.mxu0 0.0
    %5323 = vmatpush1.msra.mxu0 %v5254
    %5324 = vmatprep.subr.mxu0 0.0
    %5325 = vmatpush1.msra.mxu0 %v5255
    %5326 = vmatprep.subr.mxu0 0.0
    %5327 = vmatpush1.msra.mxu0 %v5256
    %5328 = vmatprep.mubr.f32.mxu0 %v5162
    %5329 = vmatmul.mubr.f32.gmra.mrb[0].mxu0 %v5161
    %v5330 = vpop.f32.mrb[0].mxu0
    %v5331 = vadd.f32 %v5262, %v5330
    %v5332 = vpop.f32.mrb[0].mxu0
    %5333 = vmatprep.mubr.f32.mxu0 %v5164
    %5334 = vmatmul.mubr.f32.gmra.mrb[0].mxu0 %v5163
    %v5335 = vpop.f32.mrb[0].mxu0
    %v5336 = vadd.f32 %v5262, %v5335
    %v5337 = vpop.f32.mrb[0].mxu0
    %5338 = vmatprep.mubr.f32.mxu0 %v5166
    %5339 = vmatmul.mubr.f32.gmra.mrb[0].mxu0 %v5165
    %v5340 = vpop.f32.mrb[0].mxu0
    %v5341 = vadd.f32 %v5262, %v5340
    %v5342 = vpop.f32.mrb[0].mxu0
    %5343 = vmatprep.mubr.f32.mxu0 %v5168
    %5344 = vmatmul.mubr.f32.gmra.mrb[0].mxu0 %v5167
    %v5345 = vpop.f32.mrb[0].mxu0
    %v5346 = vadd.f32 %v5262, %v5345
    %v5347 = vpop.f32.mrb[0].mxu0
    %5348 = vmatprep.mubr.f32.mxu0 %v5170
    %5349 = vmatmul.mubr.f32.gmra.mrb[0].mxu0 %v5169
    %v5350 = vpop.f32.mrb[0].mxu0
    %v5351 = vadd.f32 %v5262, %v5350
    %v5352 = vpop.f32.mrb[0].mxu0
    %5353 = vmatprep.mubr.f32.mxu0 %v5172
    %5354 = vmatmul.mubr.f32.gmra.mrb[0].mxu0 %v5171
    %v5355 = vpop.f32.mrb[0].mxu0
    %v5356 = vadd.f32 %v5262, %v5355
    %v5357 = vpop.f32.mrb[0].mxu0
    %5358 = vmatprep.mubr.f32.mxu0 %v5174
    %5359 = vmatmul.mubr.f32.gmra.mrb[0].mxu0 %v5173
    %v5360 = vpop.f32.mrb[0].mxu0
    %v5361 = vadd.f32 %v5262, %v5360
    %v5362 = vpop.f32.mrb[0].mxu0
    %5363 = vmatprep.mubr.f32.mxu0 %v5176
    %5364 = vmatmul.mubr.f32.gmra.mrb[0].mxu0 %v5175
    %v5365 = vpop.f32.mrb[0].mxu0
    %v5366 = vadd.f32 %v5262, %v5365
    %v5367 = vpop.f32.mrb[0].mxu0
    %5368 = vmatprep.mubr.f32.mxu0 %v5178
    %5369 = vmatmul.mubr.f32.gmra.mrb[0].mxu0 %v5177
    %v5370 = vpop.f32.mrb[0].mxu0
    %v5371 = vadd.f32 %v5262, %v5370
    %v5372 = vpop.f32.mrb[0].mxu0
    %5373 = vmatprep.mubr.f32.mxu0 %v5180
    %5374 = vmatmul.mubr.f32.gmra.mrb[0].mxu0 %v5179
    %v5375 = vpop.f32.mrb[0].mxu0
    %v5376 = vadd.f32 %v5262, %v5375
    %v5377 = vpop.f32.mrb[0].mxu0
    %5378 = vmatprep.mubr.f32.mxu0 %v5182
    %5379 = vmatmul.mubr.f32.gmra.mrb[0].mxu0 %v5181
    %v5380 = vpop.f32.mrb[0].mxu0
    %v5381 = vadd.f32 %v5262, %v5380
    %v5382 = vpop.f32.mrb[0].mxu0
    %5383 = vmatprep.mubr.f32.mxu0 %v5184
    %5384 = vmatmul.mubr.f32.gmra.mrb[0].mxu0 %v5183
    %v5385 = vpop.f32.mrb[0].mxu0
    %v5386 = vadd.f32 %v5262, %v5385
    %v5387 = vpop.f32.mrb[0].mxu0
    %5388 = vmatprep.mubr.f32.mxu0 %v5186
    %5389 = vmatmul.mubr.f32.gmra.mrb[0].mxu0 %v5185
    %v5390 = vpop.f32.mrb[0].mxu0
    %v5391 = vadd.f32 %v5262, %v5390
    %v5392 = vpop.f32.mrb[0].mxu0
    %5393 = vmatprep.mubr.f32.mxu0 %v5188
    %5394 = vmatmul.mubr.f32.gmra.mrb[0].mxu0 %v5187
    %v5395 = vpop.f32.mrb[0].mxu0
    %v5396 = vadd.f32 %v5262, %v5395
    %v5397 = vpop.f32.mrb[0].mxu0
    %5398 = vmatprep.mubr.f32.mxu0 %v5190
    %5399 = vmatmul.mubr.f32.gmra.mrb[0].mxu0 %v5189
    %v5400 = vpop.f32.mrb[0].mxu0
    %v5401 = vadd.f32 %v5262, %v5400
    %v5402 = vpop.f32.mrb[0].mxu0
    %5403 = vmatprep.mubr.f32.mxu0 %v5192
    %5404 = vmatmul.mubr.f32.gmra.mrb[0].mxu0 %v5191
    %v5405 = vpop.f32.mrb[0].mxu0
    %v5406 = vadd.f32 %v5262, %v5405
    %v5407 = vpop.f32.mrb[0].mxu0
    %5408 = vmatprep.mubr.f32.mxu0 %v5194
    %5409 = vmatmul.mubr.f32.gmra.mrb[0].mxu0 %v5193
    %v5410 = vpop.f32.mrb[0].mxu0
    %v5411 = vadd.f32 %v5262, %v5410
    %v5412 = vpop.f32.mrb[0].mxu0
    %5413 = vmatprep.mubr.f32.mxu0 %v5196
    %5414 = vmatmul.mubr.f32.gmra.mrb[0].mxu0 %v5195
    %v5415 = vpop.f32.mrb[0].mxu0
    %v5416 = vadd.f32 %v5262, %v5415
    %v5417 = vpop.f32.mrb[0].mxu0
    %5418 = vmatprep.mubr.f32.mxu0 %v5198
    %5419 = vmatmul.mubr.f32.gmra.mrb[0].mxu0 %v5197
    %v5420 = vpop.f32.mrb[0].mxu0
    %v5421 = vadd.f32 %v5262, %v5420
    %v5422 = vpop.f32.mrb[0].mxu0
    %5423 = vmatprep.mubr.f32.mxu0 %v5200
    %5424 = vmatmul.mubr.f32.gmra.mrb[0].mxu0 %v5199
    %v5425 = vpop.f32.mrb[0].mxu0
    %v5426 = vadd.f32 %v5262, %v5425
    %v5427 = vpop.f32.mrb[0].mxu0
    %5428 = vmatprep.mubr.f32.mxu0 %v5202
    %5429 = vmatmul.mubr.f32.gmra.mrb[0].mxu0 %v5201
    %v5430 = vpop.f32.mrb[0].mxu0
    %v5431 = vadd.f32 %v5262, %v5430
    %v5432 = vpop.f32.mrb[0].mxu0
    %5433 = vmatprep.mubr.f32.mxu0 %v5204
    %5434 = vmatmul.mubr.f32.gmra.mrb[0].mxu0 %v5203
    %v5435 = vpop.f32.mrb[0].mxu0
    %v5436 = vadd.f32 %v5262, %v5435
    %v5437 = vpop.f32.mrb[0].mxu0
    %5438 = vmatprep.mubr.f32.mxu0 %v5206
    %5439 = vmatmul.mubr.f32.gmra.mrb[0].mxu0 %v5205
    %v5440 = vpop.f32.mrb[0].mxu0
    %v5441 = vadd.f32 %v5262, %v5440
    %v5442 = vpop.f32.mrb[0].mxu0
    %5443 = vmatprep.mubr.f32.mxu0 %v5208
    %5444 = vmatmul.mubr.f32.gmra.mrb[0].mxu0 %v5207
    %v5445 = vpop.f32.mrb[0].mxu0
    %v5446 = vadd.f32 %v5262, %v5445
    %v5447 = vpop.f32.mrb[0].mxu0
    %5448 = vmatprep.mubr.f32.mxu0 %v5210
    %5449 = vmatmul.mubr.f32.gmra.mrb[0].mxu0 %v5209
    %v5450 = vpop.f32.mrb[0].mxu0
    %v5451 = vadd.f32 %v5262, %v5450
    %v5452 = vpop.f32.mrb[0].mxu0
    %5453 = vmatprep.mubr.f32.mxu0 %v5212
    %5454 = vmatmul.mubr.f32.gmra.mrb[0].mxu0 %v5211
    %v5455 = vpop.f32.mrb[0].mxu0
    %v5456 = vadd.f32 %v5262, %v5455
    %v5457 = vpop.f32.mrb[0].mxu0
    %5458 = vmatprep.mubr.f32.mxu0 %v5214
    %5459 = vmatmul.mubr.f32.gmra.mrb[0].mxu0 %v5213
    %v5460 = vpop.f32.mrb[0].mxu0
    %v5461 = vadd.f32 %v5262, %v5460
    %v5462 = vpop.f32.mrb[0].mxu0
    %5463 = vmatprep.mubr.f32.mxu0 %v5216
    %5464 = vmatmul.mubr.f32.gmra.mrb[0].mxu0 %v5215
    %v5465 = vpop.f32.mrb[0].mxu0
    %v5466 = vadd.f32 %v5262, %v5465
    %v5467 = vpop.f32.mrb[0].mxu0
    %5468 = vmatprep.mubr.f32.mxu0 %v5218
    %5469 = vmatmul.mubr.f32.gmra.mrb[0].mxu0 %v5217
    %v5470 = vpop.f32.mrb[0].mxu0
    %v5471 = vadd.f32 %v5262, %v5470
    %v5472 = vpop.f32.mrb[0].mxu0
    %5473 = vmatprep.mubr.f32.mxu0 %v5220
    %5474 = vmatmul.mubr.f32.gmra.mrb[0].mxu0 %v5219
    %v5475 = vpop.f32.mrb[0].mxu0
    %v5476 = vadd.f32 %v5262, %v5475
    %v5477 = vpop.f32.mrb[0].mxu0
    %5478 = vmatprep.mubr.f32.mxu0 %v5222
    %5479 = vmatmul.mubr.f32.gmra.mrb[0].mxu0 %v5221
    %v5480 = vpop.f32.mrb[0].mxu0
    %v5481 = vadd.f32 %v5262, %v5480
    %v5482 = vpop.f32.mrb[0].mxu0
    %5483 = vmatprep.mubr.f32.mxu0 %v5224
    %5484 = vmatmul.mubr.f32.gmra.mrb[0].mxu0 %v5223
    %v5485 = vpop.f32.mrb[0].mxu0
    %v5486 = vadd.f32 %v5262, %v5485
    %v5487 = vpop.f32.mrb[0].mxu0
    %5488 = vdwg.mxu0
    %v5489 = vadd.f32 %v4828, %v5331
    %v5490 = vadd.f32 %v4829, %v5336
    %v5491 = vadd.f32 %v4830, %v5341
    %v5492 = vadd.f32 %v4831, %v5346
    %v5493 = vadd.f32 %v4832, %v5351
    %v5494 = vadd.f32 %v4833, %v5356
    %v5495 = vadd.f32 %v4834, %v5361
    %v5496 = vadd.f32 %v4835, %v5366
    %v5497 = vadd.f32 %v4836, %v5371
    %v5498 = vadd.f32 %v4837, %v5376
    %v5499 = vadd.f32 %v4838, %v5381
    %v5500 = vadd.f32 %v4839, %v5386
    %v5501 = vadd.f32 %v4840, %v5391
    %v5502 = vadd.f32 %v4841, %v5396
    %v5503 = vadd.f32 %v4842, %v5401
    %v5504 = vadd.f32 %v4843, %v5406
    %v5505 = vadd.f32 %v4844, %v5411
    %v5506 = vadd.f32 %v4845, %v5416
    %v5507 = vadd.f32 %v4846, %v5421
    %v5508 = vadd.f32 %v4847, %v5426
    %v5509 = vadd.f32 %v4848, %v5431
    %v5510 = vadd.f32 %v4849, %v5436
    %v5511 = vadd.f32 %v4850, %v5441
    %v5512 = vadd.f32 %v4851, %v5446
    %v5513 = vadd.f32 %v4852, %v5451
    %v5514 = vadd.f32 %v4853, %v5456
    %v5515 = vadd.f32 %v4854, %v5461
    %v5516 = vadd.f32 %v4855, %v5466
    %v5517 = vadd.f32 %v4856, %v5471
    %v5518 = vadd.f32 %v4857, %v5476
    %v5519 = vadd.f32 %v4858, %v5481
    %v5520 = vadd.f32 %v4859, %v5486
    %v5521 = vld [vmem:[#allocation28] sm:$0x1]
    %v5522 = vld [vmem:[#allocation28 + $0x1] sm:$0x1]
    %5523 = vadd.xlane.f32.xlu0 %v5489
    %v5524 = vpop.xlane.xlu0 %5523
    %5525 = vadd.xlane.f32.xlu0 %v5490
    %v5526 = vpop.xlane.xlu0 %5525
    %5527 = vadd.xlane.f32.xlu0 %v5491
    %v5528 = vpop.xlane.xlu0 %5527
    %5529 = vadd.xlane.f32.xlu0 %v5492
    %v5530 = vpop.xlane.xlu0 %5529
    %5531 = vadd.xlane.f32.xlu0 %v5493
    %v5532 = vpop.xlane.xlu0 %5531
    %5533 = vadd.xlane.f32.xlu0 %v5494
    %v5534 = vpop.xlane.xlu0 %5533
    %5535 = vadd.xlane.f32.xlu0 %v5495
    %v5536 = vpop.xlane.xlu0 %5535
    %5537 = vadd.xlane.f32.xlu0 %v5496
    %v5538 = vpop.xlane.xlu0 %5537
    %5539 = vadd.xlane.f32.xlu0 %v5497
    %v5540 = vpop.xlane.xlu0 %5539
    %5541 = vadd.xlane.f32.xlu0 %v5498
    %v5542 = vpop.xlane.xlu0 %5541
    %5543 = vadd.xlane.f32.xlu0 %v5499
    %v5544 = vpop.xlane.xlu0 %5543
    %5545 = vadd.xlane.f32.xlu0 %v5500
    %v5546 = vpop.xlane.xlu0 %5545
    %5547 = vadd.xlane.f32.xlu0 %v5501
    %v5548 = vpop.xlane.xlu0 %5547
    %5549 = vadd.xlane.f32.xlu0 %v5502
    %v5550 = vpop.xlane.xlu0 %5549
    %5551 = vadd.xlane.f32.xlu0 %v5503
    %v5552 = vpop.xlane.xlu0 %5551
    %5553 = vadd.xlane.f32.xlu0 %v5504
    %v5554 = vpop.xlane.xlu0 %5553
    %5555 = vadd.xlane.f32.xlu0 %v5505
    %v5556 = vpop.xlane.xlu0 %5555
    %5557 = vadd.xlane.f32.xlu0 %v5506
    %v5558 = vpop.xlane.xlu0 %5557
    %5559 = vadd.xlane.f32.xlu0 %v5507
    %v5560 = vpop.xlane.xlu0 %5559
    %5561 = vadd.xlane.f32.xlu0 %v5508
    %v5562 = vpop.xlane.xlu0 %5561
    %5563 = vadd.xlane.f32.xlu0 %v5509
    %v5564 = vpop.xlane.xlu0 %5563
    %5565 = vadd.xlane.f32.xlu0 %v5510
    %v5566 = vpop.xlane.xlu0 %5565
    %5567 = vadd.xlane.f32.xlu0 %v5511
    %v5568 = vpop.xlane.xlu0 %5567
    %5569 = vadd.xlane.f32.xlu0 %v5512
    %v5570 = vpop.xlane.xlu0 %5569
    %5571 = vadd.xlane.f32.xlu0 %v5513
    %v5572 = vpop.xlane.xlu0 %5571
    %5573 = vadd.xlane.f32.xlu0 %v5514
    %v5574 = vpop.xlane.xlu0 %5573
    %5575 = vadd.xlane.f32.xlu0 %v5515
    %v5576 = vpop.xlane.xlu0 %5575
    %5577 = vadd.xlane.f32.xlu0 %v5516
    %v5578 = vpop.xlane.xlu0 %5577
    %5579 = vadd.xlane.f32.xlu0 %v5517
    %v5580 = vpop.xlane.xlu0 %5579
    %5581 = vadd.xlane.f32.xlu0 %v5518
    %v5582 = vpop.xlane.xlu0 %5581
    %5583 = vadd.xlane.f32.xlu0 %v5519
    %v5584 = vpop.xlane.xlu0 %5583
    %5585 = vadd.xlane.f32.xlu0 %v5520
    %v5586 = vpop.xlane.xlu0 %5585
    %v5587 = vmul.f32 %v5524, %v637
    %v5588 = vmul.f32 %v5526, %v637
    %v5589 = vmul.f32 %v5528, %v637
    %v5590 = vmul.f32 %v5530, %v637
    %v5591 = vmul.f32 %v5532, %v637
    %v5592 = vmul.f32 %v5534, %v637
    %v5593 = vmul.f32 %v5536, %v637
    %v5594 = vmul.f32 %v5538, %v637
    %v5595 = vmul.f32 %v5540, %v637
    %v5596 = vmul.f32 %v5542, %v637
    %v5597 = vmul.f32 %v5544, %v637
    %v5598 = vmul.f32 %v5546, %v637
    %v5599 = vmul.f32 %v5548, %v637
    %v5600 = vmul.f32 %v5550, %v637
    %v5601 = vmul.f32 %v5552, %v637
    %v5602 = vmul.f32 %v5554, %v637
    %v5603 = vmul.f32 %v5556, %v637
    %v5604 = vmul.f32 %v5558, %v637
    %v5605 = vmul.f32 %v5560, %v637
    %v5606 = vmul.f32 %v5562, %v637
    %v5607 = vmul.f32 %v5564, %v637
    %v5608 = vmul.f32 %v5566, %v637
    %v5609 = vmul.f32 %v5568, %v637
    %v5610 = vmul.f32 %v5570, %v637
    %v5611 = vmul.f32 %v5572, %v637
    %v5612 = vmul.f32 %v5574, %v637
    %v5613 = vmul.f32 %v5576, %v637
    %v5614 = vmul.f32 %v5578, %v637
    %v5615 = vmul.f32 %v5580, %v637
    %v5616 = vmul.f32 %v5582, %v637
    %v5617 = vmul.f32 %v5584, %v637
    %v5618 = vmul.f32 %v5586, %v637
    %v5619 = vsub.f32 %v5489, %v5587
    %v5620 = vsub.f32 %v5490, %v5588
    %v5621 = vsub.f32 %v5491, %v5589
    %v5622 = vsub.f32 %v5492, %v5590
    %v5623 = vsub.f32 %v5493, %v5591
    %v5624 = vsub.f32 %v5494, %v5592
    %v5625 = vsub.f32 %v5495, %v5593
    %v5626 = vsub.f32 %v5496, %v5594
    %v5627 = vsub.f32 %v5497, %v5595
    %v5628 = vsub.f32 %v5498, %v5596
    %v5629 = vsub.f32 %v5499, %v5597
    %v5630 = vsub.f32 %v5500, %v5598
    %v5631 = vsub.f32 %v5501, %v5599
    %v5632 = vsub.f32 %v5502, %v5600
    %v5633 = vsub.f32 %v5503, %v5601
    %v5634 = vsub.f32 %v5504, %v5602
    %v5635 = vsub.f32 %v5505, %v5603
    %v5636 = vsub.f32 %v5506, %v5604
    %v5637 = vsub.f32 %v5507, %v5605
    %v5638 = vsub.f32 %v5508, %v5606
    %v5639 = vsub.f32 %v5509, %v5607
    %v5640 = vsub.f32 %v5510, %v5608
    %v5641 = vsub.f32 %v5511, %v5609
    %v5642 = vsub.f32 %v5512, %v5610
    %v5643 = vsub.f32 %v5513, %v5611
    %v5644 = vsub.f32 %v5514, %v5612
    %v5645 = vsub.f32 %v5515, %v5613
    %v5646 = vsub.f32 %v5516, %v5614
    %v5647 = vsub.f32 %v5517, %v5615
    %v5648 = vsub.f32 %v5518, %v5616
    %v5649 = vsub.f32 %v5519, %v5617
    %v5650 = vsub.f32 %v5520, %v5618
    %v5651 = vmul.f32 %v5619, %v5619
    %v5652 = vmul.f32 %v5620, %v5620
    %v5653 = vmul.f32 %v5621, %v5621
    %v5654 = vmul.f32 %v5622, %v5622
    %v5655 = vmul.f32 %v5623, %v5623
    %v5656 = vmul.f32 %v5624, %v5624
    %v5657 = vmul.f32 %v5625, %v5625
    %v5658 = vmul.f32 %v5626, %v5626
    %v5659 = vmul.f32 %v5627, %v5627
    %v5660 = vmul.f32 %v5628, %v5628
    %v5661 = vmul.f32 %v5629, %v5629
    %v5662 = vmul.f32 %v5630, %v5630
    %v5663 = vmul.f32 %v5631, %v5631
    %v5664 = vmul.f32 %v5632, %v5632
    %v5665 = vmul.f32 %v5633, %v5633
    %v5666 = vmul.f32 %v5634, %v5634
    %v5667 = vmul.f32 %v5635, %v5635
    %v5668 = vmul.f32 %v5636, %v5636
    %v5669 = vmul.f32 %v5637, %v5637
    %v5670 = vmul.f32 %v5638, %v5638
    %v5671 = vmul.f32 %v5639, %v5639
    %v5672 = vmul.f32 %v5640, %v5640
    %v5673 = vmul.f32 %v5641, %v5641
    %v5674 = vmul.f32 %v5642, %v5642
    %v5675 = vmul.f32 %v5643, %v5643
    %v5676 = vmul.f32 %v5644, %v5644
    %v5677 = vmul.f32 %v5645, %v5645
    %v5678 = vmul.f32 %v5646, %v5646
    %v5679 = vmul.f32 %v5647, %v5647
    %v5680 = vmul.f32 %v5648, %v5648
    %v5681 = vmul.f32 %v5649, %v5649
    %v5682 = vmul.f32 %v5650, %v5650
    %5683 = vadd.xlane.f32.xlu0 %v5651
    %v5684 = vpop.xlane.xlu0 %5683
    %5685 = vadd.xlane.f32.xlu0 %v5652
    %v5686 = vpop.xlane.xlu0 %5685
    %5687 = vadd.xlane.f32.xlu0 %v5653
    %v5688 = vpop.xlane.xlu0 %5687
    %5689 = vadd.xlane.f32.xlu0 %v5654
    %v5690 = vpop.xlane.xlu0 %5689
    %5691 = vadd.xlane.f32.xlu0 %v5655
    %v5692 = vpop.xlane.xlu0 %5691
    %5693 = vadd.xlane.f32.xlu0 %v5656
    %v5694 = vpop.xlane.xlu0 %5693
    %5695 = vadd.xlane.f32.xlu0 %v5657
    %v5696 = vpop.xlane.xlu0 %5695
    %5697 = vadd.xlane.f32.xlu0 %v5658
    %v5698 = vpop.xlane.xlu0 %5697
    %5699 = vadd.xlane.f32.xlu0 %v5659
    %v5700 = vpop.xlane.xlu0 %5699
    %5701 = vadd.xlane.f32.xlu0 %v5660
    %v5702 = vpop.xlane.xlu0 %5701
    %5703 = vadd.xlane.f32.xlu0 %v5661
    %v5704 = vpop.xlane.xlu0 %5703
    %5705 = vadd.xlane.f32.xlu0 %v5662
    %v5706 = vpop.xlane.xlu0 %5705
    %5707 = vadd.xlane.f32.xlu0 %v5663
    %v5708 = vpop.xlane.xlu0 %5707
    %5709 = vadd.xlane.f32.xlu0 %v5664
    %v5710 = vpop.xlane.xlu0 %5709
    %5711 = vadd.xlane.f32.xlu0 %v5665
    %v5712 = vpop.xlane.xlu0 %5711
    %5713 = vadd.xlane.f32.xlu0 %v5666
    %v5714 = vpop.xlane.xlu0 %5713
    %5715 = vadd.xlane.f32.xlu0 %v5667
    %v5716 = vpop.xlane.xlu0 %5715
    %5717 = vadd.xlane.f32.xlu0 %v5668
    %v5718 = vpop.xlane.xlu0 %5717
    %5719 = vadd.xlane.f32.xlu0 %v5669
    %v5720 = vpop.xlane.xlu0 %5719
    %5721 = vadd.xlane.f32.xlu0 %v5670
    %v5722 = vpop.xlane.xlu0 %5721
    %5723 = vadd.xlane.f32.xlu0 %v5671
    %v5724 = vpop.xlane.xlu0 %5723
    %5725 = vadd.xlane.f32.xlu0 %v5672
    %v5726 = vpop.xlane.xlu0 %5725
    %5727 = vadd.xlane.f32.xlu0 %v5673
    %v5728 = vpop.xlane.xlu0 %5727
    %5729 = vadd.xlane.f32.xlu0 %v5674
    %v5730 = vpop.xlane.xlu0 %5729
    %5731 = vadd.xlane.f32.xlu0 %v5675
    %v5732 = vpop.xlane.xlu0 %5731
    %5733 = vadd.xlane.f32.xlu0 %v5676
    %v5734 = vpop.xlane.xlu0 %5733
    %5735 = vadd.xlane.f32.xlu0 %v5677
    %v5736 = vpop.xlane.xlu0 %5735
    %5737 = vadd.xlane.f32.xlu0 %v5678
    %v5738 = vpop.xlane.xlu0 %5737
    %5739 = vadd.xlane.f32.xlu0 %v5679
    %v5740 = vpop.xlane.xlu0 %5739
    %5741 = vadd.xlane.f32.xlu0 %v5680
    %v5742 = vpop.xlane.xlu0 %5741
    %5743 = vadd.xlane.f32.xlu0 %v5681
    %v5744 = vpop.xlane.xlu0 %5743
    %5745 = vadd.xlane.f32.xlu0 %v5682
    %v5746 = vpop.xlane.xlu0 %5745
    %v5747 = vmul.f32 %v5684, %v637
    %v5748 = vmul.f32 %v5686, %v637
    %v5749 = vmul.f32 %v5688, %v637
    %v5750 = vmul.f32 %v5690, %v637
    %v5751 = vmul.f32 %v5692, %v637
    %v5752 = vmul.f32 %v5694, %v637
    %v5753 = vmul.f32 %v5696, %v637
    %v5754 = vmul.f32 %v5698, %v637
    %v5755 = vmul.f32 %v5700, %v637
    %v5756 = vmul.f32 %v5702, %v637
    %v5757 = vmul.f32 %v5704, %v637
    %v5758 = vmul.f32 %v5706, %v637
    %v5759 = vmul.f32 %v5708, %v637
    %v5760 = vmul.f32 %v5710, %v637
    %v5761 = vmul.f32 %v5712, %v637
    %v5762 = vmul.f32 %v5714, %v637
    %v5763 = vmul.f32 %v5716, %v637
    %v5764 = vmul.f32 %v5718, %v637
    %v5765 = vmul.f32 %v5720, %v637
    %v5766 = vmul.f32 %v5722, %v637
    %v5767 = vmul.f32 %v5724, %v637
    %v5768 = vmul.f32 %v5726, %v637
    %v5769 = vmul.f32 %v5728, %v637
    %v5770 = vmul.f32 %v5730, %v637
    %v5771 = vmul.f32 %v5732, %v637
    %v5772 = vmul.f32 %v5734, %v637
    %v5773 = vmul.f32 %v5736, %v637
    %v5774 = vmul.f32 %v5738, %v637
    %v5775 = vmul.f32 %v5740, %v637
    %v5776 = vmul.f32 %v5742, %v637
    %v5777 = vmul.f32 %v5744, %v637
    %v5778 = vmul.f32 %v5746, %v637
    %v5779 = vadd.f32 %v5747, 1e-12
    %v5780 = vadd.f32 %v5748, 1e-12
    %v5781 = vadd.f32 %v5749, 1e-12
    %v5782 = vadd.f32 %v5750, 1e-12
    %v5783 = vadd.f32 %v5751, 1e-12
    %v5784 = vadd.f32 %v5752, 1e-12
    %v5785 = vadd.f32 %v5753, 1e-12
    %v5786 = vadd.f32 %v5754, 1e-12
    %v5787 = vadd.f32 %v5755, 1e-12
    %v5788 = vadd.f32 %v5756, 1e-12
    %v5789 = vadd.f32 %v5757, 1e-12
    %v5790 = vadd.f32 %v5758, 1e-12
    %v5791 = vadd.f32 %v5759, 1e-12
    %v5792 = vadd.f32 %v5760, 1e-12
    %v5793 = vadd.f32 %v5761, 1e-12
    %v5794 = vadd.f32 %v5762, 1e-12
    %v5795 = vadd.f32 %v5763, 1e-12
    %v5796 = vadd.f32 %v5764, 1e-12
    %v5797 = vadd.f32 %v5765, 1e-12
    %v5798 = vadd.f32 %v5766, 1e-12
    %v5799 = vadd.f32 %v5767, 1e-12
    %v5800 = vadd.f32 %v5768, 1e-12
    %v5801 = vadd.f32 %v5769, 1e-12
    %v5802 = vadd.f32 %v5770, 1e-12
    %v5803 = vadd.f32 %v5771, 1e-12
    %v5804 = vadd.f32 %v5772, 1e-12
    %v5805 = vadd.f32 %v5773, 1e-12
    %v5806 = vadd.f32 %v5774, 1e-12
    %v5807 = vadd.f32 %v5775, 1e-12
    %v5808 = vadd.f32 %v5776, 1e-12
    %v5809 = vadd.f32 %v5777, 1e-12
    %v5810 = vadd.f32 %v5778, 1e-12
    %v5811 = vrsqrt.pop %v5779
    %v5812 = vrsqrt.pop %v5780
    %v5813 = vrsqrt.pop %v5781
    %v5814 = vrsqrt.pop %v5782
    %v5815 = vrsqrt.pop %v5783
    %v5816 = vrsqrt.pop %v5784
    %v5817 = vrsqrt.pop %v5785
    %v5818 = vrsqrt.pop %v5786
    %v5819 = vrsqrt.pop %v5787
    %v5820 = vrsqrt.pop %v5788
    %v5821 = vrsqrt.pop %v5789
    %v5822 = vrsqrt.pop %v5790
    %v5823 = vrsqrt.pop %v5791
    %v5824 = vrsqrt.pop %v5792
    %v5825 = vrsqrt.pop %v5793
    %v5826 = vrsqrt.pop %v5794
    %v5827 = vrsqrt.pop %v5795
    %v5828 = vrsqrt.pop %v5796
    %v5829 = vrsqrt.pop %v5797
    %v5830 = vrsqrt.pop %v5798
    %v5831 = vrsqrt.pop %v5799
    %v5832 = vrsqrt.pop %v5800
    %v5833 = vrsqrt.pop %v5801
    %v5834 = vrsqrt.pop %v5802
    %v5835 = vrsqrt.pop %v5803
    %v5836 = vrsqrt.pop %v5804
    %v5837 = vrsqrt.pop %v5805
    %v5838 = vrsqrt.pop %v5806
    %v5839 = vrsqrt.pop %v5807
    %v5840 = vrsqrt.pop %v5808
    %v5841 = vrsqrt.pop %v5809
    %v5842 = vrsqrt.pop %v5810
    %v5843 = vmul.f32 %v5619, %v5811
    %v5844 = vmul.f32 %v5620, %v5812
    %v5845 = vmul.f32 %v5621, %v5813
    %v5846 = vmul.f32 %v5622, %v5814
    %v5847 = vmul.f32 %v5623, %v5815
    %v5848 = vmul.f32 %v5624, %v5816
    %v5849 = vmul.f32 %v5625, %v5817
    %v5850 = vmul.f32 %v5626, %v5818
    %v5851 = vmul.f32 %v5627, %v5819
    %v5852 = vmul.f32 %v5628, %v5820
    %v5853 = vmul.f32 %v5629, %v5821
    %v5854 = vmul.f32 %v5630, %v5822
    %v5855 = vmul.f32 %v5631, %v5823
    %v5856 = vmul.f32 %v5632, %v5824
    %v5857 = vmul.f32 %v5633, %v5825
    %v5858 = vmul.f32 %v5634, %v5826
    %v5859 = vmul.f32 %v5635, %v5827
    %v5860 = vmul.f32 %v5636, %v5828
    %v5861 = vmul.f32 %v5637, %v5829
    %v5862 = vmul.f32 %v5638, %v5830
    %v5863 = vmul.f32 %v5639, %v5831
    %v5864 = vmul.f32 %v5640, %v5832
    %v5865 = vmul.f32 %v5641, %v5833
    %v5866 = vmul.f32 %v5642, %v5834
    %v5867 = vmul.f32 %v5643, %v5835
    %v5868 = vmul.f32 %v5644, %v5836
    %v5869 = vmul.f32 %v5645, %v5837
    %v5870 = vmul.f32 %v5646, %v5838
    %v5871 = vmul.f32 %v5647, %v5839
    %v5872 = vmul.f32 %v5648, %v5840
    %v5873 = vmul.f32 %v5649, %v5841
    %v5874 = vmul.f32 %v5650, %v5842
    %v5875 = vlaneseq
    %v5876 = vshrl.u32 %v5875, 7
    %v5877 = vsub.s32 0, %v5876
    %v5878 = vrot.slane %v5521, %v5877
    %v5879 = vmul.f32 %v5843, %v5878
    %v5880 = vmul.f32 %v5844, %v5878
    %v5881 = vmul.f32 %v5845, %v5878
    %v5882 = vmul.f32 %v5846, %v5878
    %v5883 = vmul.f32 %v5847, %v5878
    %v5884 = vmul.f32 %v5848, %v5878
    %v5885 = vmul.f32 %v5849, %v5878
    %v5886 = vmul.f32 %v5850, %v5878
    %v5887 = vmul.f32 %v5851, %v5878
    %v5888 = vmul.f32 %v5852, %v5878
    %v5889 = vmul.f32 %v5853, %v5878
    %v5890 = vmul.f32 %v5854, %v5878
    %v5891 = vmul.f32 %v5855, %v5878
    %v5892 = vmul.f32 %v5856, %v5878
    %v5893 = vmul.f32 %v5857, %v5878
    %v5894 = vmul.f32 %v5858, %v5878
    %v5895 = vmul.f32 %v5859, %v5878
    %v5896 = vmul.f32 %v5860, %v5878
    %v5897 = vmul.f32 %v5861, %v5878
    %v5898 = vmul.f32 %v5862, %v5878
    %v5899 = vmul.f32 %v5863, %v5878
    %v5900 = vmul.f32 %v5864, %v5878
    %v5901 = vmul.f32 %v5865, %v5878
    %v5902 = vmul.f32 %v5866, %v5878
    %v5903 = vmul.f32 %v5867, %v5878
    %v5904 = vmul.f32 %v5868, %v5878
    %v5905 = vmul.f32 %v5869, %v5878
    %v5906 = vmul.f32 %v5870, %v5878
    %v5907 = vmul.f32 %v5871, %v5878
    %v5908 = vmul.f32 %v5872, %v5878
    %v5909 = vmul.f32 %v5873, %v5878
    %v5910 = vmul.f32 %v5874, %v5878
    %v5911 = vlaneseq
    %v5912 = vshrl.u32 %v5911, 7
    %v5913 = vsub.s32 0, %v5912
    %v5914 = vrot.slane %v5522, %v5913
    %v5915 = vadd.f32 %v5879, %v5914
    %v5916 = vadd.f32 %v5880, %v5914
    %v5917 = vadd.f32 %v5881, %v5914
    %v5918 = vadd.f32 %v5882, %v5914
    %v5919 = vadd.f32 %v5883, %v5914
    %v5920 = vadd.f32 %v5884, %v5914
    %v5921 = vadd.f32 %v5885, %v5914
    %v5922 = vadd.f32 %v5886, %v5914
    %v5923 = vadd.f32 %v5887, %v5914
    %v5924 = vadd.f32 %v5888, %v5914
    %v5925 = vadd.f32 %v5889, %v5914
    %v5926 = vadd.f32 %v5890, %v5914
    %v5927 = vadd.f32 %v5891, %v5914
    %v5928 = vadd.f32 %v5892, %v5914
    %v5929 = vadd.f32 %v5893, %v5914
    %v5930 = vadd.f32 %v5894, %v5914
    %v5931 = vadd.f32 %v5895, %v5914
    %v5932 = vadd.f32 %v5896, %v5914
    %v5933 = vadd.f32 %v5897, %v5914
    %v5934 = vadd.f32 %v5898, %v5914
    %v5935 = vadd.f32 %v5899, %v5914
    %v5936 = vadd.f32 %v5900, %v5914
    %v5937 = vadd.f32 %v5901, %v5914
    %v5938 = vadd.f32 %v5902, %v5914
    %v5939 = vadd.f32 %v5903, %v5914
    %v5940 = vadd.f32 %v5904, %v5914
    %v5941 = vadd.f32 %v5905, %v5914
    %v5942 = vadd.f32 %v5906, %v5914
    %v5943 = vadd.f32 %v5907, %v5914
    %v5944 = vadd.f32 %v5908, %v5914
    %v5945 = vadd.f32 %v5909, %v5914
    %v5946 = vadd.f32 %v5910, %v5914
    %v5947 = vld [vmem:[#allocation7] sm:$0xff]
    %v5948 = vld [vmem:[#allocation7 + $0x8] sm:$0xff]
    %v5949 = vld [vmem:[#allocation7 + $0x10] sm:$0xff]
    %v5950 = vld [vmem:[#allocation7 + $0x18] sm:$0xff]
    %v5951 = vld [vmem:[#allocation7 + $0x20] sm:$0xff]
    %v5952 = vld [vmem:[#allocation7 + $0x28] sm:$0xff]
    %v5953 = vld [vmem:[#allocation7 + $0x30] sm:$0xff]
    %v5954 = vld [vmem:[#allocation7 + $0x38] sm:$0xff]
    %v5955 = vld [vmem:[#allocation7 + $0x40] sm:$0xff]
    %v5956 = vld [vmem:[#allocation7 + $0x48] sm:$0xff]
    %v5957 = vld [vmem:[#allocation7 + $0x50] sm:$0xff]
    %v5958 = vld [vmem:[#allocation7 + $0x58] sm:$0xff]
    %v5959 = vld [vmem:[#allocation7 + $0x60] sm:$0xff]
    %v5960 = vld [vmem:[#allocation7 + $0x68] sm:$0xff]
    %v5961 = vld [vmem:[#allocation7 + $0x70] sm:$0xff]
    %v5962 = vld [vmem:[#allocation7 + $0x78] sm:$0xff]
    %v5963 = vld [vmem:[#allocation7 + $0x80] sm:$0xff]
    %v5964 = vld [vmem:[#allocation7 + $0x88] sm:$0xff]
    %v5965 = vld [vmem:[#allocation7 + $0x90] sm:$0xff]
    %v5966 = vld [vmem:[#allocation7 + $0x98] sm:$0xff]
    %5967 = vmatprep.subr.mxu0 0.0
    %5968 = vmatpush1.msra.mxu0 %v5915
    %5969 = vmatprep.subr.mxu0 0.0
    %5970 = vmatpush1.msra.mxu0 %v5916
    %5971 = vmatprep.subr.mxu0 0.0
    %5972 = vmatpush1.msra.mxu0 %v5917
    %5973 = vmatprep.subr.mxu0 0.0
    %5974 = vmatpush1.msra.mxu0 %v5918
    %5975 = vmatprep.subr.mxu0 0.0
    %5976 = vmatpush1.msra.mxu0 %v5919
    %5977 = vmatprep.subr.mxu0 0.0
    %5978 = vmatpush1.msra.mxu0 %v5920
    %5979 = vmatprep.subr.mxu0 0.0
    %5980 = vmatpush1.msra.mxu0 %v5921
    %5981 = vmatprep.subr.mxu0 0.0
    %5982 = vmatpush1.msra.mxu0 %v5922
    %5983 = vmatprep.subr.mxu0 0.0
    %5984 = vmatpush1.msra.mxu0 %v5923
    %5985 = vmatprep.subr.mxu0 0.0
    %5986 = vmatpush1.msra.mxu0 %v5924
    %5987 = vmatprep.subr.mxu0 0.0
    %5988 = vmatpush1.msra.mxu0 %v5925
    %5989 = vmatprep.subr.mxu0 0.0
    %5990 = vmatpush1.msra.mxu0 %v5926
    %5991 = vmatprep.subr.mxu0 0.0
    %5992 = vmatpush1.msra.mxu0 %v5927
    %5993 = vmatprep.subr.mxu0 0.0
    %5994 = vmatpush1.msra.mxu0 %v5928
    %5995 = vmatprep.subr.mxu0 0.0
    %5996 = vmatpush1.msra.mxu0 %v5929
    %5997 = vmatprep.subr.mxu0 0.0
    %5998 = vmatpush1.msra.mxu0 %v5930
    %5999 = vmatprep.subr.mxu0 0.0
    %6000 = vmatpush1.msra.mxu0 %v5931
    %6001 = vmatprep.subr.mxu0 0.0
    %6002 = vmatpush1.msra.mxu0 %v5932
    %6003 = vmatprep.subr.mxu0 0.0
    %6004 = vmatpush1.msra.mxu0 %v5933
    %6005 = vmatprep.subr.mxu0 0.0
    %6006 = vmatpush1.msra.mxu0 %v5934
    %6007 = vmatprep.subr.mxu0 0.0
    %6008 = vmatpush1.msra.mxu0 %v5935
    %6009 = vmatprep.subr.mxu0 0.0
    %6010 = vmatpush1.msra.mxu0 %v5936
    %6011 = vmatprep.subr.mxu0 0.0
    %6012 = vmatpush1.msra.mxu0 %v5937
    %6013 = vmatprep.subr.mxu0 0.0
    %6014 = vmatpush1.msra.mxu0 %v5938
    %6015 = vmatprep.subr.mxu0 0.0
    %6016 = vmatpush1.msra.mxu0 %v5939
    %6017 = vmatprep.subr.mxu0 0.0
    %6018 = vmatpush1.msra.mxu0 %v5940
    %6019 = vmatprep.subr.mxu0 0.0
    %6020 = vmatpush1.msra.mxu0 %v5941
    %6021 = vmatprep.subr.mxu0 0.0
    %6022 = vmatpush1.msra.mxu0 %v5942
    %6023 = vmatprep.subr.mxu0 0.0
    %6024 = vmatpush1.msra.mxu0 %v5943
    %6025 = vmatprep.subr.mxu0 0.0
    %6026 = vmatpush1.msra.mxu0 %v5944
    %6027 = vmatprep.subr.mxu0 0.0
    %6028 = vmatpush1.msra.mxu0 %v5945
    %6029 = vmatprep.subr.mxu0 0.0
    %6030 = vmatpush1.msra.mxu0 %v5946
    %6031 = vmatprep.mubr.f32.mxu0 %v5948
    %6032 = vmatmul.mubr.f32.gmra.mrb[0].mxu0 %v5947
    %v6033 = vpop.f32.mrb[0].mxu0
    %v6034 = vadd.f32 0.0, %v6033
    %v6035 = vpop.f32.mrb[0].mxu0
    %6036 = vmatprep.mubr.f32.mxu0 %v5950
    %6037 = vmatmul.mubr.f32.gmra.mrb[0].mxu0 %v5949
    %v6038 = vpop.f32.mrb[0].mxu0
    %v6039 = vadd.f32 0.0, %v6038
    %v6040 = vpop.f32.mrb[0].mxu0
    %6041 = vmatprep.mubr.f32.mxu0 %v5952
    %6042 = vmatmul.mubr.f32.gmra.mrb[0].mxu0 %v5951
    %v6043 = vpop.f32.mrb[0].mxu0
    %v6044 = vadd.f32 0.0, %v6043
    %v6045 = vpop.f32.mrb[0].mxu0
    %6046 = vmatprep.mubr.f32.mxu0 %v5954
    %6047 = vmatmul.mubr.f32.gmra.mrb[0].mxu0 %v5953
    %v6048 = vpop.f32.mrb[0].mxu0
    %v6049 = vadd.f32 0.0, %v6048
    %v6050 = vpop.f32.mrb[0].mxu0
    %6051 = vmatprep.mubr.f32.mxu0 %v5956
    %6052 = vmatmul.mubr.f32.gmra.mrb[0].mxu0 %v5955
    %v6053 = vpop.f32.mrb[0].mxu0
    %v6054 = vadd.f32 0.0, %v6053
    %v6055 = vpop.f32.mrb[0].mxu0
    %6056 = vmatprep.mubr.f32.mxu0 %v5958
    %6057 = vmatmul.mubr.f32.gmra.mrb[0].mxu0 %v5957
    %v6058 = vpop.f32.mrb[0].mxu0
    %v6059 = vadd.f32 0.0, %v6058
    %v6060 = vpop.f32.mrb[0].mxu0
    %6061 = vmatprep.mubr.f32.mxu0 %v5960
    %6062 = vmatmul.mubr.f32.gmra.mrb[0].mxu0 %v5959
    %v6063 = vpop.f32.mrb[0].mxu0
    %v6064 = vadd.f32 0.0, %v6063
    %v6065 = vpop.f32.mrb[0].mxu0
    %6066 = vmatprep.mubr.f32.mxu0 %v5962
    %6067 = vmatmul.mubr.f32.gmra.mrb[0].mxu0 %v5961
    %v6068 = vpop.f32.mrb[0].mxu0
    %v6069 = vadd.f32 0.0, %v6068
    %v6070 = vpop.f32.mrb[0].mxu0
    %6071 = vmatprep.mubr.f32.mxu0 %v5964
    %6072 = vmatmul.mubr.f32.gmra.mrb[0].mxu0 %v5963
    %v6073 = vpop.f32.mrb[0].mxu0
    %v6074 = vadd.f32 0.0, %v6073
    %v6075 = vpop.f32.mrb[0].mxu0
    %6076 = vmatprep.mubr.f32.mxu0 %v5966
    %6077 = vmatmul.mubr.f32.gmra.mrb[0].mxu0 %v5965
    %v6078 = vpop.f32.mrb[0].mxu0
    %v6079 = vadd.f32 0.0, %v6078
    %v6080 = vpop.f32.mrb[0].mxu0
    %6081 = vdwg.mxu0
    %v6082 = vld [vmem:[#allocation8] sm:$0xff]
    %v6083 = vld [vmem:[#allocation8 + $0x8] sm:$0xff]
    %v6084 = vld [vmem:[%s45] sm:$0xff]
    %v6085 = vld [vmem:[%s45 + $0x8] sm:$0xff]
    %v6086 = vld [vmem:[%s45 + $0x10] sm:$0xff]
    %v6087 = vld [vmem:[%s45 + $0x18] sm:$0xff]
    %v6088 = vld [vmem:[%s45 + $0x20] sm:$0xff]
    %v6089 = vld [vmem:[%s45 + $0x28] sm:$0xff]
    %v6090 = vld [vmem:[%s45 + $0x30] sm:$0xff]
    %v6091 = vld [vmem:[%s45 + $0x38] sm:$0xff]
    %v6092 = vld [vmem:[%s45 + $0x40] sm:$0xff]
    %v6093 = vld [vmem:[%s45 + $0x48] sm:$0xff]
    %v6094 = vld [vmem:[%s45 + $0x50] sm:$0xff]
    %v6095 = vld [vmem:[%s45 + $0x58] sm:$0xff]
    %v6096 = vld [vmem:[%s45 + $0x60] sm:$0xff]
    %v6097 = vld [vmem:[%s45 + $0x68] sm:$0xff]
    %v6098 = vld [vmem:[%s45 + $0x70] sm:$0xff]
    %v6099 = vld [vmem:[%s45 + $0x78] sm:$0xff]
    %v6100 = vld [vmem:[%s45 + $0x80] sm:$0xff]
    %v6101 = vld [vmem:[%s45 + $0x88] sm:$0xff]
    %v6102 = vld [vmem:[%s45 + $0x90] sm:$0xff]
    %v6103 = vld [vmem:[%s45 + $0x98] sm:$0xff]
    %v6104 = vld [vmem:[%s45 + $0xa0] sm:$0xff]
    %v6105 = vld [vmem:[%s45 + $0xa8] sm:$0xff]
    %v6106 = vld [vmem:[%s45 + $0xb0] sm:$0xff]
    %v6107 = vld [vmem:[%s45 + $0xb8] sm:$0xff]
    %v6108 = vld [vmem:[%s45 + $0xc0] sm:$0xff]
    %v6109 = vld [vmem:[%s45 + $0xc8] sm:$0xff]
    %v6110 = vld [vmem:[%s45 + $0xd0] sm:$0xff]
    %v6111 = vld [vmem:[%s45 + $0xd8] sm:$0xff]
    %v6112 = vld [vmem:[%s45 + $0xe0] sm:$0xff]
    %v6113 = vld [vmem:[%s45 + $0xe8] sm:$0xff]
    %v6114 = vld [vmem:[%s45 + $0xf0] sm:$0xff]
    %v6115 = vld [vmem:[%s45 + $0xf8] sm:$0xff]
    %v6116 = vld [vmem:[%s45 + $0x100] sm:$0xff]
    %v6117 = vld [vmem:[%s45 + $0x108] sm:$0xff]
    %v6118 = vld [vmem:[%s45 + $0x110] sm:$0xff]
    %v6119 = vld [vmem:[%s45 + $0x118] sm:$0xff]
    %v6120 = vld [vmem:[%s45 + $0x120] sm:$0xff]
    %v6121 = vld [vmem:[%s45 + $0x128] sm:$0xff]
    %v6122 = vld [vmem:[%s45 + $0x130] sm:$0xff]
    %v6123 = vld [vmem:[%s45 + $0x138] sm:$0xff]
    %v6124 = vld [vmem:[%s45 + $0x140] sm:$0xff]
    %v6125 = vld [vmem:[%s45 + $0x148] sm:$0xff]
    %v6126 = vld [vmem:[%s45 + $0x150] sm:$0xff]
    %v6127 = vld [vmem:[%s45 + $0x158] sm:$0xff]
    %v6128 = vld [vmem:[%s45 + $0x160] sm:$0xff]
    %v6129 = vld [vmem:[%s45 + $0x168] sm:$0xff]
    %v6130 = vld [vmem:[%s45 + $0x170] sm:$0xff]
    %v6131 = vld [vmem:[%s45 + $0x178] sm:$0xff]
    %v6132 = vld [vmem:[%s45 + $0x180] sm:$0xff]
    %v6133 = vld [vmem:[%s45 + $0x188] sm:$0xff]
    %v6134 = vld [vmem:[%s45 + $0x190] sm:$0xff]
    %v6135 = vld [vmem:[%s45 + $0x198] sm:$0xff]
    %v6136 = vld [vmem:[%s45 + $0x1a0] sm:$0xff]
    %v6137 = vld [vmem:[%s45 + $0x1a8] sm:$0xff]
    %v6138 = vld [vmem:[%s45 + $0x1b0] sm:$0xff]
    %v6139 = vld [vmem:[%s45 + $0x1b8] sm:$0xff]
    %v6140 = vld [vmem:[%s45 + $0x1c0] sm:$0xff]
    %v6141 = vld [vmem:[%s45 + $0x1c8] sm:$0xff]
    %v6142 = vld [vmem:[%s45 + $0x1d0] sm:$0xff]
    %v6143 = vld [vmem:[%s45 + $0x1d8] sm:$0xff]
    %v6144 = vld [vmem:[%s45 + $0x1e0] sm:$0xff]
    %v6145 = vld [vmem:[%s45 + $0x1e8] sm:$0xff]
    %v6146 = vld [vmem:[%s45 + $0x1f0] sm:$0xff]
    %v6147 = vld [vmem:[%s45 + $0x1f8] sm:$0xff]
    %v6148 = vld [vmem:[%s45 + $0x200] sm:$0xff]
    %v6149 = vld [vmem:[%s45 + $0x208] sm:$0xff]
    %v6150 = vld [vmem:[%s45 + $0x210] sm:$0xff]
    %v6151 = vld [vmem:[%s45 + $0x218] sm:$0xff]
    %v6152 = vld [vmem:[%s45 + $0x220] sm:$0xff]
    %v6153 = vld [vmem:[%s45 + $0x228] sm:$0xff]
    %v6154 = vld [vmem:[%s45 + $0x230] sm:$0xff]
    %v6155 = vld [vmem:[%s45 + $0x238] sm:$0xff]
    %v6156 = vld [vmem:[%s45 + $0x240] sm:$0xff]
    %v6157 = vld [vmem:[%s45 + $0x248] sm:$0xff]
    %v6158 = vld [vmem:[%s45 + $0x250] sm:$0xff]
    %v6159 = vld [vmem:[%s45 + $0x258] sm:$0xff]
    %v6160 = vld [vmem:[%s45 + $0x260] sm:$0xff]
    %v6161 = vld [vmem:[%s45 + $0x268] sm:$0xff]
    %v6162 = vld [vmem:[%s45 + $0x270] sm:$0xff]
    %v6163 = vld [vmem:[%s45 + $0x278] sm:$0xff]
    %6164 = vmatprep.subr.mxu0 0.0
    %6165 = vmatpush1.msra.mxu0 %v6084
    %6166 = vmatprep.subr.mxu0 0.0
    %6167 = vmatpush1.msra.mxu0 %v6085
    %6168 = vmatprep.subr.mxu0 0.0
    %6169 = vmatpush1.msra.mxu0 %v6086
    %6170 = vmatprep.subr.mxu0 0.0
    %6171 = vmatpush1.msra.mxu0 %v6087
    %6172 = vmatprep.subr.mxu0 0.0
    %6173 = vmatpush1.msra.mxu0 %v6088
    %6174 = vmatprep.subr.mxu0 0.0
    %6175 = vmatpush1.msra.mxu0 %v6089
    %6176 = vmatprep.subr.mxu0 0.0
    %6177 = vmatpush1.msra.mxu0 %v6090
    %6178 = vmatprep.subr.mxu0 0.0
    %6179 = vmatpush1.msra.mxu0 %v6091
    %6180 = vmatprep.subr.mxu0 0.0
    %6181 = vmatpush1.msra.mxu0 %v6092
    %6182 = vmatprep.subr.mxu0 0.0
    %6183 = vmatpush1.msra.mxu0 %v6093
    %6184 = vmatprep.subr.mxu0 0.0
    %6185 = vmatpush1.msra.mxu0 %v6094
    %6186 = vmatprep.subr.mxu0 0.0
    %6187 = vmatpush1.msra.mxu0 %v6095
    %6188 = vmatprep.subr.mxu0 0.0
    %6189 = vmatpush1.msra.mxu0 %v6096
    %6190 = vmatprep.subr.mxu0 0.0
    %6191 = vmatpush1.msra.mxu0 %v6097
    %6192 = vmatprep.subr.mxu0 0.0
    %6193 = vmatpush1.msra.mxu0 %v6098
    %6194 = vmatprep.subr.mxu0 0.0
    %6195 = vmatpush1.msra.mxu0 %v6099
    %6196 = vmatprep.subr.mxu0 0.0
    %6197 = vmatpush1.msra.mxu0 %v6100
    %6198 = vmatprep.subr.mxu0 0.0
    %6199 = vmatpush1.msra.mxu0 %v6101
    %6200 = vmatprep.subr.mxu0 0.0
    %6201 = vmatpush1.msra.mxu0 %v6102
    %6202 = vmatprep.subr.mxu0 0.0
    %6203 = vmatpush1.msra.mxu0 %v6103
    %6204 = vmatprep.subr.mxu0 0.0
    %6205 = vmatpush1.msra.mxu0 %v6104
    %6206 = vmatprep.subr.mxu0 0.0
    %6207 = vmatpush1.msra.mxu0 %v6105
    %6208 = vmatprep.subr.mxu0 0.0
    %6209 = vmatpush1.msra.mxu0 %v6106
    %6210 = vmatprep.subr.mxu0 0.0
    %6211 = vmatpush1.msra.mxu0 %v6107
    %6212 = vmatprep.subr.mxu0 0.0
    %6213 = vmatpush1.msra.mxu0 %v6108
    %6214 = vmatprep.subr.mxu0 0.0
    %6215 = vmatpush1.msra.mxu0 %v6109
    %6216 = vmatprep.subr.mxu0 0.0
    %6217 = vmatpush1.msra.mxu0 %v6110
    %6218 = vmatprep.subr.mxu0 0.0
    %6219 = vmatpush1.msra.mxu0 %v6111
    %6220 = vmatprep.subr.mxu0 0.0
    %6221 = vmatpush1.msra.mxu0 %v6112
    %6222 = vmatprep.subr.mxu0 0.0
    %6223 = vmatpush1.msra.mxu0 %v6113
    %6224 = vmatprep.subr.mxu0 0.0
    %6225 = vmatpush1.msra.mxu0 %v6114
    %6226 = vmatprep.subr.mxu0 0.0
    %6227 = vmatpush1.msra.mxu0 %v6115
    %6228 = vmatprep.mubr.f32.mxu0 %v6074
    %6229 = vmatmul.mubr.f32.gmra.mrb[0].mxu0 %v6064
    %v6230 = vpop.f32.mrb[0].mxu0
    %v6231 = vadd.f32 0.0, %v6230
    %v6232 = vpop.f32.mrb[0].mxu0
    %6233 = vmatprep.mubr.f32.mxu0 %v6079
    %6234 = vmatmul.mubr.f32.gmra.mrb[0].mxu0 %v6069
    %v6235 = vpop.f32.mrb[0].mxu0
    %v6236 = vadd.f32 0.0, %v6235
    %v6237 = vpop.f32.mrb[0].mxu0
    %6238 = vdwg.mxu0
    %6239 = vmatprep.subr.mxu0 0.0
    %6240 = vmatpush1.msra.mxu0 %v6116
    %6241 = vmatprep.subr.mxu0 0.0
    %6242 = vmatpush1.msra.mxu0 %v6117
    %6243 = vmatprep.subr.mxu0 0.0
    %6244 = vmatpush1.msra.mxu0 %v6118
    %6245 = vmatprep.subr.mxu0 0.0
    %6246 = vmatpush1.msra.mxu0 %v6119
    %6247 = vmatprep.subr.mxu0 0.0
    %6248 = vmatpush1.msra.mxu0 %v6120
    %6249 = vmatprep.subr.mxu0 0.0
    %6250 = vmatpush1.msra.mxu0 %v6121
    %6251 = vmatprep.subr.mxu0 0.0
    %6252 = vmatpush1.msra.mxu0 %v6122
    %6253 = vmatprep.subr.mxu0 0.0
    %6254 = vmatpush1.msra.mxu0 %v6123
    %6255 = vmatprep.subr.mxu0 0.0
    %6256 = vmatpush1.msra.mxu0 %v6124
    %6257 = vmatprep.subr.mxu0 0.0
    %6258 = vmatpush1.msra.mxu0 %v6125
    %6259 = vmatprep.subr.mxu0 0.0
    %6260 = vmatpush1.msra.mxu0 %v6126
    %6261 = vmatprep.subr.mxu0 0.0
    %6262 = vmatpush1.msra.mxu0 %v6127
    %6263 = vmatprep.subr.mxu0 0.0
    %6264 = vmatpush1.msra.mxu0 %v6128
    %6265 = vmatprep.subr.mxu0 0.0
    %6266 = vmatpush1.msra.mxu0 %v6129
    %6267 = vmatprep.subr.mxu0 0.0
    %6268 = vmatpush1.msra.mxu0 %v6130
    %6269 = vmatprep.subr.mxu0 0.0
    %6270 = vmatpush1.msra.mxu0 %v6131
    %6271 = vmatprep.subr.mxu0 0.0
    %6272 = vmatpush1.msra.mxu0 %v6132
    %6273 = vmatprep.subr.mxu0 0.0
    %6274 = vmatpush1.msra.mxu0 %v6133
    %6275 = vmatprep.subr.mxu0 0.0
    %6276 = vmatpush1.msra.mxu0 %v6134
    %6277 = vmatprep.subr.mxu0 0.0
    %6278 = vmatpush1.msra.mxu0 %v6135
    %6279 = vmatprep.subr.mxu0 0.0
    %6280 = vmatpush1.msra.mxu0 %v6136
    %6281 = vmatprep.subr.mxu0 0.0
    %6282 = vmatpush1.msra.mxu0 %v6137
    %6283 = vmatprep.subr.mxu0 0.0
    %6284 = vmatpush1.msra.mxu0 %v6138
    %6285 = vmatprep.subr.mxu0 0.0
    %6286 = vmatpush1.msra.mxu0 %v6139
    %6287 = vmatprep.subr.mxu0 0.0
    %6288 = vmatpush1.msra.mxu0 %v6140
    %6289 = vmatprep.subr.mxu0 0.0
    %6290 = vmatpush1.msra.mxu0 %v6141
    %6291 = vmatprep.subr.mxu0 0.0
    %6292 = vmatpush1.msra.mxu0 %v6142
    %6293 = vmatprep.subr.mxu0 0.0
    %6294 = vmatpush1.msra.mxu0 %v6143
    %6295 = vmatprep.subr.mxu0 0.0
    %6296 = vmatpush1.msra.mxu0 %v6144
    %6297 = vmatprep.subr.mxu0 0.0
    %6298 = vmatpush1.msra.mxu0 %v6145
    %6299 = vmatprep.subr.mxu0 0.0
    %6300 = vmatpush1.msra.mxu0 %v6146
    %6301 = vmatprep.subr.mxu0 0.0
    %6302 = vmatpush1.msra.mxu0 %v6147
    %6303 = vmatprep.mubr.f32.mxu0 %v6044
    %6304 = vmatmul.mubr.f32.gmra.mrb[0].mxu0 %v6034
    %v6305 = vpop.f32.mrb[0].mxu0
    %v6306 = vadd.f32 %v6231, %v6305
    %v6307 = vpop.f32.mrb[0].mxu0
    %6308 = vmatprep.mubr.f32.mxu0 %v6049
    %6309 = vmatmul.mubr.f32.gmra.mrb[0].mxu0 %v6039
    %v6310 = vpop.f32.mrb[0].mxu0
    %v6311 = vadd.f32 %v6236, %v6310
    %v6312 = vpop.f32.mrb[0].mxu0
    %6313 = vdwg.mxu0
    %6314 = vmatprep.subr.mxu0 0.0
    %6315 = vmatpush1.msra.mxu0 %v6148
    %6316 = vmatprep.subr.mxu0 0.0
    %6317 = vmatpush1.msra.mxu0 %v6149
    %6318 = vmatprep.subr.mxu0 0.0
    %6319 = vmatpush1.msra.mxu0 %v6150
    %6320 = vmatprep.subr.mxu0 0.0
    %6321 = vmatpush1.msra.mxu0 %v6151
    %6322 = vmatprep.subr.mxu0 0.0
    %6323 = vmatpush1.msra.mxu0 %v6152
    %6324 = vmatprep.subr.mxu0 0.0
    %6325 = vmatpush1.msra.mxu0 %v6153
    %6326 = vmatprep.subr.mxu0 0.0
    %6327 = vmatpush1.msra.mxu0 %v6154
    %6328 = vmatprep.subr.mxu0 0.0
    %6329 = vmatpush1.msra.mxu0 %v6155
    %6330 = vmatprep.subr.mxu0 0.0
    %6331 = vmatpush1.msra.mxu0 %v6156
    %6332 = vmatprep.subr.mxu0 0.0
    %6333 = vmatpush1.msra.mxu0 %v6157
    %6334 = vmatprep.subr.mxu0 0.0
    %6335 = vmatpush1.msra.mxu0 %v6158
    %6336 = vmatprep.subr.mxu0 0.0
    %6337 = vmatpush1.msra.mxu0 %v6159
    %6338 = vmatprep.subr.mxu0 0.0
    %6339 = vmatpush1.msra.mxu0 %v6160
    %6340 = vmatprep.subr.mxu0 0.0
    %6341 = vmatpush1.msra.mxu0 %v6161
    %6342 = vmatprep.subr.mxu0 0.0
    %6343 = vmatpush1.msra.mxu0 %v6162
    %6344 = vmatprep.subr.mxu0 0.0
    %6345 = vmatpush1.msra.mxu0 %v6163
    %6346 = vmatprep.subr.mxu0 0.0
    %6347 = vmatpush1.msra.mxu0 0.0
    %6348 = vmatprep.subr.mxu0 0.0
    %6349 = vmatpush1.msra.mxu0 0.0
    %6350 = vmatprep.subr.mxu0 0.0
    %6351 = vmatpush1.msra.mxu0 0.0
    %6352 = vmatprep.subr.mxu0 0.0
    %6353 = vmatpush1.msra.mxu0 0.0
    %6354 = vmatprep.subr.mxu0 0.0
    %6355 = vmatpush1.msra.mxu0 0.0
    %6356 = vmatprep.subr.mxu0 0.0
    %6357 = vmatpush1.msra.mxu0 0.0
    %6358 = vmatprep.subr.mxu0 0.0
    %6359 = vmatpush1.msra.mxu0 0.0
    %6360 = vmatprep.subr.mxu0 0.0
    %6361 = vmatpush1.msra.mxu0 0.0
    %6362 = vmatprep.subr.mxu0 0.0
    %6363 = vmatpush1.msra.mxu0 0.0
    %6364 = vmatprep.subr.mxu0 0.0
    %6365 = vmatpush1.msra.mxu0 0.0
    %6366 = vmatprep.subr.mxu0 0.0
    %6367 = vmatpush1.msra.mxu0 0.0
    %6368 = vmatprep.subr.mxu0 0.0
    %6369 = vmatpush1.msra.mxu0 0.0
    %6370 = vmatprep.subr.mxu0 0.0
    %6371 = vmatpush1.msra.mxu0 0.0
    %6372 = vmatprep.subr.mxu0 0.0
    %6373 = vmatpush1.msra.mxu0 0.0
    %6374 = vmatprep.subr.mxu0 0.0
    %6375 = vmatpush1.msra.mxu0 0.0
    %6376 = vmatprep.subr.mxu0 0.0
    %6377 = vmatpush1.msra.mxu0 0.0
    %6378 = vmatprep.mubr.f32.mxu0 0.0
    %6379 = vmatmul.mubr.f32.gmra.mrb[0].mxu0 %v6082
    %v6380 = vpop.f32.mrb[0].mxu0
    %v6381 = vadd.f32 %v6306, %v6380
    %v6382 = vpop.f32.mrb[0].mxu0
    %6383 = vmatprep.mubr.f32.mxu0 0.0
    %6384 = vmatmul.mubr.f32.gmra.mrb[0].mxu0 %v6083
    %v6385 = vpop.f32.mrb[0].mxu0
    %v6386 = vadd.f32 %v6311, %v6385
    %v6387 = vpop.f32.mrb[0].mxu0
    %6388 = vdwg.mxu0
    %v6389 = vadd.f32 %v6054, %v6381
    %v6390 = vadd.f32 %v6059, %v6386
    %v6391 = vld [vmem:[#allocation29] sm:$0x1]
    %v6393 = vlaneseq
    %v6394 = vshrl.u32 %v6393, 7
    %v6395 = vsub.s32 0, %v6394
    %v6396 = vrot.slane %v6391, %v6395
    %v6398 = vadd.f32 %v6389, %v6396
    %v6399 = vadd.f32 %v6390, %v6396
    %v6400 = vld [vmem:[%s9] sm:$0xff]
    %v6401 = vld [vmem:[%s9 + $0x8] sm:$0xff]
    %v6402 = vld [vmem:[%s9 + $0x10] sm:$0xff]
    %v6403 = vld [vmem:[%s9 + $0x18] sm:$0xff]
    %v6404 = vld [vmem:[%s49] sm:$0xff]
    %v6405 = vld [vmem:[%s49 + $0x8] sm:$0xff]
    %v6406 = vld [vmem:[%s49 + $0x10] sm:$0xf]
    %vm6407 = vcmask 162816
    %v6409 = vsel %vm6407, %v6400, 0
    %v6412 = vsel %vm6407, %v6401, 0
    %v6415 = vsel %vm6407, %v6402, 0
    %v6418 = vsel %vm6407, %v6403, 0
    %vm6420 = vcmask 1043456
    %v6422 = vsel %vm6420, %v6406, 0
    %6424 = vmatprep.subr.mxu0 0.0
    %6425 = vmatpush1.msra.mxu0 %v6404
    %6426 = vmatprep.subr.mxu0 0.0
    %6427 = vmatpush1.msra.mxu0 %v6405
    %6428 = vmatprep.subr.mxu0 0.0
    %6429 = vmatpush1.msra.mxu0 %v6422
    %6430 = vmatprep.subr.mxu0 0.0
    %6431 = vmatpush1.msra.mxu0 0.0
    %6432 = vmatprep.subr.mxu0 0.0
    %6433 = vmatpush1.msra.mxu0 0.0
    %6434 = vmatprep.subr.mxu0 0.0
    %6435 = vmatpush1.msra.mxu0 0.0
    %6436 = vmatprep.subr.mxu0 0.0
    %6437 = vmatpush1.msra.mxu0 0.0
    %6438 = vmatprep.subr.mxu0 0.0
    %6439 = vmatpush1.msra.mxu0 0.0
    %6440 = vmatprep.subr.mxu0 0.0
    %6441 = vmatpush1.msra.mxu0 0.0
    %6442 = vmatprep.subr.mxu0 0.0
    %6443 = vmatpush1.msra.mxu0 0.0
    %6444 = vmatprep.subr.mxu0 0.0
    %6445 = vmatpush1.msra.mxu0 0.0
    %6446 = vmatprep.subr.mxu0 0.0
    %6447 = vmatpush1.msra.mxu0 0.0
    %6448 = vmatprep.subr.mxu0 0.0
    %6449 = vmatpush1.msra.mxu0 0.0
    %6450 = vmatprep.subr.mxu0 0.0
    %6451 = vmatpush1.msra.mxu0 0.0
    %6452 = vmatprep.subr.mxu0 0.0
    %6453 = vmatpush1.msra.mxu0 0.0
    %6454 = vmatprep.subr.mxu0 0.0
    %6455 = vmatpush1.msra.mxu0 0.0
    %6456 = vmatprep.subr.mxu0 0.0
    %6457 = vmatpush1.msra.mxu0 0.0
    %6458 = vmatprep.subr.mxu0 0.0
    %6459 = vmatpush1.msra.mxu0 0.0
    %6460 = vmatprep.subr.mxu0 0.0
    %6461 = vmatpush1.msra.mxu0 0.0
    %6462 = vmatprep.subr.mxu0 0.0
    %6463 = vmatpush1.msra.mxu0 0.0
    %6464 = vmatprep.subr.mxu0 0.0
    %6465 = vmatpush1.msra.mxu0 0.0
    %6466 = vmatprep.subr.mxu0 0.0
    %6467 = vmatpush1.msra.mxu0 0.0
    %6468 = vmatprep.subr.mxu0 0.0
    %6469 = vmatpush1.msra.mxu0 0.0
    %6470 = vmatprep.subr.mxu0 0.0
    %6471 = vmatpush1.msra.mxu0 0.0
    %6472 = vmatprep.subr.mxu0 0.0
    %6473 = vmatpush1.msra.mxu0 0.0
    %6474 = vmatprep.subr.mxu0 0.0
    %6475 = vmatpush1.msra.mxu0 0.0
    %6476 = vmatprep.subr.mxu0 0.0
    %6477 = vmatpush1.msra.mxu0 0.0
    %6478 = vmatprep.subr.mxu0 0.0
    %6479 = vmatpush1.msra.mxu0 0.0
    %6480 = vmatprep.subr.mxu0 0.0
    %6481 = vmatpush1.msra.mxu0 0.0
    %6482 = vmatprep.subr.mxu0 0.0
    %6483 = vmatpush1.msra.mxu0 0.0
    %6484 = vmatprep.subr.mxu0 0.0
    %6485 = vmatpush1.msra.mxu0 0.0
    %6486 = vmatprep.subr.mxu0 0.0
    %6487 = vmatpush1.msra.mxu0 0.0
    %6488 = vmatprep.mubr.f32.mxu0 0.0
    %6489 = vmatmul.mubr.f32.gmra.mrb[0].mxu0 %v6409
    %v6490 = vpop.f32.mrb[0].mxu0
    %v6491 = vadd.f32 0.0, %v6490
    %v6492 = vpop.f32.mrb[0].mxu0
    %6493 = vmatprep.mubr.f32.mxu0 0.0
    %6494 = vmatmul.mubr.f32.gmra.mrb[0].mxu0 %v6412
    %v6495 = vpop.f32.mrb[0].mxu0
    %v6496 = vadd.f32 0.0, %v6495
    %v6497 = vpop.f32.mrb[0].mxu0
    %6498 = vmatprep.mubr.f32.mxu0 0.0
    %6499 = vmatmul.mubr.f32.gmra.mrb[0].mxu0 %v6415
    %v6500 = vpop.f32.mrb[0].mxu0
    %v6501 = vadd.f32 0.0, %v6500
    %v6502 = vpop.f32.mrb[0].mxu0
    %6503 = vmatprep.mubr.f32.mxu0 0.0
    %6504 = vmatmul.mubr.f32.gmra.mrb[0].mxu0 %v6418
    %v6505 = vpop.f32.mrb[0].mxu0
    %v6506 = vadd.f32 0.0, %v6505
    %v6507 = vpop.f32.mrb[0].mxu0
    %6508 = vdwg.mxu0
    %v6509 = vadd.f32 %v6034, %v6491
    %v6510 = vadd.f32 %v6039, %v6496
    %v6511 = vadd.f32 %v6044, %v6501
    %v6512 = vadd.f32 %v6049, %v6506
    %v6513 = vld [vmem:[%s51] sm:$0x1]
    %v6515 = vlaneseq
    %v6516 = vshrl.u32 %v6515, 7
    %v6517 = vsub.s32 0, %v6516
    %v6518 = vrot.slane %v6513, %v6517
    %v6520 = vadd.f32 %v6509, %v6518
    %v6521 = vadd.f32 %v6510, %v6518
    %v6522 = vadd.f32 %v6511, %v6518
    %v6523 = vadd.f32 %v6512, %v6518
    %v6524 = vld [vmem:[#allocation31] sm:$0xff]
    %v6525 = vld [vmem:[#allocation31 + $0x8] sm:$0xff]
    %v6526 = vld [vmem:[#allocation31 + $0x10] sm:$0xff]
    %v6527 = vld [vmem:[#allocation31 + $0x18] sm:$0xff]
    %v6528 = vld [vmem:[#allocation31 + $0x20] sm:$0xff]
    %v6529 = vld [vmem:[#allocation31 + $0x28] sm:$0xff]
    %v6530 = vld [vmem:[#allocation31 + $0x30] sm:$0xff]
    %v6531 = vld [vmem:[#allocation31 + $0x38] sm:$0xff]
    %v6532 = vld [vmem:[#allocation31 + $0x40] sm:$0xff]
    %v6533 = vld [vmem:[#allocation31 + $0x48] sm:$0xff]
    %v6534 = vld [vmem:[#allocation31 + $0x50] sm:$0xff]
    %v6535 = vld [vmem:[#allocation31 + $0x58] sm:$0xff]
    %v6536 = vld [vmem:[#allocation31 + $0x60] sm:$0xff]
    %v6537 = vld [vmem:[#allocation31 + $0x68] sm:$0xff]
    %v6538 = vld [vmem:[#allocation31 + $0x70] sm:$0xff]
    %v6539 = vld [vmem:[#allocation31 + $0x78] sm:$0xff]
    %v6540 = vld [vmem:[%s55] sm:$0x1]
    %v6542 = vlaneseq
    %v6543 = vshrl.u32 %v6542, 7
    %v6544 = vsub.s32 0, %v6543
    %v6545 = vrot.slane %v6540, %v6544
    %6547 = vmatprep.subr.mxu0 0.0
    %6548 = vmatpush1.msra.mxu0 %v6524
    %6549 = vmatprep.subr.mxu0 0.0
    %6550 = vmatpush1.msra.mxu0 %v6525
    %6551 = vmatprep.subr.mxu0 0.0
    %6552 = vmatpush1.msra.mxu0 %v6526
    %6553 = vmatprep.subr.mxu0 0.0
    %6554 = vmatpush1.msra.mxu0 %v6527
    %6555 = vmatprep.subr.mxu0 0.0
    %6556 = vmatpush1.msra.mxu0 %v6528
    %6557 = vmatprep.subr.mxu0 0.0
    %6558 = vmatpush1.msra.mxu0 %v6529
    %6559 = vmatprep.subr.mxu0 0.0
    %6560 = vmatpush1.msra.mxu0 %v6530
    %6561 = vmatprep.subr.mxu0 0.0
    %6562 = vmatpush1.msra.mxu0 %v6531
    %6563 = vmatprep.subr.mxu0 0.0
    %6564 = vmatpush1.msra.mxu0 %v6532
    %6565 = vmatprep.subr.mxu0 0.0
    %6566 = vmatpush1.msra.mxu0 %v6533
    %6567 = vmatprep.subr.mxu0 0.0
    %6568 = vmatpush1.msra.mxu0 %v6534
    %6569 = vmatprep.subr.mxu0 0.0
    %6570 = vmatpush1.msra.mxu0 %v6535
    %6571 = vmatprep.subr.mxu0 0.0
    %6572 = vmatpush1.msra.mxu0 %v6536
    %6573 = vmatprep.subr.mxu0 0.0
    %6574 = vmatpush1.msra.mxu0 %v6537
    %6575 = vmatprep.subr.mxu0 0.0
    %6576 = vmatpush1.msra.mxu0 %v6538
    %6577 = vmatprep.subr.mxu0 0.0
    %6578 = vmatpush1.msra.mxu0 %v6539
    %6579 = vmatprep.subr.mxu0 0.0
    %6580 = vmatpush1.msra.mxu0 0.0
    %6581 = vmatprep.subr.mxu0 0.0
    %6582 = vmatpush1.msra.mxu0 0.0
    %6583 = vmatprep.subr.mxu0 0.0
    %6584 = vmatpush1.msra.mxu0 0.0
    %6585 = vmatprep.subr.mxu0 0.0
    %6586 = vmatpush1.msra.mxu0 0.0
    %6587 = vmatprep.subr.mxu0 0.0
    %6588 = vmatpush1.msra.mxu0 0.0
    %6589 = vmatprep.subr.mxu0 0.0
    %6590 = vmatpush1.msra.mxu0 0.0
    %6591 = vmatprep.subr.mxu0 0.0
    %6592 = vmatpush1.msra.mxu0 0.0
    %6593 = vmatprep.subr.mxu0 0.0
    %6594 = vmatpush1.msra.mxu0 0.0
    %6595 = vmatprep.subr.mxu0 0.0
    %6596 = vmatpush1.msra.mxu0 0.0
    %6597 = vmatprep.subr.mxu0 0.0
    %6598 = vmatpush1.msra.mxu0 0.0
    %6599 = vmatprep.subr.mxu0 0.0
    %6600 = vmatpush1.msra.mxu0 0.0
    %6601 = vmatprep.subr.mxu0 0.0
    %6602 = vmatpush1.msra.mxu0 0.0
    %6603 = vmatprep.subr.mxu0 0.0
    %6604 = vmatpush1.msra.mxu0 0.0
    %6605 = vmatprep.subr.mxu0 0.0
    %6606 = vmatpush1.msra.mxu0 0.0
    %6607 = vmatprep.subr.mxu0 0.0
    %6608 = vmatpush1.msra.mxu0 0.0
    %6609 = vmatprep.subr.mxu0 0.0
    %6610 = vmatpush1.msra.mxu0 0.0
    %6611 = vmatprep.mubr.f32.mxu0 0.0
    %6612 = vmatmul.mubr.f32.gmra.mrb[0].mxu0 %v6520
    %v6613 = vpop.f32.mrb[0].mxu0
    %v6614 = vadd.f32 %v6545, %v6613
    %v6615 = vpop.f32.mrb[0].mxu0
    %6616 = vmatprep.mubr.f32.mxu0 0.0
    %6617 = vmatmul.mubr.f32.gmra.mrb[0].mxu0 %v6521
    %v6618 = vpop.f32.mrb[0].mxu0
    %v6619 = vadd.f32 %v6545, %v6618
    %v6620 = vpop.f32.mrb[0].mxu0
    %6621 = vmatprep.mubr.f32.mxu0 0.0
    %6622 = vmatmul.mubr.f32.gmra.mrb[0].mxu0 %v6522
    %v6623 = vpop.f32.mrb[0].mxu0
    %v6624 = vadd.f32 %v6545, %v6623
    %v6625 = vpop.f32.mrb[0].mxu0
    %6626 = vmatprep.mubr.f32.mxu0 0.0
    %6627 = vmatmul.mubr.f32.gmra.mrb[0].mxu0 %v6523
    %v6628 = vpop.f32.mrb[0].mxu0
    %v6629 = vadd.f32 %v6545, %v6628
    %v6630 = vpop.f32.mrb[0].mxu0
    %6631 = vdwg.mxu0
    %v6632 = vmax.f32 %v6614, 0.0
    %v6633 = vmax.f32 %v6619, 0.0
    %v6634 = vmax.f32 %v6624, 0.0
    %v6635 = vmax.f32 %v6629, 0.0
    %v6636 = vld [vmem:[#allocation32] sm:$0xff]
    %v6637 = vld [vmem:[#allocation32 + $0x8] sm:$0xff]
    %v6638 = vld [vmem:[#allocation32 + $0x10] sm:$0xff]
    %v6639 = vld [vmem:[#allocation32 + $0x18] sm:$0xff]
    %v6640 = vld [vmem:[#allocation32 + $0x20] sm:$0xff]
    %v6641 = vld [vmem:[#allocation32 + $0x28] sm:$0xff]
    %v6642 = vld [vmem:[#allocation32 + $0x30] sm:$0xff]
    %v6643 = vld [vmem:[#allocation32 + $0x38] sm:$0xff]
    %v6644 = vld [vmem:[#allocation32 + $0x40] sm:$0xff]
    %v6645 = vld [vmem:[#allocation32 + $0x48] sm:$0xff]
    %v6646 = vld [vmem:[#allocation32 + $0x50] sm:$0xff]
    %v6647 = vld [vmem:[#allocation32 + $0x58] sm:$0xff]
    %v6648 = vld [vmem:[#allocation32 + $0x60] sm:$0xff]
    %v6649 = vld [vmem:[#allocation32 + $0x68] sm:$0xff]
    %v6650 = vld [vmem:[#allocation32 + $0x70] sm:$0xff]
    %v6651 = vld [vmem:[#allocation32 + $0x78] sm:$0xff]
    %v6652 = vld [vmem:[%s59] sm:$0x1]
    %v6654 = vlaneseq
    %v6655 = vshrl.u32 %v6654, 7
    %v6656 = vsub.s32 0, %v6655
    %v6657 = vrot.slane %v6652, %v6656
    %6659 = vmatprep.subr.mxu0 0.0
    %6660 = vmatpush1.msra.mxu0 %v6636
    %6661 = vmatprep.subr.mxu0 0.0
    %6662 = vmatpush1.msra.mxu0 %v6637
    %6663 = vmatprep.subr.mxu0 0.0
    %6664 = vmatpush1.msra.mxu0 %v6638
    %6665 = vmatprep.subr.mxu0 0.0
    %6666 = vmatpush1.msra.mxu0 %v6639
    %6667 = vmatprep.subr.mxu0 0.0
    %6668 = vmatpush1.msra.mxu0 %v6640
    %6669 = vmatprep.subr.mxu0 0.0
    %6670 = vmatpush1.msra.mxu0 %v6641
    %6671 = vmatprep.subr.mxu0 0.0
    %6672 = vmatpush1.msra.mxu0 %v6642
    %6673 = vmatprep.subr.mxu0 0.0
    %6674 = vmatpush1.msra.mxu0 %v6643
    %6675 = vmatprep.subr.mxu0 0.0
    %6676 = vmatpush1.msra.mxu0 %v6644
    %6677 = vmatprep.subr.mxu0 0.0
    %6678 = vmatpush1.msra.mxu0 %v6645
    %6679 = vmatprep.subr.mxu0 0.0
    %6680 = vmatpush1.msra.mxu0 %v6646
    %6681 = vmatprep.subr.mxu0 0.0
    %6682 = vmatpush1.msra.mxu0 %v6647
    %6683 = vmatprep.subr.mxu0 0.0
    %6684 = vmatpush1.msra.mxu0 %v6648
    %6685 = vmatprep.subr.mxu0 0.0
    %6686 = vmatpush1.msra.mxu0 %v6649
    %6687 = vmatprep.subr.mxu0 0.0
    %6688 = vmatpush1.msra.mxu0 %v6650
    %6689 = vmatprep.subr.mxu0 0.0
    %6690 = vmatpush1.msra.mxu0 %v6651
    %6691 = vmatprep.subr.mxu0 0.0
    %6692 = vmatpush1.msra.mxu0 0.0
    %6693 = vmatprep.subr.mxu0 0.0
    %6694 = vmatpush1.msra.mxu0 0.0
    %6695 = vmatprep.subr.mxu0 0.0
    %6696 = vmatpush1.msra.mxu0 0.0
    %6697 = vmatprep.subr.mxu0 0.0
    %6698 = vmatpush1.msra.mxu0 0.0
    %6699 = vmatprep.subr.mxu0 0.0
    %6700 = vmatpush1.msra.mxu0 0.0
    %6701 = vmatprep.subr.mxu0 0.0
    %6702 = vmatpush1.msra.mxu0 0.0
    %6703 = vmatprep.subr.mxu0 0.0
    %6704 = vmatpush1.msra.mxu0 0.0
    %6705 = vmatprep.subr.mxu0 0.0
    %6706 = vmatpush1.msra.mxu0 0.0
    %6707 = vmatprep.subr.mxu0 0.0
    %6708 = vmatpush1.msra.mxu0 0.0
    %6709 = vmatprep.subr.mxu0 0.0
    %6710 = vmatpush1.msra.mxu0 0.0
    %6711 = vmatprep.subr.mxu0 0.0
    %6712 = vmatpush1.msra.mxu0 0.0
    %6713 = vmatprep.subr.mxu0 0.0
    %6714 = vmatpush1.msra.mxu0 0.0
    %6715 = vmatprep.subr.mxu0 0.0
    %6716 = vmatpush1.msra.mxu0 0.0
    %6717 = vmatprep.subr.mxu0 0.0
    %6718 = vmatpush1.msra.mxu0 0.0
    %6719 = vmatprep.subr.mxu0 0.0
    %6720 = vmatpush1.msra.mxu0 0.0
    %6721 = vmatprep.subr.mxu0 0.0
    %6722 = vmatpush1.msra.mxu0 0.0
    %6723 = vmatprep.mubr.f32.mxu0 0.0
    %6724 = vmatmul.mubr.f32.gmra.mrb[0].mxu0 %v6632
    %v6725 = vpop.f32.mrb[0].mxu0
    %v6726 = vadd.f32 %v6657, %v6725
    %v6727 = vpop.f32.mrb[0].mxu0
    %6728 = vmatprep.mubr.f32.mxu0 0.0
    %6729 = vmatmul.mubr.f32.gmra.mrb[0].mxu0 %v6633
    %v6730 = vpop.f32.mrb[0].mxu0
    %v6731 = vadd.f32 %v6657, %v6730
    %v6732 = vpop.f32.mrb[0].mxu0
    %6733 = vmatprep.mubr.f32.mxu0 0.0
    %6734 = vmatmul.mubr.f32.gmra.mrb[0].mxu0 %v6634
    %v6735 = vpop.f32.mrb[0].mxu0
    %v6736 = vadd.f32 %v6657, %v6735
    %v6737 = vpop.f32.mrb[0].mxu0
    %6738 = vmatprep.mubr.f32.mxu0 0.0
    %6739 = vmatmul.mubr.f32.gmra.mrb[0].mxu0 %v6635
    %v6740 = vpop.f32.mrb[0].mxu0
    %v6741 = vadd.f32 %v6657, %v6740
    %v6742 = vpop.f32.mrb[0].mxu0
    %6743 = vdwg.mxu0
    %6744 = vst [vmem:[#allocation38] sm:$0xff] %v6726
    %6745 = vst [vmem:[#allocation38 + $0x8] sm:$0xff] %v6731
    %6746 = vst [vmem:[#allocation38 + $0x10] sm:$0xff] %v6736
    %6747 = vst [vmem:[#allocation38 + $0x18] sm:$0xff] %v6741
    %v6748 = vld [vmem:[#allocation34] sm:$0xff]
    %v6749 = vld [vmem:[#allocation34 + $0x8] sm:$0xff]
    %v6750 = vld [vmem:[#allocation34 + $0x10] sm:$0xff]
    %v6751 = vld [vmem:[#allocation34 + $0x18] sm:$0xff]
    %v6752 = vld [vmem:[#allocation34 + $0x20] sm:$0xff]
    %v6753 = vld [vmem:[#allocation34 + $0x28] sm:$0xff]
    %v6754 = vld [vmem:[#allocation34 + $0x30] sm:$0xff]
    %v6755 = vld [vmem:[#allocation34 + $0x38] sm:$0xff]
    %v6756 = vld [vmem:[#allocation34 + $0x40] sm:$0xff]
    %v6757 = vld [vmem:[#allocation34 + $0x48] sm:$0xff]
    %v6758 = vld [vmem:[#allocation34 + $0x50] sm:$0xff]
    %v6759 = vld [vmem:[#allocation34 + $0x58] sm:$0xff]
    %v6760 = vld [vmem:[#allocation34 + $0x60] sm:$0xff]
    %v6761 = vld [vmem:[#allocation34 + $0x68] sm:$0xff]
    %v6762 = vld [vmem:[#allocation34 + $0x70] sm:$0xff]
    %v6763 = vld [vmem:[#allocation34 + $0x78] sm:$0xff]
    %v6764 = vld [vmem:[%s63] sm:$0x1]
    %v6766 = vlaneseq
    %v6767 = vshrl.u32 %v6766, 7
    %v6768 = vsub.s32 0, %v6767
    %v6769 = vrot.slane %v6764, %v6768
    %6771 = vmatprep.subr.mxu0 0.0
    %6772 = vmatpush1.msra.mxu0 %v6748
    %6773 = vmatprep.subr.mxu0 0.0
    %6774 = vmatpush1.msra.mxu0 %v6749
    %6775 = vmatprep.subr.mxu0 0.0
    %6776 = vmatpush1.msra.mxu0 %v6750
    %6777 = vmatprep.subr.mxu0 0.0
    %6778 = vmatpush1.msra.mxu0 %v6751
    %6779 = vmatprep.subr.mxu0 0.0
    %6780 = vmatpush1.msra.mxu0 %v6752
    %6781 = vmatprep.subr.mxu0 0.0
    %6782 = vmatpush1.msra.mxu0 %v6753
    %6783 = vmatprep.subr.mxu0 0.0
    %6784 = vmatpush1.msra.mxu0 %v6754
    %6785 = vmatprep.subr.mxu0 0.0
    %6786 = vmatpush1.msra.mxu0 %v6755
    %6787 = vmatprep.subr.mxu0 0.0
    %6788 = vmatpush1.msra.mxu0 %v6756
    %6789 = vmatprep.subr.mxu0 0.0
    %6790 = vmatpush1.msra.mxu0 %v6757
    %6791 = vmatprep.subr.mxu0 0.0
    %6792 = vmatpush1.msra.mxu0 %v6758
    %6793 = vmatprep.subr.mxu0 0.0
    %6794 = vmatpush1.msra.mxu0 %v6759
    %6795 = vmatprep.subr.mxu0 0.0
    %6796 = vmatpush1.msra.mxu0 %v6760
    %6797 = vmatprep.subr.mxu0 0.0
    %6798 = vmatpush1.msra.mxu0 %v6761
    %6799 = vmatprep.subr.mxu0 0.0
    %6800 = vmatpush1.msra.mxu0 %v6762
    %6801 = vmatprep.subr.mxu0 0.0
    %6802 = vmatpush1.msra.mxu0 %v6763
    %6803 = vmatprep.subr.mxu0 0.0
    %6804 = vmatpush1.msra.mxu0 0.0
    %6805 = vmatprep.subr.mxu0 0.0
    %6806 = vmatpush1.msra.mxu0 0.0
    %6807 = vmatprep.subr.mxu0 0.0
    %6808 = vmatpush1.msra.mxu0 0.0
    %6809 = vmatprep.subr.mxu0 0.0
    %6810 = vmatpush1.msra.mxu0 0.0
    %6811 = vmatprep.subr.mxu0 0.0
    %6812 = vmatpush1.msra.mxu0 0.0
    %6813 = vmatprep.subr.mxu0 0.0
    %6814 = vmatpush1.msra.mxu0 0.0
    %6815 = vmatprep.subr.mxu0 0.0
    %6816 = vmatpush1.msra.mxu0 0.0
    %6817 = vmatprep.subr.mxu0 0.0
    %6818 = vmatpush1.msra.mxu0 0.0
    %6819 = vmatprep.subr.mxu0 0.0
    %6820 = vmatpush1.msra.mxu0 0.0
    %6821 = vmatprep.subr.mxu0 0.0
    %6822 = vmatpush1.msra.mxu0 0.0
    %6823 = vmatprep.subr.mxu0 0.0
    %6824 = vmatpush1.msra.mxu0 0.0
    %6825 = vmatprep.subr.mxu0 0.0
    %6826 = vmatpush1.msra.mxu0 0.0
    %6827 = vmatprep.subr.mxu0 0.0
    %6828 = vmatpush1.msra.mxu0 0.0
    %6829 = vmatprep.subr.mxu0 0.0
    %6830 = vmatpush1.msra.mxu0 0.0
    %6831 = vmatprep.subr.mxu0 0.0
    %6832 = vmatpush1.msra.mxu0 0.0
    %6833 = vmatprep.subr.mxu0 0.0
    %6834 = vmatpush1.msra.mxu0 0.0
    %6835 = vmatprep.mubr.f32.mxu0 0.0
    %6836 = vmatmul.mubr.f32.gmra.mrb[0].mxu0 %v6398
    %v6837 = vpop.f32.mrb[0].mxu0
    %v6838 = vadd.f32 %v6769, %v6837
    %v6839 = vpop.f32.mrb[0].mxu0
    %6840 = vmatprep.mubr.f32.mxu0 0.0
    %6841 = vmatmul.mubr.f32.gmra.mrb[0].mxu0 %v6399
    %v6842 = vpop.f32.mrb[0].mxu0
    %v6843 = vadd.f32 %v6769, %v6842
    %v6844 = vpop.f32.mrb[0].mxu0
    %6845 = vdwg.mxu0
    %v6846 = vmax.f32 %v6838, 0.0
    %v6847 = vmax.f32 %v6843, 0.0
    %v6848 = vld [vmem:[#allocation35] sm:$0xff]
    %v6849 = vld [vmem:[#allocation35 + $0x8] sm:$0xff]
    %v6850 = vld [vmem:[#allocation35 + $0x10] sm:$0xff]
    %v6851 = vld [vmem:[#allocation35 + $0x18] sm:$0xff]
    %v6852 = vld [vmem:[#allocation35 + $0x20] sm:$0xff]
    %v6853 = vld [vmem:[#allocation35 + $0x28] sm:$0xff]
    %v6854 = vld [vmem:[#allocation35 + $0x30] sm:$0xff]
    %v6855 = vld [vmem:[#allocation35 + $0x38] sm:$0xff]
    %v6856 = vld [vmem:[#allocation35 + $0x40] sm:$0xff]
    %v6857 = vld [vmem:[#allocation35 + $0x48] sm:$0xff]
    %v6858 = vld [vmem:[#allocation35 + $0x50] sm:$0xff]
    %v6859 = vld [vmem:[#allocation35 + $0x58] sm:$0xff]
    %v6860 = vld [vmem:[#allocation35 + $0x60] sm:$0xff]
    %v6861 = vld [vmem:[#allocation35 + $0x68] sm:$0xff]
    %v6862 = vld [vmem:[#allocation35 + $0x70] sm:$0xff]
    %v6863 = vld [vmem:[#allocation35 + $0x78] sm:$0xff]
    %v6864 = vld [vmem:[%s67] sm:$0x1]
    %v6866 = vlaneseq
    %v6867 = vshrl.u32 %v6866, 7
    %v6868 = vsub.s32 0, %v6867
    %v6869 = vrot.slane %v6864, %v6868
    %6871 = vmatprep.subr.mxu0 0.0
    %6872 = vmatpush1.msra.mxu0 %v6848
    %6873 = vmatprep.subr.mxu0 0.0
    %6874 = vmatpush1.msra.mxu0 %v6849
    %6875 = vmatprep.subr.mxu0 0.0
    %6876 = vmatpush1.msra.mxu0 %v6850
    %6877 = vmatprep.subr.mxu0 0.0
    %6878 = vmatpush1.msra.mxu0 %v6851
    %6879 = vmatprep.subr.mxu0 0.0
    %6880 = vmatpush1.msra.mxu0 %v6852
    %6881 = vmatprep.subr.mxu0 0.0
    %6882 = vmatpush1.msra.mxu0 %v6853
    %6883 = vmatprep.subr.mxu0 0.0
    %6884 = vmatpush1.msra.mxu0 %v6854
    %6885 = vmatprep.subr.mxu0 0.0
    %6886 = vmatpush1.msra.mxu0 %v6855
    %6887 = vmatprep.subr.mxu0 0.0
    %6888 = vmatpush1.msra.mxu0 %v6856
    %6889 = vmatprep.subr.mxu0 0.0
    %6890 = vmatpush1.msra.mxu0 %v6857
    %6891 = vmatprep.subr.mxu0 0.0
    %6892 = vmatpush1.msra.mxu0 %v6858
    %6893 = vmatprep.subr.mxu0 0.0
    %6894 = vmatpush1.msra.mxu0 %v6859
    %6895 = vmatprep.subr.mxu0 0.0
    %6896 = vmatpush1.msra.mxu0 %v6860
    %6897 = vmatprep.subr.mxu0 0.0
    %6898 = vmatpush1.msra.mxu0 %v6861
    %6899 = vmatprep.subr.mxu0 0.0
    %6900 = vmatpush1.msra.mxu0 %v6862
    %6901 = vmatprep.subr.mxu0 0.0
    %6902 = vmatpush1.msra.mxu0 %v6863
    %6903 = vmatprep.subr.mxu0 0.0
    %6904 = vmatpush1.msra.mxu0 0.0
    %6905 = vmatprep.subr.mxu0 0.0
    %6906 = vmatpush1.msra.mxu0 0.0
    %6907 = vmatprep.subr.mxu0 0.0
    %6908 = vmatpush1.msra.mxu0 0.0
    %6909 = vmatprep.subr.mxu0 0.0
    %6910 = vmatpush1.msra.mxu0 0.0
    %6911 = vmatprep.subr.mxu0 0.0
    %6912 = vmatpush1.msra.mxu0 0.0
    %6913 = vmatprep.subr.mxu0 0.0
    %6914 = vmatpush1.msra.mxu0 0.0
    %6915 = vmatprep.subr.mxu0 0.0
    %6916 = vmatpush1.msra.mxu0 0.0
    %6917 = vmatprep.subr.mxu0 0.0
    %6918 = vmatpush1.msra.mxu0 0.0
    %6919 = vmatprep.subr.mxu0 0.0
    %6920 = vmatpush1.msra.mxu0 0.0
    %6921 = vmatprep.subr.mxu0 0.0
    %6922 = vmatpush1.msra.mxu0 0.0
    %6923 = vmatprep.subr.mxu0 0.0
    %6924 = vmatpush1.msra.mxu0 0.0
    %6925 = vmatprep.subr.mxu0 0.0
    %6926 = vmatpush1.msra.mxu0 0.0
    %6927 = vmatprep.subr.mxu0 0.0
    %6928 = vmatpush1.msra.mxu0 0.0
    %6929 = vmatprep.subr.mxu0 0.0
    %6930 = vmatpush1.msra.mxu0 0.0
    %6931 = vmatprep.subr.mxu0 0.0
    %6932 = vmatpush1.msra.mxu0 0.0
    %6933 = vmatprep.subr.mxu0 0.0
    %6934 = vmatpush1.msra.mxu0 0.0
    %6935 = vmatprep.mubr.f32.mxu0 0.0
    %6936 = vmatmul.mubr.f32.gmra.mrb[0].mxu0 %v6846
    %v6937 = vpop.f32.mrb[0].mxu0
    %v6938 = vadd.f32 %v6869, %v6937
    %v6939 = vpop.f32.mrb[0].mxu0
    %6940 = vmatprep.mubr.f32.mxu0 0.0
    %6941 = vmatmul.mubr.f32.gmra.mrb[0].mxu0 %v6847
    %v6942 = vpop.f32.mrb[0].mxu0
    %v6943 = vadd.f32 %v6869, %v6942
    %v6944 = vpop.f32.mrb[0].mxu0
    %6945 = vdwg.mxu0
    %v6946 = vcvt.s32.f32 %v3209
    %vm6947 = vcmp.ge.s32.totalorder %v3209, 1
    %vm6948 = vcmp.lt.s32.totalorder %v3209, 9
    %vm6949 = vmand %vm6947, %vm6948
    %v6950 = vsel %vm6949, %v6726, -1e+30
    %v6951 = vsel %vm6949, %v6731, -1e+30
    %v6952 = vsel %vm6949, %v6736, -1e+30
    %v6953 = vsel %vm6949, %v6741, -1e+30
    %6954 = vmax.xlane.f32.xlu0 %v6950
    %v6955 = vpop.xlane.xlu0 %6954
    %6956 = vmax.xlane.f32.xlu0 %v6951
    %v6957 = vpop.xlane.xlu0 %6956
    %6958 = vmax.xlane.f32.xlu0 %v6952
    %v6959 = vpop.xlane.xlu0 %6958
    %6960 = vmax.xlane.f32.xlu0 %v6953
    %v6961 = vpop.xlane.xlu0 %6960
    %vm6962 = vcmp.ge.f32.partialorder %v6950, %v6955
    %vm6963 = vcmp.ge.f32.partialorder %v6951, %v6957
    %vm6964 = vcmp.ge.f32.partialorder %v6952, %v6959
    %vm6965 = vcmp.ge.f32.partialorder %v6953, %v6961
    %v6966 = vsel %vm6962, %v6946, 1e+09
    %v6967 = vsel %vm6963, %v6946, 1e+09
    %v6968 = vsel %vm6964, %v6946, 1e+09
    %v6969 = vsel %vm6965, %v6946, 1e+09
    %6970 = vmin.xlane.f32.xlu0 %v6966
    %v6971 = vpop.xlane.xlu0 %6970
    %6972 = vmin.xlane.f32.xlu0 %v6967
    %v6973 = vpop.xlane.xlu0 %6972
    %6974 = vmin.xlane.f32.xlu0 %v6968
    %v6975 = vpop.xlane.xlu0 %6974
    %6976 = vmin.xlane.f32.xlu0 %v6969
    %v6977 = vpop.xlane.xlu0 %6976
    %v6978 = vmul.f32 %v6971, 9.0
    %v6979 = vmul.f32 %v6973, 9.0
    %v6980 = vadd.f32 %v6978, %v6975
    %v6981 = vadd.f32 %v6979, %v6977
    %vm6982 = vcmp.eq.f32.partialorder %v6946, %v6980
    %vm6983 = vcmp.eq.f32.partialorder %v6946, %v6981
    %v6984 = vsel %vm6982, 1, 0
    %v6985 = vsel %vm6983, 1, 0
    %v6986 = vcvt.s32.f32 %v6984
    %v6987 = vcvt.s32.f32 %v6985
    %v6988 = vld [vmem:[#allocation37] sm:$0xff]
    %v6989 = vld [vmem:[#allocation37 + $0x8] sm:$0xff]
    %v6990 = vld [vmem:[#allocation37 + $0x10] sm:$0xff]
    %v6991 = vld [vmem:[#allocation37 + $0x18] sm:$0xff]
    %v6992 = vld [vmem:[#allocation37 + $0x20] sm:$0xff]
    %v6993 = vld [vmem:[#allocation37 + $0x28] sm:$0xff]
    %v6994 = vld [vmem:[#allocation37 + $0x30] sm:$0xff]
    %v6995 = vld [vmem:[#allocation37 + $0x38] sm:$0xff]
    %v6996 = vld [vmem:[#allocation37 + $0x40] sm:$0xff]
    %v6997 = vld [vmem:[#allocation37 + $0x48] sm:$0xff]
    %v6998 = vld [vmem:[#allocation37 + $0x50] sm:$0xff]
    %v6999 = vld [vmem:[#allocation37 + $0x58] sm:$0xff]
    %v7000 = vld [vmem:[#allocation37 + $0x60] sm:$0xff]
    %v7001 = vld [vmem:[#allocation37 + $0x68] sm:$0xff]
    %v7002 = vld [vmem:[#allocation37 + $0x70] sm:$0xff]
    %v7003 = vld [vmem:[#allocation37 + $0x78] sm:$0xff]
    %7004 = vmatprep.subr.mxu0 0.0
    %7005 = vmatpush1.msra.mxu0 %v6988
    %7006 = vmatprep.subr.mxu0 0.0
    %7007 = vmatpush1.msra.mxu0 %v6989
    %7008 = vmatprep.subr.mxu0 0.0
    %7009 = vmatpush1.msra.mxu0 %v6990
    %7010 = vmatprep.subr.mxu0 0.0
    %7011 = vmatpush1.msra.mxu0 %v6991
    %7012 = vmatprep.subr.mxu0 0.0
    %7013 = vmatpush1.msra.mxu0 %v6992
    %7014 = vmatprep.subr.mxu0 0.0
    %7015 = vmatpush1.msra.mxu0 %v6993
    %7016 = vmatprep.subr.mxu0 0.0
    %7017 = vmatpush1.msra.mxu0 %v6994
    %7018 = vmatprep.subr.mxu0 0.0
    %7019 = vmatpush1.msra.mxu0 %v6995
    %7020 = vmatprep.subr.mxu0 0.0
    %7021 = vmatpush1.msra.mxu0 %v6996
    %7022 = vmatprep.subr.mxu0 0.0
    %7023 = vmatpush1.msra.mxu0 %v6997
    %7024 = vmatprep.subr.mxu0 0.0
    %7025 = vmatpush1.msra.mxu0 %v6998
    %7026 = vmatprep.subr.mxu0 0.0
    %7027 = vmatpush1.msra.mxu0 %v6999
    %7028 = vmatprep.subr.mxu0 0.0
    %7029 = vmatpush1.msra.mxu0 %v7000
    %7030 = vmatprep.subr.mxu0 0.0
    %7031 = vmatpush1.msra.mxu0 %v7001
    %7032 = vmatprep.subr.mxu0 0.0
    %7033 = vmatpush1.msra.mxu0 %v7002
    %7034 = vmatprep.subr.mxu0 0.0
    %7035 = vmatpush1.msra.mxu0 %v7003
    %7036 = vmatprep.subr.mxu0 0.0
    %7037 = vmatpush1.msra.mxu0 0.0
    %7038 = vmatprep.subr.mxu0 0.0
    %7039 = vmatpush1.msra.mxu0 0.0
    %7040 = vmatprep.subr.mxu0 0.0
    %7041 = vmatpush1.msra.mxu0 0.0
    %7042 = vmatprep.subr.mxu0 0.0
    %7043 = vmatpush1.msra.mxu0 0.0
    %7044 = vmatprep.subr.mxu0 0.0
    %7045 = vmatpush1.msra.mxu0 0.0
    %7046 = vmatprep.subr.mxu0 0.0
    %7047 = vmatpush1.msra.mxu0 0.0
    %7048 = vmatprep.subr.mxu0 0.0
    %7049 = vmatpush1.msra.mxu0 0.0
    %7050 = vmatprep.subr.mxu0 0.0
    %7051 = vmatpush1.msra.mxu0 0.0
    %7052 = vmatprep.subr.mxu0 0.0
    %7053 = vmatpush1.msra.mxu0 0.0
    %7054 = vmatprep.subr.mxu0 0.0
    %7055 = vmatpush1.msra.mxu0 0.0
    %7056 = vmatprep.subr.mxu0 0.0
    %7057 = vmatpush1.msra.mxu0 0.0
    %7058 = vmatprep.subr.mxu0 0.0
    %7059 = vmatpush1.msra.mxu0 0.0
    %7060 = vmatprep.subr.mxu0 0.0
    %7061 = vmatpush1.msra.mxu0 0.0
    %7062 = vmatprep.subr.mxu0 0.0
    %7063 = vmatpush1.msra.mxu0 0.0
    %7064 = vmatprep.subr.mxu0 0.0
    %7065 = vmatpush1.msra.mxu0 0.0
    %7066 = vmatprep.subr.mxu0 0.0
    %7067 = vmatpush1.msra.mxu0 0.0
    %7068 = vmatprep.mubr.f32.mxu0 0.0
    %7069 = vmatmul.mubr.f32.gmra.mrb[0].mxu0 %v6986
    %v7070 = vpop.f32.mrb[0].mxu0
    %v7071 = vadd.f32 0.0, %v7070
    %v7072 = vpop.f32.mrb[0].mxu0
    %7073 = vmatprep.mubr.f32.mxu0 0.0
    %7074 = vmatmul.mubr.f32.gmra.mrb[0].mxu0 %v6987
    %v7075 = vpop.f32.mrb[0].mxu0
    %v7076 = vadd.f32 0.0, %v7075
    %v7077 = vpop.f32.mrb[0].mxu0
    %7078 = vdwg.mxu0
    %v7079 = vadd.f32 %v6938, %v7071
    %v7080 = vadd.f32 %v6943, %v7076
    %7081 = vst [vmem:[#allocation39] sm:$0xff] %v7079
    %7082 = vst [vmem:[#allocation39 + $0x8] sm:$0xff] %v7080
    // Predicated region
    $region234: #{tpu_custom_call.1} parent=1 // pred_check
      _
    $region235: #{tpu_custom_call.1} parent=1 // pred_check_branch
      %7084 = sbr.rel (0) target = $region237
    $region236: #{tpu_custom_call.1} parent=1 // pred_region
      %s7086 = ssub.s32 512, 512
      %7087 = vsyncadd [#allocation4], %s7086
      %s7088 = sshll.u32 [#allocation38], 4
      %s7089 = int_to_ptr.vmem [resolvable:$true] %s7088
      %7094 = dma.vmem_to_hbm [thread:$0]  %s7089, 512, %s71, [#allocation4], 128, 128, 8
    $region237: #{tpu_custom_call.1} parent=1 // pred_fallthru
      _
    // Predicated region
    $region238: #{tpu_custom_call.1} parent=1 // pred_check
      _
    $region239: #{tpu_custom_call.1} parent=1 // pred_check_branch
      %7096 = sbr.rel (0) target = $region241
    $region240: #{tpu_custom_call.1} parent=1 // pred_region
      %s7098 = ssub.s32 256, 256
      %7099 = vsyncadd [#allocation40], %s7098
      %s7100 = sshll.u32 [#allocation39], 4
      %s7101 = int_to_ptr.vmem [resolvable:$true] %s7100
      %7106 = dma.vmem_to_hbm [thread:$0]  %s7101, 256, %s73, [#allocation40], 128, 128, 8
    $region241: #{tpu_custom_call.1} parent=1 // pred_fallthru
      _
    // Predicated region
    $region242: #{tpu_custom_call.1} parent=1 // pred_check
      _
    $region243: #{tpu_custom_call.1} parent=1 // pred_check_branch
      %7108 = sbr.rel (0) target = $region245
    $region244: #{tpu_custom_call.1} parent=1 // pred_region
      %7109 = dma.done [#allocation4], 512
    $region245: #{tpu_custom_call.1} parent=1 // pred_fallthru
      _
    // Predicated region
    $region246: #{tpu_custom_call.1} parent=1 // pred_check
      _
    $region247: #{tpu_custom_call.1} parent=1 // pred_check_branch
      %7111 = sbr.rel (0) target = $region249
    $region248: #{tpu_custom_call.1} parent=1 // pred_region
      %7112 = dma.done [#allocation40], 256
    $region249: #{tpu_custom_call.1} parent=1 // pred_fallthru
      _
    %7113 = vsyncpa [#allocation3], 1
    %7114 = vsyncpa [#allocation6], 1
    %7115 = vsyncpa [#allocation9], 1
    %7116 = vsyncpa [#allocation12], 1
    %7117 = vsyncpa [#allocation15], 1
    %7118 = vsyncpa [#allocation18], 1
    %7119 = vsyncpa [#allocation21], 1
    %7120 = vsyncpa [#allocation24], 1
    %7121 = vsyncpa [#allocation27], 1
    %7122 = vsyncpa [#allocation30], 1
    %7123 = vsyncpa [#allocation33], 1
    %7124 = vsyncpa [#allocation36], 1
    %7125 = vsyncpa [#allocation4], 1
    %7126 = vsyncpa [#allocation40], 1

</llo_original>
